<compile_context>
chip_gen: v6e
topology: v6e:2x2x1
jax: 0.10.0
libtpu: 0.0.40
codegen_flags: <defaults>
</compile_context>

<pallas_src>
import functools

import numpy as np
import jax
import jax.numpy as jnp
from jax import lax
from jax.experimental import pallas as pl
from jax.experimental.pallas import tpu as pltpu


# ----------------------------------------------------------------------------
# Host-side helpers (trace-time constants)
# ----------------------------------------------------------------------------
def _round_up(v, m):
    return ((v + m - 1) // m) * m


_TAPS = [(kh - 1, kw - 1) for kh in range(4) for kw in range(3)]  # 'same' (4,3)


def _pool_select(H, W):
    """0/1 gather: pick the top-left corner of each 2x2 window of a dense
    (H*W) map into a dense (H/2*W/2) map (corner already holds the 2x2 max)."""
    Ho, Wo = H // 2, W // 2
    S = np.zeros((Ho * Wo, H * W), np.float32)
    r = np.arange(Ho * Wo)
    a, b = r // Wo, r % Wo
    S[r, (2 * a) * W + 2 * b] = 1.0
    return S


def _up_select(H, W):
    """0/1 gather implementing nearest-neighbour 2x upsample of a dense (H*W)
    map into a dense (2H*2W) map."""
    Ho, Wo = 2 * H, 2 * W
    D = np.zeros((Ho * Wo, H * W), np.float32)
    r = np.arange(Ho * Wo)
    i, j = r // Wo, r % Wo
    D[r, (i // 2) * W + (j // 2)] = 1.0
    return D


def _premask(Hc, Wc, cout):
    """Pre-mask applied to the per-tap partial-sum matrix PP (M, 12*cout):
    entry [r, t*cout:(t+1)*cout] is 1 iff PP row r, read back by output pixel
    m = r - d_t (d_t = dh*Wc+dw), corresponds to an in-image tap.  Together
    with zeroed margins this reproduces PyTorch 'same' padding exactly."""
    M = Hc * Wc
    pm = np.zeros((M, 12 * cout), np.float32)
    m = np.arange(M)
    i, j = m // Wc, m % Wc
    for t, (dh, dw) in enumerate(_TAPS):
        d = dh * Wc + dw
        ok = (i + dh >= 0) & (i + dh < Hc) & (j + dw >= 0) & (j + dw < Wc)
        src = m + d
        sel = ok & (src >= 0) & (src < M)
        pm[src[sel], t * cout:(t + 1) * cout] = 1.0
    return pm


def _im2col_1ch(x, H, W):
    """(N, H, W) -> (N, H*W, 16): the 12 'same'-padded taps of the 1-channel
    input (t = kh*3 + kw), zero-padded to 16 lanes.  Pure layout plumbing."""
    xp = jnp.pad(x, ((0, 0), (1, 2), (1, 1)))
    cols = [xp[:, kh:kh + H, kw:kw + W] for kh in range(4) for kw in range(3)]
    col = jnp.stack(cols, axis=-1).reshape(x.shape[0], H * W, 12)
    return jnp.pad(col, ((0, 0), (0, 0), (0, 4)))


# ----------------------------------------------------------------------------
# Fused Pallas kernel: whole ConvAE forward for one image per grid step
# ----------------------------------------------------------------------------
def _convae_kernel(xcol_ref,
                   w1, b1, w2, b2, w3, b3, w4, b4,
                   w5, b5, w6, b6, w7, b7, w8, b8,
                   pm_half, pm_quar, pm_full,
                   sel_p1, sel_p2, sel_u1, sel_u2,
                   o_ref, buf,
                   *, H, W, off):
    f32 = jnp.float32
    HW = H * W
    rows, lanes = buf.shape

    # Per-step hygiene: zero only the never-written head/tail margin rows so
    # unmasked pool reads and off-the-top conv reads return exact zeros.
    buf[pl.ds(0, off), :] = jnp.zeros((off, lanes), f32)
    buf[pl.ds(off + HW, rows - off - HW), :] = jnp.zeros(
        (rows - off - HW, lanes), f32)

    def conv_pp(a, Hc, Wc, cout, w_ref, b_ref, pm_ref, act):
        """'same' (4,3) conv: ONE (M,32)x(32,12*cout) matmul producing all 12
        per-tap partial sums, pre-masked, stashed into the row buffer, then 12
        static shifted reads + adds (shift-after-matmul im2col variant)."""
        M = Hc * Wc
        k = 12 * cout
        pp = jnp.dot(a, w_ref[...], preferred_element_type=f32) * pm_ref[...]
        buf[pl.ds(off, M), pl.ds(0, k)] = pp
        # Rows just below the stash must read as zero (taps falling off the
        # bottom of the image); margins above are already zero.
        strip = 2 * Wc + 1
        buf[pl.ds(off + M, strip), pl.ds(0, k)] = jnp.zeros((strip, k), f32)
        acc = jnp.zeros((M, cout), f32) + b_ref[...]
        for t, (dh, dw) in enumerate(_TAPS):
            d = dh * Wc + dw
            acc = acc + buf[pl.ds(off + d, M), pl.ds(t * cout, cout)]
        if act == "relu":
            return jnp.maximum(acc, 0.0)
        return 1.0 / (1.0 + jnp.exp(-acc))          # exact sigmoid

    def maxpool(h, Hc, Wc, sel_ref):
        """2x2/2 max pool: 3 shifted reads + max, then a 0/1 gather matmul
        compacting the even (i, j) anchors into the dense pooled map."""
        M = Hc * Wc
        buf[pl.ds(off, M), pl.ds(0, 32)] = h
        m = jnp.maximum(h, buf[pl.ds(off + 1, M), pl.ds(0, 32)])
        m = jnp.maximum(m, buf[pl.ds(off + Wc, M), pl.ds(0, 32)])
        m = jnp.maximum(m, buf[pl.ds(off + Wc + 1, M), pl.ds(0, 32)])
        return jnp.dot(sel_ref[...], m, preferred_element_type=f32)

    def upsample(h, sel_ref):
        return jnp.dot(sel_ref[...], h, preferred_element_type=f32)

    # ---------------- encoder ----------------
    h = jnp.maximum(
        jnp.dot(xcol_ref[...], w1[...], preferred_element_type=f32) + b1[...],
        0.0)                                         # conv1 (host im2col, K=16)
    h = maxpool(h, H, W, sel_p1)
    h = conv_pp(h, H // 2, W // 2, 32, w2, b2, pm_half, "relu")
    h = maxpool(h, H // 2, W // 2, sel_p2)
    h = conv_pp(h, H // 4, W // 4, 32, w3, b3, pm_quar, "relu")
    h = conv_pp(h, H // 4, W // 4, 32, w4, b4, pm_quar, "relu")
    # ---------------- decoder ----------------
    h = conv_pp(h, H // 4, W // 4, 32, w5, b5, pm_quar, "relu")
    h = conv_pp(h, H // 4, W // 4, 32, w6, b6, pm_quar, "relu")
    h = upsample(h, sel_u1)
    h = conv_pp(h, H // 2, W // 2, 32, w7, b7, pm_half, "relu")
    h = upsample(h, sel_u2)
    h = conv_pp(h, H, W, 1, w8, b8, pm_full, "sigmoid")   # (HW, 1)
    # TODO(synk): (HW, 1) store is 1 lane wide; a transposed final layer would
    #             make this lane-dense.
    o_ref[...] = h


# ----------------------------------------------------------------------------
# Wrapper: one pallas_call for the whole forward pass
# ----------------------------------------------------------------------------
def convae_forward(x, params):
    """x: (N, H, W) float32 -> (N, H, W) float32 (matches the PyTorch forward)."""
    N, H, W = x.shape
    assert H % 4 == 0 and W % 4 == 0, "two 2x pools / 2x upsamples need H, W % 4 == 0"
    HW = H * W

    # Row-buffer geometry: conv shifts range over [-(W+1), 2W+1].
    off = _round_up(W + 1, 8)
    pad_hi = _round_up(2 * W + 1, 8)
    rows = off + HW + pad_hi

    x = x.astype(jnp.float32)
    xcol = _im2col_1ch(x, H, W)                       # (N, HW, 16)

    (w1, b1) = params[0]
    (w8, b8) = params[7]

    # Layer-1 weight as (16, 32) tap-major (rows 12..15 are zero padding).
    w1p = jnp.pad(w1.reshape(12, 32).astype(jnp.float32), ((0, 4), (0, 0)))
    wargs = [w1p, b1.reshape(1, 32).astype(jnp.float32)]
    # Convs 2..7: (4,3,32,32) -> (cin=32, 12*cout=384) tap-major along lanes.
    for w, b in params[1:7]:
        wargs += [w.transpose(2, 0, 1, 3).reshape(32, 12 * 32).astype(jnp.float32),
                  b.reshape(1, 32).astype(jnp.float32)]
    # Conv 8: (4,3,32,1) -> (32, 12).
    wargs += [w8.transpose(2, 0, 1, 3).reshape(32, 12).astype(jnp.float32),
              b8.reshape(1, 1).astype(jnp.float32)]

    consts = [jnp.asarray(_premask(H // 2, W // 2, 32)),   # convs 2, 7
              jnp.asarray(_premask(H // 4, W // 4, 32)),   # convs 3-6
              jnp.asarray(_premask(H, W, 1)),              # conv 8
              jnp.asarray(_pool_select(H, W)),
              jnp.asarray(_pool_select(H // 2, W // 2)),
              jnp.asarray(_up_select(H // 4, W // 4)),
              jnp.asarray(_up_select(H // 2, W // 2))]

    kernel = functools.partial(_convae_kernel, H=H, W=W, off=off)

    def resident(a):                                   # full-array VMEM resident
        return pl.BlockSpec(a.shape, lambda n: (0, 0))

    in_specs = ([pl.BlockSpec((None, HW, 16), lambda n: (n, 0, 0))]
                + [resident(a) for a in wargs]
                + [resident(a) for a in consts])
    out_specs = pl.BlockSpec((None, HW, 1), lambda n: (n, 0, 0))

    out = pl.pallas_call(
        kernel,
        out_shape=jax.ShapeDtypeStruct((N, HW, 1), jnp.float32),
        grid=(N,),
        in_specs=in_specs,
        out_specs=out_specs,
        scratch_shapes=[pltpu.VMEM((rows, 384), jnp.float32)],
        compiler_params=pltpu.CompilerParams(
            dimension_semantics=("parallel",),
            vmem_limit_bytes=16 * 1024 * 1024),
    )(xcol, *wargs, *consts)
    return out.reshape(N, H, W)


# ----------------------------------------------------------------------------
# Pure-JAX reference (correctness check)
# ----------------------------------------------------------------------------
def _same_pads(kh, kw):
    ph = ((kh - 1) // 2, (kh - 1) - (kh - 1) // 2)   # k=4 -> (1, 2)
    pw = ((kw - 1) // 2, (kw - 1) - (kw - 1) // 2)   # k=3 -> (1, 1)
    return ph, pw


def _ref_conv(x, w, b, activation):
    KH, KW = w.shape[0], w.shape[1]
    ph, pw = _same_pads(KH, KW)
    y = lax.conv_general_dilated(
        x, w, window_strides=(1, 1), padding=[ph, pw],
        dimension_numbers=("NHWC", "HWIO", "NHWC"),
        precision=lax.Precision.HIGHEST)
    y = y + b
    if activation == "relu":
        return jnp.maximum(y, 0.0)
    return 1.0 / (1.0 + jnp.exp(-y))


def _ref_pool(x):
    return lax.reduce_window(x, -jnp.inf, lax.max,
                             (1, 2, 2, 1), (1, 2, 2, 1), "VALID")


def _ref_up(x):
    return jnp.repeat(jnp.repeat(x, 2, axis=1), 2, axis=2)


def convae_forward_ref(x, params):
    h = x[..., None]
    h = _ref_conv(h, *params[0], activation="relu")
    h = _ref_pool(h)
    h = _ref_conv(h, *params[1], activation="relu")
    h = _ref_pool(h)
    h = _ref_conv(h, *params[2], activation="relu")
    h = _ref_conv(h, *params[3], activation="relu")
    h = _ref_conv(h, *params[4], activation="relu")
    h = _ref_conv(h, *params[5], activation="relu")
    h = _ref_up(h)
    h = _ref_conv(h, *params[6], activation="relu")
    h = _ref_up(h)
    h = _ref_conv(h, *params[7], activation="sigmoid")
    return h[..., 0]


# ----------------------------------------------------------------------------
# Deterministic synthetic parameter init (weights stored as (KH, KW, Cin, Cout))
# ----------------------------------------------------------------------------
def init_params(key):
    layer_channels = [(1, 32), (32, 32), (32, 32), (32, 32),   # encoder convs
                      (32, 32), (32, 32), (32, 32), (32, 1)]   # decoder convs
    params = []
    keys = jax.random.split(key, len(layer_channels))
    for k, (cin, cout) in zip(keys, layer_channels):
        kw_key, kb_key = jax.random.split(k)
        fan_in = cin * 4 * 3
        w = jax.random.normal(kw_key, (4, 3, cin, cout), jnp.float32)
        w = w * (1.0 / jnp.sqrt(jnp.float32(fan_in)))
        b = 0.01 * jax.random.normal(kb_key, (cout,), jnp.float32)
        params.append((w, b))
    return params


# ----------------------------------------------------------------------------
if __name__ == "__main__":
    key = jax.random.PRNGKey(0)
    kx, kp = jax.random.split(key)

    # Module input is (N, H, W); H and W must be multiples of 4 (2x pool / up).
    x = jax.random.uniform(kx, (2, 16, 16), dtype=jnp.float32)
    params = init_params(kp)

    y = jax.block_until_ready(jax.jit(convae_forward)(x, params))
    assert y.shape == (2, 16, 16) and y.dtype == jnp.float32

    y_ref = jax.block_until_ready(convae_forward_ref(x, params))
    np.testing.assert_allclose(np.asarray(y), np.asarray(y_ref),
                               rtol=1e-2, atol=1e-2)

    print("KERNEL_OK")
</pallas_src>

<mosaic_0001>
module attributes {stable_mosaic.version = 11 : i64} {
  func.func @_convae_kernel(%arg0: i32, %arg1: memref<1x256x16xf32, #tpu.memory_space<vmem>>, %arg2: memref<16x32xf32, #tpu.memory_space<vmem>>, %arg3: memref<1x32xf32, #tpu.memory_space<vmem>>, %arg4: memref<32x384xf32, #tpu.memory_space<vmem>>, %arg5: memref<1x32xf32, #tpu.memory_space<vmem>>, %arg6: memref<32x384xf32, #tpu.memory_space<vmem>>, %arg7: memref<1x32xf32, #tpu.memory_space<vmem>>, %arg8: memref<32x384xf32, #tpu.memory_space<vmem>>, %arg9: memref<1x32xf32, #tpu.memory_space<vmem>>, %arg10: memref<32x384xf32, #tpu.memory_space<vmem>>, %arg11: memref<1x32xf32, #tpu.memory_space<vmem>>, %arg12: memref<32x384xf32, #tpu.memory_space<vmem>>, %arg13: memref<1x32xf32, #tpu.memory_space<vmem>>, %arg14: memref<32x384xf32, #tpu.memory_space<vmem>>, %arg15: memref<1x32xf32, #tpu.memory_space<vmem>>, %arg16: memref<32x12xf32, #tpu.memory_space<vmem>>, %arg17: memref<1x1xf32, #tpu.memory_space<vmem>>, %arg18: memref<64x384xf32, #tpu.memory_space<vmem>>, %arg19: memref<16x384xf32, #tpu.memory_space<vmem>>, %arg20: memref<256x12xf32, #tpu.memory_space<vmem>>, %arg21: memref<64x256xf32, #tpu.memory_space<vmem>>, %arg22: memref<16x64xf32, #tpu.memory_space<vmem>>, %arg23: memref<64x16xf32, #tpu.memory_space<vmem>>, %arg24: memref<256x64xf32, #tpu.memory_space<vmem>>, %arg25: memref<1x256x1xf32, #tpu.memory_space<vmem>>, %arg26: memref<320x384xf32, #tpu.memory_space<vmem>>) attributes {dimension_semantics = [#tpu.dimension_semantics<parallel>], iteration_bounds = array<i64: 2>, scalar_prefetch = 0 : i64, scratch_operands = 1 : i64, tpu.core_type = #tpu.core_type<tc>, window_params = [{transform_indices = @transform_0, window_bounds = array<i64: 1, 256, 16>}, {pipeline_mode = #tpu.pipeline_mode<synchronous>, transform_indices = @transform_1, window_bounds = array<i64: 16, 32>}, {pipeline_mode = #tpu.pipeline_mode<synchronous>, transform_indices = @transform_2, window_bounds = array<i64: 1, 32>}, {pipeline_mode = #tpu.pipeline_mode<synchronous>, transform_indices = @transform_3, window_bounds = array<i64: 32, 384>}, {pipeline_mode = #tpu.pipeline_mode<synchronous>, transform_indices = @transform_4, window_bounds = array<i64: 1, 32>}, {pipeline_mode = #tpu.pipeline_mode<synchronous>, transform_indices = @transform_5, window_bounds = array<i64: 32, 384>}, {pipeline_mode = #tpu.pipeline_mode<synchronous>, transform_indices = @transform_6, window_bounds = array<i64: 1, 32>}, {pipeline_mode = #tpu.pipeline_mode<synchronous>, transform_indices = @transform_7, window_bounds = array<i64: 32, 384>}, {pipeline_mode = #tpu.pipeline_mode<synchronous>, transform_indices = @transform_8, window_bounds = array<i64: 1, 32>}, {pipeline_mode = #tpu.pipeline_mode<synchronous>, transform_indices = @transform_9, window_bounds = array<i64: 32, 384>}, {pipeline_mode = #tpu.pipeline_mode<synchronous>, transform_indices = @transform_10, window_bounds = array<i64: 1, 32>}, {pipeline_mode = #tpu.pipeline_mode<synchronous>, transform_indices = @transform_11, window_bounds = array<i64: 32, 384>}, {pipeline_mode = #tpu.pipeline_mode<synchronous>, transform_indices = @transform_12, window_bounds = array<i64: 1, 32>}, {pipeline_mode = #tpu.pipeline_mode<synchronous>, transform_indices = @transform_13, window_bounds = array<i64: 32, 384>}, {pipeline_mode = #tpu.pipeline_mode<synchronous>, transform_indices = @transform_14, window_bounds = array<i64: 1, 32>}, {pipeline_mode = #tpu.pipeline_mode<synchronous>, transform_indices = @transform_15, window_bounds = array<i64: 32, 12>}, {pipeline_mode = #tpu.pipeline_mode<synchronous>, transform_indices = @transform_16, window_bounds = array<i64: 1, 1>}, {pipeline_mode = #tpu.pipeline_mode<synchronous>, transform_indices = @transform_17, window_bounds = array<i64: 64, 384>}, {pipeline_mode = #tpu.pipeline_mode<synchronous>, transform_indices = @transform_18, window_bounds = array<i64: 16, 384>}, {pipeline_mode = #tpu.pipeline_mode<synchronous>, transform_indices = @transform_19, window_bounds = array<i64: 256, 12>}, {pipeline_mode = #tpu.pipeline_mode<synchronous>, transform_indices = @transform_20, window_bounds = array<i64: 64, 256>}, {pipeline_mode = #tpu.pipeline_mode<synchronous>, transform_indices = @transform_21, window_bounds = array<i64: 16, 64>}, {pipeline_mode = #tpu.pipeline_mode<synchronous>, transform_indices = @transform_22, window_bounds = array<i64: 64, 16>}, {pipeline_mode = #tpu.pipeline_mode<synchronous>, transform_indices = @transform_23, window_bounds = array<i64: 256, 64>}, {transform_indices = @transform_24, window_bounds = array<i64: 1, 256, 1>}]} {
    %cst = arith.constant 0.000000e+00 : f32
    %0 = vector.broadcast %cst : f32 to vector<24x384xf32>
    %c0 = arith.constant 0 : index
    %c0_0 = arith.constant 0 : index
    %1 = vector.load %arg26[%c0, %c0_0] : memref<320x384xf32, #tpu.memory_space<vmem>>, vector<24x384xf32>
    tpu.vector_store %arg26[%c0, %c0_0], %0 {strides = array<i32>} : memref<320x384xf32, #tpu.memory_space<vmem>>, vector<24x384xf32>,
    %cst_1 = arith.constant 0.000000e+00 : f32
    %2 = vector.broadcast %cst_1 : f32 to vector<40x384xf32>
    %c280 = arith.constant 280 : index
    %c0_2 = arith.constant 0 : index
    %3 = vector.load %arg26[%c280, %c0_2] : memref<320x384xf32, #tpu.memory_space<vmem>>, vector<40x384xf32>
    tpu.vector_store %arg26[%c280, %c0_2], %2 {strides = array<i32>} : memref<320x384xf32, #tpu.memory_space<vmem>>, vector<40x384xf32>,
    %c0_3 = arith.constant 0 : index
    %c0_4 = arith.constant 0 : index
    %c0_5 = arith.constant 0 : index
    %4 = vector.load %arg1[%c0_3, %c0_4, %c0_5] : memref<1x256x16xf32, #tpu.memory_space<vmem>>, vector<1x256x16xf32>
    %5 = vector.shape_cast %4 : vector<1x256x16xf32> to vector<256x16xf32>
    %c0_6 = arith.constant 0 : index
    %c0_7 = arith.constant 0 : index
    %6 = vector.load %arg2[%c0_6, %c0_7] : memref<16x32xf32, #tpu.memory_space<vmem>>, vector<16x32xf32>
    %cst_8 = arith.constant dense<0.000000e+00> : vector<256x32xf32>
    %7 = tpu.matmul %5, %6, %cst_8 {dimension_numbers = #tpu.dot_dimension_numbers<[1], [0], [0], [1], [0, 0, 1, 1], [], []>} : vector<256x16xf32>, vector<16x32xf32>, vector<256x32xf32> -> vector<256x32xf32>
    %c0_9 = arith.constant 0 : index
    %c0_10 = arith.constant 0 : index
    %8 = vector.load %arg3[%c0_9, %c0_10] : memref<1x32xf32, #tpu.memory_space<vmem>>, vector<1x32xf32>
    %9 = vector.broadcast %8 : vector<1x32xf32> to vector<256x32xf32>
    %10 = arith.addf %7, %9 : vector<256x32xf32>
    %cst_11 = arith.constant 0.000000e+00 : f32
    %11 = vector.broadcast %cst_11 : f32 to vector<256x32xf32>
    %12 = arith.maximumf %10, %11 : vector<256x32xf32>
    %c24 = arith.constant 24 : index
    %c0_12 = arith.constant 0 : index
    %13 = vector.load %arg26[%c24, %c0_12] : memref<320x384xf32, #tpu.memory_space<vmem>>, vector<256x32xf32>
    tpu.vector_store %arg26[%c24, %c0_12], %12 {strides = array<i32>} : memref<320x384xf32, #tpu.memory_space<vmem>>, vector<256x32xf32>,
    %c25 = arith.constant 25 : index
    %c0_13 = arith.constant 0 : index
    %14 = vector.load %arg26[%c25, %c0_13] : memref<320x384xf32, #tpu.memory_space<vmem>>, vector<256x32xf32>
    %15 = arith.maximumf %12, %14 : vector<256x32xf32>
    %c40 = arith.constant 40 : index
    %c0_14 = arith.constant 0 : index
    %16 = vector.load %arg26[%c40, %c0_14] : memref<320x384xf32, #tpu.memory_space<vmem>>, vector<256x32xf32>
    %17 = arith.maximumf %15, %16 : vector<256x32xf32>
    %c41 = arith.constant 41 : index
    %c0_15 = arith.constant 0 : index
    %18 = vector.load %arg26[%c41, %c0_15] : memref<320x384xf32, #tpu.memory_space<vmem>>, vector<256x32xf32>
    %19 = arith.maximumf %17, %18 : vector<256x32xf32>
    %c0_16 = arith.constant 0 : index
    %c0_17 = arith.constant 0 : index
    %20 = vector.load %arg21[%c0_16, %c0_17] : memref<64x256xf32, #tpu.memory_space<vmem>>, vector<64x256xf32>
    %cst_18 = arith.constant dense<0.000000e+00> : vector<64x32xf32>
    %21 = tpu.matmul %20, %19, %cst_18 {dimension_numbers = #tpu.dot_dimension_numbers<[1], [0], [0], [1], [0, 0, 1, 1], [], []>} : vector<64x256xf32>, vector<256x32xf32>, vector<64x32xf32> -> vector<64x32xf32>
    %c0_19 = arith.constant 0 : index
    %c0_20 = arith.constant 0 : index
    %22 = vector.load %arg4[%c0_19, %c0_20] : memref<32x384xf32, #tpu.memory_space<vmem>>, vector<32x384xf32>
    %cst_21 = arith.constant dense<0.000000e+00> : vector<64x384xf32>
    %23 = tpu.matmul %21, %22, %cst_21 {dimension_numbers = #tpu.dot_dimension_numbers<[1], [0], [0], [1], [0, 0, 1, 1], [], []>} : vector<64x32xf32>, vector<32x384xf32>, vector<64x384xf32> -> vector<64x384xf32>
    %c0_22 = arith.constant 0 : index
    %c0_23 = arith.constant 0 : index
    %24 = vector.load %arg18[%c0_22, %c0_23] : memref<64x384xf32, #tpu.memory_space<vmem>>, vector<64x384xf32>
    %25 = arith.mulf %23, %24 : vector<64x384xf32>
    %c24_24 = arith.constant 24 : index
    %c0_25 = arith.constant 0 : index
    %26 = vector.load %arg26[%c24_24, %c0_25] : memref<320x384xf32, #tpu.memory_space<vmem>>, vector<64x384xf32>
    tpu.vector_store %arg26[%c24_24, %c0_25], %25 {strides = array<i32>} : memref<320x384xf32, #tpu.memory_space<vmem>>, vector<64x384xf32>,
    %cst_26 = arith.constant 0.000000e+00 : f32
    %27 = vector.broadcast %cst_26 : f32 to vector<17x384xf32>
    %c88 = arith.constant 88 : index
    %c0_27 = arith.constant 0 : index
    %28 = vector.load %arg26[%c88, %c0_27] : memref<320x384xf32, #tpu.memory_space<vmem>>, vector<17x384xf32>
    tpu.vector_store %arg26[%c88, %c0_27], %27 {strides = array<i32>} : memref<320x384xf32, #tpu.memory_space<vmem>>, vector<17x384xf32>,
    %cst_28 = arith.constant 0.000000e+00 : f32
    %29 = vector.broadcast %cst_28 : f32 to vector<64x32xf32>
    %c0_29 = arith.constant 0 : index
    %c0_30 = arith.constant 0 : index
    %30 = vector.load %arg5[%c0_29, %c0_30] : memref<1x32xf32, #tpu.memory_space<vmem>>, vector<1x32xf32>
    %31 = vector.broadcast %30 : vector<1x32xf32> to vector<64x32xf32>
    %32 = arith.addf %29, %31 : vector<64x32xf32>
    %c15 = arith.constant 15 : index
    %c0_31 = arith.constant 0 : index
    %33 = vector.load %arg26[%c15, %c0_31] : memref<320x384xf32, #tpu.memory_space<vmem>>, vector<64x32xf32>
    %34 = arith.addf %32, %33 : vector<64x32xf32>
    %c16 = arith.constant 16 : index
    %c32 = arith.constant 32 : index
    %35 = vector.load %arg26[%c16, %c32] : memref<320x384xf32, #tpu.memory_space<vmem>>, vector<64x32xf32>
    %36 = arith.addf %34, %35 : vector<64x32xf32>
    %c17 = arith.constant 17 : index
    %c64 = arith.constant 64 : index
    %37 = vector.load %arg26[%c17, %c64] : memref<320x384xf32, #tpu.memory_space<vmem>>, vector<64x32xf32>
    %38 = arith.addf %36, %37 : vector<64x32xf32>
    %c23 = arith.constant 23 : index
    %c96 = arith.constant 96 : index
    %39 = vector.load %arg26[%c23, %c96] : memref<320x384xf32, #tpu.memory_space<vmem>>, vector<64x32xf32>
    %40 = arith.addf %38, %39 : vector<64x32xf32>
    %c24_32 = arith.constant 24 : index
    %c128 = arith.constant 128 : index
    %41 = vector.load %arg26[%c24_32, %c128] : memref<320x384xf32, #tpu.memory_space<vmem>>, vector<64x32xf32>
    %42 = arith.addf %40, %41 : vector<64x32xf32>
    %c25_33 = arith.constant 25 : index
    %c160 = arith.constant 160 : index
    %43 = vector.load %arg26[%c25_33, %c160] : memref<320x384xf32, #tpu.memory_space<vmem>>, vector<64x32xf32>
    %44 = arith.addf %42, %43 : vector<64x32xf32>
    %c31 = arith.constant 31 : index
    %c192 = arith.constant 192 : index
    %45 = vector.load %arg26[%c31, %c192] : memref<320x384xf32, #tpu.memory_space<vmem>>, vector<64x32xf32>
    %46 = arith.addf %44, %45 : vector<64x32xf32>
    %c32_34 = arith.constant 32 : index
    %c224 = arith.constant 224 : index
    %47 = vector.load %arg26[%c32_34, %c224] : memref<320x384xf32, #tpu.memory_space<vmem>>, vector<64x32xf32>
    %48 = arith.addf %46, %47 : vector<64x32xf32>
    %c33 = arith.constant 33 : index
    %c256 = arith.constant 256 : index
    %49 = vector.load %arg26[%c33, %c256] : memref<320x384xf32, #tpu.memory_space<vmem>>, vector<64x32xf32>
    %50 = arith.addf %48, %49 : vector<64x32xf32>
    %c39 = arith.constant 39 : index
    %c288 = arith.constant 288 : index
    %51 = vector.load %arg26[%c39, %c288] : memref<320x384xf32, #tpu.memory_space<vmem>>, vector<64x32xf32>
    %52 = arith.addf %50, %51 : vector<64x32xf32>
    %c40_35 = arith.constant 40 : index
    %c320 = arith.constant 320 : index
    %53 = vector.load %arg26[%c40_35, %c320] : memref<320x384xf32, #tpu.memory_space<vmem>>, vector<64x32xf32>
    %54 = arith.addf %52, %53 : vector<64x32xf32>
    %c41_36 = arith.constant 41 : index
    %c352 = arith.constant 352 : index
    %55 = vector.load %arg26[%c41_36, %c352] : memref<320x384xf32, #tpu.memory_space<vmem>>, vector<64x32xf32>
    %56 = arith.addf %54, %55 : vector<64x32xf32>
    %cst_37 = arith.constant 0.000000e+00 : f32
    %57 = vector.broadcast %cst_37 : f32 to vector<64x32xf32>
    %58 = arith.maximumf %56, %57 : vector<64x32xf32>
    %c24_38 = arith.constant 24 : index
    %c0_39 = arith.constant 0 : index
    %59 = vector.load %arg26[%c24_38, %c0_39] : memref<320x384xf32, #tpu.memory_space<vmem>>, vector<64x32xf32>
    tpu.vector_store %arg26[%c24_38, %c0_39], %58 {strides = array<i32>} : memref<320x384xf32, #tpu.memory_space<vmem>>, vector<64x32xf32>,
    %c25_40 = arith.constant 25 : index
    %c0_41 = arith.constant 0 : index
    %60 = vector.load %arg26[%c25_40, %c0_41] : memref<320x384xf32, #tpu.memory_space<vmem>>, vector<64x32xf32>
    %61 = arith.maximumf %58, %60 : vector<64x32xf32>
    %c32_42 = arith.constant 32 : index
    %c0_43 = arith.constant 0 : index
    %62 = vector.load %arg26[%c32_42, %c0_43] : memref<320x384xf32, #tpu.memory_space<vmem>>, vector<64x32xf32>
    %63 = arith.maximumf %61, %62 : vector<64x32xf32>
    %c33_44 = arith.constant 33 : index
    %c0_45 = arith.constant 0 : index
    %64 = vector.load %arg26[%c33_44, %c0_45] : memref<320x384xf32, #tpu.memory_space<vmem>>, vector<64x32xf32>
    %65 = arith.maximumf %63, %64 : vector<64x32xf32>
    %c0_46 = arith.constant 0 : index
    %c0_47 = arith.constant 0 : index
    %66 = vector.load %arg22[%c0_46, %c0_47] : memref<16x64xf32, #tpu.memory_space<vmem>>, vector<16x64xf32>
    %cst_48 = arith.constant dense<0.000000e+00> : vector<16x32xf32>
    %67 = tpu.matmul %66, %65, %cst_48 {dimension_numbers = #tpu.dot_dimension_numbers<[1], [0], [0], [1], [0, 0, 1, 1], [], []>} : vector<16x64xf32>, vector<64x32xf32>, vector<16x32xf32> -> vector<16x32xf32>
    %c0_49 = arith.constant 0 : index
    %c0_50 = arith.constant 0 : index
    %68 = vector.load %arg6[%c0_49, %c0_50] : memref<32x384xf32, #tpu.memory_space<vmem>>, vector<32x384xf32>
    %cst_51 = arith.constant dense<0.000000e+00> : vector<16x384xf32>
    %69 = tpu.matmul %67, %68, %cst_51 {dimension_numbers = #tpu.dot_dimension_numbers<[1], [0], [0], [1], [0, 0, 1, 1], [], []>} : vector<16x32xf32>, vector<32x384xf32>, vector<16x384xf32> -> vector<16x384xf32>
    %c0_52 = arith.constant 0 : index
    %c0_53 = arith.constant 0 : index
    %70 = vector.load %arg19[%c0_52, %c0_53] : memref<16x384xf32, #tpu.memory_space<vmem>>, vector<16x384xf32>
    %71 = arith.mulf %69, %70 : vector<16x384xf32>
    %c24_54 = arith.constant 24 : index
    %c0_55 = arith.constant 0 : index
    %72 = vector.load %arg26[%c24_54, %c0_55] : memref<320x384xf32, #tpu.memory_space<vmem>>, vector<16x384xf32>
    tpu.vector_store %arg26[%c24_54, %c0_55], %71 {strides = array<i32>} : memref<320x384xf32, #tpu.memory_space<vmem>>, vector<16x384xf32>,
    %cst_56 = arith.constant 0.000000e+00 : f32
    %73 = vector.broadcast %cst_56 : f32 to vector<9x384xf32>
    %c40_57 = arith.constant 40 : index
    %c0_58 = arith.constant 0 : index
    %74 = vector.load %arg26[%c40_57, %c0_58] : memref<320x384xf32, #tpu.memory_space<vmem>>, vector<9x384xf32>
    tpu.vector_store %arg26[%c40_57, %c0_58], %73 {strides = array<i32>} : memref<320x384xf32, #tpu.memory_space<vmem>>, vector<9x384xf32>,
    %cst_59 = arith.constant 0.000000e+00 : f32
    %75 = vector.broadcast %cst_59 : f32 to vector<16x32xf32>
    %c0_60 = arith.constant 0 : index
    %c0_61 = arith.constant 0 : index
    %76 = vector.load %arg7[%c0_60, %c0_61] : memref<1x32xf32, #tpu.memory_space<vmem>>, vector<1x32xf32>
    %77 = vector.broadcast %76 : vector<1x32xf32> to vector<16x32xf32>
    %78 = arith.addf %75, %77 : vector<16x32xf32>
    %c19 = arith.constant 19 : index
    %c0_62 = arith.constant 0 : index
    %79 = vector.load %arg26[%c19, %c0_62] : memref<320x384xf32, #tpu.memory_space<vmem>>, vector<16x32xf32>
    %80 = arith.addf %78, %79 : vector<16x32xf32>
    %c20 = arith.constant 20 : index
    %c32_63 = arith.constant 32 : index
    %81 = vector.load %arg26[%c20, %c32_63] : memref<320x384xf32, #tpu.memory_space<vmem>>, vector<16x32xf32>
    %82 = arith.addf %80, %81 : vector<16x32xf32>
    %c21 = arith.constant 21 : index
    %c64_64 = arith.constant 64 : index
    %83 = vector.load %arg26[%c21, %c64_64] : memref<320x384xf32, #tpu.memory_space<vmem>>, vector<16x32xf32>
    %84 = arith.addf %82, %83 : vector<16x32xf32>
    %c23_65 = arith.constant 23 : index
    %c96_66 = arith.constant 96 : index
    %85 = vector.load %arg26[%c23_65, %c96_66] : memref<320x384xf32, #tpu.memory_space<vmem>>, vector<16x32xf32>
    %86 = arith.addf %84, %85 : vector<16x32xf32>
    %c24_67 = arith.constant 24 : index
    %c128_68 = arith.constant 128 : index
    %87 = vector.load %arg26[%c24_67, %c128_68] : memref<320x384xf32, #tpu.memory_space<vmem>>, vector<16x32xf32>
    %88 = arith.addf %86, %87 : vector<16x32xf32>
    %c25_69 = arith.constant 25 : index
    %c160_70 = arith.constant 160 : index
    %89 = vector.load %arg26[%c25_69, %c160_70] : memref<320x384xf32, #tpu.memory_space<vmem>>, vector<16x32xf32>
    %90 = arith.addf %88, %89 : vector<16x32xf32>
    %c27 = arith.constant 27 : index
    %c192_71 = arith.constant 192 : index
    %91 = vector.load %arg26[%c27, %c192_71] : memref<320x384xf32, #tpu.memory_space<vmem>>, vector<16x32xf32>
    %92 = arith.addf %90, %91 : vector<16x32xf32>
    %c28 = arith.constant 28 : index
    %c224_72 = arith.constant 224 : index
    %93 = vector.load %arg26[%c28, %c224_72] : memref<320x384xf32, #tpu.memory_space<vmem>>, vector<16x32xf32>
    %94 = arith.addf %92, %93 : vector<16x32xf32>
    %c29 = arith.constant 29 : index
    %c256_73 = arith.constant 256 : index
    %95 = vector.load %arg26[%c29, %c256_73] : memref<320x384xf32, #tpu.memory_space<vmem>>, vector<16x32xf32>
    %96 = arith.addf %94, %95 : vector<16x32xf32>
    %c31_74 = arith.constant 31 : index
    %c288_75 = arith.constant 288 : index
    %97 = vector.load %arg26[%c31_74, %c288_75] : memref<320x384xf32, #tpu.memory_space<vmem>>, vector<16x32xf32>
    %98 = arith.addf %96, %97 : vector<16x32xf32>
    %c32_76 = arith.constant 32 : index
    %c320_77 = arith.constant 320 : index
    %99 = vector.load %arg26[%c32_76, %c320_77] : memref<320x384xf32, #tpu.memory_space<vmem>>, vector<16x32xf32>
    %100 = arith.addf %98, %99 : vector<16x32xf32>
    %c33_78 = arith.constant 33 : index
    %c352_79 = arith.constant 352 : index
    %101 = vector.load %arg26[%c33_78, %c352_79] : memref<320x384xf32, #tpu.memory_space<vmem>>, vector<16x32xf32>
    %102 = arith.addf %100, %101 : vector<16x32xf32>
    %cst_80 = arith.constant 0.000000e+00 : f32
    %103 = vector.broadcast %cst_80 : f32 to vector<16x32xf32>
    %104 = arith.maximumf %102, %103 : vector<16x32xf32>
    %c0_81 = arith.constant 0 : index
    %c0_82 = arith.constant 0 : index
    %105 = vector.load %arg8[%c0_81, %c0_82] : memref<32x384xf32, #tpu.memory_space<vmem>>, vector<32x384xf32>
    %cst_83 = arith.constant dense<0.000000e+00> : vector<16x384xf32>
    %106 = tpu.matmul %104, %105, %cst_83 {dimension_numbers = #tpu.dot_dimension_numbers<[1], [0], [0], [1], [0, 0, 1, 1], [], []>} : vector<16x32xf32>, vector<32x384xf32>, vector<16x384xf32> -> vector<16x384xf32>
    %c0_84 = arith.constant 0 : index
    %c0_85 = arith.constant 0 : index
    %107 = vector.load %arg19[%c0_84, %c0_85] : memref<16x384xf32, #tpu.memory_space<vmem>>, vector<16x384xf32>
    %108 = arith.mulf %106, %107 : vector<16x384xf32>
    %c24_86 = arith.constant 24 : index
    %c0_87 = arith.constant 0 : index
    %109 = vector.load %arg26[%c24_86, %c0_87] : memref<320x384xf32, #tpu.memory_space<vmem>>, vector<16x384xf32>
    tpu.vector_store %arg26[%c24_86, %c0_87], %108 {strides = array<i32>} : memref<320x384xf32, #tpu.memory_space<vmem>>, vector<16x384xf32>,
    %cst_88 = arith.constant 0.000000e+00 : f32
    %110 = vector.broadcast %cst_88 : f32 to vector<9x384xf32>
    %c40_89 = arith.constant 40 : index
    %c0_90 = arith.constant 0 : index
    %111 = vector.load %arg26[%c40_89, %c0_90] : memref<320x384xf32, #tpu.memory_space<vmem>>, vector<9x384xf32>
    tpu.vector_store %arg26[%c40_89, %c0_90], %110 {strides = array<i32>} : memref<320x384xf32, #tpu.memory_space<vmem>>, vector<9x384xf32>,
    %cst_91 = arith.constant 0.000000e+00 : f32
    %112 = vector.broadcast %cst_91 : f32 to vector<16x32xf32>
    %c0_92 = arith.constant 0 : index
    %c0_93 = arith.constant 0 : index
    %113 = vector.load %arg9[%c0_92, %c0_93] : memref<1x32xf32, #tpu.memory_space<vmem>>, vector<1x32xf32>
    %114 = vector.broadcast %113 : vector<1x32xf32> to vector<16x32xf32>
    %115 = arith.addf %112, %114 : vector<16x32xf32>
    %c19_94 = arith.constant 19 : index
    %c0_95 = arith.constant 0 : index
    %116 = vector.load %arg26[%c19_94, %c0_95] : memref<320x384xf32, #tpu.memory_space<vmem>>, vector<16x32xf32>
    %117 = arith.addf %115, %116 : vector<16x32xf32>
    %c20_96 = arith.constant 20 : index
    %c32_97 = arith.constant 32 : index
    %118 = vector.load %arg26[%c20_96, %c32_97] : memref<320x384xf32, #tpu.memory_space<vmem>>, vector<16x32xf32>
    %119 = arith.addf %117, %118 : vector<16x32xf32>
    %c21_98 = arith.constant 21 : index
    %c64_99 = arith.constant 64 : index
    %120 = vector.load %arg26[%c21_98, %c64_99] : memref<320x384xf32, #tpu.memory_space<vmem>>, vector<16x32xf32>
    %121 = arith.addf %119, %120 : vector<16x32xf32>
    %c23_100 = arith.constant 23 : index
    %c96_101 = arith.constant 96 : index
    %122 = vector.load %arg26[%c23_100, %c96_101] : memref<320x384xf32, #tpu.memory_space<vmem>>, vector<16x32xf32>
    %123 = arith.addf %121, %122 : vector<16x32xf32>
    %c24_102 = arith.constant 24 : index
    %c128_103 = arith.constant 128 : index
    %124 = vector.load %arg26[%c24_102, %c128_103] : memref<320x384xf32, #tpu.memory_space<vmem>>, vector<16x32xf32>
    %125 = arith.addf %123, %124 : vector<16x32xf32>
    %c25_104 = arith.constant 25 : index
    %c160_105 = arith.constant 160 : index
    %126 = vector.load %arg26[%c25_104, %c160_105] : memref<320x384xf32, #tpu.memory_space<vmem>>, vector<16x32xf32>
    %127 = arith.addf %125, %126 : vector<16x32xf32>
    %c27_106 = arith.constant 27 : index
    %c192_107 = arith.constant 192 : index
    %128 = vector.load %arg26[%c27_106, %c192_107] : memref<320x384xf32, #tpu.memory_space<vmem>>, vector<16x32xf32>
    %129 = arith.addf %127, %128 : vector<16x32xf32>
    %c28_108 = arith.constant 28 : index
    %c224_109 = arith.constant 224 : index
    %130 = vector.load %arg26[%c28_108, %c224_109] : memref<320x384xf32, #tpu.memory_space<vmem>>, vector<16x32xf32>
    %131 = arith.addf %129, %130 : vector<16x32xf32>
    %c29_110 = arith.constant 29 : index
    %c256_111 = arith.constant 256 : index
    %132 = vector.load %arg26[%c29_110, %c256_111] : memref<320x384xf32, #tpu.memory_space<vmem>>, vector<16x32xf32>
    %133 = arith.addf %131, %132 : vector<16x32xf32>
    %c31_112 = arith.constant 31 : index
    %c288_113 = arith.constant 288 : index
    %134 = vector.load %arg26[%c31_112, %c288_113] : memref<320x384xf32, #tpu.memory_space<vmem>>, vector<16x32xf32>
    %135 = arith.addf %133, %134 : vector<16x32xf32>
    %c32_114 = arith.constant 32 : index
    %c320_115 = arith.constant 320 : index
    %136 = vector.load %arg26[%c32_114, %c320_115] : memref<320x384xf32, #tpu.memory_space<vmem>>, vector<16x32xf32>
    %137 = arith.addf %135, %136 : vector<16x32xf32>
    %c33_116 = arith.constant 33 : index
    %c352_117 = arith.constant 352 : index
    %138 = vector.load %arg26[%c33_116, %c352_117] : memref<320x384xf32, #tpu.memory_space<vmem>>, vector<16x32xf32>
    %139 = arith.addf %137, %138 : vector<16x32xf32>
    %cst_118 = arith.constant 0.000000e+00 : f32
    %140 = vector.broadcast %cst_118 : f32 to vector<16x32xf32>
    %141 = arith.maximumf %139, %140 : vector<16x32xf32>
    %c0_119 = arith.constant 0 : index
    %c0_120 = arith.constant 0 : index
    %142 = vector.load %arg10[%c0_119, %c0_120] : memref<32x384xf32, #tpu.memory_space<vmem>>, vector<32x384xf32>
    %cst_121 = arith.constant dense<0.000000e+00> : vector<16x384xf32>
    %143 = tpu.matmul %141, %142, %cst_121 {dimension_numbers = #tpu.dot_dimension_numbers<[1], [0], [0], [1], [0, 0, 1, 1], [], []>} : vector<16x32xf32>, vector<32x384xf32>, vector<16x384xf32> -> vector<16x384xf32>
    %c0_122 = arith.constant 0 : index
    %c0_123 = arith.constant 0 : index
    %144 = vector.load %arg19[%c0_122, %c0_123] : memref<16x384xf32, #tpu.memory_space<vmem>>, vector<16x384xf32>
    %145 = arith.mulf %143, %144 : vector<16x384xf32>
    %c24_124 = arith.constant 24 : index
    %c0_125 = arith.constant 0 : index
    %146 = vector.load %arg26[%c24_124, %c0_125] : memref<320x384xf32, #tpu.memory_space<vmem>>, vector<16x384xf32>
    tpu.vector_store %arg26[%c24_124, %c0_125], %145 {strides = array<i32>} : memref<320x384xf32, #tpu.memory_space<vmem>>, vector<16x384xf32>,
    %cst_126 = arith.constant 0.000000e+00 : f32
    %147 = vector.broadcast %cst_126 : f32 to vector<9x384xf32>
    %c40_127 = arith.constant 40 : index
    %c0_128 = arith.constant 0 : index
    %148 = vector.load %arg26[%c40_127, %c0_128] : memref<320x384xf32, #tpu.memory_space<vmem>>, vector<9x384xf32>
    tpu.vector_store %arg26[%c40_127, %c0_128], %147 {strides = array<i32>} : memref<320x384xf32, #tpu.memory_space<vmem>>, vector<9x384xf32>,
    %cst_129 = arith.constant 0.000000e+00 : f32
    %149 = vector.broadcast %cst_129 : f32 to vector<16x32xf32>
    %c0_130 = arith.constant 0 : index
    %c0_131 = arith.constant 0 : index
    %150 = vector.load %arg11[%c0_130, %c0_131] : memref<1x32xf32, #tpu.memory_space<vmem>>, vector<1x32xf32>
    %151 = vector.broadcast %150 : vector<1x32xf32> to vector<16x32xf32>
    %152 = arith.addf %149, %151 : vector<16x32xf32>
    %c19_132 = arith.constant 19 : index
    %c0_133 = arith.constant 0 : index
    %153 = vector.load %arg26[%c19_132, %c0_133] : memref<320x384xf32, #tpu.memory_space<vmem>>, vector<16x32xf32>
    %154 = arith.addf %152, %153 : vector<16x32xf32>
    %c20_134 = arith.constant 20 : index
    %c32_135 = arith.constant 32 : index
    %155 = vector.load %arg26[%c20_134, %c32_135] : memref<320x384xf32, #tpu.memory_space<vmem>>, vector<16x32xf32>
    %156 = arith.addf %154, %155 : vector<16x32xf32>
    %c21_136 = arith.constant 21 : index
    %c64_137 = arith.constant 64 : index
    %157 = vector.load %arg26[%c21_136, %c64_137] : memref<320x384xf32, #tpu.memory_space<vmem>>, vector<16x32xf32>
    %158 = arith.addf %156, %157 : vector<16x32xf32>
    %c23_138 = arith.constant 23 : index
    %c96_139 = arith.constant 96 : index
    %159 = vector.load %arg26[%c23_138, %c96_139] : memref<320x384xf32, #tpu.memory_space<vmem>>, vector<16x32xf32>
    %160 = arith.addf %158, %159 : vector<16x32xf32>
    %c24_140 = arith.constant 24 : index
    %c128_141 = arith.constant 128 : index
    %161 = vector.load %arg26[%c24_140, %c128_141] : memref<320x384xf32, #tpu.memory_space<vmem>>, vector<16x32xf32>
    %162 = arith.addf %160, %161 : vector<16x32xf32>
    %c25_142 = arith.constant 25 : index
    %c160_143 = arith.constant 160 : index
    %163 = vector.load %arg26[%c25_142, %c160_143] : memref<320x384xf32, #tpu.memory_space<vmem>>, vector<16x32xf32>
    %164 = arith.addf %162, %163 : vector<16x32xf32>
    %c27_144 = arith.constant 27 : index
    %c192_145 = arith.constant 192 : index
    %165 = vector.load %arg26[%c27_144, %c192_145] : memref<320x384xf32, #tpu.memory_space<vmem>>, vector<16x32xf32>
    %166 = arith.addf %164, %165 : vector<16x32xf32>
    %c28_146 = arith.constant 28 : index
    %c224_147 = arith.constant 224 : index
    %167 = vector.load %arg26[%c28_146, %c224_147] : memref<320x384xf32, #tpu.memory_space<vmem>>, vector<16x32xf32>
    %168 = arith.addf %166, %167 : vector<16x32xf32>
    %c29_148 = arith.constant 29 : index
    %c256_149 = arith.constant 256 : index
    %169 = vector.load %arg26[%c29_148, %c256_149] : memref<320x384xf32, #tpu.memory_space<vmem>>, vector<16x32xf32>
    %170 = arith.addf %168, %169 : vector<16x32xf32>
    %c31_150 = arith.constant 31 : index
    %c288_151 = arith.constant 288 : index
    %171 = vector.load %arg26[%c31_150, %c288_151] : memref<320x384xf32, #tpu.memory_space<vmem>>, vector<16x32xf32>
    %172 = arith.addf %170, %171 : vector<16x32xf32>
    %c32_152 = arith.constant 32 : index
    %c320_153 = arith.constant 320 : index
    %173 = vector.load %arg26[%c32_152, %c320_153] : memref<320x384xf32, #tpu.memory_space<vmem>>, vector<16x32xf32>
    %174 = arith.addf %172, %173 : vector<16x32xf32>
    %c33_154 = arith.constant 33 : index
    %c352_155 = arith.constant 352 : index
    %175 = vector.load %arg26[%c33_154, %c352_155] : memref<320x384xf32, #tpu.memory_space<vmem>>, vector<16x32xf32>
    %176 = arith.addf %174, %175 : vector<16x32xf32>
    %cst_156 = arith.constant 0.000000e+00 : f32
    %177 = vector.broadcast %cst_156 : f32 to vector<16x32xf32>
    %178 = arith.maximumf %176, %177 : vector<16x32xf32>
    %c0_157 = arith.constant 0 : index
    %c0_158 = arith.constant 0 : index
    %179 = vector.load %arg12[%c0_157, %c0_158] : memref<32x384xf32, #tpu.memory_space<vmem>>, vector<32x384xf32>
    %cst_159 = arith.constant dense<0.000000e+00> : vector<16x384xf32>
    %180 = tpu.matmul %178, %179, %cst_159 {dimension_numbers = #tpu.dot_dimension_numbers<[1], [0], [0], [1], [0, 0, 1, 1], [], []>} : vector<16x32xf32>, vector<32x384xf32>, vector<16x384xf32> -> vector<16x384xf32>
    %c0_160 = arith.constant 0 : index
    %c0_161 = arith.constant 0 : index
    %181 = vector.load %arg19[%c0_160, %c0_161] : memref<16x384xf32, #tpu.memory_space<vmem>>, vector<16x384xf32>
    %182 = arith.mulf %180, %181 : vector<16x384xf32>
    %c24_162 = arith.constant 24 : index
    %c0_163 = arith.constant 0 : index
    %183 = vector.load %arg26[%c24_162, %c0_163] : memref<320x384xf32, #tpu.memory_space<vmem>>, vector<16x384xf32>
    tpu.vector_store %arg26[%c24_162, %c0_163], %182 {strides = array<i32>} : memref<320x384xf32, #tpu.memory_space<vmem>>, vector<16x384xf32>,
    %cst_164 = arith.constant 0.000000e+00 : f32
    %184 = vector.broadcast %cst_164 : f32 to vector<9x384xf32>
    %c40_165 = arith.constant 40 : index
    %c0_166 = arith.constant 0 : index
    %185 = vector.load %arg26[%c40_165, %c0_166] : memref<320x384xf32, #tpu.memory_space<vmem>>, vector<9x384xf32>
    tpu.vector_store %arg26[%c40_165, %c0_166], %184 {strides = array<i32>} : memref<320x384xf32, #tpu.memory_space<vmem>>, vector<9x384xf32>,
    %cst_167 = arith.constant 0.000000e+00 : f32
    %186 = vector.broadcast %cst_167 : f32 to vector<16x32xf32>
    %c0_168 = arith.constant 0 : index
    %c0_169 = arith.constant 0 : index
    %187 = vector.load %arg13[%c0_168, %c0_169] : memref<1x32xf32, #tpu.memory_space<vmem>>, vector<1x32xf32>
    %188 = vector.broadcast %187 : vector<1x32xf32> to vector<16x32xf32>
    %189 = arith.addf %186, %188 : vector<16x32xf32>
    %c19_170 = arith.constant 19 : index
    %c0_171 = arith.constant 0 : index
    %190 = vector.load %arg26[%c19_170, %c0_171] : memref<320x384xf32, #tpu.memory_space<vmem>>, vector<16x32xf32>
    %191 = arith.addf %189, %190 : vector<16x32xf32>
    %c20_172 = arith.constant 20 : index
    %c32_173 = arith.constant 32 : index
    %192 = vector.load %arg26[%c20_172, %c32_173] : memref<320x384xf32, #tpu.memory_space<vmem>>, vector<16x32xf32>
    %193 = arith.addf %191, %192 : vector<16x32xf32>
    %c21_174 = arith.constant 21 : index
    %c64_175 = arith.constant 64 : index
    %194 = vector.load %arg26[%c21_174, %c64_175] : memref<320x384xf32, #tpu.memory_space<vmem>>, vector<16x32xf32>
    %195 = arith.addf %193, %194 : vector<16x32xf32>
    %c23_176 = arith.constant 23 : index
    %c96_177 = arith.constant 96 : index
    %196 = vector.load %arg26[%c23_176, %c96_177] : memref<320x384xf32, #tpu.memory_space<vmem>>, vector<16x32xf32>
    %197 = arith.addf %195, %196 : vector<16x32xf32>
    %c24_178 = arith.constant 24 : index
    %c128_179 = arith.constant 128 : index
    %198 = vector.load %arg26[%c24_178, %c128_179] : memref<320x384xf32, #tpu.memory_space<vmem>>, vector<16x32xf32>
    %199 = arith.addf %197, %198 : vector<16x32xf32>
    %c25_180 = arith.constant 25 : index
    %c160_181 = arith.constant 160 : index
    %200 = vector.load %arg26[%c25_180, %c160_181] : memref<320x384xf32, #tpu.memory_space<vmem>>, vector<16x32xf32>
    %201 = arith.addf %199, %200 : vector<16x32xf32>
    %c27_182 = arith.constant 27 : index
    %c192_183 = arith.constant 192 : index
    %202 = vector.load %arg26[%c27_182, %c192_183] : memref<320x384xf32, #tpu.memory_space<vmem>>, vector<16x32xf32>
    %203 = arith.addf %201, %202 : vector<16x32xf32>
    %c28_184 = arith.constant 28 : index
    %c224_185 = arith.constant 224 : index
    %204 = vector.load %arg26[%c28_184, %c224_185] : memref<320x384xf32, #tpu.memory_space<vmem>>, vector<16x32xf32>
    %205 = arith.addf %203, %204 : vector<16x32xf32>
    %c29_186 = arith.constant 29 : index
    %c256_187 = arith.constant 256 : index
    %206 = vector.load %arg26[%c29_186, %c256_187] : memref<320x384xf32, #tpu.memory_space<vmem>>, vector<16x32xf32>
    %207 = arith.addf %205, %206 : vector<16x32xf32>
    %c31_188 = arith.constant 31 : index
    %c288_189 = arith.constant 288 : index
    %208 = vector.load %arg26[%c31_188, %c288_189] : memref<320x384xf32, #tpu.memory_space<vmem>>, vector<16x32xf32>
    %209 = arith.addf %207, %208 : vector<16x32xf32>
    %c32_190 = arith.constant 32 : index
    %c320_191 = arith.constant 320 : index
    %210 = vector.load %arg26[%c32_190, %c320_191] : memref<320x384xf32, #tpu.memory_space<vmem>>, vector<16x32xf32>
    %211 = arith.addf %209, %210 : vector<16x32xf32>
    %c33_192 = arith.constant 33 : index
    %c352_193 = arith.constant 352 : index
    %212 = vector.load %arg26[%c33_192, %c352_193] : memref<320x384xf32, #tpu.memory_space<vmem>>, vector<16x32xf32>
    %213 = arith.addf %211, %212 : vector<16x32xf32>
    %cst_194 = arith.constant 0.000000e+00 : f32
    %214 = vector.broadcast %cst_194 : f32 to vector<16x32xf32>
    %215 = arith.maximumf %213, %214 : vector<16x32xf32>
    %c0_195 = arith.constant 0 : index
    %c0_196 = arith.constant 0 : index
    %216 = vector.load %arg23[%c0_195, %c0_196] : memref<64x16xf32, #tpu.memory_space<vmem>>, vector<64x16xf32>
    %cst_197 = arith.constant dense<0.000000e+00> : vector<64x32xf32>
    %217 = tpu.matmul %216, %215, %cst_197 {dimension_numbers = #tpu.dot_dimension_numbers<[1], [0], [0], [1], [0, 0, 1, 1], [], []>} : vector<64x16xf32>, vector<16x32xf32>, vector<64x32xf32> -> vector<64x32xf32>
    %c0_198 = arith.constant 0 : index
    %c0_199 = arith.constant 0 : index
    %218 = vector.load %arg14[%c0_198, %c0_199] : memref<32x384xf32, #tpu.memory_space<vmem>>, vector<32x384xf32>
    %cst_200 = arith.constant dense<0.000000e+00> : vector<64x384xf32>
    %219 = tpu.matmul %217, %218, %cst_200 {dimension_numbers = #tpu.dot_dimension_numbers<[1], [0], [0], [1], [0, 0, 1, 1], [], []>} : vector<64x32xf32>, vector<32x384xf32>, vector<64x384xf32> -> vector<64x384xf32>
    %c0_201 = arith.constant 0 : index
    %c0_202 = arith.constant 0 : index
    %220 = vector.load %arg18[%c0_201, %c0_202] : memref<64x384xf32, #tpu.memory_space<vmem>>, vector<64x384xf32>
    %221 = arith.mulf %219, %220 : vector<64x384xf32>
    %c24_203 = arith.constant 24 : index
    %c0_204 = arith.constant 0 : index
    %222 = vector.load %arg26[%c24_203, %c0_204] : memref<320x384xf32, #tpu.memory_space<vmem>>, vector<64x384xf32>
    tpu.vector_store %arg26[%c24_203, %c0_204], %221 {strides = array<i32>} : memref<320x384xf32, #tpu.memory_space<vmem>>, vector<64x384xf32>,
    %cst_205 = arith.constant 0.000000e+00 : f32
    %223 = vector.broadcast %cst_205 : f32 to vector<17x384xf32>
    %c88_206 = arith.constant 88 : index
    %c0_207 = arith.constant 0 : index
    %224 = vector.load %arg26[%c88_206, %c0_207] : memref<320x384xf32, #tpu.memory_space<vmem>>, vector<17x384xf32>
    tpu.vector_store %arg26[%c88_206, %c0_207], %223 {strides = array<i32>} : memref<320x384xf32, #tpu.memory_space<vmem>>, vector<17x384xf32>,
    %cst_208 = arith.constant 0.000000e+00 : f32
    %225 = vector.broadcast %cst_208 : f32 to vector<64x32xf32>
    %c0_209 = arith.constant 0 : index
    %c0_210 = arith.constant 0 : index
    %226 = vector.load %arg15[%c0_209, %c0_210] : memref<1x32xf32, #tpu.memory_space<vmem>>, vector<1x32xf32>
    %227 = vector.broadcast %226 : vector<1x32xf32> to vector<64x32xf32>
    %228 = arith.addf %225, %227 : vector<64x32xf32>
    %c15_211 = arith.constant 15 : index
    %c0_212 = arith.constant 0 : index
    %229 = vector.load %arg26[%c15_211, %c0_212] : memref<320x384xf32, #tpu.memory_space<vmem>>, vector<64x32xf32>
    %230 = arith.addf %228, %229 : vector<64x32xf32>
    %c16_213 = arith.constant 16 : index
    %c32_214 = arith.constant 32 : index
    %231 = vector.load %arg26[%c16_213, %c32_214] : memref<320x384xf32, #tpu.memory_space<vmem>>, vector<64x32xf32>
    %232 = arith.addf %230, %231 : vector<64x32xf32>
    %c17_215 = arith.constant 17 : index
    %c64_216 = arith.constant 64 : index
    %233 = vector.load %arg26[%c17_215, %c64_216] : memref<320x384xf32, #tpu.memory_space<vmem>>, vector<64x32xf32>
    %234 = arith.addf %232, %233 : vector<64x32xf32>
    %c23_217 = arith.constant 23 : index
    %c96_218 = arith.constant 96 : index
    %235 = vector.load %arg26[%c23_217, %c96_218] : memref<320x384xf32, #tpu.memory_space<vmem>>, vector<64x32xf32>
    %236 = arith.addf %234, %235 : vector<64x32xf32>
    %c24_219 = arith.constant 24 : index
    %c128_220 = arith.constant 128 : index
    %237 = vector.load %arg26[%c24_219, %c128_220] : memref<320x384xf32, #tpu.memory_space<vmem>>, vector<64x32xf32>
    %238 = arith.addf %236, %237 : vector<64x32xf32>
    %c25_221 = arith.constant 25 : index
    %c160_222 = arith.constant 160 : index
    %239 = vector.load %arg26[%c25_221, %c160_222] : memref<320x384xf32, #tpu.memory_space<vmem>>, vector<64x32xf32>
    %240 = arith.addf %238, %239 : vector<64x32xf32>
    %c31_223 = arith.constant 31 : index
    %c192_224 = arith.constant 192 : index
    %241 = vector.load %arg26[%c31_223, %c192_224] : memref<320x384xf32, #tpu.memory_space<vmem>>, vector<64x32xf32>
    %242 = arith.addf %240, %241 : vector<64x32xf32>
    %c32_225 = arith.constant 32 : index
    %c224_226 = arith.constant 224 : index
    %243 = vector.load %arg26[%c32_225, %c224_226] : memref<320x384xf32, #tpu.memory_space<vmem>>, vector<64x32xf32>
    %244 = arith.addf %242, %243 : vector<64x32xf32>
    %c33_227 = arith.constant 33 : index
    %c256_228 = arith.constant 256 : index
    %245 = vector.load %arg26[%c33_227, %c256_228] : memref<320x384xf32, #tpu.memory_space<vmem>>, vector<64x32xf32>
    %246 = arith.addf %244, %245 : vector<64x32xf32>
    %c39_229 = arith.constant 39 : index
    %c288_230 = arith.constant 288 : index
    %247 = vector.load %arg26[%c39_229, %c288_230] : memref<320x384xf32, #tpu.memory_space<vmem>>, vector<64x32xf32>
    %248 = arith.addf %246, %247 : vector<64x32xf32>
    %c40_231 = arith.constant 40 : index
    %c320_232 = arith.constant 320 : index
    %249 = vector.load %arg26[%c40_231, %c320_232] : memref<320x384xf32, #tpu.memory_space<vmem>>, vector<64x32xf32>
    %250 = arith.addf %248, %249 : vector<64x32xf32>
    %c41_233 = arith.constant 41 : index
    %c352_234 = arith.constant 352 : index
    %251 = vector.load %arg26[%c41_233, %c352_234] : memref<320x384xf32, #tpu.memory_space<vmem>>, vector<64x32xf32>
    %252 = arith.addf %250, %251 : vector<64x32xf32>
    %cst_235 = arith.constant 0.000000e+00 : f32
    %253 = vector.broadcast %cst_235 : f32 to vector<64x32xf32>
    %254 = arith.maximumf %252, %253 : vector<64x32xf32>
    %c0_236 = arith.constant 0 : index
    %c0_237 = arith.constant 0 : index
    %255 = vector.load %arg24[%c0_236, %c0_237] : memref<256x64xf32, #tpu.memory_space<vmem>>, vector<256x64xf32>
    %cst_238 = arith.constant dense<0.000000e+00> : vector<256x32xf32>
    %256 = tpu.matmul %255, %254, %cst_238 {dimension_numbers = #tpu.dot_dimension_numbers<[1], [0], [0], [1], [0, 0, 1, 1], [], []>} : vector<256x64xf32>, vector<64x32xf32>, vector<256x32xf32> -> vector<256x32xf32>
    %c0_239 = arith.constant 0 : index
    %c0_240 = arith.constant 0 : index
    %257 = vector.load %arg16[%c0_239, %c0_240] : memref<32x12xf32, #tpu.memory_space<vmem>>, vector<32x12xf32>
    %cst_241 = arith.constant dense<0.000000e+00> : vector<256x12xf32>
    %258 = tpu.matmul %256, %257, %cst_241 {dimension_numbers = #tpu.dot_dimension_numbers<[1], [0], [0], [1], [0, 0, 1, 1], [], []>} : vector<256x32xf32>, vector<32x12xf32>, vector<256x12xf32> -> vector<256x12xf32>
    %c0_242 = arith.constant 0 : index
    %c0_243 = arith.constant 0 : index
    %259 = vector.load %arg20[%c0_242, %c0_243] : memref<256x12xf32, #tpu.memory_space<vmem>>, vector<256x12xf32>
    %260 = arith.mulf %258, %259 : vector<256x12xf32>
    %c24_244 = arith.constant 24 : index
    %c0_245 = arith.constant 0 : index
    %261 = vector.load %arg26[%c24_244, %c0_245] : memref<320x384xf32, #tpu.memory_space<vmem>>, vector<256x12xf32>
    tpu.vector_store %arg26[%c24_244, %c0_245], %260 {strides = array<i32>} : memref<320x384xf32, #tpu.memory_space<vmem>>, vector<256x12xf32>,
    %cst_246 = arith.constant 0.000000e+00 : f32
    %262 = vector.broadcast %cst_246 : f32 to vector<33x12xf32>
    %c280_247 = arith.constant 280 : index
    %c0_248 = arith.constant 0 : index
    %263 = vector.load %arg26[%c280_247, %c0_248] : memref<320x384xf32, #tpu.memory_space<vmem>>, vector<33x12xf32>
    tpu.vector_store %arg26[%c280_247, %c0_248], %262 {strides = array<i32>} : memref<320x384xf32, #tpu.memory_space<vmem>>, vector<33x12xf32>,
    %cst_249 = arith.constant 0.000000e+00 : f32
    %264 = vector.broadcast %cst_249 : f32 to vector<256x1xf32>
    %c0_250 = arith.constant 0 : index
    %c0_251 = arith.constant 0 : index
    %265 = vector.load %arg17[%c0_250, %c0_251] : memref<1x1xf32, #tpu.memory_space<vmem>>, vector<1x1xf32>
    %266 = vector.broadcast %265 : vector<1x1xf32> to vector<256x1xf32>
    %267 = arith.addf %264, %266 : vector<256x1xf32>
    %c7 = arith.constant 7 : index
    %c0_252 = arith.constant 0 : index
    %268 = vector.load %arg26[%c7, %c0_252] : memref<320x384xf32, #tpu.memory_space<vmem>>, vector<256x1xf32>
    %269 = arith.addf %267, %268 : vector<256x1xf32>
    %c8 = arith.constant 8 : index
    %c1 = arith.constant 1 : index
    %270 = vector.load %arg26[%c8, %c1] : memref<320x384xf32, #tpu.memory_space<vmem>>, vector<256x1xf32>
    %271 = arith.addf %269, %270 : vector<256x1xf32>
    %c9 = arith.constant 9 : index
    %c2 = arith.constant 2 : index
    %272 = vector.load %arg26[%c9, %c2] : memref<320x384xf32, #tpu.memory_space<vmem>>, vector<256x1xf32>
    %273 = arith.addf %271, %272 : vector<256x1xf32>
    %c23_253 = arith.constant 23 : index
    %c3 = arith.constant 3 : index
    %274 = vector.load %arg26[%c23_253, %c3] : memref<320x384xf32, #tpu.memory_space<vmem>>, vector<256x1xf32>
    %275 = arith.addf %273, %274 : vector<256x1xf32>
    %c24_254 = arith.constant 24 : index
    %c4 = arith.constant 4 : index
    %276 = vector.load %arg26[%c24_254, %c4] : memref<320x384xf32, #tpu.memory_space<vmem>>, vector<256x1xf32>
    %277 = arith.addf %275, %276 : vector<256x1xf32>
    %c25_255 = arith.constant 25 : index
    %c5 = arith.constant 5 : index
    %278 = vector.load %arg26[%c25_255, %c5] : memref<320x384xf32, #tpu.memory_space<vmem>>, vector<256x1xf32>
    %279 = arith.addf %277, %278 : vector<256x1xf32>
    %c39_256 = arith.constant 39 : index
    %c6 = arith.constant 6 : index
    %280 = vector.load %arg26[%c39_256, %c6] : memref<320x384xf32, #tpu.memory_space<vmem>>, vector<256x1xf32>
    %281 = arith.addf %279, %280 : vector<256x1xf32>
    %c40_257 = arith.constant 40 : index
    %c7_258 = arith.constant 7 : index
    %282 = vector.load %arg26[%c40_257, %c7_258] : memref<320x384xf32, #tpu.memory_space<vmem>>, vector<256x1xf32>
    %283 = arith.addf %281, %282 : vector<256x1xf32>
    %c41_259 = arith.constant 41 : index
    %c8_260 = arith.constant 8 : index
    %284 = vector.load %arg26[%c41_259, %c8_260] : memref<320x384xf32, #tpu.memory_space<vmem>>, vector<256x1xf32>
    %285 = arith.addf %283, %284 : vector<256x1xf32>
    %c55 = arith.constant 55 : index
    %c9_261 = arith.constant 9 : index
    %286 = vector.load %arg26[%c55, %c9_261] : memref<320x384xf32, #tpu.memory_space<vmem>>, vector<256x1xf32>
    %287 = arith.addf %285, %286 : vector<256x1xf32>
    %c56 = arith.constant 56 : index
    %c10 = arith.constant 10 : index
    %288 = vector.load %arg26[%c56, %c10] : memref<320x384xf32, #tpu.memory_space<vmem>>, vector<256x1xf32>
    %289 = arith.addf %287, %288 : vector<256x1xf32>
    %c57 = arith.constant 57 : index
    %c11 = arith.constant 11 : index
    %290 = vector.load %arg26[%c57, %c11] : memref<320x384xf32, #tpu.memory_space<vmem>>, vector<256x1xf32>
    %291 = arith.addf %289, %290 : vector<256x1xf32>
    %cst_262 = arith.constant 0.000000e+00 : f32
    %292 = vector.broadcast %cst_262 : f32 to vector<256x1xf32>
    %293 = arith.subf %292, %291 : vector<256x1xf32>
    %294 = math.exp %293 : vector<256x1xf32>
    %cst_263 = arith.constant 1.000000e+00 : f32
    %295 = vector.broadcast %cst_263 : f32 to vector<256x1xf32>
    %296 = arith.addf %295, %294 : vector<256x1xf32>
    %cst_264 = arith.constant 1.000000e+00 : f32
    %297 = vector.broadcast %cst_264 : f32 to vector<256x1xf32>
    %298 = arith.divf %297, %296 : vector<256x1xf32>
    %c0_265 = arith.constant 0 : index
    %c0_266 = arith.constant 0 : index
    %c0_267 = arith.constant 0 : index
    %299 = vector.load %arg25[%c0_265, %c0_266, %c0_267] : memref<1x256x1xf32, #tpu.memory_space<vmem>>, vector<1x256x1xf32>
    %300 = vector.shape_cast %299 : vector<1x256x1xf32> to vector<256x1xf32>
    %301 = vector.shape_cast %298 : vector<256x1xf32> to vector<1x256x1xf32>
    tpu.vector_store %arg25[%c0_265, %c0_266, %c0_267], %301 {strides = array<i32>} : memref<1x256x1xf32, #tpu.memory_space<vmem>>, vector<1x256x1xf32>,
    return
  }
  func.func @transform_0(%arg0: i32) -> (i32, i32, i32) {
    %c0_i32 = arith.constant 0 : i32
    %c0_i32_0 = arith.constant 0 : i32
    %c0_i32_1 = arith.constant 0 : i32
    return %arg0, %c0_i32, %c0_i32_0 : i32, i32, i32
  }
  func.func @transform_1(%arg0: i32) -> (i32, i32) {
    %c0_i32 = arith.constant 0 : i32
    %c0_i32_0 = arith.constant 0 : i32
    %c0_i32_1 = arith.constant 0 : i32
    return %c0_i32, %c0_i32_0 : i32, i32
  }
  func.func @transform_2(%arg0: i32) -> (i32, i32) {
    %c0_i32 = arith.constant 0 : i32
    %c0_i32_0 = arith.constant 0 : i32
    %c0_i32_1 = arith.constant 0 : i32
    return %c0_i32, %c0_i32_0 : i32, i32
  }
  func.func @transform_3(%arg0: i32) -> (i32, i32) {
    %c0_i32 = arith.constant 0 : i32
    %c0_i32_0 = arith.constant 0 : i32
    %c0_i32_1 = arith.constant 0 : i32
    return %c0_i32, %c0_i32_0 : i32, i32
  }
  func.func @transform_4(%arg0: i32) -> (i32, i32) {
    %c0_i32 = arith.constant 0 : i32
    %c0_i32_0 = arith.constant 0 : i32
    %c0_i32_1 = arith.constant 0 : i32
    return %c0_i32, %c0_i32_0 : i32, i32
  }
  func.func @transform_5(%arg0: i32) -> (i32, i32) {
    %c0_i32 = arith.constant 0 : i32
    %c0_i32_0 = arith.constant 0 : i32
    %c0_i32_1 = arith.constant 0 : i32
    return %c0_i32, %c0_i32_0 : i32, i32
  }
  func.func @transform_6(%arg0: i32) -> (i32, i32) {
    %c0_i32 = arith.constant 0 : i32
    %c0_i32_0 = arith.constant 0 : i32
    %c0_i32_1 = arith.constant 0 : i32
    return %c0_i32, %c0_i32_0 : i32, i32
  }
  func.func @transform_7(%arg0: i32) -> (i32, i32) {
    %c0_i32 = arith.constant 0 : i32
    %c0_i32_0 = arith.constant 0 : i32
    %c0_i32_1 = arith.constant 0 : i32
    return %c0_i32, %c0_i32_0 : i32, i32
  }
  func.func @transform_8(%arg0: i32) -> (i32, i32) {
    %c0_i32 = arith.constant 0 : i32
    %c0_i32_0 = arith.constant 0 : i32
    %c0_i32_1 = arith.constant 0 : i32
    return %c0_i32, %c0_i32_0 : i32, i32
  }
  func.func @transform_9(%arg0: i32) -> (i32, i32) {
    %c0_i32 = arith.constant 0 : i32
    %c0_i32_0 = arith.constant 0 : i32
    %c0_i32_1 = arith.constant 0 : i32
    return %c0_i32, %c0_i32_0 : i32, i32
  }
  func.func @transform_10(%arg0: i32) -> (i32, i32) {
    %c0_i32 = arith.constant 0 : i32
    %c0_i32_0 = arith.constant 0 : i32
    %c0_i32_1 = arith.constant 0 : i32
    return %c0_i32, %c0_i32_0 : i32, i32
  }
  func.func @transform_11(%arg0: i32) -> (i32, i32) {
    %c0_i32 = arith.constant 0 : i32
    %c0_i32_0 = arith.constant 0 : i32
    %c0_i32_1 = arith.constant 0 : i32
    return %c0_i32, %c0_i32_0 : i32, i32
  }
  func.func @transform_12(%arg0: i32) -> (i32, i32) {
    %c0_i32 = arith.constant 0 : i32
    %c0_i32_0 = arith.constant 0 : i32
    %c0_i32_1 = arith.constant 0 : i32
    return %c0_i32, %c0_i32_0 : i32, i32
  }
  func.func @transform_13(%arg0: i32) -> (i32, i32) {
    %c0_i32 = arith.constant 0 : i32
    %c0_i32_0 = arith.constant 0 : i32
    %c0_i32_1 = arith.constant 0 : i32
    return %c0_i32, %c0_i32_0 : i32, i32
  }
  func.func @transform_14(%arg0: i32) -> (i32, i32) {
    %c0_i32 = arith.constant 0 : i32
    %c0_i32_0 = arith.constant 0 : i32
    %c0_i32_1 = arith.constant 0 : i32
    return %c0_i32, %c0_i32_0 : i32, i32
  }
  func.func @transform_15(%arg0: i32) -> (i32, i32) {
    %c0_i32 = arith.constant 0 : i32
    %c0_i32_0 = arith.constant 0 : i32
    %c0_i32_1 = arith.constant 0 : i32
    return %c0_i32, %c0_i32_0 : i32, i32
  }
  func.func @transform_16(%arg0: i32) -> (i32, i32) {
    %c0_i32 = arith.constant 0 : i32
    %c0_i32_0 = arith.constant 0 : i32
    %c0_i32_1 = arith.constant 0 : i32
    return %c0_i32, %c0_i32_0 : i32, i32
  }
  func.func @transform_17(%arg0: i32) -> (i32, i32) {
    %c0_i32 = arith.constant 0 : i32
    %c0_i32_0 = arith.constant 0 : i32
    %c0_i32_1 = arith.constant 0 : i32
    return %c0_i32, %c0_i32_0 : i32, i32
  }
  func.func @transform_18(%arg0: i32) -> (i32, i32) {
    %c0_i32 = arith.constant 0 : i32
    %c0_i32_0 = arith.constant 0 : i32
    %c0_i32_1 = arith.constant 0 : i32
    return %c0_i32, %c0_i32_0 : i32, i32
  }
  func.func @transform_19(%arg0: i32) -> (i32, i32) {
    %c0_i32 = arith.constant 0 : i32
    %c0_i32_0 = arith.constant 0 : i32
    %c0_i32_1 = arith.constant 0 : i32
    return %c0_i32, %c0_i32_0 : i32, i32
  }
  func.func @transform_20(%arg0: i32) -> (i32, i32) {
    %c0_i32 = arith.constant 0 : i32
    %c0_i32_0 = arith.constant 0 : i32
    %c0_i32_1 = arith.constant 0 : i32
    return %c0_i32, %c0_i32_0 : i32, i32
  }
  func.func @transform_21(%arg0: i32) -> (i32, i32) {
    %c0_i32 = arith.constant 0 : i32
    %c0_i32_0 = arith.constant 0 : i32
    %c0_i32_1 = arith.constant 0 : i32
    return %c0_i32, %c0_i32_0 : i32, i32
  }
  func.func @transform_22(%arg0: i32) -> (i32, i32) {
    %c0_i32 = arith.constant 0 : i32
    %c0_i32_0 = arith.constant 0 : i32
    %c0_i32_1 = arith.constant 0 : i32
    return %c0_i32, %c0_i32_0 : i32, i32
  }
  func.func @transform_23(%arg0: i32) -> (i32, i32) {
    %c0_i32 = arith.constant 0 : i32
    %c0_i32_0 = arith.constant 0 : i32
    %c0_i32_1 = arith.constant 0 : i32
    return %c0_i32, %c0_i32_0 : i32, i32
  }
  func.func @transform_24(%arg0: i32) -> (i32, i32, i32) {
    %c0_i32 = arith.constant 0 : i32
    %c0_i32_0 = arith.constant 0 : i32
    %c0_i32_1 = arith.constant 0 : i32
    return %arg0, %c0_i32, %c0_i32_0 : i32, i32, i32
  }
}

</mosaic_0001>

<llo_original>
// kernel: convae_forward.1
$region0: #{convae_forward.1}
  #allocation0 [shape = 'u32[]', space=smem, size = 0x4, offset = 0x4, fixed_abs, tag = 'smem constant byte address 0x4 - core index']
  #allocation1 [shape = 'u32[144,128]{1,0:T(1,128)}', space=vmem, size = 0x12000, scoped, tag = 'internal scratch']
  #allocation2 [shape = 'f32[320,384]{1,0:T(8,128)}', space=vmem, size = 0x78000, scoped, tag = 'scratch operand']
  #allocation3 [shape = 'f32[1,1]{1,0:T(1,128)S(1)}', space=vmem, size = 0x200, scoped, tag = 'scoped memory for convae_forward.1']
  %s0 = inlined_call_operand.vmem [shape: f32[2,256,16], index: 0, kind: input, shape index: {}]
  %s1 = inlined_call_operand.vmem [shape: f32[16,32], index: 1, kind: input, shape index: {}]
  %s2 = inlined_call_operand.vmem [shape: f32[1,32], index: 2, kind: input, shape index: {}]
  %s3 = inlined_call_operand.vmem [shape: f32[32,384], index: 3, kind: input, shape index: {}]
  %s4 = inlined_call_operand.vmem [shape: f32[1,32], index: 4, kind: input, shape index: {}]
  %s5 = inlined_call_operand.vmem [shape: f32[32,384], index: 5, kind: input, shape index: {}]
  %s6 = inlined_call_operand.vmem [shape: f32[1,32], index: 6, kind: input, shape index: {}]
  %s7 = inlined_call_operand.vmem [shape: f32[32,384], index: 7, kind: input, shape index: {}]
  %s8 = inlined_call_operand.vmem [shape: f32[1,32], index: 8, kind: input, shape index: {}]
  %s9 = inlined_call_operand.vmem [shape: f32[32,384], index: 9, kind: input, shape index: {}]
  %s10 = inlined_call_operand.vmem [shape: f32[1,32], index: 10, kind: input, shape index: {}]
  %s11 = inlined_call_operand.vmem [shape: f32[32,384], index: 11, kind: input, shape index: {}]
  %s12 = inlined_call_operand.vmem [shape: f32[1,32], index: 12, kind: input, shape index: {}]
  %s13 = inlined_call_operand.vmem [shape: f32[32,384], index: 13, kind: input, shape index: {}]
  %s14 = inlined_call_operand.vmem [shape: f32[1,32], index: 14, kind: input, shape index: {}]
  %s15 = inlined_call_operand.vmem [shape: f32[32,12], index: 15, kind: input, shape index: {}]
  %s16 = inlined_call_operand.<no memory space> [shape: f32[1,1], index: 16, kind: input, shape index: {}]
  %s17 = inlined_call_operand.vmem [shape: f32[64,384], index: 17, kind: input, shape index: {}]
  %s18 = inlined_call_operand.vmem [shape: f32[16,384], index: 18, kind: input, shape index: {}]
  %s19 = inlined_call_operand.vmem [shape: f32[256,12], index: 19, kind: input, shape index: {}]
  %s20 = inlined_call_operand.vmem [shape: f32[64,256], index: 20, kind: input, shape index: {}]
  %s21 = inlined_call_operand.vmem [shape: f32[16,64], index: 21, kind: input, shape index: {}]
  %s22 = inlined_call_operand.vmem [shape: f32[64,16], index: 22, kind: input, shape index: {}]
  %s23 = inlined_call_operand.vmem [shape: f32[256,64], index: 23, kind: input, shape index: {}]
  %s24 = inlined_call_operand.vmem [shape: f32[2,256,1], index: 24, kind: output, shape index: {}]
  %s25 = sld [smem:[#allocation0]]
  $region129: #{convae_forward.1} parent=0
    _
  %s27 = ssub.s32 1, %s25
  %s28 = scalar_select 0, %s27, %s25
  %v29 = vstv %s16
  %30 = vst [vmem:[#allocation3] sm:$0x1] %v29
  loop: start=0, step=1, limit=4
  $region2: #{convae_forward.1} parent=0 // loop_pre_header
    _
  $region3: #{convae_forward.1} parent=0 // loop_header
    %s32 = sphi 0, %s36
    %p33 = scmp.ge.s32.totalorder %s32, 4
    %s42 = sphi 0, %s44
    %s45 = sphi 0, %s42
    %s46 = sphi 0, %s45
    %s62 = sphi 0, %s46
    %s66 = sphi 0, %s66
    %s68 = sphi 0, %s66
    %s69 = sphi 0, %s68
    %s83 = sphi 0, %s69
    %s87 = sphi 0, %s87
    %s89 = sphi 0, %s87
    %s90 = sphi 0, %s89
    %s104 = sphi 0, %s90
    %s108 = sphi 0, %s108
    %s110 = sphi 0, %s108
    %s111 = sphi 0, %s110
    %s125 = sphi 0, %s111
    %s129 = sphi 0, %s129
    %s131 = sphi 0, %s129
    %s132 = sphi 0, %s131
    %s146 = sphi 0, %s132
    %s150 = sphi 0, %s150
    %s152 = sphi 0, %s150
    %s153 = sphi 0, %s152
    %s167 = sphi 0, %s153
    %s171 = sphi 0, %s171
    %s173 = sphi 0, %s171
    %s174 = sphi 0, %s173
    %s188 = sphi 0, %s174
    %s192 = sphi 0, %s192
    %s194 = sphi 0, %s192
    %s195 = sphi 0, %s194
    %s209 = sphi 0, %s195
    %s213 = sphi 0, %s213
    %s215 = sphi 0, %s213
    %s216 = sphi 0, %s215
    %s230 = sphi 0, %s216
    %s234 = sphi 0, %s234
    %s236 = sphi 0, %s234
    %s237 = sphi 0, %s236
    %s251 = sphi 0, %s237
    %s255 = sphi 0, %s255
    %s257 = sphi 0, %s255
    %s258 = sphi 0, %s257
    %s272 = sphi 0, %s258
    %s276 = sphi 0, %s276
    %s278 = sphi 0, %s276
    %s279 = sphi 0, %s278
    %s293 = sphi 0, %s279
    %s297 = sphi 0, %s297
    %s299 = sphi 0, %s297
    %s300 = sphi 0, %s299
    %s314 = sphi 0, %s300
    %s318 = sphi 0, %s318
    %s320 = sphi 0, %s318
    %s321 = sphi 0, %s320
    %s335 = sphi 0, %s321
    %s339 = sphi 0, %s339
    %s341 = sphi 0, %s339
    %s342 = sphi 0, %s341
    %s356 = sphi 0, %s342
    %s360 = sphi 0, %s360
    %s362 = sphi 0, %s360
    %s363 = sphi 0, %s362
    %s377 = sphi 0, %s363
    %s381 = sphi 0, %s381
    %s383 = sphi 0, %s381
    %s384 = sphi 0, %s383
    %s398 = sphi 0, %s384
    %s402 = sphi 0, %s402
    %s404 = sphi 0, %s402
    %s405 = sphi 0, %s404
    %s419 = sphi 0, %s405
    %s423 = sphi 0, %s423
    %s425 = sphi 0, %s423
    %s426 = sphi 0, %s425
    %s440 = sphi 0, %s426
    %s444 = sphi 0, %s444
    %s446 = sphi 0, %s444
    %s447 = sphi 0, %s446
    %s461 = sphi 0, %s447
    %s465 = sphi 0, %s465
    %s467 = sphi 0, %s465
    %s468 = sphi 0, %s467
    %s482 = sphi 0, %s468
    %s486 = sphi 0, %s486
    %s488 = sphi 0, %s486
    %s489 = sphi 0, %s488
    %s503 = sphi 0, %s489
    %s507 = sphi 0, %s507
    %s509 = sphi 0, %s507
    %s510 = sphi 0, %s509
    %s524 = sphi 0, %s510
    %s528 = sphi 0, %s528
    %s530 = sphi 0, %s528
    %s531 = sphi 0, %s530
    %s545 = sphi 0, %s531
    %s551 = sphi 0, %s553
    %s554 = sphi 0, %s551
    %s555 = sphi 0, %s554
    %s571 = sphi 0, %s555
  $region4: #{convae_forward.1} parent=0 // loop_header_branch
    %35 = sbr.rel (%p33) target = $region8
  $region5: #{convae_forward.1} parent=0 // loop_body
    %s37 = ssub.s32 %s32, 1
    %s38 = ssub.s32 %s32, 2
    %s39 = sadd.s32 %s32, 1
    %s40 = ssub.s32 %s32, %s39
    %p41 = scmp.eq.s32.totalorder %s40, 0
    %s43 = sadd.s32 %s42, 1
    %s44 = scalar_select %p41, %s42, %s43
    %p47 = pneg %p41
    %p48 = scmp.eq.s32.totalorder %s32, 1
    %p49 = por %p47, %p48
    %p50 = scmp.ne.s32.totalorder %s42, %s45
    %p51 = scmp.eq.s32.totalorder %s32, 0
    %p52 = por %p50, %p51
    %p53 = scmp.ne.s32.totalorder %s42, %s45
    %p54 = scmp.eq.s32.totalorder %s37, 1
    %p55 = por %p53, %p54
    %p56 = scmp.ne.s32.totalorder %s45, %s46
    %p57 = scmp.eq.s32.totalorder %s37, 0
    %p58 = por %p56, %p57
    %p59 = scmp.ne.s32.totalorder %s45, %s46
    %p60 = scmp.eq.s32.totalorder %s38, 1
    %p61 = por %p59, %p60
    %p63 = scmp.ne.s32.totalorder %s46, %s62
    %p64 = scmp.eq.s32.totalorder %s38, 0
    %p65 = por %p63, %p64
    %s67 = sadd.s32 %s66, 1
    %p70 = scmp.eq.s32.totalorder %s32, 1
    %p71 = scmp.ne.s32.totalorder %s66, %s68
    %p72 = scmp.eq.s32.totalorder %s32, 0
    %p73 = por %p71, %p72
    %p74 = scmp.ne.s32.totalorder %s66, %s68
    %p75 = scmp.eq.s32.totalorder %s37, 1
    %p76 = por %p74, %p75
    %p77 = scmp.ne.s32.totalorder %s68, %s69
    %p78 = scmp.eq.s32.totalorder %s37, 0
    %p79 = por %p77, %p78
    %p80 = scmp.ne.s32.totalorder %s68, %s69
    %p81 = scmp.eq.s32.totalorder %s38, 1
    %p82 = por %p80, %p81
    %p84 = scmp.ne.s32.totalorder %s69, %s83
    %p85 = scmp.eq.s32.totalorder %s38, 0
    %p86 = por %p84, %p85
    %s88 = sadd.s32 %s87, 1
    %p91 = scmp.eq.s32.totalorder %s32, 1
    %p92 = scmp.ne.s32.totalorder %s87, %s89
    %p93 = scmp.eq.s32.totalorder %s32, 0
    %p94 = por %p92, %p93
    %p95 = scmp.ne.s32.totalorder %s87, %s89
    %p96 = scmp.eq.s32.totalorder %s37, 1
    %p97 = por %p95, %p96
    %p98 = scmp.ne.s32.totalorder %s89, %s90
    %p99 = scmp.eq.s32.totalorder %s37, 0
    %p100 = por %p98, %p99
    %p101 = scmp.ne.s32.totalorder %s89, %s90
    %p102 = scmp.eq.s32.totalorder %s38, 1
    %p103 = por %p101, %p102
    %p105 = scmp.ne.s32.totalorder %s90, %s104
    %p106 = scmp.eq.s32.totalorder %s38, 0
    %p107 = por %p105, %p106
    %s109 = sadd.s32 %s108, 1
    %p112 = scmp.eq.s32.totalorder %s32, 1
    %p113 = scmp.ne.s32.totalorder %s108, %s110
    %p114 = scmp.eq.s32.totalorder %s32, 0
    %p115 = por %p113, %p114
    %p116 = scmp.ne.s32.totalorder %s108, %s110
    %p117 = scmp.eq.s32.totalorder %s37, 1
    %p118 = por %p116, %p117
    %p119 = scmp.ne.s32.totalorder %s110, %s111
    %p120 = scmp.eq.s32.totalorder %s37, 0
    %p121 = por %p119, %p120
    %p122 = scmp.ne.s32.totalorder %s110, %s111
    %p123 = scmp.eq.s32.totalorder %s38, 1
    %p124 = por %p122, %p123
    %p126 = scmp.ne.s32.totalorder %s111, %s125
    %p127 = scmp.eq.s32.totalorder %s38, 0
    %p128 = por %p126, %p127
    %s130 = sadd.s32 %s129, 1
    %p133 = scmp.eq.s32.totalorder %s32, 1
    %p134 = scmp.ne.s32.totalorder %s129, %s131
    %p135 = scmp.eq.s32.totalorder %s32, 0
    %p136 = por %p134, %p135
    %p137 = scmp.ne.s32.totalorder %s129, %s131
    %p138 = scmp.eq.s32.totalorder %s37, 1
    %p139 = por %p137, %p138
    %p140 = scmp.ne.s32.totalorder %s131, %s132
    %p141 = scmp.eq.s32.totalorder %s37, 0
    %p142 = por %p140, %p141
    %p143 = scmp.ne.s32.totalorder %s131, %s132
    %p144 = scmp.eq.s32.totalorder %s38, 1
    %p145 = por %p143, %p144
    %p147 = scmp.ne.s32.totalorder %s132, %s146
    %p148 = scmp.eq.s32.totalorder %s38, 0
    %p149 = por %p147, %p148
    %s151 = sadd.s32 %s150, 1
    %p154 = scmp.eq.s32.totalorder %s32, 1
    %p155 = scmp.ne.s32.totalorder %s150, %s152
    %p156 = scmp.eq.s32.totalorder %s32, 0
    %p157 = por %p155, %p156
    %p158 = scmp.ne.s32.totalorder %s150, %s152
    %p159 = scmp.eq.s32.totalorder %s37, 1
    %p160 = por %p158, %p159
    %p161 = scmp.ne.s32.totalorder %s152, %s153
    %p162 = scmp.eq.s32.totalorder %s37, 0
    %p163 = por %p161, %p162
    %p164 = scmp.ne.s32.totalorder %s152, %s153
    %p165 = scmp.eq.s32.totalorder %s38, 1
    %p166 = por %p164, %p165
    %p168 = scmp.ne.s32.totalorder %s153, %s167
    %p169 = scmp.eq.s32.totalorder %s38, 0
    %p170 = por %p168, %p169
    %s172 = sadd.s32 %s171, 1
    %p175 = scmp.eq.s32.totalorder %s32, 1
    %p176 = scmp.ne.s32.totalorder %s171, %s173
    %p177 = scmp.eq.s32.totalorder %s32, 0
    %p178 = por %p176, %p177
    %p179 = scmp.ne.s32.totalorder %s171, %s173
    %p180 = scmp.eq.s32.totalorder %s37, 1
    %p181 = por %p179, %p180
    %p182 = scmp.ne.s32.totalorder %s173, %s174
    %p183 = scmp.eq.s32.totalorder %s37, 0
    %p184 = por %p182, %p183
    %p185 = scmp.ne.s32.totalorder %s173, %s174
    %p186 = scmp.eq.s32.totalorder %s38, 1
    %p187 = por %p185, %p186
    %p189 = scmp.ne.s32.totalorder %s174, %s188
    %p190 = scmp.eq.s32.totalorder %s38, 0
    %p191 = por %p189, %p190
    %s193 = sadd.s32 %s192, 1
    %p196 = scmp.eq.s32.totalorder %s32, 1
    %p197 = scmp.ne.s32.totalorder %s192, %s194
    %p198 = scmp.eq.s32.totalorder %s32, 0
    %p199 = por %p197, %p198
    %p200 = scmp.ne.s32.totalorder %s192, %s194
    %p201 = scmp.eq.s32.totalorder %s37, 1
    %p202 = por %p200, %p201
    %p203 = scmp.ne.s32.totalorder %s194, %s195
    %p204 = scmp.eq.s32.totalorder %s37, 0
    %p205 = por %p203, %p204
    %p206 = scmp.ne.s32.totalorder %s194, %s195
    %p207 = scmp.eq.s32.totalorder %s38, 1
    %p208 = por %p206, %p207
    %p210 = scmp.ne.s32.totalorder %s195, %s209
    %p211 = scmp.eq.s32.totalorder %s38, 0
    %p212 = por %p210, %p211
    %s214 = sadd.s32 %s213, 1
    %p217 = scmp.eq.s32.totalorder %s32, 1
    %p218 = scmp.ne.s32.totalorder %s213, %s215
    %p219 = scmp.eq.s32.totalorder %s32, 0
    %p220 = por %p218, %p219
    %p221 = scmp.ne.s32.totalorder %s213, %s215
    %p222 = scmp.eq.s32.totalorder %s37, 1
    %p223 = por %p221, %p222
    %p224 = scmp.ne.s32.totalorder %s215, %s216
    %p225 = scmp.eq.s32.totalorder %s37, 0
    %p226 = por %p224, %p225
    %p227 = scmp.ne.s32.totalorder %s215, %s216
    %p228 = scmp.eq.s32.totalorder %s38, 1
    %p229 = por %p227, %p228
    %p231 = scmp.ne.s32.totalorder %s216, %s230
    %p232 = scmp.eq.s32.totalorder %s38, 0
    %p233 = por %p231, %p232
    %s235 = sadd.s32 %s234, 1
    %p238 = scmp.eq.s32.totalorder %s32, 1
    %p239 = scmp.ne.s32.totalorder %s234, %s236
    %p240 = scmp.eq.s32.totalorder %s32, 0
    %p241 = por %p239, %p240
    %p242 = scmp.ne.s32.totalorder %s234, %s236
    %p243 = scmp.eq.s32.totalorder %s37, 1
    %p244 = por %p242, %p243
    %p245 = scmp.ne.s32.totalorder %s236, %s237
    %p246 = scmp.eq.s32.totalorder %s37, 0
    %p247 = por %p245, %p246
    %p248 = scmp.ne.s32.totalorder %s236, %s237
    %p249 = scmp.eq.s32.totalorder %s38, 1
    %p250 = por %p248, %p249
    %p252 = scmp.ne.s32.totalorder %s237, %s251
    %p253 = scmp.eq.s32.totalorder %s38, 0
    %p254 = por %p252, %p253
    %s256 = sadd.s32 %s255, 1
    %p259 = scmp.eq.s32.totalorder %s32, 1
    %p260 = scmp.ne.s32.totalorder %s255, %s257
    %p261 = scmp.eq.s32.totalorder %s32, 0
    %p262 = por %p260, %p261
    %p263 = scmp.ne.s32.totalorder %s255, %s257
    %p264 = scmp.eq.s32.totalorder %s37, 1
    %p265 = por %p263, %p264
    %p266 = scmp.ne.s32.totalorder %s257, %s258
    %p267 = scmp.eq.s32.totalorder %s37, 0
    %p268 = por %p266, %p267
    %p269 = scmp.ne.s32.totalorder %s257, %s258
    %p270 = scmp.eq.s32.totalorder %s38, 1
    %p271 = por %p269, %p270
    %p273 = scmp.ne.s32.totalorder %s258, %s272
    %p274 = scmp.eq.s32.totalorder %s38, 0
    %p275 = por %p273, %p274
    %s277 = sadd.s32 %s276, 1
    %p280 = scmp.eq.s32.totalorder %s32, 1
    %p281 = scmp.ne.s32.totalorder %s276, %s278
    %p282 = scmp.eq.s32.totalorder %s32, 0
    %p283 = por %p281, %p282
    %p284 = scmp.ne.s32.totalorder %s276, %s278
    %p285 = scmp.eq.s32.totalorder %s37, 1
    %p286 = por %p284, %p285
    %p287 = scmp.ne.s32.totalorder %s278, %s279
    %p288 = scmp.eq.s32.totalorder %s37, 0
    %p289 = por %p287, %p288
    %p290 = scmp.ne.s32.totalorder %s278, %s279
    %p291 = scmp.eq.s32.totalorder %s38, 1
    %p292 = por %p290, %p291
    %p294 = scmp.ne.s32.totalorder %s279, %s293
    %p295 = scmp.eq.s32.totalorder %s38, 0
    %p296 = por %p294, %p295
    %s298 = sadd.s32 %s297, 1
    %p301 = scmp.eq.s32.totalorder %s32, 1
    %p302 = scmp.ne.s32.totalorder %s297, %s299
    %p303 = scmp.eq.s32.totalorder %s32, 0
    %p304 = por %p302, %p303
    %p305 = scmp.ne.s32.totalorder %s297, %s299
    %p306 = scmp.eq.s32.totalorder %s37, 1
    %p307 = por %p305, %p306
    %p308 = scmp.ne.s32.totalorder %s299, %s300
    %p309 = scmp.eq.s32.totalorder %s37, 0
    %p310 = por %p308, %p309
    %p311 = scmp.ne.s32.totalorder %s299, %s300
    %p312 = scmp.eq.s32.totalorder %s38, 1
    %p313 = por %p311, %p312
    %p315 = scmp.ne.s32.totalorder %s300, %s314
    %p316 = scmp.eq.s32.totalorder %s38, 0
    %p317 = por %p315, %p316
    %s319 = sadd.s32 %s318, 1
    %p322 = scmp.eq.s32.totalorder %s32, 1
    %p323 = scmp.ne.s32.totalorder %s318, %s320
    %p324 = scmp.eq.s32.totalorder %s32, 0
    %p325 = por %p323, %p324
    %p326 = scmp.ne.s32.totalorder %s318, %s320
    %p327 = scmp.eq.s32.totalorder %s37, 1
    %p328 = por %p326, %p327
    %p329 = scmp.ne.s32.totalorder %s320, %s321
    %p330 = scmp.eq.s32.totalorder %s37, 0
    %p331 = por %p329, %p330
    %p332 = scmp.ne.s32.totalorder %s320, %s321
    %p333 = scmp.eq.s32.totalorder %s38, 1
    %p334 = por %p332, %p333
    %p336 = scmp.ne.s32.totalorder %s321, %s335
    %p337 = scmp.eq.s32.totalorder %s38, 0
    %p338 = por %p336, %p337
    %s340 = sadd.s32 %s339, 1
    %p343 = scmp.eq.s32.totalorder %s32, 1
    %p344 = scmp.ne.s32.totalorder %s339, %s341
    %p345 = scmp.eq.s32.totalorder %s32, 0
    %p346 = por %p344, %p345
    %p347 = scmp.ne.s32.totalorder %s339, %s341
    %p348 = scmp.eq.s32.totalorder %s37, 1
    %p349 = por %p347, %p348
    %p350 = scmp.ne.s32.totalorder %s341, %s342
    %p351 = scmp.eq.s32.totalorder %s37, 0
    %p352 = por %p350, %p351
    %p353 = scmp.ne.s32.totalorder %s341, %s342
    %p354 = scmp.eq.s32.totalorder %s38, 1
    %p355 = por %p353, %p354
    %p357 = scmp.ne.s32.totalorder %s342, %s356
    %p358 = scmp.eq.s32.totalorder %s38, 0
    %p359 = por %p357, %p358
    %s361 = sadd.s32 %s360, 1
    %p364 = scmp.eq.s32.totalorder %s32, 1
    %p365 = scmp.ne.s32.totalorder %s360, %s362
    %p366 = scmp.eq.s32.totalorder %s32, 0
    %p367 = por %p365, %p366
    %p368 = scmp.ne.s32.totalorder %s360, %s362
    %p369 = scmp.eq.s32.totalorder %s37, 1
    %p370 = por %p368, %p369
    %p371 = scmp.ne.s32.totalorder %s362, %s363
    %p372 = scmp.eq.s32.totalorder %s37, 0
    %p373 = por %p371, %p372
    %p374 = scmp.ne.s32.totalorder %s362, %s363
    %p375 = scmp.eq.s32.totalorder %s38, 1
    %p376 = por %p374, %p375
    %p378 = scmp.ne.s32.totalorder %s363, %s377
    %p379 = scmp.eq.s32.totalorder %s38, 0
    %p380 = por %p378, %p379
    %s382 = sadd.s32 %s381, 1
    %p385 = scmp.eq.s32.totalorder %s32, 1
    %p386 = scmp.ne.s32.totalorder %s381, %s383
    %p387 = scmp.eq.s32.totalorder %s32, 0
    %p388 = por %p386, %p387
    %p389 = scmp.ne.s32.totalorder %s381, %s383
    %p390 = scmp.eq.s32.totalorder %s37, 1
    %p391 = por %p389, %p390
    %p392 = scmp.ne.s32.totalorder %s383, %s384
    %p393 = scmp.eq.s32.totalorder %s37, 0
    %p394 = por %p392, %p393
    %p395 = scmp.ne.s32.totalorder %s383, %s384
    %p396 = scmp.eq.s32.totalorder %s38, 1
    %p397 = por %p395, %p396
    %p399 = scmp.ne.s32.totalorder %s384, %s398
    %p400 = scmp.eq.s32.totalorder %s38, 0
    %p401 = por %p399, %p400
    %s403 = sadd.s32 %s402, 1
    %p406 = scmp.eq.s32.totalorder %s32, 1
    %p407 = scmp.ne.s32.totalorder %s402, %s404
    %p408 = scmp.eq.s32.totalorder %s32, 0
    %p409 = por %p407, %p408
    %p410 = scmp.ne.s32.totalorder %s402, %s404
    %p411 = scmp.eq.s32.totalorder %s37, 1
    %p412 = por %p410, %p411
    %p413 = scmp.ne.s32.totalorder %s404, %s405
    %p414 = scmp.eq.s32.totalorder %s37, 0
    %p415 = por %p413, %p414
    %p416 = scmp.ne.s32.totalorder %s404, %s405
    %p417 = scmp.eq.s32.totalorder %s38, 1
    %p418 = por %p416, %p417
    %p420 = scmp.ne.s32.totalorder %s405, %s419
    %p421 = scmp.eq.s32.totalorder %s38, 0
    %p422 = por %p420, %p421
    %s424 = sadd.s32 %s423, 1
    %p427 = scmp.eq.s32.totalorder %s32, 1
    %p428 = scmp.ne.s32.totalorder %s423, %s425
    %p429 = scmp.eq.s32.totalorder %s32, 0
    %p430 = por %p428, %p429
    %p431 = scmp.ne.s32.totalorder %s423, %s425
    %p432 = scmp.eq.s32.totalorder %s37, 1
    %p433 = por %p431, %p432
    %p434 = scmp.ne.s32.totalorder %s425, %s426
    %p435 = scmp.eq.s32.totalorder %s37, 0
    %p436 = por %p434, %p435
    %p437 = scmp.ne.s32.totalorder %s425, %s426
    %p438 = scmp.eq.s32.totalorder %s38, 1
    %p439 = por %p437, %p438
    %p441 = scmp.ne.s32.totalorder %s426, %s440
    %p442 = scmp.eq.s32.totalorder %s38, 0
    %p443 = por %p441, %p442
    %s445 = sadd.s32 %s444, 1
    %p448 = scmp.eq.s32.totalorder %s32, 1
    %p449 = scmp.ne.s32.totalorder %s444, %s446
    %p450 = scmp.eq.s32.totalorder %s32, 0
    %p451 = por %p449, %p450
    %p452 = scmp.ne.s32.totalorder %s444, %s446
    %p453 = scmp.eq.s32.totalorder %s37, 1
    %p454 = por %p452, %p453
    %p455 = scmp.ne.s32.totalorder %s446, %s447
    %p456 = scmp.eq.s32.totalorder %s37, 0
    %p457 = por %p455, %p456
    %p458 = scmp.ne.s32.totalorder %s446, %s447
    %p459 = scmp.eq.s32.totalorder %s38, 1
    %p460 = por %p458, %p459
    %p462 = scmp.ne.s32.totalorder %s447, %s461
    %p463 = scmp.eq.s32.totalorder %s38, 0
    %p464 = por %p462, %p463
    %s466 = sadd.s32 %s465, 1
    %p469 = scmp.eq.s32.totalorder %s32, 1
    %p470 = scmp.ne.s32.totalorder %s465, %s467
    %p471 = scmp.eq.s32.totalorder %s32, 0
    %p472 = por %p470, %p471
    %p473 = scmp.ne.s32.totalorder %s465, %s467
    %p474 = scmp.eq.s32.totalorder %s37, 1
    %p475 = por %p473, %p474
    %p476 = scmp.ne.s32.totalorder %s467, %s468
    %p477 = scmp.eq.s32.totalorder %s37, 0
    %p478 = por %p476, %p477
    %p479 = scmp.ne.s32.totalorder %s467, %s468
    %p480 = scmp.eq.s32.totalorder %s38, 1
    %p481 = por %p479, %p480
    %p483 = scmp.ne.s32.totalorder %s468, %s482
    %p484 = scmp.eq.s32.totalorder %s38, 0
    %p485 = por %p483, %p484
    %s487 = sadd.s32 %s486, 1
    %p490 = scmp.eq.s32.totalorder %s32, 1
    %p491 = scmp.ne.s32.totalorder %s486, %s488
    %p492 = scmp.eq.s32.totalorder %s32, 0
    %p493 = por %p491, %p492
    %p494 = scmp.ne.s32.totalorder %s486, %s488
    %p495 = scmp.eq.s32.totalorder %s37, 1
    %p496 = por %p494, %p495
    %p497 = scmp.ne.s32.totalorder %s488, %s489
    %p498 = scmp.eq.s32.totalorder %s37, 0
    %p499 = por %p497, %p498
    %p500 = scmp.ne.s32.totalorder %s488, %s489
    %p501 = scmp.eq.s32.totalorder %s38, 1
    %p502 = por %p500, %p501
    %p504 = scmp.ne.s32.totalorder %s489, %s503
    %p505 = scmp.eq.s32.totalorder %s38, 0
    %p506 = por %p504, %p505
    %s508 = sadd.s32 %s507, 1
    %p511 = scmp.eq.s32.totalorder %s32, 1
    %p512 = scmp.ne.s32.totalorder %s507, %s509
    %p513 = scmp.eq.s32.totalorder %s32, 0
    %p514 = por %p512, %p513
    %p515 = scmp.ne.s32.totalorder %s507, %s509
    %p516 = scmp.eq.s32.totalorder %s37, 1
    %p517 = por %p515, %p516
    %p518 = scmp.ne.s32.totalorder %s509, %s510
    %p519 = scmp.eq.s32.totalorder %s37, 0
    %p520 = por %p518, %p519
    %p521 = scmp.ne.s32.totalorder %s509, %s510
    %p522 = scmp.eq.s32.totalorder %s38, 1
    %p523 = por %p521, %p522
    %p525 = scmp.ne.s32.totalorder %s510, %s524
    %p526 = scmp.eq.s32.totalorder %s38, 0
    %p527 = por %p525, %p526
    %s529 = sadd.s32 %s528, 1
    %p532 = scmp.eq.s32.totalorder %s32, 1
    %p533 = scmp.ne.s32.totalorder %s528, %s530
    %p534 = scmp.eq.s32.totalorder %s32, 0
    %p535 = por %p533, %p534
    %p536 = scmp.ne.s32.totalorder %s528, %s530
    %p537 = scmp.eq.s32.totalorder %s37, 1
    %p538 = por %p536, %p537
    %p539 = scmp.ne.s32.totalorder %s530, %s531
    %p540 = scmp.eq.s32.totalorder %s37, 0
    %p541 = por %p539, %p540
    %p542 = scmp.ne.s32.totalorder %s530, %s531
    %p543 = scmp.eq.s32.totalorder %s38, 1
    %p544 = por %p542, %p543
    %p546 = scmp.ne.s32.totalorder %s531, %s545
    %p547 = scmp.eq.s32.totalorder %s38, 0
    %p548 = por %p546, %p547
    %s549 = ssub.s32 %s32, %s39
    %p550 = scmp.eq.s32.totalorder %s549, 0
    %s552 = sadd.s32 %s551, 1
    %s553 = scalar_select %p550, %s551, %s552
    %p556 = pneg %p550
    %p557 = scmp.eq.s32.totalorder %s32, 1
    %p558 = por %p556, %p557
    %p559 = scmp.ne.s32.totalorder %s551, %s554
    %p560 = scmp.eq.s32.totalorder %s32, 0
    %p561 = por %p559, %p560
    %p562 = scmp.ne.s32.totalorder %s551, %s554
    %p563 = scmp.eq.s32.totalorder %s37, 1
    %p564 = por %p562, %p563
    %p565 = scmp.ne.s32.totalorder %s554, %s555
    %p566 = scmp.eq.s32.totalorder %s37, 0
    %p567 = por %p565, %p566
    %p568 = scmp.ne.s32.totalorder %s554, %s555
    %p569 = scmp.eq.s32.totalorder %s38, 1
    %p570 = por %p568, %p569
    %p572 = scmp.ne.s32.totalorder %s555, %s571
    %p573 = scmp.eq.s32.totalorder %s38, 0
    %p574 = por %p572, %p573
    %p575 = scmp.le.s32.totalorder 1, %s32
    %p576 = scmp.lt.s32.totalorder %s32, 3
    %p577 = pnand %p575, %p576
    %p578 = pneg %p577
    // Predicated region
    $region9: #{convae_forward.1} parent=5 // pred_check
      _
    $region10: #{convae_forward.1} parent=5 // pred_check_branch
      %580 = sbr.rel (%p577) target = $region12
    $region11: #{convae_forward.1} parent=5 // pred_region
      %s581 = ssub.s32 %s32, 1
      // Predicated region
      $region13: #{convae_forward.1} parent=11 // pred_check
        %p582 = pneg %p79
      $region14: #{convae_forward.1} parent=11 // pred_check_branch
        %584 = sbr.rel (%p582) target = $region16
      $region15: #{convae_forward.1} parent=11 // pred_region
        _
      $region16: #{convae_forward.1} parent=11 // pred_fallthru
        _
      // Predicated region
      $region17: #{convae_forward.1} parent=11 // pred_check
        %p585 = pneg %p100
      $region18: #{convae_forward.1} parent=11 // pred_check_branch
        %587 = sbr.rel (%p585) target = $region20
      $region19: #{convae_forward.1} parent=11 // pred_region
        _
      $region20: #{convae_forward.1} parent=11 // pred_fallthru
        _
      // Predicated region
      $region21: #{convae_forward.1} parent=11 // pred_check
        %p588 = pneg %p121
      $region22: #{convae_forward.1} parent=11 // pred_check_branch
        %590 = sbr.rel (%p588) target = $region24
      $region23: #{convae_forward.1} parent=11 // pred_region
        _
      $region24: #{convae_forward.1} parent=11 // pred_fallthru
        _
      // Predicated region
      $region25: #{convae_forward.1} parent=11 // pred_check
        %p591 = pneg %p142
      $region26: #{convae_forward.1} parent=11 // pred_check_branch
        %593 = sbr.rel (%p591) target = $region28
      $region27: #{convae_forward.1} parent=11 // pred_region
        _
      $region28: #{convae_forward.1} parent=11 // pred_fallthru
        _
      // Predicated region
      $region29: #{convae_forward.1} parent=11 // pred_check
        %p594 = pneg %p163
      $region30: #{convae_forward.1} parent=11 // pred_check_branch
        %596 = sbr.rel (%p594) target = $region32
      $region31: #{convae_forward.1} parent=11 // pred_region
        _
      $region32: #{convae_forward.1} parent=11 // pred_fallthru
        _
      // Predicated region
      $region33: #{convae_forward.1} parent=11 // pred_check
        %p597 = pneg %p184
      $region34: #{convae_forward.1} parent=11 // pred_check_branch
        %599 = sbr.rel (%p597) target = $region36
      $region35: #{convae_forward.1} parent=11 // pred_region
        _
      $region36: #{convae_forward.1} parent=11 // pred_fallthru
        _
      // Predicated region
      $region37: #{convae_forward.1} parent=11 // pred_check
        %p600 = pneg %p205
      $region38: #{convae_forward.1} parent=11 // pred_check_branch
        %602 = sbr.rel (%p600) target = $region40
      $region39: #{convae_forward.1} parent=11 // pred_region
        _
      $region40: #{convae_forward.1} parent=11 // pred_fallthru
        _
      // Predicated region
      $region41: #{convae_forward.1} parent=11 // pred_check
        %p603 = pneg %p226
      $region42: #{convae_forward.1} parent=11 // pred_check_branch
        %605 = sbr.rel (%p603) target = $region44
      $region43: #{convae_forward.1} parent=11 // pred_region
        _
      $region44: #{convae_forward.1} parent=11 // pred_fallthru
        _
      // Predicated region
      $region45: #{convae_forward.1} parent=11 // pred_check
        %p606 = pneg %p247
      $region46: #{convae_forward.1} parent=11 // pred_check_branch
        %608 = sbr.rel (%p606) target = $region48
      $region47: #{convae_forward.1} parent=11 // pred_region
        _
      $region48: #{convae_forward.1} parent=11 // pred_fallthru
        _
      // Predicated region
      $region49: #{convae_forward.1} parent=11 // pred_check
        %p609 = pneg %p268
      $region50: #{convae_forward.1} parent=11 // pred_check_branch
        %611 = sbr.rel (%p609) target = $region52
      $region51: #{convae_forward.1} parent=11 // pred_region
        _
      $region52: #{convae_forward.1} parent=11 // pred_fallthru
        _
      // Predicated region
      $region53: #{convae_forward.1} parent=11 // pred_check
        %p612 = pneg %p289
      $region54: #{convae_forward.1} parent=11 // pred_check_branch
        %614 = sbr.rel (%p612) target = $region56
      $region55: #{convae_forward.1} parent=11 // pred_region
        _
      $region56: #{convae_forward.1} parent=11 // pred_fallthru
        _
      // Predicated region
      $region57: #{convae_forward.1} parent=11 // pred_check
        %p615 = pneg %p310
      $region58: #{convae_forward.1} parent=11 // pred_check_branch
        %617 = sbr.rel (%p615) target = $region60
      $region59: #{convae_forward.1} parent=11 // pred_region
        _
      $region60: #{convae_forward.1} parent=11 // pred_fallthru
        _
      // Predicated region
      $region61: #{convae_forward.1} parent=11 // pred_check
        %p618 = pneg %p331
      $region62: #{convae_forward.1} parent=11 // pred_check_branch
        %620 = sbr.rel (%p618) target = $region64
      $region63: #{convae_forward.1} parent=11 // pred_region
        _
      $region64: #{convae_forward.1} parent=11 // pred_fallthru
        _
      // Predicated region
      $region65: #{convae_forward.1} parent=11 // pred_check
        %p621 = pneg %p352
      $region66: #{convae_forward.1} parent=11 // pred_check_branch
        %623 = sbr.rel (%p621) target = $region68
      $region67: #{convae_forward.1} parent=11 // pred_region
        _
      $region68: #{convae_forward.1} parent=11 // pred_fallthru
        _
      // Predicated region
      $region69: #{convae_forward.1} parent=11 // pred_check
        %p624 = pneg %p373
      $region70: #{convae_forward.1} parent=11 // pred_check_branch
        %626 = sbr.rel (%p624) target = $region72
      $region71: #{convae_forward.1} parent=11 // pred_region
        _
      $region72: #{convae_forward.1} parent=11 // pred_fallthru
        _
      // Predicated region
      $region73: #{convae_forward.1} parent=11 // pred_check
        %p627 = pneg %p394
      $region74: #{convae_forward.1} parent=11 // pred_check_branch
        %629 = sbr.rel (%p627) target = $region76
      $region75: #{convae_forward.1} parent=11 // pred_region
        _
      $region76: #{convae_forward.1} parent=11 // pred_fallthru
        _
      // Predicated region
      $region77: #{convae_forward.1} parent=11 // pred_check
        %p630 = pneg %p415
      $region78: #{convae_forward.1} parent=11 // pred_check_branch
        %632 = sbr.rel (%p630) target = $region80
      $region79: #{convae_forward.1} parent=11 // pred_region
        _
      $region80: #{convae_forward.1} parent=11 // pred_fallthru
        _
      // Predicated region
      $region81: #{convae_forward.1} parent=11 // pred_check
        %p633 = pneg %p436
      $region82: #{convae_forward.1} parent=11 // pred_check_branch
        %635 = sbr.rel (%p633) target = $region84
      $region83: #{convae_forward.1} parent=11 // pred_region
        _
      $region84: #{convae_forward.1} parent=11 // pred_fallthru
        _
      // Predicated region
      $region85: #{convae_forward.1} parent=11 // pred_check
        %p636 = pneg %p457
      $region86: #{convae_forward.1} parent=11 // pred_check_branch
        %638 = sbr.rel (%p636) target = $region88
      $region87: #{convae_forward.1} parent=11 // pred_region
        _
      $region88: #{convae_forward.1} parent=11 // pred_fallthru
        _
      // Predicated region
      $region89: #{convae_forward.1} parent=11 // pred_check
        %p639 = pneg %p478
      $region90: #{convae_forward.1} parent=11 // pred_check_branch
        %641 = sbr.rel (%p639) target = $region92
      $region91: #{convae_forward.1} parent=11 // pred_region
        _
      $region92: #{convae_forward.1} parent=11 // pred_fallthru
        _
      // Predicated region
      $region93: #{convae_forward.1} parent=11 // pred_check
        %p642 = pneg %p499
      $region94: #{convae_forward.1} parent=11 // pred_check_branch
        %644 = sbr.rel (%p642) target = $region96
      $region95: #{convae_forward.1} parent=11 // pred_region
        _
      $region96: #{convae_forward.1} parent=11 // pred_fallthru
        _
      // Predicated region
      $region97: #{convae_forward.1} parent=11 // pred_check
        %p645 = pneg %p520
      $region98: #{convae_forward.1} parent=11 // pred_check_branch
        %647 = sbr.rel (%p645) target = $region100
      $region99: #{convae_forward.1} parent=11 // pred_region
        _
      $region100: #{convae_forward.1} parent=11 // pred_fallthru
        _
      // Predicated region
      $region101: #{convae_forward.1} parent=11 // pred_check
        %p648 = pneg %p541
      $region102: #{convae_forward.1} parent=11 // pred_check_branch
        %650 = sbr.rel (%p648) target = $region104
      $region103: #{convae_forward.1} parent=11 // pred_region
        _
      $region104: #{convae_forward.1} parent=11 // pred_fallthru
        _
    $region12: #{convae_forward.1} parent=5 // pred_fallthru
      _
    %p651 = scmp.lt.s32.totalorder %s32, 2
    // Predicated region
    $region105: #{convae_forward.1} parent=5 // pred_check
      %p652 = pneg %p651
    $region106: #{convae_forward.1} parent=5 // pred_check_branch
      %654 = sbr.rel (%p652) target = $region108
    $region107: #{convae_forward.1} parent=5 // pred_region
      // Predicated region
      $region109: #{convae_forward.1} parent=107 // pred_check
        %p655 = pneg %p52
      $region110: #{convae_forward.1} parent=107 // pred_check_branch
        %657 = sbr.rel (%p655) target = $region112
      $region111: #{convae_forward.1} parent=107 // pred_region
        %p658 = scmp.lt.s32.totalorder %s32, 1
        %s659 = scalar_select %p658, %s32, 1
        %s660 = smul.addr %s659, 32
        %s661 = smul.addr %s660, 8
        %s662 = scalar_lea.vmem %s0, %s661
      $region112: #{convae_forward.1} parent=107 // pred_fallthru
        _
    $region108: #{convae_forward.1} parent=5 // pred_fallthru
      _
    %p663 = scmp.le.s32.totalorder 1, %s32
    %p664 = scmp.lt.s32.totalorder %s32, 3
    %p665 = pnand %p663, %p664
    %p666 = pneg %p665
    // Predicated region
    $region113: #{convae_forward.1} parent=5 // pred_check
      _
    $region114: #{convae_forward.1} parent=5 // pred_check_branch
      %668 = sbr.rel (%p665) target = $region116
    $region115: #{convae_forward.1} parent=5 // pred_region
      %s669 = ssub.s32 %s32, 1
      %p670 = scmp.lt.s32.totalorder %s37, 1
      %s671 = scalar_select %p670, %s37, 1
      %s672 = smul.addr %s671, 32
      %s673 = smul.addr %s672, 8
      %s674 = scalar_lea.vmem %s0, %s673
      %p675 = pneg %p58
      %p676 = pneg %p55
      %p677 = pneg %p79
      %p678 = pneg %p76
      %p679 = pneg %p100
      %p680 = pneg %p97
      %p681 = pneg %p121
      %p682 = pneg %p118
      %p683 = pneg %p142
      %p684 = pneg %p139
      %p685 = pneg %p163
      %p686 = pneg %p160
      %p687 = pneg %p184
      %p688 = pneg %p181
      %p689 = pneg %p205
      %p690 = pneg %p202
      %p691 = pneg %p226
      %p692 = pneg %p223
      %p693 = pneg %p247
      %p694 = pneg %p244
      %p695 = pneg %p268
      %p696 = pneg %p265
      %p697 = pneg %p289
      %p698 = pneg %p286
      %p699 = pneg %p310
      %p700 = pneg %p307
      %p701 = pneg %p331
      %p702 = pneg %p328
      %p703 = pneg %p352
      %p704 = pneg %p349
      %p705 = pneg %p373
      %p706 = pneg %p370
      %p707 = pneg %p394
      %p708 = pneg %p391
      %p709 = pneg %p415
      %p710 = pneg %p412
      %p711 = pneg %p436
      %p712 = pneg %p433
      %p713 = pneg %p457
      %p714 = pneg %p454
      %p715 = pneg %p478
      %p716 = pneg %p475
      %p717 = pneg %p499
      %p718 = pneg %p496
      %p719 = pneg %p520
      %p720 = pneg %p517
      %p721 = pneg %p541
      %p722 = pneg %p538
      %p723 = pneg %p567
      %p724 = pneg %p564
      %p725 = scmp.lt.s32.totalorder %s37, 1
      %s726 = scalar_select %p725, %s37, 1
      %s727 = smul.addr %s726, 32
      %s728 = smul.addr %s727, 8
      %s729 = scalar_lea.vmem %s24, %s728
      %p730 = scmp.lt.s32.totalorder %s37, 1
      %s731 = scalar_select %p730, %s37, 1
      %s732 = smul.addr %s731, 32
      %s733 = smul.addr %s732, 8
      %s734 = scalar_lea.vmem %s0, %s733
      %p735 = scmp.lt.s32.totalorder %s37, 1
      %s736 = scalar_select %p735, %s37, 1
      %s737 = smul.addr %s736, 32
      %s738 = smul.addr %s737, 8
      %s739 = scalar_lea.vmem %s24, %s738
      %740 = vst [vmem:[#allocation2] sm:$0xff] 0.0
      %741 = vst [vmem:[#allocation2 + $0x8] sm:$0xff] 0.0
      %742 = vst [vmem:[#allocation2 + $0x10] sm:$0xff] 0.0
      %743 = vst [vmem:[#allocation2 + $0x18] sm:$0xff] 0.0
      %744 = vst [vmem:[#allocation2 + $0x20] sm:$0xff] 0.0
      %745 = vst [vmem:[#allocation2 + $0x28] sm:$0xff] 0.0
      %746 = vst [vmem:[#allocation2 + $0x30] sm:$0xff] 0.0
      %747 = vst [vmem:[#allocation2 + $0x38] sm:$0xff] 0.0
      %748 = vst [vmem:[#allocation2 + $0x40] sm:$0xff] 0.0
      %749 = vst [vmem:[#allocation2 + $0x348] sm:$0xff] 0.0
      %750 = vst [vmem:[#allocation2 + $0x350] sm:$0xff] 0.0
      %751 = vst [vmem:[#allocation2 + $0x358] sm:$0xff] 0.0
      %752 = vst [vmem:[#allocation2 + $0x360] sm:$0xff] 0.0
      %753 = vst [vmem:[#allocation2 + $0x368] sm:$0xff] 0.0
      %754 = vst [vmem:[#allocation2 + $0x370] sm:$0xff] 0.0
      %755 = vst [vmem:[#allocation2 + $0x378] sm:$0xff] 0.0
      %756 = vst [vmem:[#allocation2 + $0x380] sm:$0xff] 0.0
      %757 = vst [vmem:[#allocation2 + $0x388] sm:$0xff] 0.0
      %758 = vst [vmem:[#allocation2 + $0x390] sm:$0xff] 0.0
      %759 = vst [vmem:[#allocation2 + $0x398] sm:$0xff] 0.0
      %760 = vst [vmem:[#allocation2 + $0x3a0] sm:$0xff] 0.0
      %761 = vst [vmem:[#allocation2 + $0x3a8] sm:$0xff] 0.0
      %762 = vst [vmem:[#allocation2 + $0x3b0] sm:$0xff] 0.0
      %763 = vst [vmem:[#allocation2 + $0x3b8] sm:$0xff] 0.0
      %v764 = vld [vmem:[%s734] sm:$0xff]
      %v765 = vld [vmem:[%s734 + $0x8] sm:$0xff]
      %v766 = vld [vmem:[%s734 + $0x10] sm:$0xff]
      %v767 = vld [vmem:[%s734 + $0x18] sm:$0xff]
      %v768 = vld [vmem:[%s734 + $0x20] sm:$0xff]
      %v769 = vld [vmem:[%s734 + $0x28] sm:$0xff]
      %v770 = vld [vmem:[%s734 + $0x30] sm:$0xff]
      %v771 = vld [vmem:[%s734 + $0x38] sm:$0xff]
      %v772 = vld [vmem:[%s734 + $0x40] sm:$0xff]
      %v773 = vld [vmem:[%s734 + $0x48] sm:$0xff]
      %v774 = vld [vmem:[%s734 + $0x50] sm:$0xff]
      %v775 = vld [vmem:[%s734 + $0x58] sm:$0xff]
      %v776 = vld [vmem:[%s734 + $0x60] sm:$0xff]
      %v777 = vld [vmem:[%s734 + $0x68] sm:$0xff]
      %v778 = vld [vmem:[%s734 + $0x70] sm:$0xff]
      %v779 = vld [vmem:[%s734 + $0x78] sm:$0xff]
      %v780 = vld [vmem:[%s734 + $0x80] sm:$0xff]
      %v781 = vld [vmem:[%s734 + $0x88] sm:$0xff]
      %v782 = vld [vmem:[%s734 + $0x90] sm:$0xff]
      %v783 = vld [vmem:[%s734 + $0x98] sm:$0xff]
      %v784 = vld [vmem:[%s734 + $0xa0] sm:$0xff]
      %v785 = vld [vmem:[%s734 + $0xa8] sm:$0xff]
      %v786 = vld [vmem:[%s734 + $0xb0] sm:$0xff]
      %v787 = vld [vmem:[%s734 + $0xb8] sm:$0xff]
      %v788 = vld [vmem:[%s734 + $0xc0] sm:$0xff]
      %v789 = vld [vmem:[%s734 + $0xc8] sm:$0xff]
      %v790 = vld [vmem:[%s734 + $0xd0] sm:$0xff]
      %v791 = vld [vmem:[%s734 + $0xd8] sm:$0xff]
      %v792 = vld [vmem:[%s734 + $0xe0] sm:$0xff]
      %v793 = vld [vmem:[%s734 + $0xe8] sm:$0xff]
      %v794 = vld [vmem:[%s734 + $0xf0] sm:$0xff]
      %v795 = vld [vmem:[%s734 + $0xf8] sm:$0xff]
      %v796 = vld [vmem:[%s1] sm:$0xff]
      %v797 = vld [vmem:[%s1 + $0x8] sm:$0xff]
      %v798 = vld [vmem:[%s2] sm:$0x1]
      %v800 = vlaneseq
      %v801 = vshrl.u32 %v800, 7
      %v802 = vsub.s32 0, %v801
      %v803 = vrot.slane %v798, %v802
      %vm805 = vcmask 130048
      %v807 = vsel %vm805, %v764, 0
      %v810 = vsel %vm805, %v765, 0
      %v813 = vsel %vm805, %v766, 0
      %v816 = vsel %vm805, %v767, 0
      %v819 = vsel %vm805, %v768, 0
      %v822 = vsel %vm805, %v769, 0
      %v825 = vsel %vm805, %v770, 0
      %v828 = vsel %vm805, %v771, 0
      %v831 = vsel %vm805, %v772, 0
      %v834 = vsel %vm805, %v773, 0
      %v837 = vsel %vm805, %v774, 0
      %v840 = vsel %vm805, %v775, 0
      %v843 = vsel %vm805, %v776, 0
      %v846 = vsel %vm805, %v777, 0
      %v849 = vsel %vm805, %v778, 0
      %v852 = vsel %vm805, %v779, 0
      %v855 = vsel %vm805, %v780, 0
      %v858 = vsel %vm805, %v781, 0
      %v861 = vsel %vm805, %v782, 0
      %v864 = vsel %vm805, %v783, 0
      %v867 = vsel %vm805, %v784, 0
      %v870 = vsel %vm805, %v785, 0
      %v873 = vsel %vm805, %v786, 0
      %v876 = vsel %vm805, %v787, 0
      %v879 = vsel %vm805, %v788, 0
      %v882 = vsel %vm805, %v789, 0
      %v885 = vsel %vm805, %v790, 0
      %v888 = vsel %vm805, %v791, 0
      %v891 = vsel %vm805, %v792, 0
      %v894 = vsel %vm805, %v793, 0
      %v897 = vsel %vm805, %v794, 0
      %v900 = vsel %vm805, %v795, 0
      %902 = vmatprep.subr.mxu0 0.0
      %903 = vmatpush1.msra.mxu0 0.0
      %904 = vmatprep.subr.mxu0 0.0
      %905 = vmatpush1.msra.mxu0 0.0
      %906 = vmatprep.subr.mxu0 0.0
      %907 = vmatpush1.msra.mxu0 0.0
      %908 = vmatprep.subr.mxu0 0.0
      %909 = vmatpush1.msra.mxu0 0.0
      %910 = vmatprep.subr.mxu0 0.0
      %911 = vmatpush1.msra.mxu0 0.0
      %912 = vmatprep.subr.mxu0 0.0
      %913 = vmatpush1.msra.mxu0 0.0
      %914 = vmatprep.subr.mxu0 0.0
      %915 = vmatpush1.msra.mxu0 0.0
      %916 = vmatprep.subr.mxu0 0.0
      %917 = vmatpush1.msra.mxu0 0.0
      %918 = vmatprep.subr.mxu0 0.0
      %919 = vmatpush1.msra.mxu0 0.0
      %920 = vmatprep.subr.mxu0 0.0
      %921 = vmatpush1.msra.mxu0 0.0
      %922 = vmatprep.subr.mxu0 0.0
      %923 = vmatpush1.msra.mxu0 0.0
      %924 = vmatprep.subr.mxu0 0.0
      %925 = vmatpush1.msra.mxu0 0.0
      %926 = vmatprep.subr.mxu0 0.0
      %927 = vmatpush1.msra.mxu0 0.0
      %928 = vmatprep.subr.mxu0 0.0
      %929 = vmatpush1.msra.mxu0 0.0
      %930 = vmatprep.subr.mxu0 0.0
      %931 = vmatpush1.msra.mxu0 %v797
      %932 = vmatprep.subr.mxu0 0.0
      %933 = vmatpush1.msra.mxu0 %v796
      %934 = vmatprep.subr.mxu0 0.0
      %935 = vmatpush2.msra.mxu0 0.0
      %936 = vmatprep.subr.mxu0 0.0
      %937 = vmatpush2.msra.mxu0 0.0
      %938 = vmatprep.subr.mxu0 0.0
      %939 = vmatpush2.msra.mxu0 0.0
      %940 = vmatprep.subr.mxu0 0.0
      %941 = vmatpush2.msra.mxu0 0.0
      %942 = vmatprep.subr.mxu0 0.0
      %943 = vmatpush2.msra.mxu0 0.0
      %944 = vmatprep.subr.mxu0 0.0
      %945 = vmatpush2.msra.mxu0 0.0
      %946 = vmatprep.subr.mxu0 0.0
      %947 = vmatpush2.msra.mxu0 0.0
      %948 = vmatprep.subr.mxu0 0.0
      %949 = vmatpush2.msra.mxu0 0.0
      %950 = vmatprep.subr.mxu0 0.0
      %951 = vmatpush2.msra.mxu0 0.0
      %952 = vmatprep.subr.mxu0 0.0
      %953 = vmatpush2.msra.mxu0 0.0
      %954 = vmatprep.subr.mxu0 0.0
      %955 = vmatpush2.msra.mxu0 0.0
      %956 = vmatprep.subr.mxu0 0.0
      %957 = vmatpush2.msra.mxu0 0.0
      %958 = vmatprep.subr.mxu0 0.0
      %959 = vmatpush2.msra.mxu0 0.0
      %960 = vmatprep.subr.mxu0 0.0
      %961 = vmatpush2.msra.mxu0 0.0
      %962 = vmatprep.subr.mxu0 0.0
      %963 = vmatpush2.msra.mxu0 0.0
      %964 = vmatprep.subr.mxu0 0.0
      %965 = vmatpush2.msra.mxu0 0.0
      %966 = vmatprep.mubr.f32.mxu0 0.0
      %967 = vmatmul.mubr.f32.gmra.mxu0 %v807
      %v968 = vpop.f32.mrf.mxu0
      %v969 = vadd.f32 %v803, %v968
      %v970 = vpop.f32.mrf.mxu0
      %971 = vmatprep.mubr.f32.mxu0 0.0
      %972 = vmatmul.mubr.f32.gmra.mxu0 %v810
      %v973 = vpop.f32.mrf.mxu0
      %v974 = vadd.f32 %v803, %v973
      %v975 = vpop.f32.mrf.mxu0
      %976 = vmatprep.mubr.f32.mxu0 0.0
      %977 = vmatmul.mubr.f32.gmra.mxu0 %v813
      %v978 = vpop.f32.mrf.mxu0
      %v979 = vadd.f32 %v803, %v978
      %v980 = vpop.f32.mrf.mxu0
      %981 = vmatprep.mubr.f32.mxu0 0.0
      %982 = vmatmul.mubr.f32.gmra.mxu0 %v816
      %v983 = vpop.f32.mrf.mxu0
      %v984 = vadd.f32 %v803, %v983
      %v985 = vpop.f32.mrf.mxu0
      %986 = vmatprep.mubr.f32.mxu0 0.0
      %987 = vmatmul.mubr.f32.gmra.mxu0 %v819
      %v988 = vpop.f32.mrf.mxu0
      %v989 = vadd.f32 %v803, %v988
      %v990 = vpop.f32.mrf.mxu0
      %991 = vmatprep.mubr.f32.mxu0 0.0
      %992 = vmatmul.mubr.f32.gmra.mxu0 %v822
      %v993 = vpop.f32.mrf.mxu0
      %v994 = vadd.f32 %v803, %v993
      %v995 = vpop.f32.mrf.mxu0
      %996 = vmatprep.mubr.f32.mxu0 0.0
      %997 = vmatmul.mubr.f32.gmra.mxu0 %v825
      %v998 = vpop.f32.mrf.mxu0
      %v999 = vadd.f32 %v803, %v998
      %v1000 = vpop.f32.mrf.mxu0
      %1001 = vmatprep.mubr.f32.mxu0 0.0
      %1002 = vmatmul.mubr.f32.gmra.mxu0 %v828
      %v1003 = vpop.f32.mrf.mxu0
      %v1004 = vadd.f32 %v803, %v1003
      %v1005 = vpop.f32.mrf.mxu0
      %1006 = vmatprep.mubr.f32.mxu0 0.0
      %1007 = vmatmul.mubr.f32.gmra.mxu0 %v831
      %v1008 = vpop.f32.mrf.mxu0
      %v1009 = vadd.f32 %v803, %v1008
      %v1010 = vpop.f32.mrf.mxu0
      %1011 = vmatprep.mubr.f32.mxu0 0.0
      %1012 = vmatmul.mubr.f32.gmra.mxu0 %v834
      %v1013 = vpop.f32.mrf.mxu0
      %v1014 = vadd.f32 %v803, %v1013
      %v1015 = vpop.f32.mrf.mxu0
      %1016 = vmatprep.mubr.f32.mxu0 0.0
      %1017 = vmatmul.mubr.f32.gmra.mxu0 %v837
      %v1018 = vpop.f32.mrf.mxu0
      %v1019 = vadd.f32 %v803, %v1018
      %v1020 = vpop.f32.mrf.mxu0
      %1021 = vmatprep.mubr.f32.mxu0 0.0
      %1022 = vmatmul.mubr.f32.gmra.mxu0 %v840
      %v1023 = vpop.f32.mrf.mxu0
      %v1024 = vadd.f32 %v803, %v1023
      %v1025 = vpop.f32.mrf.mxu0
      %1026 = vmatprep.mubr.f32.mxu0 0.0
      %1027 = vmatmul.mubr.f32.gmra.mxu0 %v843
      %v1028 = vpop.f32.mrf.mxu0
      %v1029 = vadd.f32 %v803, %v1028
      %v1030 = vpop.f32.mrf.mxu0
      %1031 = vmatprep.mubr.f32.mxu0 0.0
      %1032 = vmatmul.mubr.f32.gmra.mxu0 %v846
      %v1033 = vpop.f32.mrf.mxu0
      %v1034 = vadd.f32 %v803, %v1033
      %v1035 = vpop.f32.mrf.mxu0
      %1036 = vmatprep.mubr.f32.mxu0 0.0
      %1037 = vmatmul.mubr.f32.gmra.mxu0 %v849
      %v1038 = vpop.f32.mrf.mxu0
      %v1039 = vadd.f32 %v803, %v1038
      %v1040 = vpop.f32.mrf.mxu0
      %1041 = vmatprep.mubr.f32.mxu0 0.0
      %1042 = vmatmul.mubr.f32.gmra.mxu0 %v852
      %v1043 = vpop.f32.mrf.mxu0
      %v1044 = vadd.f32 %v803, %v1043
      %v1045 = vpop.f32.mrf.mxu0
      %1046 = vmatprep.mubr.f32.mxu0 0.0
      %1047 = vmatmul.mubr.f32.gmra.mxu0 %v855
      %v1048 = vpop.f32.mrf.mxu0
      %v1049 = vadd.f32 %v803, %v1048
      %v1050 = vpop.f32.mrf.mxu0
      %1051 = vmatprep.mubr.f32.mxu0 0.0
      %1052 = vmatmul.mubr.f32.gmra.mxu0 %v858
      %v1053 = vpop.f32.mrf.mxu0
      %v1054 = vadd.f32 %v803, %v1053
      %v1055 = vpop.f32.mrf.mxu0
      %1056 = vmatprep.mubr.f32.mxu0 0.0
      %1057 = vmatmul.mubr.f32.gmra.mxu0 %v861
      %v1058 = vpop.f32.mrf.mxu0
      %v1059 = vadd.f32 %v803, %v1058
      %v1060 = vpop.f32.mrf.mxu0
      %1061 = vmatprep.mubr.f32.mxu0 0.0
      %1062 = vmatmul.mubr.f32.gmra.mxu0 %v864
      %v1063 = vpop.f32.mrf.mxu0
      %v1064 = vadd.f32 %v803, %v1063
      %v1065 = vpop.f32.mrf.mxu0
      %1066 = vmatprep.mubr.f32.mxu0 0.0
      %1067 = vmatmul.mubr.f32.gmra.mxu0 %v867
      %v1068 = vpop.f32.mrf.mxu0
      %v1069 = vadd.f32 %v803, %v1068
      %v1070 = vpop.f32.mrf.mxu0
      %1071 = vmatprep.mubr.f32.mxu0 0.0
      %1072 = vmatmul.mubr.f32.gmra.mxu0 %v870
      %v1073 = vpop.f32.mrf.mxu0
      %v1074 = vadd.f32 %v803, %v1073
      %v1075 = vpop.f32.mrf.mxu0
      %1076 = vmatprep.mubr.f32.mxu0 0.0
      %1077 = vmatmul.mubr.f32.gmra.mxu0 %v873
      %v1078 = vpop.f32.mrf.mxu0
      %v1079 = vadd.f32 %v803, %v1078
      %v1080 = vpop.f32.mrf.mxu0
      %1081 = vmatprep.mubr.f32.mxu0 0.0
      %1082 = vmatmul.mubr.f32.gmra.mxu0 %v876
      %v1083 = vpop.f32.mrf.mxu0
      %v1084 = vadd.f32 %v803, %v1083
      %v1085 = vpop.f32.mrf.mxu0
      %1086 = vmatprep.mubr.f32.mxu0 0.0
      %1087 = vmatmul.mubr.f32.gmra.mxu0 %v879
      %v1088 = vpop.f32.mrf.mxu0
      %v1089 = vadd.f32 %v803, %v1088
      %v1090 = vpop.f32.mrf.mxu0
      %1091 = vmatprep.mubr.f32.mxu0 0.0
      %1092 = vmatmul.mubr.f32.gmra.mxu0 %v882
      %v1093 = vpop.f32.mrf.mxu0
      %v1094 = vadd.f32 %v803, %v1093
      %v1095 = vpop.f32.mrf.mxu0
      %1096 = vmatprep.mubr.f32.mxu0 0.0
      %1097 = vmatmul.mubr.f32.gmra.mxu0 %v885
      %v1098 = vpop.f32.mrf.mxu0
      %v1099 = vadd.f32 %v803, %v1098
      %v1100 = vpop.f32.mrf.mxu0
      %1101 = vmatprep.mubr.f32.mxu0 0.0
      %1102 = vmatmul.mubr.f32.gmra.mxu0 %v888
      %v1103 = vpop.f32.mrf.mxu0
      %v1104 = vadd.f32 %v803, %v1103
      %v1105 = vpop.f32.mrf.mxu0
      %1106 = vmatprep.mubr.f32.mxu0 0.0
      %1107 = vmatmul.mubr.f32.gmra.mxu0 %v891
      %v1108 = vpop.f32.mrf.mxu0
      %v1109 = vadd.f32 %v803, %v1108
      %v1110 = vpop.f32.mrf.mxu0
      %1111 = vmatprep.mubr.f32.mxu0 0.0
      %1112 = vmatmul.mubr.f32.gmra.mxu0 %v894
      %v1113 = vpop.f32.mrf.mxu0
      %v1114 = vadd.f32 %v803, %v1113
      %v1115 = vpop.f32.mrf.mxu0
      %1116 = vmatprep.mubr.f32.mxu0 0.0
      %1117 = vmatmul.mubr.f32.gmra.mxu0 %v897
      %v1118 = vpop.f32.mrf.mxu0
      %v1119 = vadd.f32 %v803, %v1118
      %v1120 = vpop.f32.mrf.mxu0
      %1121 = vmatprep.mubr.f32.mxu0 0.0
      %1122 = vmatmul.mubr.f32.gmra.mxu0 %v900
      %v1123 = vpop.f32.mrf.mxu0
      %v1124 = vadd.f32 %v803, %v1123
      %v1125 = vpop.f32.mrf.mxu0
      %1126 = vdwg.mxu0
      %v1127 = vmax.f32 %v969, 0.0
      %v1128 = vmax.f32 %v974, 0.0
      %v1129 = vmax.f32 %v979, 0.0
      %v1130 = vmax.f32 %v984, 0.0
      %v1131 = vmax.f32 %v989, 0.0
      %v1132 = vmax.f32 %v994, 0.0
      %v1133 = vmax.f32 %v999, 0.0
      %v1134 = vmax.f32 %v1004, 0.0
      %v1135 = vmax.f32 %v1009, 0.0
      %v1136 = vmax.f32 %v1014, 0.0
      %v1137 = vmax.f32 %v1019, 0.0
      %v1138 = vmax.f32 %v1024, 0.0
      %v1139 = vmax.f32 %v1029, 0.0
      %v1140 = vmax.f32 %v1034, 0.0
      %v1141 = vmax.f32 %v1039, 0.0
      %v1142 = vmax.f32 %v1044, 0.0
      %v1143 = vmax.f32 %v1049, 0.0
      %v1144 = vmax.f32 %v1054, 0.0
      %v1145 = vmax.f32 %v1059, 0.0
      %v1146 = vmax.f32 %v1064, 0.0
      %v1147 = vmax.f32 %v1069, 0.0
      %v1148 = vmax.f32 %v1074, 0.0
      %v1149 = vmax.f32 %v1079, 0.0
      %v1150 = vmax.f32 %v1084, 0.0
      %v1151 = vmax.f32 %v1089, 0.0
      %v1152 = vmax.f32 %v1094, 0.0
      %v1153 = vmax.f32 %v1099, 0.0
      %v1154 = vmax.f32 %v1104, 0.0
      %v1155 = vmax.f32 %v1109, 0.0
      %v1156 = vmax.f32 %v1114, 0.0
      %v1157 = vmax.f32 %v1119, 0.0
      %v1158 = vmax.f32 %v1124, 0.0
      %vm1159 = vcmask 261120
      %1160 = vst.msk [vmem:[#allocation2 + $0x48] sm:$0xff] %vm1159, %v1127
      %1161 = vst.msk [vmem:[#allocation2 + $0x60] sm:$0xff] %vm1159, %v1128
      %1162 = vst.msk [vmem:[#allocation2 + $0x78] sm:$0xff] %vm1159, %v1129
      %1163 = vst.msk [vmem:[#allocation2 + $0x90] sm:$0xff] %vm1159, %v1130
      %1164 = vst.msk [vmem:[#allocation2 + $0xa8] sm:$0xff] %vm1159, %v1131
      %1165 = vst.msk [vmem:[#allocation2 + $0xc0] sm:$0xff] %vm1159, %v1132
      %1166 = vst.msk [vmem:[#allocation2 + $0xd8] sm:$0xff] %vm1159, %v1133
      %1167 = vst.msk [vmem:[#allocation2 + $0xf0] sm:$0xff] %vm1159, %v1134
      %1168 = vst.msk [vmem:[#allocation2 + $0x108] sm:$0xff] %vm1159, %v1135
      %1169 = vst.msk [vmem:[#allocation2 + $0x120] sm:$0xff] %vm1159, %v1136
      %1170 = vst.msk [vmem:[#allocation2 + $0x138] sm:$0xff] %vm1159, %v1137
      %1171 = vst.msk [vmem:[#allocation2 + $0x150] sm:$0xff] %vm1159, %v1138
      %1172 = vst.msk [vmem:[#allocation2 + $0x168] sm:$0xff] %vm1159, %v1139
      %1173 = vst.msk [vmem:[#allocation2 + $0x180] sm:$0xff] %vm1159, %v1140
      %1174 = vst.msk [vmem:[#allocation2 + $0x198] sm:$0xff] %vm1159, %v1141
      %1175 = vst.msk [vmem:[#allocation2 + $0x1b0] sm:$0xff] %vm1159, %v1142
      %1176 = vst.msk [vmem:[#allocation2 + $0x1c8] sm:$0xff] %vm1159, %v1143
      %1177 = vst.msk [vmem:[#allocation2 + $0x1e0] sm:$0xff] %vm1159, %v1144
      %1178 = vst.msk [vmem:[#allocation2 + $0x1f8] sm:$0xff] %vm1159, %v1145
      %1179 = vst.msk [vmem:[#allocation2 + $0x210] sm:$0xff] %vm1159, %v1146
      %1180 = vst.msk [vmem:[#allocation2 + $0x228] sm:$0xff] %vm1159, %v1147
      %1181 = vst.msk [vmem:[#allocation2 + $0x240] sm:$0xff] %vm1159, %v1148
      %1182 = vst.msk [vmem:[#allocation2 + $0x258] sm:$0xff] %vm1159, %v1149
      %1183 = vst.msk [vmem:[#allocation2 + $0x270] sm:$0xff] %vm1159, %v1150
      %1184 = vst.msk [vmem:[#allocation2 + $0x288] sm:$0xff] %vm1159, %v1151
      %1185 = vst.msk [vmem:[#allocation2 + $0x2a0] sm:$0xff] %vm1159, %v1152
      %1186 = vst.msk [vmem:[#allocation2 + $0x2b8] sm:$0xff] %vm1159, %v1153
      %1187 = vst.msk [vmem:[#allocation2 + $0x2d0] sm:$0xff] %vm1159, %v1154
      %1188 = vst.msk [vmem:[#allocation2 + $0x2e8] sm:$0xff] %vm1159, %v1155
      %1189 = vst.msk [vmem:[#allocation2 + $0x300] sm:$0xff] %vm1159, %v1156
      %1190 = vst.msk [vmem:[#allocation2 + $0x318] sm:$0xff] %vm1159, %v1157
      %1191 = vst.msk [vmem:[#allocation2 + $0x330] sm:$0xff] %vm1159, %v1158
      %v1192 = vld [vmem:[#allocation2 + $0x48] sm:$0xfe]
      %v1193 = vld [vmem:[#allocation2 + $0x60] sm:$0xff]
      %v1194 = vld [vmem:[#allocation2 + $0x78] sm:$0xff]
      %v1195 = vld [vmem:[#allocation2 + $0x90] sm:$0xff]
      %v1196 = vld [vmem:[#allocation2 + $0xa8] sm:$0xff]
      %v1197 = vld [vmem:[#allocation2 + $0xc0] sm:$0xff]
      %v1198 = vld [vmem:[#allocation2 + $0xd8] sm:$0xff]
      %v1199 = vld [vmem:[#allocation2 + $0xf0] sm:$0xff]
      %v1200 = vld [vmem:[#allocation2 + $0x108] sm:$0xff]
      %v1201 = vld [vmem:[#allocation2 + $0x120] sm:$0xff]
      %v1202 = vld [vmem:[#allocation2 + $0x138] sm:$0xff]
      %v1203 = vld [vmem:[#allocation2 + $0x150] sm:$0xff]
      %v1204 = vld [vmem:[#allocation2 + $0x168] sm:$0xff]
      %v1205 = vld [vmem:[#allocation2 + $0x180] sm:$0xff]
      %v1206 = vld [vmem:[#allocation2 + $0x198] sm:$0xff]
      %v1207 = vld [vmem:[#allocation2 + $0x1b0] sm:$0xff]
      %v1208 = vld [vmem:[#allocation2 + $0x1c8] sm:$0xff]
      %v1209 = vld [vmem:[#allocation2 + $0x1e0] sm:$0xff]
      %v1210 = vld [vmem:[#allocation2 + $0x1f8] sm:$0xff]
      %v1211 = vld [vmem:[#allocation2 + $0x210] sm:$0xff]
      %v1212 = vld [vmem:[#allocation2 + $0x228] sm:$0xff]
      %v1213 = vld [vmem:[#allocation2 + $0x240] sm:$0xff]
      %v1214 = vld [vmem:[#allocation2 + $0x258] sm:$0xff]
      %v1215 = vld [vmem:[#allocation2 + $0x270] sm:$0xff]
      %v1216 = vld [vmem:[#allocation2 + $0x288] sm:$0xff]
      %v1217 = vld [vmem:[#allocation2 + $0x2a0] sm:$0xff]
      %v1218 = vld [vmem:[#allocation2 + $0x2b8] sm:$0xff]
      %v1219 = vld [vmem:[#allocation2 + $0x2d0] sm:$0xff]
      %v1220 = vld [vmem:[#allocation2 + $0x2e8] sm:$0xff]
      %v1221 = vld [vmem:[#allocation2 + $0x300] sm:$0xff]
      %v1222 = vld [vmem:[#allocation2 + $0x318] sm:$0xff]
      %v1223 = vld [vmem:[#allocation2 + $0x330] sm:$0xff]
      %v1224 = vld [vmem:[#allocation2 + $0x348] sm:$0x1]
      %vm1258 = vcmask 1046528
      %v1259 = vrot.slane %v1192, 1
      %v1260 = vrot.slane %v1193, 1
      %v1261 = vsel %vm1258, %v1259, %v1260
      %v1262 = vrot.slane %v1194, 1
      %v1263 = vsel %vm1258, %v1260, %v1262
      %v1264 = vrot.slane %v1195, 1
      %v1265 = vsel %vm1258, %v1262, %v1264
      %v1266 = vrot.slane %v1196, 1
      %v1267 = vsel %vm1258, %v1264, %v1266
      %v1268 = vrot.slane %v1197, 1
      %v1269 = vsel %vm1258, %v1266, %v1268
      %v1270 = vrot.slane %v1198, 1
      %v1271 = vsel %vm1258, %v1268, %v1270
      %v1272 = vrot.slane %v1199, 1
      %v1273 = vsel %vm1258, %v1270, %v1272
      %v1274 = vrot.slane %v1200, 1
      %v1275 = vsel %vm1258, %v1272, %v1274
      %v1276 = vrot.slane %v1201, 1
      %v1277 = vsel %vm1258, %v1274, %v1276
      %v1278 = vrot.slane %v1202, 1
      %v1279 = vsel %vm1258, %v1276, %v1278
      %v1280 = vrot.slane %v1203, 1
      %v1281 = vsel %vm1258, %v1278, %v1280
      %v1282 = vrot.slane %v1204, 1
      %v1283 = vsel %vm1258, %v1280, %v1282
      %v1284 = vrot.slane %v1205, 1
      %v1285 = vsel %vm1258, %v1282, %v1284
      %v1286 = vrot.slane %v1206, 1
      %v1287 = vsel %vm1258, %v1284, %v1286
      %v1288 = vrot.slane %v1207, 1
      %v1289 = vsel %vm1258, %v1286, %v1288
      %v1290 = vrot.slane %v1208, 1
      %v1291 = vsel %vm1258, %v1288, %v1290
      %v1292 = vrot.slane %v1209, 1
      %v1293 = vsel %vm1258, %v1290, %v1292
      %v1294 = vrot.slane %v1210, 1
      %v1295 = vsel %vm1258, %v1292, %v1294
      %v1296 = vrot.slane %v1211, 1
      %v1297 = vsel %vm1258, %v1294, %v1296
      %v1298 = vrot.slane %v1212, 1
      %v1299 = vsel %vm1258, %v1296, %v1298
      %v1300 = vrot.slane %v1213, 1
      %v1301 = vsel %vm1258, %v1298, %v1300
      %v1302 = vrot.slane %v1214, 1
      %v1303 = vsel %vm1258, %v1300, %v1302
      %v1304 = vrot.slane %v1215, 1
      %v1305 = vsel %vm1258, %v1302, %v1304
      %v1306 = vrot.slane %v1216, 1
      %v1307 = vsel %vm1258, %v1304, %v1306
      %v1308 = vrot.slane %v1217, 1
      %v1309 = vsel %vm1258, %v1306, %v1308
      %v1310 = vrot.slane %v1218, 1
      %v1311 = vsel %vm1258, %v1308, %v1310
      %v1312 = vrot.slane %v1219, 1
      %v1313 = vsel %vm1258, %v1310, %v1312
      %v1314 = vrot.slane %v1220, 1
      %v1315 = vsel %vm1258, %v1312, %v1314
      %v1316 = vrot.slane %v1221, 1
      %v1317 = vsel %vm1258, %v1314, %v1316
      %v1318 = vrot.slane %v1222, 1
      %v1319 = vsel %vm1258, %v1316, %v1318
      %v1320 = vrot.slane %v1223, 1
      %v1321 = vsel %vm1258, %v1318, %v1320
      %v1322 = vrot.slane %v1224, 1
      %v1323 = vsel %vm1258, %v1320, %v1322
      %v1356 = vmax.f32 %v1127, %v1261
      %v1357 = vmax.f32 %v1128, %v1263
      %v1358 = vmax.f32 %v1129, %v1265
      %v1359 = vmax.f32 %v1130, %v1267
      %v1360 = vmax.f32 %v1131, %v1269
      %v1361 = vmax.f32 %v1132, %v1271
      %v1362 = vmax.f32 %v1133, %v1273
      %v1363 = vmax.f32 %v1134, %v1275
      %v1364 = vmax.f32 %v1135, %v1277
      %v1365 = vmax.f32 %v1136, %v1279
      %v1366 = vmax.f32 %v1137, %v1281
      %v1367 = vmax.f32 %v1138, %v1283
      %v1368 = vmax.f32 %v1139, %v1285
      %v1369 = vmax.f32 %v1140, %v1287
      %v1370 = vmax.f32 %v1141, %v1289
      %v1371 = vmax.f32 %v1142, %v1291
      %v1372 = vmax.f32 %v1143, %v1293
      %v1373 = vmax.f32 %v1144, %v1295
      %v1374 = vmax.f32 %v1145, %v1297
      %v1375 = vmax.f32 %v1146, %v1299
      %v1376 = vmax.f32 %v1147, %v1301
      %v1377 = vmax.f32 %v1148, %v1303
      %v1378 = vmax.f32 %v1149, %v1305
      %v1379 = vmax.f32 %v1150, %v1307
      %v1380 = vmax.f32 %v1151, %v1309
      %v1381 = vmax.f32 %v1152, %v1311
      %v1382 = vmax.f32 %v1153, %v1313
      %v1383 = vmax.f32 %v1154, %v1315
      %v1384 = vmax.f32 %v1155, %v1317
      %v1385 = vmax.f32 %v1156, %v1319
      %v1386 = vmax.f32 %v1157, %v1321
      %v1387 = vmax.f32 %v1158, %v1323
      %v1388 = vld [vmem:[#allocation2 + $0x348] sm:$0xff]
      %v1389 = vld [vmem:[#allocation2 + $0x360] sm:$0xff]
      %v1390 = vmax.f32 %v1356, %v1194
      %v1391 = vmax.f32 %v1357, %v1195
      %v1392 = vmax.f32 %v1358, %v1196
      %v1393 = vmax.f32 %v1359, %v1197
      %v1394 = vmax.f32 %v1360, %v1198
      %v1395 = vmax.f32 %v1361, %v1199
      %v1396 = vmax.f32 %v1362, %v1200
      %v1397 = vmax.f32 %v1363, %v1201
      %v1398 = vmax.f32 %v1364, %v1202
      %v1399 = vmax.f32 %v1365, %v1203
      %v1400 = vmax.f32 %v1366, %v1204
      %v1401 = vmax.f32 %v1367, %v1205
      %v1402 = vmax.f32 %v1368, %v1206
      %v1403 = vmax.f32 %v1369, %v1207
      %v1404 = vmax.f32 %v1370, %v1208
      %v1405 = vmax.f32 %v1371, %v1209
      %v1406 = vmax.f32 %v1372, %v1210
      %v1407 = vmax.f32 %v1373, %v1211
      %v1408 = vmax.f32 %v1374, %v1212
      %v1409 = vmax.f32 %v1375, %v1213
      %v1410 = vmax.f32 %v1376, %v1214
      %v1411 = vmax.f32 %v1377, %v1215
      %v1412 = vmax.f32 %v1378, %v1216
      %v1413 = vmax.f32 %v1379, %v1217
      %v1414 = vmax.f32 %v1380, %v1218
      %v1415 = vmax.f32 %v1381, %v1219
      %v1416 = vmax.f32 %v1382, %v1220
      %v1417 = vmax.f32 %v1383, %v1221
      %v1418 = vmax.f32 %v1384, %v1222
      %v1419 = vmax.f32 %v1385, %v1223
      %v1420 = vmax.f32 %v1386, %v1388
      %v1421 = vmax.f32 %v1387, %v1389
      %v1422 = vld [vmem:[#allocation2 + $0x78] sm:$0xfe]
      %v1423 = vld [vmem:[#allocation2 + $0x378] sm:$0x1]
      %v1428 = vrot.slane %v1422, 1
      %v1429 = vsel %vm1258, %v1428, %v1264
      %v1430 = vrot.slane %v1388, 1
      %v1431 = vsel %vm1258, %v1320, %v1430
      %v1432 = vrot.slane %v1389, 1
      %v1433 = vsel %vm1258, %v1430, %v1432
      %v1434 = vrot.slane %v1423, 1
      %v1435 = vsel %vm1258, %v1432, %v1434
      %v1440 = vmax.f32 %v1390, %v1429
      %v1441 = vmax.f32 %v1391, %v1267
      %v1442 = vmax.f32 %v1392, %v1269
      %v1443 = vmax.f32 %v1393, %v1271
      %v1444 = vmax.f32 %v1394, %v1273
      %v1445 = vmax.f32 %v1395, %v1275
      %v1446 = vmax.f32 %v1396, %v1277
      %v1447 = vmax.f32 %v1397, %v1279
      %v1448 = vmax.f32 %v1398, %v1281
      %v1449 = vmax.f32 %v1399, %v1283
      %v1450 = vmax.f32 %v1400, %v1285
      %v1451 = vmax.f32 %v1401, %v1287
      %v1452 = vmax.f32 %v1402, %v1289
      %v1453 = vmax.f32 %v1403, %v1291
      %v1454 = vmax.f32 %v1404, %v1293
      %v1455 = vmax.f32 %v1405, %v1295
      %v1456 = vmax.f32 %v1406, %v1297
      %v1457 = vmax.f32 %v1407, %v1299
      %v1458 = vmax.f32 %v1408, %v1301
      %v1459 = vmax.f32 %v1409, %v1303
      %v1460 = vmax.f32 %v1410, %v1305
      %v1461 = vmax.f32 %v1411, %v1307
      %v1462 = vmax.f32 %v1412, %v1309
      %v1463 = vmax.f32 %v1413, %v1311
      %v1464 = vmax.f32 %v1414, %v1313
      %v1465 = vmax.f32 %v1415, %v1315
      %v1466 = vmax.f32 %v1416, %v1317
      %v1467 = vmax.f32 %v1417, %v1319
      %v1468 = vmax.f32 %v1418, %v1321
      %v1469 = vmax.f32 %v1419, %v1431
      %v1470 = vmax.f32 %v1420, %v1433
      %v1471 = vmax.f32 %v1421, %v1435
      %v1472 = vld [vmem:[%s20] sm:$0xff]
      %v1473 = vld [vmem:[%s20 + $0x8] sm:$0xff]
      %v1474 = vld [vmem:[%s20 + $0x10] sm:$0xff]
      %v1475 = vld [vmem:[%s20 + $0x18] sm:$0xff]
      %v1476 = vld [vmem:[%s20 + $0x20] sm:$0xff]
      %v1477 = vld [vmem:[%s20 + $0x28] sm:$0xff]
      %v1478 = vld [vmem:[%s20 + $0x30] sm:$0xff]
      %v1479 = vld [vmem:[%s20 + $0x38] sm:$0xff]
      %v1480 = vld [vmem:[%s20 + $0x40] sm:$0xff]
      %v1481 = vld [vmem:[%s20 + $0x48] sm:$0xff]
      %v1482 = vld [vmem:[%s20 + $0x50] sm:$0xff]
      %v1483 = vld [vmem:[%s20 + $0x58] sm:$0xff]
      %v1484 = vld [vmem:[%s20 + $0x60] sm:$0xff]
      %v1485 = vld [vmem:[%s20 + $0x68] sm:$0xff]
      %v1486 = vld [vmem:[%s20 + $0x70] sm:$0xff]
      %v1487 = vld [vmem:[%s20 + $0x78] sm:$0xff]
      %1488 = vmatprep.subr.mxu0 0.0
      %1489 = vmatpush1.msra.mxu0 %v1455
      %1490 = vmatprep.subr.mxu0 0.0
      %1491 = vmatpush1.msra.mxu0 %v1454
      %1492 = vmatprep.subr.mxu0 0.0
      %1493 = vmatpush1.msra.mxu0 %v1453
      %1494 = vmatprep.subr.mxu0 0.0
      %1495 = vmatpush1.msra.mxu0 %v1452
      %1496 = vmatprep.subr.mxu0 0.0
      %1497 = vmatpush1.msra.mxu0 %v1451
      %1498 = vmatprep.subr.mxu0 0.0
      %1499 = vmatpush1.msra.mxu0 %v1450
      %1500 = vmatprep.subr.mxu0 0.0
      %1501 = vmatpush1.msra.mxu0 %v1449
      %1502 = vmatprep.subr.mxu0 0.0
      %1503 = vmatpush1.msra.mxu0 %v1448
      %1504 = vmatprep.subr.mxu0 0.0
      %1505 = vmatpush1.msra.mxu0 %v1447
      %1506 = vmatprep.subr.mxu0 0.0
      %1507 = vmatpush1.msra.mxu0 %v1446
      %1508 = vmatprep.subr.mxu0 0.0
      %1509 = vmatpush1.msra.mxu0 %v1445
      %1510 = vmatprep.subr.mxu0 0.0
      %1511 = vmatpush1.msra.mxu0 %v1444
      %1512 = vmatprep.subr.mxu0 0.0
      %1513 = vmatpush1.msra.mxu0 %v1443
      %1514 = vmatprep.subr.mxu0 0.0
      %1515 = vmatpush1.msra.mxu0 %v1442
      %1516 = vmatprep.subr.mxu0 0.0
      %1517 = vmatpush1.msra.mxu0 %v1441
      %1518 = vmatprep.subr.mxu0 0.0
      %1519 = vmatpush1.msra.mxu0 %v1440
      %1520 = vmatprep.subr.mxu0 0.0
      %1521 = vmatpush2.msra.mxu0 %v1471
      %1522 = vmatprep.subr.mxu0 0.0
      %1523 = vmatpush2.msra.mxu0 %v1470
      %1524 = vmatprep.subr.mxu0 0.0
      %1525 = vmatpush2.msra.mxu0 %v1469
      %1526 = vmatprep.subr.mxu0 0.0
      %1527 = vmatpush2.msra.mxu0 %v1468
      %1528 = vmatprep.subr.mxu0 0.0
      %1529 = vmatpush2.msra.mxu0 %v1467
      %1530 = vmatprep.subr.mxu0 0.0
      %1531 = vmatpush2.msra.mxu0 %v1466
      %1532 = vmatprep.subr.mxu0 0.0
      %1533 = vmatpush2.msra.mxu0 %v1465
      %1534 = vmatprep.subr.mxu0 0.0
      %1535 = vmatpush2.msra.mxu0 %v1464
      %1536 = vmatprep.subr.mxu0 0.0
      %1537 = vmatpush2.msra.mxu0 %v1463
      %1538 = vmatprep.subr.mxu0 0.0
      %1539 = vmatpush2.msra.mxu0 %v1462
      %1540 = vmatprep.subr.mxu0 0.0
      %1541 = vmatpush2.msra.mxu0 %v1461
      %1542 = vmatprep.subr.mxu0 0.0
      %1543 = vmatpush2.msra.mxu0 %v1460
      %1544 = vmatprep.subr.mxu0 0.0
      %1545 = vmatpush2.msra.mxu0 %v1459
      %1546 = vmatprep.subr.mxu0 0.0
      %1547 = vmatpush2.msra.mxu0 %v1458
      %1548 = vmatprep.subr.mxu0 0.0
      %1549 = vmatpush2.msra.mxu0 %v1457
      %1550 = vmatprep.subr.mxu0 0.0
      %1551 = vmatpush2.msra.mxu0 %v1456
      %1552 = vmatprep.mubr.f32.mxu0 %v1473
      %1553 = vmatmul.mubr.f32.gmra.mxu0 %v1472
      %v1554 = vpop.f32.mrf.mxu0
      %v1555 = vadd.f32 0.0, %v1554
      %v1556 = vpop.f32.mrf.mxu0
      %1557 = vmatprep.mubr.f32.mxu0 %v1475
      %1558 = vmatmul.mubr.f32.gmra.mxu0 %v1474
      %v1559 = vpop.f32.mrf.mxu0
      %v1560 = vadd.f32 0.0, %v1559
      %v1561 = vpop.f32.mrf.mxu0
      %1562 = vmatprep.mubr.f32.mxu0 %v1477
      %1563 = vmatmul.mubr.f32.gmra.mxu0 %v1476
      %v1564 = vpop.f32.mrf.mxu0
      %v1565 = vadd.f32 0.0, %v1564
      %v1566 = vpop.f32.mrf.mxu0
      %1567 = vmatprep.mubr.f32.mxu0 %v1479
      %1568 = vmatmul.mubr.f32.gmra.mxu0 %v1478
      %v1569 = vpop.f32.mrf.mxu0
      %v1570 = vadd.f32 0.0, %v1569
      %v1571 = vpop.f32.mrf.mxu0
      %1572 = vmatprep.mubr.f32.mxu0 %v1481
      %1573 = vmatmul.mubr.f32.gmra.mxu0 %v1480
      %v1574 = vpop.f32.mrf.mxu0
      %v1575 = vadd.f32 0.0, %v1574
      %v1576 = vpop.f32.mrf.mxu0
      %1577 = vmatprep.mubr.f32.mxu0 %v1483
      %1578 = vmatmul.mubr.f32.gmra.mxu0 %v1482
      %v1579 = vpop.f32.mrf.mxu0
      %v1580 = vadd.f32 0.0, %v1579
      %v1581 = vpop.f32.mrf.mxu0
      %1582 = vmatprep.mubr.f32.mxu0 %v1485
      %1583 = vmatmul.mubr.f32.gmra.mxu0 %v1484
      %v1584 = vpop.f32.mrf.mxu0
      %v1585 = vadd.f32 0.0, %v1584
      %v1586 = vpop.f32.mrf.mxu0
      %1587 = vmatprep.mubr.f32.mxu0 %v1487
      %1588 = vmatmul.mubr.f32.gmra.mxu0 %v1486
      %v1589 = vpop.f32.mrf.mxu0
      %v1590 = vadd.f32 0.0, %v1589
      %v1591 = vpop.f32.mrf.mxu0
      %1592 = vdwg.mxu0
      %v1593 = vld [vmem:[%s3] sm:$0xff]
      %v1594 = vld [vmem:[%s3 + $0x8] sm:$0xff]
      %v1595 = vld [vmem:[%s3 + $0x10] sm:$0xff]
      %v1596 = vld [vmem:[%s3 + $0x18] sm:$0xff]
      %v1597 = vld [vmem:[%s3 + $0x20] sm:$0xff]
      %v1598 = vld [vmem:[%s3 + $0x28] sm:$0xff]
      %v1599 = vld [vmem:[%s3 + $0x30] sm:$0xff]
      %v1600 = vld [vmem:[%s3 + $0x38] sm:$0xff]
      %v1601 = vld [vmem:[%s3 + $0x40] sm:$0xff]
      %v1602 = vld [vmem:[%s3 + $0x48] sm:$0xff]
      %v1603 = vld [vmem:[%s3 + $0x50] sm:$0xff]
      %v1604 = vld [vmem:[%s3 + $0x58] sm:$0xff]
      %v1606 = vsel %vm1159, %v1555, 0
      %v1609 = vsel %vm1159, %v1560, 0
      %v1612 = vsel %vm1159, %v1565, 0
      %v1615 = vsel %vm1159, %v1570, 0
      %v1618 = vsel %vm1159, %v1575, 0
      %v1621 = vsel %vm1159, %v1580, 0
      %v1624 = vsel %vm1159, %v1585, 0
      %v1627 = vsel %vm1159, %v1590, 0
      %1629 = vmatprep.subr.mxu0 0.0
      %1630 = vmatpush1.msra.mxu0 0.0
      %1631 = vmatprep.subr.mxu0 0.0
      %1632 = vmatpush1.msra.mxu0 0.0
      %1633 = vmatprep.subr.mxu0 0.0
      %1634 = vmatpush1.msra.mxu0 0.0
      %1635 = vmatprep.subr.mxu0 0.0
      %1636 = vmatpush1.msra.mxu0 0.0
      %1637 = vmatprep.subr.mxu0 0.0
      %1638 = vmatpush1.msra.mxu0 0.0
      %1639 = vmatprep.subr.mxu0 0.0
      %1640 = vmatpush1.msra.mxu0 0.0
      %1641 = vmatprep.subr.mxu0 0.0
      %1642 = vmatpush1.msra.mxu0 0.0
      %1643 = vmatprep.subr.mxu0 0.0
      %1644 = vmatpush1.msra.mxu0 0.0
      %1645 = vmatprep.subr.mxu0 0.0
      %1646 = vmatpush1.msra.mxu0 0.0
      %1647 = vmatprep.subr.mxu0 0.0
      %1648 = vmatpush1.msra.mxu0 0.0
      %1649 = vmatprep.subr.mxu0 0.0
      %1650 = vmatpush1.msra.mxu0 0.0
      %1651 = vmatprep.subr.mxu0 0.0
      %1652 = vmatpush1.msra.mxu0 0.0
      %1653 = vmatprep.subr.mxu0 %v1603
      %1654 = vmatpush1.msra.mxu0 %v1602
      %1655 = vmatprep.subr.mxu0 %v1600
      %1656 = vmatpush1.msra.mxu0 %v1599
      %1657 = vmatprep.subr.mxu0 %v1597
      %1658 = vmatpush1.msra.mxu0 %v1596
      %1659 = vmatprep.subr.mxu0 %v1594
      %1660 = vmatpush1.msra.mxu0 %v1593
      %1661 = vmatprep.subr.mxu0 0.0
      %1662 = vmatpush2.msra.mxu0 0.0
      %1663 = vmatprep.subr.mxu0 0.0
      %1664 = vmatpush2.msra.mxu0 0.0
      %1665 = vmatprep.subr.mxu0 0.0
      %1666 = vmatpush2.msra.mxu0 0.0
      %1667 = vmatprep.subr.mxu0 0.0
      %1668 = vmatpush2.msra.mxu0 0.0
      %1669 = vmatprep.subr.mxu0 0.0
      %1670 = vmatpush2.msra.mxu0 0.0
      %1671 = vmatprep.subr.mxu0 0.0
      %1672 = vmatpush2.msra.mxu0 0.0
      %1673 = vmatprep.subr.mxu0 0.0
      %1674 = vmatpush2.msra.mxu0 0.0
      %1675 = vmatprep.subr.mxu0 0.0
      %1676 = vmatpush2.msra.mxu0 0.0
      %1677 = vmatprep.subr.mxu0 0.0
      %1678 = vmatpush2.msra.mxu0 0.0
      %1679 = vmatprep.subr.mxu0 0.0
      %1680 = vmatpush2.msra.mxu0 0.0
      %1681 = vmatprep.subr.mxu0 0.0
      %1682 = vmatpush2.msra.mxu0 0.0
      %1683 = vmatprep.subr.mxu0 0.0
      %1684 = vmatpush2.msra.mxu0 0.0
      %1685 = vmatprep.subr.mxu0 0.0
      %1686 = vmatpush2.msra.mxu0 0.0
      %1687 = vmatprep.subr.mxu0 0.0
      %1688 = vmatpush2.msra.mxu0 0.0
      %1689 = vmatprep.subr.mxu0 0.0
      %1690 = vmatpush2.msra.mxu0 0.0
      %1691 = vmatprep.subr.mxu0 0.0
      %1692 = vmatpush2.msra.mxu0 0.0
      %1693 = vmatprep.mubr.f32.mxu0 0.0
      %1694 = vmatmul.mubr.f32.gmra.mxu0 %v1606
      %v1695 = vpop.f32.mrf.mxu0
      %v1696 = vadd.f32 0.0, %v1695
      %v1697 = vpop.f32.mrf.mxu0
      %v1698 = vadd.f32 0.0, %v1697
      %1699 = vmatprep.mubr.f32.mxu0 0.0
      %1700 = vmatmul.mubr.f32.gmra.mxu0 %v1609
      %v1701 = vpop.f32.mrf.mxu0
      %v1702 = vadd.f32 0.0, %v1701
      %v1703 = vpop.f32.mrf.mxu0
      %v1704 = vadd.f32 0.0, %v1703
      %1705 = vmatprep.mubr.f32.mxu0 0.0
      %1706 = vmatmul.mubr.f32.gmra.mxu0 %v1612
      %v1707 = vpop.f32.mrf.mxu0
      %v1708 = vadd.f32 0.0, %v1707
      %v1709 = vpop.f32.mrf.mxu0
      %v1710 = vadd.f32 0.0, %v1709
      %1711 = vmatprep.mubr.f32.mxu0 0.0
      %1712 = vmatmul.mubr.f32.gmra.mxu0 %v1615
      %v1713 = vpop.f32.mrf.mxu0
      %v1714 = vadd.f32 0.0, %v1713
      %v1715 = vpop.f32.mrf.mxu0
      %v1716 = vadd.f32 0.0, %v1715
      %1717 = vmatprep.mubr.f32.mxu0 0.0
      %1718 = vmatmul.mubr.f32.gmra.mxu0 %v1618
      %v1719 = vpop.f32.mrf.mxu0
      %v1720 = vadd.f32 0.0, %v1719
      %v1721 = vpop.f32.mrf.mxu0
      %v1722 = vadd.f32 0.0, %v1721
      %1723 = vmatprep.mubr.f32.mxu0 0.0
      %1724 = vmatmul.mubr.f32.gmra.mxu0 %v1621
      %v1725 = vpop.f32.mrf.mxu0
      %v1726 = vadd.f32 0.0, %v1725
      %v1727 = vpop.f32.mrf.mxu0
      %v1728 = vadd.f32 0.0, %v1727
      %1729 = vmatprep.mubr.f32.mxu0 0.0
      %1730 = vmatmul.mubr.f32.gmra.mxu0 %v1624
      %v1731 = vpop.f32.mrf.mxu0
      %v1732 = vadd.f32 0.0, %v1731
      %v1733 = vpop.f32.mrf.mxu0
      %v1734 = vadd.f32 0.0, %v1733
      %1735 = vmatprep.mubr.f32.mxu0 0.0
      %1736 = vmatmul.mubr.f32.gmra.mxu0 %v1627
      %v1737 = vpop.f32.mrf.mxu0
      %v1738 = vadd.f32 0.0, %v1737
      %v1739 = vpop.f32.mrf.mxu0
      %v1740 = vadd.f32 0.0, %v1739
      %1741 = vdwg.mxu0
      %1742 = vmatprep.subr.mxu0 0.0
      %1743 = vmatpush1.msra.mxu0 0.0
      %1744 = vmatprep.subr.mxu0 0.0
      %1745 = vmatpush1.msra.mxu0 0.0
      %1746 = vmatprep.subr.mxu0 0.0
      %1747 = vmatpush1.msra.mxu0 0.0
      %1748 = vmatprep.subr.mxu0 0.0
      %1749 = vmatpush1.msra.mxu0 0.0
      %1750 = vmatprep.subr.mxu0 0.0
      %1751 = vmatpush1.msra.mxu0 0.0
      %1752 = vmatprep.subr.mxu0 0.0
      %1753 = vmatpush1.msra.mxu0 0.0
      %1754 = vmatprep.subr.mxu0 0.0
      %1755 = vmatpush1.msra.mxu0 0.0
      %1756 = vmatprep.subr.mxu0 0.0
      %1757 = vmatpush1.msra.mxu0 0.0
      %1758 = vmatprep.subr.mxu0 0.0
      %1759 = vmatpush1.msra.mxu0 0.0
      %1760 = vmatprep.subr.mxu0 0.0
      %1761 = vmatpush1.msra.mxu0 0.0
      %1762 = vmatprep.subr.mxu0 0.0
      %1763 = vmatpush1.msra.mxu0 0.0
      %1764 = vmatprep.subr.mxu0 0.0
      %1765 = vmatpush1.msra.mxu0 0.0
      %1766 = vmatprep.subr.mxu0 0.0
      %1767 = vmatpush1.msra.mxu0 %v1604
      %1768 = vmatprep.subr.mxu0 0.0
      %1769 = vmatpush1.msra.mxu0 %v1601
      %1770 = vmatprep.subr.mxu0 0.0
      %1771 = vmatpush1.msra.mxu0 %v1598
      %1772 = vmatprep.subr.mxu0 0.0
      %1773 = vmatpush1.msra.mxu0 %v1595
      %1774 = vmatprep.subr.mxu0 0.0
      %1775 = vmatpush2.msra.mxu0 0.0
      %1776 = vmatprep.subr.mxu0 0.0
      %1777 = vmatpush2.msra.mxu0 0.0
      %1778 = vmatprep.subr.mxu0 0.0
      %1779 = vmatpush2.msra.mxu0 0.0
      %1780 = vmatprep.subr.mxu0 0.0
      %1781 = vmatpush2.msra.mxu0 0.0
      %1782 = vmatprep.subr.mxu0 0.0
      %1783 = vmatpush2.msra.mxu0 0.0
      %1784 = vmatprep.subr.mxu0 0.0
      %1785 = vmatpush2.msra.mxu0 0.0
      %1786 = vmatprep.subr.mxu0 0.0
      %1787 = vmatpush2.msra.mxu0 0.0
      %1788 = vmatprep.subr.mxu0 0.0
      %1789 = vmatpush2.msra.mxu0 0.0
      %1790 = vmatprep.subr.mxu0 0.0
      %1791 = vmatpush2.msra.mxu0 0.0
      %1792 = vmatprep.subr.mxu0 0.0
      %1793 = vmatpush2.msra.mxu0 0.0
      %1794 = vmatprep.subr.mxu0 0.0
      %1795 = vmatpush2.msra.mxu0 0.0
      %1796 = vmatprep.subr.mxu0 0.0
      %1797 = vmatpush2.msra.mxu0 0.0
      %1798 = vmatprep.subr.mxu0 0.0
      %1799 = vmatpush2.msra.mxu0 0.0
      %1800 = vmatprep.subr.mxu0 0.0
      %1801 = vmatpush2.msra.mxu0 0.0
      %1802 = vmatprep.subr.mxu0 0.0
      %1803 = vmatpush2.msra.mxu0 0.0
      %1804 = vmatprep.subr.mxu0 0.0
      %1805 = vmatpush2.msra.mxu0 0.0
      %1806 = vmatprep.mubr.f32.mxu0 0.0
      %1807 = vmatmul.mubr.f32.gmra.mxu0 %v1606
      %v1808 = vpop.f32.mrf.mxu0
      %v1809 = vadd.f32 0.0, %v1808
      %v1810 = vpop.f32.mrf.mxu0
      %1811 = vmatprep.mubr.f32.mxu0 0.0
      %1812 = vmatmul.mubr.f32.gmra.mxu0 %v1609
      %v1813 = vpop.f32.mrf.mxu0
      %v1814 = vadd.f32 0.0, %v1813
      %v1815 = vpop.f32.mrf.mxu0
      %1816 = vmatprep.mubr.f32.mxu0 0.0
      %1817 = vmatmul.mubr.f32.gmra.mxu0 %v1612
      %v1818 = vpop.f32.mrf.mxu0
      %v1819 = vadd.f32 0.0, %v1818
      %v1820 = vpop.f32.mrf.mxu0
      %1821 = vmatprep.mubr.f32.mxu0 0.0
      %1822 = vmatmul.mubr.f32.gmra.mxu0 %v1615
      %v1823 = vpop.f32.mrf.mxu0
      %v1824 = vadd.f32 0.0, %v1823
      %v1825 = vpop.f32.mrf.mxu0
      %1826 = vmatprep.mubr.f32.mxu0 0.0
      %1827 = vmatmul.mubr.f32.gmra.mxu0 %v1618
      %v1828 = vpop.f32.mrf.mxu0
      %v1829 = vadd.f32 0.0, %v1828
      %v1830 = vpop.f32.mrf.mxu0
      %1831 = vmatprep.mubr.f32.mxu0 0.0
      %1832 = vmatmul.mubr.f32.gmra.mxu0 %v1621
      %v1833 = vpop.f32.mrf.mxu0
      %v1834 = vadd.f32 0.0, %v1833
      %v1835 = vpop.f32.mrf.mxu0
      %1836 = vmatprep.mubr.f32.mxu0 0.0
      %1837 = vmatmul.mubr.f32.gmra.mxu0 %v1624
      %v1838 = vpop.f32.mrf.mxu0
      %v1839 = vadd.f32 0.0, %v1838
      %v1840 = vpop.f32.mrf.mxu0
      %1841 = vmatprep.mubr.f32.mxu0 0.0
      %1842 = vmatmul.mubr.f32.gmra.mxu0 %v1627
      %v1843 = vpop.f32.mrf.mxu0
      %v1844 = vadd.f32 0.0, %v1843
      %v1845 = vpop.f32.mrf.mxu0
      %1846 = vdwg.mxu0
      %v1847 = vld [vmem:[%s17] sm:$0xff]
      %v1848 = vld [vmem:[%s17 + $0x8] sm:$0xff]
      %v1849 = vld [vmem:[%s17 + $0x10] sm:$0xff]
      %v1850 = vld [vmem:[%s17 + $0x18] sm:$0xff]
      %v1851 = vld [vmem:[%s17 + $0x20] sm:$0xff]
      %v1852 = vld [vmem:[%s17 + $0x28] sm:$0xff]
      %v1853 = vld [vmem:[%s17 + $0x30] sm:$0xff]
      %v1854 = vld [vmem:[%s17 + $0x38] sm:$0xff]
      %v1855 = vld [vmem:[%s17 + $0x40] sm:$0xff]
      %v1856 = vld [vmem:[%s17 + $0x48] sm:$0xff]
      %v1857 = vld [vmem:[%s17 + $0x50] sm:$0xff]
      %v1858 = vld [vmem:[%s17 + $0x58] sm:$0xff]
      %v1859 = vld [vmem:[%s17 + $0x60] sm:$0xff]
      %v1860 = vld [vmem:[%s17 + $0x68] sm:$0xff]
      %v1861 = vld [vmem:[%s17 + $0x70] sm:$0xff]
      %v1862 = vld [vmem:[%s17 + $0x78] sm:$0xff]
      %v1863 = vld [vmem:[%s17 + $0x80] sm:$0xff]
      %v1864 = vld [vmem:[%s17 + $0x88] sm:$0xff]
      %v1865 = vld [vmem:[%s17 + $0x90] sm:$0xff]
      %v1866 = vld [vmem:[%s17 + $0x98] sm:$0xff]
      %v1867 = vld [vmem:[%s17 + $0xa0] sm:$0xff]
      %v1868 = vld [vmem:[%s17 + $0xa8] sm:$0xff]
      %v1869 = vld [vmem:[%s17 + $0xb0] sm:$0xff]
      %v1870 = vld [vmem:[%s17 + $0xb8] sm:$0xff]
      %v1871 = vmul.f32 %v1696, %v1847
      %v1872 = vmul.f32 %v1698, %v1848
      %v1873 = vmul.f32 %v1809, %v1849
      %v1874 = vmul.f32 %v1702, %v1850
      %v1875 = vmul.f32 %v1704, %v1851
      %v1876 = vmul.f32 %v1814, %v1852
      %v1877 = vmul.f32 %v1708, %v1853
      %v1878 = vmul.f32 %v1710, %v1854
      %v1879 = vmul.f32 %v1819, %v1855
      %v1880 = vmul.f32 %v1714, %v1856
      %v1881 = vmul.f32 %v1716, %v1857
      %v1882 = vmul.f32 %v1824, %v1858
      %v1883 = vmul.f32 %v1720, %v1859
      %v1884 = vmul.f32 %v1722, %v1860
      %v1885 = vmul.f32 %v1829, %v1861
      %v1886 = vmul.f32 %v1726, %v1862
      %v1887 = vmul.f32 %v1728, %v1863
      %v1888 = vmul.f32 %v1834, %v1864
      %v1889 = vmul.f32 %v1732, %v1865
      %v1890 = vmul.f32 %v1734, %v1866
      %v1891 = vmul.f32 %v1839, %v1867
      %v1892 = vmul.f32 %v1738, %v1868
      %v1893 = vmul.f32 %v1740, %v1869
      %v1894 = vmul.f32 %v1844, %v1870
      %1895 = vst [vmem:[#allocation2 + $0x48] sm:$0xff] %v1871
      %1896 = vst [vmem:[#allocation2 + $0x50] sm:$0xff] %v1872
      %1897 = vst [vmem:[#allocation2 + $0x58] sm:$0xff] %v1873
      %1898 = vst [vmem:[#allocation2 + $0x60] sm:$0xff] %v1874
      %1899 = vst [vmem:[#allocation2 + $0x68] sm:$0xff] %v1875
      %1900 = vst [vmem:[#allocation2 + $0x70] sm:$0xff] %v1876
      %1901 = vst [vmem:[#allocation2 + $0x78] sm:$0xff] %v1877
      %1902 = vst [vmem:[#allocation2 + $0x80] sm:$0xff] %v1878
      %1903 = vst [vmem:[#allocation2 + $0x88] sm:$0xff] %v1879
      %1904 = vst [vmem:[#allocation2 + $0x90] sm:$0xff] %v1880
      %1905 = vst [vmem:[#allocation2 + $0x98] sm:$0xff] %v1881
      %1906 = vst [vmem:[#allocation2 + $0xa0] sm:$0xff] %v1882
      %1907 = vst [vmem:[#allocation2 + $0xa8] sm:$0xff] %v1883
      %1908 = vst [vmem:[#allocation2 + $0xb0] sm:$0xff] %v1884
      %1909 = vst [vmem:[#allocation2 + $0xb8] sm:$0xff] %v1885
      %1910 = vst [vmem:[#allocation2 + $0xc0] sm:$0xff] %v1886
      %1911 = vst [vmem:[#allocation2 + $0xc8] sm:$0xff] %v1887
      %1912 = vst [vmem:[#allocation2 + $0xd0] sm:$0xff] %v1888
      %1913 = vst [vmem:[#allocation2 + $0xd8] sm:$0xff] %v1889
      %1914 = vst [vmem:[#allocation2 + $0xe0] sm:$0xff] %v1890
      %1915 = vst [vmem:[#allocation2 + $0xe8] sm:$0xff] %v1891
      %1916 = vst [vmem:[#allocation2 + $0xf0] sm:$0xff] %v1892
      %1917 = vst [vmem:[#allocation2 + $0xf8] sm:$0xff] %v1893
      %1918 = vst [vmem:[#allocation2 + $0x100] sm:$0xff] %v1894
      %1919 = vst [vmem:[#allocation2 + $0x108] sm:$0xff] 0.0
      %1920 = vst [vmem:[#allocation2 + $0x110] sm:$0xff] 0.0
      %1921 = vst [vmem:[#allocation2 + $0x118] sm:$0xff] 0.0
      %1922 = vst [vmem:[#allocation2 + $0x120] sm:$0xff] 0.0
      %1923 = vst [vmem:[#allocation2 + $0x128] sm:$0xff] 0.0
      %1924 = vst [vmem:[#allocation2 + $0x130] sm:$0xff] 0.0
      %1925 = vst [vmem:[#allocation2 + $0x138] sm:$0x1] 0.0
      %1926 = vst [vmem:[#allocation2 + $0x140] sm:$0x1] 0.0
      %1927 = vst [vmem:[#allocation2 + $0x148] sm:$0x1] 0.0
      %v1928 = vld [vmem:[%s4] sm:$0x1]
      %v1930 = vlaneseq
      %v1931 = vshrl.u32 %v1930, 7
      %v1932 = vsub.s32 0, %v1931
      %v1933 = vrot.slane %v1928, %v1932
      %v1935 = vadd.f32 %v1933, 0.0
      %v1936 = vld [vmem:[#allocation2 + $0x18] sm:$0x80]
      %v1937 = vld [vmem:[#allocation2 + $0x30] sm:$0xff]
      %v1938 = vld [vmem:[#allocation2 + $0x48] sm:$0xff]
      %v1939 = vld [vmem:[#allocation2 + $0x60] sm:$0xff]
      %v1940 = vld [vmem:[#allocation2 + $0x78] sm:$0xff]
      %v1941 = vld [vmem:[#allocation2 + $0x90] sm:$0xff]
      %v1942 = vld [vmem:[#allocation2 + $0xa8] sm:$0xff]
      %v1943 = vld [vmem:[#allocation2 + $0xc0] sm:$0xff]
      %v1944 = vld [vmem:[#allocation2 + $0xd8] sm:$0x7f]
      %v1945 = vadd.f32 %v1935, %v1936
      %v1946 = vadd.f32 %v1935, %v1937
      %v1947 = vadd.f32 %v1935, %v1938
      %v1948 = vadd.f32 %v1935, %v1939
      %v1949 = vadd.f32 %v1935, %v1940
      %v1950 = vadd.f32 %v1935, %v1941
      %v1951 = vadd.f32 %v1935, %v1942
      %v1952 = vadd.f32 %v1935, %v1943
      %v1953 = vadd.f32 %v1935, %v1944
      %v1954 = vld [vmem:[#allocation2 + $0xd8] sm:$0xff]
      %v1963 = vrot.slane %v1937, 1
      %v1964 = vrot.slane %v1938, 1
      %v1965 = vsel %vm1258, %v1963, %v1964
      %v1966 = vrot.slane %v1939, 1
      %v1967 = vsel %vm1258, %v1964, %v1966
      %v1968 = vrot.slane %v1940, 1
      %v1969 = vsel %vm1258, %v1966, %v1968
      %v1970 = vrot.slane %v1941, 1
      %v1971 = vsel %vm1258, %v1968, %v1970
      %v1972 = vrot.slane %v1942, 1
      %v1973 = vsel %vm1258, %v1970, %v1972
      %v1974 = vrot.slane %v1943, 1
      %v1975 = vsel %vm1258, %v1972, %v1974
      %v1976 = vrot.slane %v1954, 1
      %v1977 = vsel %vm1258, %v1974, %v1976
      %1978 = vrot.lane.b32.xlu0 %v1963, 96
      %v1979 = vpop.permute.xlu0 %1978
      %1980 = vrot.lane.b32.xlu0 %v1965, 96
      %v1981 = vpop.permute.xlu0 %1980
      %1982 = vrot.lane.b32.xlu0 %v1967, 96
      %v1983 = vpop.permute.xlu0 %1982
      %1984 = vrot.lane.b32.xlu0 %v1969, 96
      %v1985 = vpop.permute.xlu0 %1984
      %1986 = vrot.lane.b32.xlu0 %v1971, 96
      %v1987 = vpop.permute.xlu0 %1986
      %1988 = vrot.lane.b32.xlu0 %v1973, 96
      %v1989 = vpop.permute.xlu0 %1988
      %1990 = vrot.lane.b32.xlu0 %v1975, 96
      %v1991 = vpop.permute.xlu0 %1990
      %1992 = vrot.lane.b32.xlu0 %v1977, 96
      %v1993 = vpop.permute.xlu0 %1992
      %1994 = vrot.lane.b32.xlu0 %v1976, 96
      %v1995 = vpop.permute.xlu0 %1994
      %v2005 = vadd.f32 %v1945, %v1979
      %v2006 = vadd.f32 %v1946, %v1981
      %v2007 = vadd.f32 %v1947, %v1983
      %v2008 = vadd.f32 %v1948, %v1985
      %v2009 = vadd.f32 %v1949, %v1987
      %v2010 = vadd.f32 %v1950, %v1989
      %v2011 = vadd.f32 %v1951, %v1991
      %v2012 = vadd.f32 %v1952, %v1993
      %v2013 = vadd.f32 %v1953, %v1995
      %v2014 = vld [vmem:[#allocation2 + $0x30] sm:$0xfe]
      %v2015 = vld [vmem:[#allocation2 + $0xf0] sm:$0x1]
      %vm2018 = vcmask 1045504
      %v2019 = vrot.slane %v2014, 2
      %v2020 = vrot.slane %v1938, 2
      %v2021 = vsel %vm2018, %v2019, %v2020
      %v2022 = vrot.slane %v1939, 2
      %v2023 = vsel %vm2018, %v2020, %v2022
      %v2024 = vrot.slane %v1940, 2
      %v2025 = vsel %vm2018, %v2022, %v2024
      %v2026 = vrot.slane %v1941, 2
      %v2027 = vsel %vm2018, %v2024, %v2026
      %v2028 = vrot.slane %v1942, 2
      %v2029 = vsel %vm2018, %v2026, %v2028
      %v2030 = vrot.slane %v1943, 2
      %v2031 = vsel %vm2018, %v2028, %v2030
      %v2032 = vrot.slane %v1954, 2
      %v2033 = vsel %vm2018, %v2030, %v2032
      %v2034 = vrot.slane %v2015, 2
      %v2035 = vsel %vm2018, %v2032, %v2034
      %2036 = vrot.lane.b32.xlu0 %v2019, 64
      %v2037 = vpop.permute.xlu0 %2036
      %2038 = vrot.lane.b32.xlu0 %v2021, 64
      %v2039 = vpop.permute.xlu0 %2038
      %2040 = vrot.lane.b32.xlu0 %v2023, 64
      %v2041 = vpop.permute.xlu0 %2040
      %2042 = vrot.lane.b32.xlu0 %v2025, 64
      %v2043 = vpop.permute.xlu0 %2042
      %2044 = vrot.lane.b32.xlu0 %v2027, 64
      %v2045 = vpop.permute.xlu0 %2044
      %2046 = vrot.lane.b32.xlu0 %v2029, 64
      %v2047 = vpop.permute.xlu0 %2046
      %2048 = vrot.lane.b32.xlu0 %v2031, 64
      %v2049 = vpop.permute.xlu0 %2048
      %2050 = vrot.lane.b32.xlu0 %v2033, 64
      %v2051 = vpop.permute.xlu0 %2050
      %2052 = vrot.lane.b32.xlu0 %v2035, 64
      %v2053 = vpop.permute.xlu0 %2052
      %v2063 = vadd.f32 %v2005, %v2037
      %v2064 = vadd.f32 %v2006, %v2039
      %v2065 = vadd.f32 %v2007, %v2041
      %v2066 = vadd.f32 %v2008, %v2043
      %v2067 = vadd.f32 %v2009, %v2045
      %v2068 = vadd.f32 %v2010, %v2047
      %v2069 = vadd.f32 %v2011, %v2049
      %v2070 = vadd.f32 %v2012, %v2051
      %v2071 = vadd.f32 %v2013, %v2053
      %v2072 = vld [vmem:[#allocation2 + $0x30] sm:$0x80]
      %v2073 = vld [vmem:[#allocation2 + $0xf0] sm:$0x7f]
      %2076 = vrot.lane.b32.xlu0 %v2072, 32
      %v2077 = vpop.permute.xlu0 %2076
      %2078 = vrot.lane.b32.xlu0 %v1938, 32
      %v2079 = vpop.permute.xlu0 %2078
      %2080 = vrot.lane.b32.xlu0 %v1939, 32
      %v2081 = vpop.permute.xlu0 %2080
      %2082 = vrot.lane.b32.xlu0 %v1940, 32
      %v2083 = vpop.permute.xlu0 %2082
      %2084 = vrot.lane.b32.xlu0 %v1941, 32
      %v2085 = vpop.permute.xlu0 %2084
      %2086 = vrot.lane.b32.xlu0 %v1942, 32
      %v2087 = vpop.permute.xlu0 %2086
      %2088 = vrot.lane.b32.xlu0 %v1943, 32
      %v2089 = vpop.permute.xlu0 %2088
      %2090 = vrot.lane.b32.xlu0 %v1954, 32
      %v2091 = vpop.permute.xlu0 %2090
      %2092 = vrot.lane.b32.xlu0 %v2073, 32
      %v2093 = vpop.permute.xlu0 %2092
      %v2103 = vadd.f32 %v2063, %v2077
      %v2104 = vadd.f32 %v2064, %v2079
      %v2105 = vadd.f32 %v2065, %v2081
      %v2106 = vadd.f32 %v2066, %v2083
      %v2107 = vadd.f32 %v2067, %v2085
      %v2108 = vadd.f32 %v2068, %v2087
      %v2109 = vadd.f32 %v2069, %v2089
      %v2110 = vadd.f32 %v2070, %v2091
      %v2111 = vadd.f32 %v2071, %v2093
      %v2112 = vld [vmem:[#allocation2 + $0x50] sm:$0xff]
      %v2113 = vld [vmem:[#allocation2 + $0x68] sm:$0xff]
      %v2114 = vld [vmem:[#allocation2 + $0x80] sm:$0xff]
      %v2115 = vld [vmem:[#allocation2 + $0x98] sm:$0xff]
      %v2116 = vld [vmem:[#allocation2 + $0xb0] sm:$0xff]
      %v2117 = vld [vmem:[#allocation2 + $0xc8] sm:$0xff]
      %v2118 = vld [vmem:[#allocation2 + $0xe0] sm:$0xff]
      %v2119 = vld [vmem:[#allocation2 + $0xf8] sm:$0xff]
      %v2128 = vrot.slane %v2112, 1
      %v2129 = vrot.slane %v2113, 1
      %v2130 = vsel %vm1258, %v2128, %v2129
      %v2131 = vrot.slane %v2114, 1
      %v2132 = vsel %vm1258, %v2129, %v2131
      %v2133 = vrot.slane %v2115, 1
      %v2134 = vsel %vm1258, %v2131, %v2133
      %v2135 = vrot.slane %v2116, 1
      %v2136 = vsel %vm1258, %v2133, %v2135
      %v2137 = vrot.slane %v2117, 1
      %v2138 = vsel %vm1258, %v2135, %v2137
      %v2139 = vrot.slane %v2118, 1
      %v2140 = vsel %vm1258, %v2137, %v2139
      %v2141 = vrot.slane %v2119, 1
      %v2142 = vsel %vm1258, %v2139, %v2141
      %v2152 = vadd.f32 %v2103, %v2128
      %v2153 = vadd.f32 %v2104, %v2130
      %v2154 = vadd.f32 %v2105, %v2132
      %v2155 = vadd.f32 %v2106, %v2134
      %v2156 = vadd.f32 %v2107, %v2136
      %v2157 = vadd.f32 %v2108, %v2138
      %v2158 = vadd.f32 %v2109, %v2140
      %v2159 = vadd.f32 %v2110, %v2142
      %v2160 = vadd.f32 %v2111, %v2141
      %v2161 = vld [vmem:[#allocation2 + $0x50] sm:$0xfe]
      %v2162 = vld [vmem:[#allocation2 + $0x110] sm:$0x1]
      %v2165 = vrot.slane %v2161, 2
      %v2166 = vrot.slane %v2113, 2
      %v2167 = vsel %vm2018, %v2165, %v2166
      %v2168 = vrot.slane %v2114, 2
      %v2169 = vsel %vm2018, %v2166, %v2168
      %v2170 = vrot.slane %v2115, 2
      %v2171 = vsel %vm2018, %v2168, %v2170
      %v2172 = vrot.slane %v2116, 2
      %v2173 = vsel %vm2018, %v2170, %v2172
      %v2174 = vrot.slane %v2117, 2
      %v2175 = vsel %vm2018, %v2172, %v2174
      %v2176 = vrot.slane %v2118, 2
      %v2177 = vsel %vm2018, %v2174, %v2176
      %v2178 = vrot.slane %v2119, 2
      %v2179 = vsel %vm2018, %v2176, %v2178
      %v2180 = vrot.slane %v2162, 2
      %v2181 = vsel %vm2018, %v2178, %v2180
      %2182 = vrot.lane.b32.xlu0 %v2165, 96
      %v2183 = vpop.permute.xlu0 %2182
      %2184 = vrot.lane.b32.xlu0 %v2167, 96
      %v2185 = vpop.permute.xlu0 %2184
      %2186 = vrot.lane.b32.xlu0 %v2169, 96
      %v2187 = vpop.permute.xlu0 %2186
      %2188 = vrot.lane.b32.xlu0 %v2171, 96
      %v2189 = vpop.permute.xlu0 %2188
      %2190 = vrot.lane.b32.xlu0 %v2173, 96
      %v2191 = vpop.permute.xlu0 %2190
      %2192 = vrot.lane.b32.xlu0 %v2175, 96
      %v2193 = vpop.permute.xlu0 %2192
      %2194 = vrot.lane.b32.xlu0 %v2177, 96
      %v2195 = vpop.permute.xlu0 %2194
      %2196 = vrot.lane.b32.xlu0 %v2179, 96
      %v2197 = vpop.permute.xlu0 %2196
      %2198 = vrot.lane.b32.xlu0 %v2181, 96
      %v2199 = vpop.permute.xlu0 %2198
      %v2209 = vadd.f32 %v2152, %v2183
      %v2210 = vadd.f32 %v2153, %v2185
      %v2211 = vadd.f32 %v2154, %v2187
      %v2212 = vadd.f32 %v2155, %v2189
      %v2213 = vadd.f32 %v2156, %v2191
      %v2214 = vadd.f32 %v2157, %v2193
      %v2215 = vadd.f32 %v2158, %v2195
      %v2216 = vadd.f32 %v2159, %v2197
      %v2217 = vadd.f32 %v2160, %v2199
      %v2218 = vld [vmem:[#allocation2 + $0x50] sm:$0x80]
      %v2219 = vld [vmem:[#allocation2 + $0x110] sm:$0x7f]
      %2222 = vrot.lane.b32.xlu0 %v2218, 64
      %v2223 = vpop.permute.xlu0 %2222
      %2224 = vrot.lane.b32.xlu0 %v2113, 64
      %v2225 = vpop.permute.xlu0 %2224
      %2226 = vrot.lane.b32.xlu0 %v2114, 64
      %v2227 = vpop.permute.xlu0 %2226
      %2228 = vrot.lane.b32.xlu0 %v2115, 64
      %v2229 = vpop.permute.xlu0 %2228
      %2230 = vrot.lane.b32.xlu0 %v2116, 64
      %v2231 = vpop.permute.xlu0 %2230
      %2232 = vrot.lane.b32.xlu0 %v2117, 64
      %v2233 = vpop.permute.xlu0 %2232
      %2234 = vrot.lane.b32.xlu0 %v2118, 64
      %v2235 = vpop.permute.xlu0 %2234
      %2236 = vrot.lane.b32.xlu0 %v2119, 64
      %v2237 = vpop.permute.xlu0 %2236
      %2238 = vrot.lane.b32.xlu0 %v2219, 64
      %v2239 = vpop.permute.xlu0 %2238
      %v2249 = vadd.f32 %v2209, %v2223
      %v2250 = vadd.f32 %v2210, %v2225
      %v2251 = vadd.f32 %v2211, %v2227
      %v2252 = vadd.f32 %v2212, %v2229
      %v2253 = vadd.f32 %v2213, %v2231
      %v2254 = vadd.f32 %v2214, %v2233
      %v2255 = vadd.f32 %v2215, %v2235
      %v2256 = vadd.f32 %v2216, %v2237
      %v2257 = vadd.f32 %v2217, %v2239
      %v2258 = vld [vmem:[#allocation2 + $0x110] sm:$0xff]
      %v2260 = vrot.slane %v2258, 1
      %v2261 = vsel %vm1258, %v2141, %v2260
      %2262 = vrot.lane.b32.xlu0 %v2129, 32
      %v2263 = vpop.permute.xlu0 %2262
      %2264 = vrot.lane.b32.xlu0 %v2132, 32
      %v2265 = vpop.permute.xlu0 %2264
      %2266 = vrot.lane.b32.xlu0 %v2134, 32
      %v2267 = vpop.permute.xlu0 %2266
      %2268 = vrot.lane.b32.xlu0 %v2136, 32
      %v2269 = vpop.permute.xlu0 %2268
      %2270 = vrot.lane.b32.xlu0 %v2138, 32
      %v2271 = vpop.permute.xlu0 %2270
      %2272 = vrot.lane.b32.xlu0 %v2140, 32
      %v2273 = vpop.permute.xlu0 %2272
      %2274 = vrot.lane.b32.xlu0 %v2142, 32
      %v2275 = vpop.permute.xlu0 %2274
      %2276 = vrot.lane.b32.xlu0 %v2261, 32
      %v2277 = vpop.permute.xlu0 %2276
      %2278 = vrot.lane.b32.xlu0 %v2260, 32
      %v2279 = vpop.permute.xlu0 %2278
      %v2289 = vadd.f32 %v2249, %v2263
      %v2290 = vadd.f32 %v2250, %v2265
      %v2291 = vadd.f32 %v2251, %v2267
      %v2292 = vadd.f32 %v2252, %v2269
      %v2293 = vadd.f32 %v2253, %v2271
      %v2294 = vadd.f32 %v2254, %v2273
      %v2295 = vadd.f32 %v2255, %v2275
      %v2296 = vadd.f32 %v2256, %v2277
      %v2297 = vadd.f32 %v2257, %v2279
      %v2298 = vld [vmem:[#allocation2 + $0x70] sm:$0xfe]
      %v2299 = vld [vmem:[#allocation2 + $0x88] sm:$0xff]
      %v2300 = vld [vmem:[#allocation2 + $0xa0] sm:$0xff]
      %v2301 = vld [vmem:[#allocation2 + $0xb8] sm:$0xff]
      %v2302 = vld [vmem:[#allocation2 + $0xd0] sm:$0xff]
      %v2303 = vld [vmem:[#allocation2 + $0xe8] sm:$0xff]
      %v2304 = vld [vmem:[#allocation2 + $0x100] sm:$0xff]
      %v2305 = vld [vmem:[#allocation2 + $0x118] sm:$0xff]
      %v2306 = vld [vmem:[#allocation2 + $0x130] sm:$0x1]
      %v2316 = vrot.slane %v2298, 2
      %v2317 = vrot.slane %v2299, 2
      %v2318 = vsel %vm2018, %v2316, %v2317
      %v2319 = vrot.slane %v2300, 2
      %v2320 = vsel %vm2018, %v2317, %v2319
      %v2321 = vrot.slane %v2301, 2
      %v2322 = vsel %vm2018, %v2319, %v2321
      %v2323 = vrot.slane %v2302, 2
      %v2324 = vsel %vm2018, %v2321, %v2323
      %v2325 = vrot.slane %v2303, 2
      %v2326 = vsel %vm2018, %v2323, %v2325
      %v2327 = vrot.slane %v2304, 2
      %v2328 = vsel %vm2018, %v2325, %v2327
      %v2329 = vrot.slane %v2305, 2
      %v2330 = vsel %vm2018, %v2327, %v2329
      %v2331 = vrot.slane %v2306, 2
      %v2332 = vsel %vm2018, %v2329, %v2331
      %v2342 = vadd.f32 %v2289, %v2316
      %v2343 = vadd.f32 %v2290, %v2318
      %v2344 = vadd.f32 %v2291, %v2320
      %v2345 = vadd.f32 %v2292, %v2322
      %v2346 = vadd.f32 %v2293, %v2324
      %v2347 = vadd.f32 %v2294, %v2326
      %v2348 = vadd.f32 %v2295, %v2328
      %v2349 = vadd.f32 %v2296, %v2330
      %v2350 = vadd.f32 %v2297, %v2332
      %v2351 = vld [vmem:[#allocation2 + $0x70] sm:$0x80]
      %v2352 = vld [vmem:[#allocation2 + $0x130] sm:$0x7f]
      %2355 = vrot.lane.b32.xlu0 %v2351, 96
      %v2356 = vpop.permute.xlu0 %2355
      %2357 = vrot.lane.b32.xlu0 %v2299, 96
      %v2358 = vpop.permute.xlu0 %2357
      %2359 = vrot.lane.b32.xlu0 %v2300, 96
      %v2360 = vpop.permute.xlu0 %2359
      %2361 = vrot.lane.b32.xlu0 %v2301, 96
      %v2362 = vpop.permute.xlu0 %2361
      %2363 = vrot.lane.b32.xlu0 %v2302, 96
      %v2364 = vpop.permute.xlu0 %2363
      %2365 = vrot.lane.b32.xlu0 %v2303, 96
      %v2366 = vpop.permute.xlu0 %2365
      %2367 = vrot.lane.b32.xlu0 %v2304, 96
      %v2368 = vpop.permute.xlu0 %2367
      %2369 = vrot.lane.b32.xlu0 %v2305, 96
      %v2370 = vpop.permute.xlu0 %2369
      %2371 = vrot.lane.b32.xlu0 %v2352, 96
      %v2372 = vpop.permute.xlu0 %2371
      %v2382 = vadd.f32 %v2342, %v2356
      %v2383 = vadd.f32 %v2343, %v2358
      %v2384 = vadd.f32 %v2344, %v2360
      %v2385 = vadd.f32 %v2345, %v2362
      %v2386 = vadd.f32 %v2346, %v2364
      %v2387 = vadd.f32 %v2347, %v2366
      %v2388 = vadd.f32 %v2348, %v2368
      %v2389 = vadd.f32 %v2349, %v2370
      %v2390 = vadd.f32 %v2350, %v2372
      %v2391 = vld [vmem:[#allocation2 + $0x130] sm:$0xff]
      %v2393 = vrot.slane %v2299, 1
      %v2394 = vrot.slane %v2300, 1
      %v2395 = vsel %vm1258, %v2393, %v2394
      %v2396 = vrot.slane %v2301, 1
      %v2397 = vsel %vm1258, %v2394, %v2396
      %v2398 = vrot.slane %v2302, 1
      %v2399 = vsel %vm1258, %v2396, %v2398
      %v2400 = vrot.slane %v2303, 1
      %v2401 = vsel %vm1258, %v2398, %v2400
      %v2402 = vrot.slane %v2304, 1
      %v2403 = vsel %vm1258, %v2400, %v2402
      %v2404 = vrot.slane %v2305, 1
      %v2405 = vsel %vm1258, %v2402, %v2404
      %v2406 = vrot.slane %v2391, 1
      %v2407 = vsel %vm1258, %v2404, %v2406
      %2408 = vrot.lane.b32.xlu0 %v2393, 64
      %v2409 = vpop.permute.xlu0 %2408
      %2410 = vrot.lane.b32.xlu0 %v2395, 64
      %v2411 = vpop.permute.xlu0 %2410
      %2412 = vrot.lane.b32.xlu0 %v2397, 64
      %v2413 = vpop.permute.xlu0 %2412
      %2414 = vrot.lane.b32.xlu0 %v2399, 64
      %v2415 = vpop.permute.xlu0 %2414
      %2416 = vrot.lane.b32.xlu0 %v2401, 64
      %v2417 = vpop.permute.xlu0 %2416
      %2418 = vrot.lane.b32.xlu0 %v2403, 64
      %v2419 = vpop.permute.xlu0 %2418
      %2420 = vrot.lane.b32.xlu0 %v2405, 64
      %v2421 = vpop.permute.xlu0 %2420
      %2422 = vrot.lane.b32.xlu0 %v2407, 64
      %v2423 = vpop.permute.xlu0 %2422
      %2424 = vrot.lane.b32.xlu0 %v2406, 64
      %v2425 = vpop.permute.xlu0 %2424
      %v2435 = vadd.f32 %v2382, %v2409
      %v2436 = vadd.f32 %v2383, %v2411
      %v2437 = vadd.f32 %v2384, %v2413
      %v2438 = vadd.f32 %v2385, %v2415
      %v2439 = vadd.f32 %v2386, %v2417
      %v2440 = vadd.f32 %v2387, %v2419
      %v2441 = vadd.f32 %v2388, %v2421
      %v2442 = vadd.f32 %v2389, %v2423
      %v2443 = vadd.f32 %v2390, %v2425
      %v2444 = vld [vmem:[#allocation2 + $0x88] sm:$0xfe]
      %v2445 = vld [vmem:[#allocation2 + $0x148] sm:$0x1]
      %v2448 = vrot.slane %v2444, 2
      %v2449 = vsel %vm2018, %v2448, %v2319
      %v2450 = vrot.slane %v2391, 2
      %v2451 = vsel %vm2018, %v2329, %v2450
      %v2452 = vrot.slane %v2445, 2
      %v2453 = vsel %vm2018, %v2450, %v2452
      %2454 = vrot.lane.b32.xlu0 %v2448, 32
      %v2455 = vpop.permute.xlu0 %2454
      %2456 = vrot.lane.b32.xlu0 %v2449, 32
      %v2457 = vpop.permute.xlu0 %2456
      %2458 = vrot.lane.b32.xlu0 %v2322, 32
      %v2459 = vpop.permute.xlu0 %2458
      %2460 = vrot.lane.b32.xlu0 %v2324, 32
      %v2461 = vpop.permute.xlu0 %2460
      %2462 = vrot.lane.b32.xlu0 %v2326, 32
      %v2463 = vpop.permute.xlu0 %2462
      %2464 = vrot.lane.b32.xlu0 %v2328, 32
      %v2465 = vpop.permute.xlu0 %2464
      %2466 = vrot.lane.b32.xlu0 %v2330, 32
      %v2467 = vpop.permute.xlu0 %2466
      %2468 = vrot.lane.b32.xlu0 %v2451, 32
      %v2469 = vpop.permute.xlu0 %2468
      %2470 = vrot.lane.b32.xlu0 %v2453, 32
      %v2471 = vpop.permute.xlu0 %2470
      %v2481 = vadd.f32 %v2435, %v2455
      %v2482 = vadd.f32 %v2436, %v2457
      %v2483 = vadd.f32 %v2437, %v2459
      %v2484 = vadd.f32 %v2438, %v2461
      %v2485 = vadd.f32 %v2439, %v2463
      %v2486 = vadd.f32 %v2440, %v2465
      %v2487 = vadd.f32 %v2441, %v2467
      %v2488 = vadd.f32 %v2442, %v2469
      %v2489 = vadd.f32 %v2443, %v2471
      %v2490 = vmax.f32 %v2481, 0.0
      %v2491 = vmax.f32 %v2482, 0.0
      %v2492 = vmax.f32 %v2483, 0.0
      %v2493 = vmax.f32 %v2484, 0.0
      %v2494 = vmax.f32 %v2485, 0.0
      %v2495 = vmax.f32 %v2486, 0.0
      %v2496 = vmax.f32 %v2487, 0.0
      %v2497 = vmax.f32 %v2488, 0.0
      %v2498 = vmax.f32 %v2489, 0.0
      %vm2508 = vcmask 1040384
      %v2509 = vrot.slane %v2490, 7
      %v2510 = vrot.slane %v2491, 7
      %v2511 = vsel %vm2508, %v2509, %v2510
      %v2512 = vrot.slane %v2492, 7
      %v2513 = vsel %vm2508, %v2510, %v2512
      %v2514 = vrot.slane %v2493, 7
      %v2515 = vsel %vm2508, %v2512, %v2514
      %v2516 = vrot.slane %v2494, 7
      %v2517 = vsel %vm2508, %v2514, %v2516
      %v2518 = vrot.slane %v2495, 7
      %v2519 = vsel %vm2508, %v2516, %v2518
      %v2520 = vrot.slane %v2496, 7
      %v2521 = vsel %vm2508, %v2518, %v2520
      %v2522 = vrot.slane %v2497, 7
      %v2523 = vsel %vm2508, %v2520, %v2522
      %v2524 = vrot.slane %v2498, 7
      %v2525 = vsel %vm2508, %v2522, %v2524
      %2534 = vst.msk [vmem:[#allocation2 + $0x48] sm:$0xff] %vm1159, %v2511
      %2535 = vst.msk [vmem:[#allocation2 + $0x60] sm:$0xff] %vm1159, %v2513
      %2536 = vst.msk [vmem:[#allocation2 + $0x78] sm:$0xff] %vm1159, %v2515
      %2537 = vst.msk [vmem:[#allocation2 + $0x90] sm:$0xff] %vm1159, %v2517
      %2538 = vst.msk [vmem:[#allocation2 + $0xa8] sm:$0xff] %vm1159, %v2519
      %2539 = vst.msk [vmem:[#allocation2 + $0xc0] sm:$0xff] %vm1159, %v2521
      %2540 = vst.msk [vmem:[#allocation2 + $0xd8] sm:$0xff] %vm1159, %v2523
      %2541 = vst.msk [vmem:[#allocation2 + $0xf0] sm:$0xff] %vm1159, %v2525
      %v2542 = vld [vmem:[#allocation2 + $0x48] sm:$0xfe]
      %v2543 = vld [vmem:[#allocation2 + $0x60] sm:$0xff]
      %v2544 = vld [vmem:[#allocation2 + $0x78] sm:$0xff]
      %v2545 = vld [vmem:[#allocation2 + $0x90] sm:$0xff]
      %v2546 = vld [vmem:[#allocation2 + $0xa8] sm:$0xff]
      %v2547 = vld [vmem:[#allocation2 + $0xc0] sm:$0xff]
      %v2548 = vld [vmem:[#allocation2 + $0xd8] sm:$0xff]
      %v2549 = vld [vmem:[#allocation2 + $0xf0] sm:$0xff]
      %v2550 = vld [vmem:[#allocation2 + $0x108] sm:$0x1]
      %v2560 = vrot.slane %v2542, 2
      %v2561 = vrot.slane %v2543, 2
      %v2562 = vsel %vm2018, %v2560, %v2561
      %v2563 = vrot.slane %v2544, 2
      %v2564 = vsel %vm2018, %v2561, %v2563
      %v2565 = vrot.slane %v2545, 2
      %v2566 = vsel %vm2018, %v2563, %v2565
      %v2567 = vrot.slane %v2546, 2
      %v2568 = vsel %vm2018, %v2565, %v2567
      %v2569 = vrot.slane %v2547, 2
      %v2570 = vsel %vm2018, %v2567, %v2569
      %v2571 = vrot.slane %v2548, 2
      %v2572 = vsel %vm2018, %v2569, %v2571
      %v2573 = vrot.slane %v2549, 2
      %v2574 = vsel %vm2018, %v2571, %v2573
      %v2575 = vrot.slane %v2550, 2
      %v2576 = vsel %vm2018, %v2573, %v2575
      %v2586 = vmax.f32 %v2490, %v2560
      %v2587 = vmax.f32 %v2491, %v2562
      %v2588 = vmax.f32 %v2492, %v2564
      %v2589 = vmax.f32 %v2493, %v2566
      %v2590 = vmax.f32 %v2494, %v2568
      %v2591 = vmax.f32 %v2495, %v2570
      %v2592 = vmax.f32 %v2496, %v2572
      %v2593 = vmax.f32 %v2497, %v2574
      %v2594 = vmax.f32 %v2498, %v2576
      %v2595 = vld [vmem:[#allocation2 + $0x108] sm:$0xff]
      %v2597 = vrot.slane %v2543, 1
      %v2598 = vrot.slane %v2544, 1
      %v2599 = vsel %vm1258, %v2597, %v2598
      %v2600 = vrot.slane %v2545, 1
      %v2601 = vsel %vm1258, %v2598, %v2600
      %v2602 = vrot.slane %v2546, 1
      %v2603 = vsel %vm1258, %v2600, %v2602
      %v2604 = vrot.slane %v2547, 1
      %v2605 = vsel %vm1258, %v2602, %v2604
      %v2606 = vrot.slane %v2548, 1
      %v2607 = vsel %vm1258, %v2604, %v2606
      %v2608 = vrot.slane %v2549, 1
      %v2609 = vsel %vm1258, %v2606, %v2608
      %v2610 = vrot.slane %v2595, 1
      %v2611 = vsel %vm1258, %v2608, %v2610
      %v2621 = vmax.f32 %v2586, %v2597
      %v2622 = vmax.f32 %v2587, %v2599
      %v2623 = vmax.f32 %v2588, %v2601
      %v2624 = vmax.f32 %v2589, %v2603
      %v2625 = vmax.f32 %v2590, %v2605
      %v2626 = vmax.f32 %v2591, %v2607
      %v2627 = vmax.f32 %v2592, %v2609
      %v2628 = vmax.f32 %v2593, %v2611
      %v2629 = vmax.f32 %v2594, %v2610
      %v2630 = vld [vmem:[#allocation2 + $0x60] sm:$0xfe]
      %v2631 = vld [vmem:[#allocation2 + $0x120] sm:$0x1]
      %v2634 = vrot.slane %v2630, 2
      %v2635 = vsel %vm2018, %v2634, %v2563
      %v2636 = vrot.slane %v2595, 2
      %v2637 = vsel %vm2018, %v2573, %v2636
      %v2638 = vrot.slane %v2631, 2
      %v2639 = vsel %vm2018, %v2636, %v2638
      %v2644 = vmax.f32 %v2621, %v2634
      %v2645 = vmax.f32 %v2622, %v2635
      %v2646 = vmax.f32 %v2623, %v2566
      %v2647 = vmax.f32 %v2624, %v2568
      %v2648 = vmax.f32 %v2625, %v2570
      %v2649 = vmax.f32 %v2626, %v2572
      %v2650 = vmax.f32 %v2627, %v2574
      %v2651 = vmax.f32 %v2628, %v2637
      %v2652 = vmax.f32 %v2629, %v2639
      %v2653 = vld [vmem:[%s21] sm:$0xff]
      %v2654 = vld [vmem:[%s21 + $0x8] sm:$0xff]
      %v2664 = vrot.slane %v2644, 7
      %v2665 = vrot.slane %v2645, 7
      %v2666 = vsel %vm2508, %v2664, %v2665
      %v2667 = vrot.slane %v2646, 7
      %v2668 = vsel %vm2508, %v2665, %v2667
      %v2669 = vrot.slane %v2647, 7
      %v2670 = vsel %vm2508, %v2667, %v2669
      %v2671 = vrot.slane %v2648, 7
      %v2672 = vsel %vm2508, %v2669, %v2671
      %v2673 = vrot.slane %v2649, 7
      %v2674 = vsel %vm2508, %v2671, %v2673
      %v2675 = vrot.slane %v2650, 7
      %v2676 = vsel %vm2508, %v2673, %v2675
      %v2677 = vrot.slane %v2651, 7
      %v2678 = vsel %vm2508, %v2675, %v2677
      %v2679 = vrot.slane %v2652, 7
      %v2680 = vsel %vm2508, %v2677, %v2679
      %vm2689 = vcmask 523264
      %v2691 = vsel %vm2689, %v2653, 0
      %v2694 = vsel %vm2689, %v2654, 0
      %2696 = vmatprep.subr.mxu0 0.0
      %2697 = vmatpush1.msra.mxu0 0.0
      %2698 = vmatprep.subr.mxu0 0.0
      %2699 = vmatpush1.msra.mxu0 0.0
      %2700 = vmatprep.subr.mxu0 0.0
      %2701 = vmatpush1.msra.mxu0 0.0
      %2702 = vmatprep.subr.mxu0 0.0
      %2703 = vmatpush1.msra.mxu0 0.0
      %2704 = vmatprep.subr.mxu0 0.0
      %2705 = vmatpush1.msra.mxu0 0.0
      %2706 = vmatprep.subr.mxu0 0.0
      %2707 = vmatpush1.msra.mxu0 0.0
      %2708 = vmatprep.subr.mxu0 0.0
      %2709 = vmatpush1.msra.mxu0 0.0
      %2710 = vmatprep.subr.mxu0 0.0
      %2711 = vmatpush1.msra.mxu0 0.0
      %2712 = vmatprep.subr.mxu0 0.0
      %2713 = vmatpush1.msra.mxu0 %v2680
      %2714 = vmatprep.subr.mxu0 0.0
      %2715 = vmatpush1.msra.mxu0 %v2678
      %2716 = vmatprep.subr.mxu0 0.0
      %2717 = vmatpush1.msra.mxu0 %v2676
      %2718 = vmatprep.subr.mxu0 0.0
      %2719 = vmatpush1.msra.mxu0 %v2674
      %2720 = vmatprep.subr.mxu0 0.0
      %2721 = vmatpush1.msra.mxu0 %v2672
      %2722 = vmatprep.subr.mxu0 0.0
      %2723 = vmatpush1.msra.mxu0 %v2670
      %2724 = vmatprep.subr.mxu0 0.0
      %2725 = vmatpush1.msra.mxu0 %v2668
      %2726 = vmatprep.subr.mxu0 0.0
      %2727 = vmatpush1.msra.mxu0 %v2666
      %2728 = vmatprep.subr.mxu0 0.0
      %2729 = vmatpush2.msra.mxu0 0.0
      %2730 = vmatprep.subr.mxu0 0.0
      %2731 = vmatpush2.msra.mxu0 0.0
      %2732 = vmatprep.subr.mxu0 0.0
      %2733 = vmatpush2.msra.mxu0 0.0
      %2734 = vmatprep.subr.mxu0 0.0
      %2735 = vmatpush2.msra.mxu0 0.0
      %2736 = vmatprep.subr.mxu0 0.0
      %2737 = vmatpush2.msra.mxu0 0.0
      %2738 = vmatprep.subr.mxu0 0.0
      %2739 = vmatpush2.msra.mxu0 0.0
      %2740 = vmatprep.subr.mxu0 0.0
      %2741 = vmatpush2.msra.mxu0 0.0
      %2742 = vmatprep.subr.mxu0 0.0
      %2743 = vmatpush2.msra.mxu0 0.0
      %2744 = vmatprep.subr.mxu0 0.0
      %2745 = vmatpush2.msra.mxu0 0.0
      %2746 = vmatprep.subr.mxu0 0.0
      %2747 = vmatpush2.msra.mxu0 0.0
      %2748 = vmatprep.subr.mxu0 0.0
      %2749 = vmatpush2.msra.mxu0 0.0
      %2750 = vmatprep.subr.mxu0 0.0
      %2751 = vmatpush2.msra.mxu0 0.0
      %2752 = vmatprep.subr.mxu0 0.0
      %2753 = vmatpush2.msra.mxu0 0.0
      %2754 = vmatprep.subr.mxu0 0.0
      %2755 = vmatpush2.msra.mxu0 0.0
      %2756 = vmatprep.subr.mxu0 0.0
      %2757 = vmatpush2.msra.mxu0 0.0
      %2758 = vmatprep.subr.mxu0 0.0
      %2759 = vmatpush2.msra.mxu0 0.0
      %2760 = vmatprep.mubr.f32.mxu0 0.0
      %2761 = vmatmul.mubr.f32.gmra.mxu0 %v2691
      %v2762 = vpop.f32.mrf.mxu0
      %v2763 = vadd.f32 0.0, %v2762
      %v2764 = vpop.f32.mrf.mxu0
      %2765 = vmatprep.mubr.f32.mxu0 0.0
      %2766 = vmatmul.mubr.f32.gmra.mxu0 %v2694
      %v2767 = vpop.f32.mrf.mxu0
      %v2768 = vadd.f32 0.0, %v2767
      %v2769 = vpop.f32.mrf.mxu0
      %2770 = vdwg.mxu0
      %v2771 = vld [vmem:[%s5] sm:$0xff]
      %v2772 = vld [vmem:[%s5 + $0x8] sm:$0xff]
      %v2773 = vld [vmem:[%s5 + $0x10] sm:$0xff]
      %v2774 = vld [vmem:[%s5 + $0x18] sm:$0xff]
      %v2775 = vld [vmem:[%s5 + $0x20] sm:$0xff]
      %v2776 = vld [vmem:[%s5 + $0x28] sm:$0xff]
      %v2777 = vld [vmem:[%s5 + $0x30] sm:$0xff]
      %v2778 = vld [vmem:[%s5 + $0x38] sm:$0xff]
      %v2779 = vld [vmem:[%s5 + $0x40] sm:$0xff]
      %v2780 = vld [vmem:[%s5 + $0x48] sm:$0xff]
      %v2781 = vld [vmem:[%s5 + $0x50] sm:$0xff]
      %v2782 = vld [vmem:[%s5 + $0x58] sm:$0xff]
      %v2784 = vsel %vm1159, %v2763, 0
      %v2787 = vsel %vm1159, %v2768, 0
      %2789 = vmatprep.subr.mxu0 0.0
      %2790 = vmatpush1.msra.mxu0 0.0
      %2791 = vmatprep.subr.mxu0 0.0
      %2792 = vmatpush1.msra.mxu0 0.0
      %2793 = vmatprep.subr.mxu0 0.0
      %2794 = vmatpush1.msra.mxu0 0.0
      %2795 = vmatprep.subr.mxu0 0.0
      %2796 = vmatpush1.msra.mxu0 0.0
      %2797 = vmatprep.subr.mxu0 0.0
      %2798 = vmatpush1.msra.mxu0 0.0
      %2799 = vmatprep.subr.mxu0 0.0
      %2800 = vmatpush1.msra.mxu0 0.0
      %2801 = vmatprep.subr.mxu0 0.0
      %2802 = vmatpush1.msra.mxu0 0.0
      %2803 = vmatprep.subr.mxu0 0.0
      %2804 = vmatpush1.msra.mxu0 0.0
      %2805 = vmatprep.subr.mxu0 0.0
      %2806 = vmatpush1.msra.mxu0 0.0
      %2807 = vmatprep.subr.mxu0 0.0
      %2808 = vmatpush1.msra.mxu0 0.0
      %2809 = vmatprep.subr.mxu0 0.0
      %2810 = vmatpush1.msra.mxu0 0.0
      %2811 = vmatprep.subr.mxu0 0.0
      %2812 = vmatpush1.msra.mxu0 0.0
      %2813 = vmatprep.subr.mxu0 %v2781
      %2814 = vmatpush1.msra.mxu0 %v2780
      %2815 = vmatprep.subr.mxu0 %v2778
      %2816 = vmatpush1.msra.mxu0 %v2777
      %2817 = vmatprep.subr.mxu0 %v2775
      %2818 = vmatpush1.msra.mxu0 %v2774
      %2819 = vmatprep.subr.mxu0 %v2772
      %2820 = vmatpush1.msra.mxu0 %v2771
      %2821 = vmatprep.subr.mxu0 0.0
      %2822 = vmatpush2.msra.mxu0 0.0
      %2823 = vmatprep.subr.mxu0 0.0
      %2824 = vmatpush2.msra.mxu0 0.0
      %2825 = vmatprep.subr.mxu0 0.0
      %2826 = vmatpush2.msra.mxu0 0.0
      %2827 = vmatprep.subr.mxu0 0.0
      %2828 = vmatpush2.msra.mxu0 0.0
      %2829 = vmatprep.subr.mxu0 0.0
      %2830 = vmatpush2.msra.mxu0 0.0
      %2831 = vmatprep.subr.mxu0 0.0
      %2832 = vmatpush2.msra.mxu0 0.0
      %2833 = vmatprep.subr.mxu0 0.0
      %2834 = vmatpush2.msra.mxu0 0.0
      %2835 = vmatprep.subr.mxu0 0.0
      %2836 = vmatpush2.msra.mxu0 0.0
      %2837 = vmatprep.subr.mxu0 0.0
      %2838 = vmatpush2.msra.mxu0 0.0
      %2839 = vmatprep.subr.mxu0 0.0
      %2840 = vmatpush2.msra.mxu0 0.0
      %2841 = vmatprep.subr.mxu0 0.0
      %2842 = vmatpush2.msra.mxu0 0.0
      %2843 = vmatprep.subr.mxu0 0.0
      %2844 = vmatpush2.msra.mxu0 0.0
      %2845 = vmatprep.subr.mxu0 0.0
      %2846 = vmatpush2.msra.mxu0 0.0
      %2847 = vmatprep.subr.mxu0 0.0
      %2848 = vmatpush2.msra.mxu0 0.0
      %2849 = vmatprep.subr.mxu0 0.0
      %2850 = vmatpush2.msra.mxu0 0.0
      %2851 = vmatprep.subr.mxu0 0.0
      %2852 = vmatpush2.msra.mxu0 0.0
      %2853 = vmatprep.mubr.f32.mxu0 0.0
      %2854 = vmatmul.mubr.f32.gmra.mxu0 %v2784
      %v2855 = vpop.f32.mrf.mxu0
      %v2856 = vadd.f32 0.0, %v2855
      %v2857 = vpop.f32.mrf.mxu0
      %v2858 = vadd.f32 0.0, %v2857
      %2859 = vmatprep.mubr.f32.mxu0 0.0
      %2860 = vmatmul.mubr.f32.gmra.mxu0 %v2787
      %v2861 = vpop.f32.mrf.mxu0
      %v2862 = vadd.f32 0.0, %v2861
      %v2863 = vpop.f32.mrf.mxu0
      %v2864 = vadd.f32 0.0, %v2863
      %2865 = vdwg.mxu0
      %2866 = vmatprep.subr.mxu0 0.0
      %2867 = vmatpush1.msra.mxu0 0.0
      %2868 = vmatprep.subr.mxu0 0.0
      %2869 = vmatpush1.msra.mxu0 0.0
      %2870 = vmatprep.subr.mxu0 0.0
      %2871 = vmatpush1.msra.mxu0 0.0
      %2872 = vmatprep.subr.mxu0 0.0
      %2873 = vmatpush1.msra.mxu0 0.0
      %2874 = vmatprep.subr.mxu0 0.0
      %2875 = vmatpush1.msra.mxu0 0.0
      %2876 = vmatprep.subr.mxu0 0.0
      %2877 = vmatpush1.msra.mxu0 0.0
      %2878 = vmatprep.subr.mxu0 0.0
      %2879 = vmatpush1.msra.mxu0 0.0
      %2880 = vmatprep.subr.mxu0 0.0
      %2881 = vmatpush1.msra.mxu0 0.0
      %2882 = vmatprep.subr.mxu0 0.0
      %2883 = vmatpush1.msra.mxu0 0.0
      %2884 = vmatprep.subr.mxu0 0.0
      %2885 = vmatpush1.msra.mxu0 0.0
      %2886 = vmatprep.subr.mxu0 0.0
      %2887 = vmatpush1.msra.mxu0 0.0
      %2888 = vmatprep.subr.mxu0 0.0
      %2889 = vmatpush1.msra.mxu0 0.0
      %2890 = vmatprep.subr.mxu0 0.0
      %2891 = vmatpush1.msra.mxu0 %v2782
      %2892 = vmatprep.subr.mxu0 0.0
      %2893 = vmatpush1.msra.mxu0 %v2779
      %2894 = vmatprep.subr.mxu0 0.0
      %2895 = vmatpush1.msra.mxu0 %v2776
      %2896 = vmatprep.subr.mxu0 0.0
      %2897 = vmatpush1.msra.mxu0 %v2773
      %2898 = vmatprep.subr.mxu0 0.0
      %2899 = vmatpush2.msra.mxu0 0.0
      %2900 = vmatprep.subr.mxu0 0.0
      %2901 = vmatpush2.msra.mxu0 0.0
      %2902 = vmatprep.subr.mxu0 0.0
      %2903 = vmatpush2.msra.mxu0 0.0
      %2904 = vmatprep.subr.mxu0 0.0
      %2905 = vmatpush2.msra.mxu0 0.0
      %2906 = vmatprep.subr.mxu0 0.0
      %2907 = vmatpush2.msra.mxu0 0.0
      %2908 = vmatprep.subr.mxu0 0.0
      %2909 = vmatpush2.msra.mxu0 0.0
      %2910 = vmatprep.subr.mxu0 0.0
      %2911 = vmatpush2.msra.mxu0 0.0
      %2912 = vmatprep.subr.mxu0 0.0
      %2913 = vmatpush2.msra.mxu0 0.0
      %2914 = vmatprep.subr.mxu0 0.0
      %2915 = vmatpush2.msra.mxu0 0.0
      %2916 = vmatprep.subr.mxu0 0.0
      %2917 = vmatpush2.msra.mxu0 0.0
      %2918 = vmatprep.subr.mxu0 0.0
      %2919 = vmatpush2.msra.mxu0 0.0
      %2920 = vmatprep.subr.mxu0 0.0
      %2921 = vmatpush2.msra.mxu0 0.0
      %2922 = vmatprep.subr.mxu0 0.0
      %2923 = vmatpush2.msra.mxu0 0.0
      %2924 = vmatprep.subr.mxu0 0.0
      %2925 = vmatpush2.msra.mxu0 0.0
      %2926 = vmatprep.subr.mxu0 0.0
      %2927 = vmatpush2.msra.mxu0 0.0
      %2928 = vmatprep.subr.mxu0 0.0
      %2929 = vmatpush2.msra.mxu0 0.0
      %2930 = vmatprep.mubr.f32.mxu0 0.0
      %2931 = vmatmul.mubr.f32.gmra.mxu0 %v2784
      %v2932 = vpop.f32.mrf.mxu0
      %v2933 = vadd.f32 0.0, %v2932
      %v2934 = vpop.f32.mrf.mxu0
      %2935 = vmatprep.mubr.f32.mxu0 0.0
      %2936 = vmatmul.mubr.f32.gmra.mxu0 %v2787
      %v2937 = vpop.f32.mrf.mxu0
      %v2938 = vadd.f32 0.0, %v2937
      %v2939 = vpop.f32.mrf.mxu0
      %2940 = vdwg.mxu0
      %v2941 = vld [vmem:[%s18] sm:$0xff]
      %v2942 = vld [vmem:[%s18 + $0x8] sm:$0xff]
      %v2943 = vld [vmem:[%s18 + $0x10] sm:$0xff]
      %v2944 = vld [vmem:[%s18 + $0x18] sm:$0xff]
      %v2945 = vld [vmem:[%s18 + $0x20] sm:$0xff]
      %v2946 = vld [vmem:[%s18 + $0x28] sm:$0xff]
      %v2947 = vmul.f32 %v2856, %v2941
      %v2948 = vmul.f32 %v2858, %v2942
      %v2949 = vmul.f32 %v2933, %v2943
      %v2950 = vmul.f32 %v2862, %v2944
      %v2951 = vmul.f32 %v2864, %v2945
      %v2952 = vmul.f32 %v2938, %v2946
      %2953 = vst [vmem:[#allocation2 + $0x48] sm:$0xff] %v2947
      %2954 = vst [vmem:[#allocation2 + $0x50] sm:$0xff] %v2948
      %2955 = vst [vmem:[#allocation2 + $0x58] sm:$0xff] %v2949
      %2956 = vst [vmem:[#allocation2 + $0x60] sm:$0xff] %v2950
      %2957 = vst [vmem:[#allocation2 + $0x68] sm:$0xff] %v2951
      %2958 = vst [vmem:[#allocation2 + $0x70] sm:$0xff] %v2952
      %2959 = vst [vmem:[#allocation2 + $0x78] sm:$0xff] 0.0
      %2960 = vst [vmem:[#allocation2 + $0x80] sm:$0xff] 0.0
      %2961 = vst [vmem:[#allocation2 + $0x88] sm:$0xff] 0.0
      %2962 = vst [vmem:[#allocation2 + $0x90] sm:$0x1] 0.0
      %2963 = vst [vmem:[#allocation2 + $0x98] sm:$0x1] 0.0
      %2964 = vst [vmem:[#allocation2 + $0xa0] sm:$0x1] 0.0
      %v2965 = vld [vmem:[%s6] sm:$0x1]
      %v2967 = vlaneseq
      %v2968 = vshrl.u32 %v2967, 7
      %v2969 = vsub.s32 0, %v2968
      %v2970 = vrot.slane %v2965, %v2969
      %v2972 = vadd.f32 %v2970, 0.0
      %v2973 = vld [vmem:[#allocation2 + $0x30] sm:$0xf8]
      %v2974 = vld [vmem:[#allocation2 + $0x48] sm:$0xff]
      %v2975 = vld [vmem:[#allocation2 + $0x60] sm:$0x7]
      %v2976 = vadd.f32 %v2972, %v2973
      %v2977 = vadd.f32 %v2972, %v2974
      %v2978 = vadd.f32 %v2972, %v2975
      %v2979 = vld [vmem:[#allocation2 + $0x30] sm:$0xf0]
      %v2980 = vld [vmem:[#allocation2 + $0x60] sm:$0xf]
      %v2984 = vrot.slane %v2979, 1
      %v2985 = vrot.slane %v2974, 1
      %v2986 = vsel %vm1258, %v2984, %v2985
      %v2987 = vrot.slane %v2980, 1
      %v2988 = vsel %vm1258, %v2985, %v2987
      %2989 = vrot.lane.b32.xlu0 %v2986, 96
      %v2990 = vpop.permute.xlu0 %2989
      %2991 = vrot.lane.b32.xlu0 %v2988, 96
      %v2992 = vpop.permute.xlu0 %2991
      %2993 = vrot.lane.b32.xlu0 %v2987, 96
      %v2994 = vpop.permute.xlu0 %2993
      %v2998 = vadd.f32 %v2976, %v2990
      %v2999 = vadd.f32 %v2977, %v2992
      %v3000 = vadd.f32 %v2978, %v2994
      %v3001 = vld [vmem:[#allocation2 + $0x30] sm:$0xe0]
      %v3002 = vld [vmem:[#allocation2 + $0x60] sm:$0x1f]
      %v3005 = vrot.slane %v3001, 2
      %v3006 = vrot.slane %v2974, 2
      %v3007 = vsel %vm2018, %v3005, %v3006
      %v3008 = vrot.slane %v3002, 2
      %v3009 = vsel %vm2018, %v3006, %v3008
      %3010 = vrot.lane.b32.xlu0 %v3007, 64
      %v3011 = vpop.permute.xlu0 %3010
      %3012 = vrot.lane.b32.xlu0 %v3009, 64
      %v3013 = vpop.permute.xlu0 %3012
      %3014 = vrot.lane.b32.xlu0 %v3008, 64
      %v3015 = vpop.permute.xlu0 %3014
      %v3019 = vadd.f32 %v2998, %v3011
      %v3020 = vadd.f32 %v2999, %v3013
      %v3021 = vadd.f32 %v3000, %v3015
      %v3022 = vld [vmem:[#allocation2 + $0x30] sm:$0x80]
      %v3023 = vld [vmem:[#allocation2 + $0x60] sm:$0x7f]
      %vm3026 = vcmask 1043456
      %v3027 = vrot.slane %v3022, 4
      %v3028 = vrot.slane %v2974, 4
      %v3029 = vsel %vm3026, %v3027, %v3028
      %v3030 = vrot.slane %v3023, 4
      %v3031 = vsel %vm3026, %v3028, %v3030
      %3032 = vrot.lane.b32.xlu0 %v3029, 32
      %v3033 = vpop.permute.xlu0 %3032
      %3034 = vrot.lane.b32.xlu0 %v3031, 32
      %v3035 = vpop.permute.xlu0 %3034
      %3036 = vrot.lane.b32.xlu0 %v3030, 32
      %v3037 = vpop.permute.xlu0 %3036
      %v3041 = vadd.f32 %v3019, %v3033
      %v3042 = vadd.f32 %v3020, %v3035
      %v3043 = vadd.f32 %v3021, %v3037
      %v3044 = vld [vmem:[#allocation2 + $0x50] sm:$0xff]
      %v3045 = vld [vmem:[#allocation2 + $0x68] sm:$0xff]
      %vm3048 = vcmask 1042432
      %v3049 = vrot.slane %v3044, 5
      %v3050 = vrot.slane %v3045, 5
      %v3051 = vsel %vm3048, %v3049, %v3050
      %v3055 = vadd.f32 %v3041, %v3049
      %v3056 = vadd.f32 %v3042, %v3051
      %v3057 = vadd.f32 %v3043, %v3050
      %v3058 = vld [vmem:[#allocation2 + $0x50] sm:$0xfe]
      %v3059 = vld [vmem:[#allocation2 + $0x80] sm:$0x1]
      %vm3062 = vcmask 1041408
      %v3063 = vrot.slane %v3058, 6
      %v3064 = vrot.slane %v3045, 6
      %v3065 = vsel %vm3062, %v3063, %v3064
      %v3066 = vrot.slane %v3059, 6
      %v3067 = vsel %vm3062, %v3064, %v3066
      %3068 = vrot.lane.b32.xlu0 %v3063, 96
      %v3069 = vpop.permute.xlu0 %3068
      %3070 = vrot.lane.b32.xlu0 %v3065, 96
      %v3071 = vpop.permute.xlu0 %3070
      %3072 = vrot.lane.b32.xlu0 %v3067, 96
      %v3073 = vpop.permute.xlu0 %3072
      %v3077 = vadd.f32 %v3055, %v3069
      %v3078 = vadd.f32 %v3056, %v3071
      %v3079 = vadd.f32 %v3057, %v3073
      %v3080 = vld [vmem:[#allocation2 + $0x50] sm:$0xf8]
      %v3081 = vld [vmem:[#allocation2 + $0x80] sm:$0x7]
      %3084 = vrot.lane.b32.xlu0 %v3080, 64
      %v3085 = vpop.permute.xlu0 %3084
      %3086 = vrot.lane.b32.xlu0 %v3045, 64
      %v3087 = vpop.permute.xlu0 %3086
      %3088 = vrot.lane.b32.xlu0 %v3081, 64
      %v3089 = vpop.permute.xlu0 %3088
      %v3093 = vadd.f32 %v3077, %v3085
      %v3094 = vadd.f32 %v3078, %v3087
      %v3095 = vadd.f32 %v3079, %v3089
      %v3096 = vld [vmem:[#allocation2 + $0x50] sm:$0xf0]
      %v3097 = vld [vmem:[#allocation2 + $0x80] sm:$0xf]
      %v3100 = vrot.slane %v3096, 1
      %v3101 = vrot.slane %v3045, 1
      %v3102 = vsel %vm1258, %v3100, %v3101
      %v3103 = vrot.slane %v3097, 1
      %v3104 = vsel %vm1258, %v3101, %v3103
      %3105 = vrot.lane.b32.xlu0 %v3102, 32
      %v3106 = vpop.permute.xlu0 %3105
      %3107 = vrot.lane.b32.xlu0 %v3104, 32
      %v3108 = vpop.permute.xlu0 %3107
      %3109 = vrot.lane.b32.xlu0 %v3103, 32
      %v3110 = vpop.permute.xlu0 %3109
      %v3114 = vadd.f32 %v3093, %v3106
      %v3115 = vadd.f32 %v3094, %v3108
      %v3116 = vadd.f32 %v3095, %v3110
      %v3117 = vld [vmem:[#allocation2 + $0x58] sm:$0xe0]
      %v3118 = vld [vmem:[#allocation2 + $0x70] sm:$0xff]
      %v3119 = vld [vmem:[#allocation2 + $0x88] sm:$0x1f]
      %v3123 = vrot.slane %v3117, 2
      %v3124 = vrot.slane %v3118, 2
      %v3125 = vsel %vm2018, %v3123, %v3124
      %v3126 = vrot.slane %v3119, 2
      %v3127 = vsel %vm2018, %v3124, %v3126
      %v3131 = vadd.f32 %v3114, %v3125
      %v3132 = vadd.f32 %v3115, %v3127
      %v3133 = vadd.f32 %v3116, %v3126
      %v3134 = vld [vmem:[#allocation2 + $0x58] sm:$0x80]
      %v3135 = vld [vmem:[#allocation2 + $0x88] sm:$0x7f]
      %v3138 = vrot.slane %v3134, 4
      %v3139 = vrot.slane %v3118, 4
      %v3140 = vsel %vm3026, %v3138, %v3139
      %v3141 = vrot.slane %v3135, 4
      %v3142 = vsel %vm3026, %v3139, %v3141
      %3143 = vrot.lane.b32.xlu0 %v3140, 96
      %v3144 = vpop.permute.xlu0 %3143
      %3145 = vrot.lane.b32.xlu0 %v3142, 96
      %v3146 = vpop.permute.xlu0 %3145
      %3147 = vrot.lane.b32.xlu0 %v3141, 96
      %v3148 = vpop.permute.xlu0 %3147
      %v3152 = vadd.f32 %v3131, %v3144
      %v3153 = vadd.f32 %v3132, %v3146
      %v3154 = vadd.f32 %v3133, %v3148
      %v3155 = vld [vmem:[#allocation2 + $0x88] sm:$0xff]
      %v3157 = vrot.slane %v3118, 5
      %v3158 = vrot.slane %v3155, 5
      %v3159 = vsel %vm3048, %v3157, %v3158
      %3160 = vrot.lane.b32.xlu0 %v3157, 64
      %v3161 = vpop.permute.xlu0 %3160
      %3162 = vrot.lane.b32.xlu0 %v3159, 64
      %v3163 = vpop.permute.xlu0 %3162
      %3164 = vrot.lane.b32.xlu0 %v3158, 64
      %v3165 = vpop.permute.xlu0 %3164
      %v3169 = vadd.f32 %v3152, %v3161
      %v3170 = vadd.f32 %v3153, %v3163
      %v3171 = vadd.f32 %v3154, %v3165
      %v3172 = vld [vmem:[#allocation2 + $0x70] sm:$0xfe]
      %v3173 = vld [vmem:[#allocation2 + $0xa0] sm:$0x1]
      %v3176 = vrot.slane %v3172, 6
      %v3177 = vrot.slane %v3155, 6
      %v3178 = vsel %vm3062, %v3176, %v3177
      %v3179 = vrot.slane %v3173, 6
      %v3180 = vsel %vm3062, %v3177, %v3179
      %3181 = vrot.lane.b32.xlu0 %v3176, 32
      %v3182 = vpop.permute.xlu0 %3181
      %3183 = vrot.lane.b32.xlu0 %v3178, 32
      %v3184 = vpop.permute.xlu0 %3183
      %3185 = vrot.lane.b32.xlu0 %v3180, 32
      %v3186 = vpop.permute.xlu0 %3185
      %v3190 = vadd.f32 %v3169, %v3182
      %v3191 = vadd.f32 %v3170, %v3184
      %v3192 = vadd.f32 %v3171, %v3186
      %v3193 = vmax.f32 %v3190, 0.0
      %v3194 = vmax.f32 %v3191, 0.0
      %v3195 = vmax.f32 %v3192, 0.0
      %v3196 = vld [vmem:[%s7] sm:$0xff]
      %v3197 = vld [vmem:[%s7 + $0x8] sm:$0xff]
      %v3198 = vld [vmem:[%s7 + $0x10] sm:$0xff]
      %v3199 = vld [vmem:[%s7 + $0x18] sm:$0xff]
      %v3200 = vld [vmem:[%s7 + $0x20] sm:$0xff]
      %v3201 = vld [vmem:[%s7 + $0x28] sm:$0xff]
      %v3202 = vld [vmem:[%s7 + $0x30] sm:$0xff]
      %v3203 = vld [vmem:[%s7 + $0x38] sm:$0xff]
      %v3204 = vld [vmem:[%s7 + $0x40] sm:$0xff]
      %v3205 = vld [vmem:[%s7 + $0x48] sm:$0xff]
      %v3206 = vld [vmem:[%s7 + $0x50] sm:$0xff]
      %v3207 = vld [vmem:[%s7 + $0x58] sm:$0xff]
      %vm3211 = vcmask 1044480
      %v3212 = vrot.slane %v3193, 3
      %v3213 = vrot.slane %v3194, 3
      %v3214 = vsel %vm3211, %v3212, %v3213
      %v3215 = vrot.slane %v3195, 3
      %v3216 = vsel %vm3211, %v3213, %v3215
      %v3217 = vsel %vm1159, %v3214, 0
      %v3219 = vsel %vm1159, %v3216, 0
      %3221 = vmatprep.subr.mxu0 0.0
      %3222 = vmatpush1.msra.mxu0 0.0
      %3223 = vmatprep.subr.mxu0 0.0
      %3224 = vmatpush1.msra.mxu0 0.0
      %3225 = vmatprep.subr.mxu0 0.0
      %3226 = vmatpush1.msra.mxu0 0.0
      %3227 = vmatprep.subr.mxu0 0.0
      %3228 = vmatpush1.msra.mxu0 0.0
      %3229 = vmatprep.subr.mxu0 0.0
      %3230 = vmatpush1.msra.mxu0 0.0
      %3231 = vmatprep.subr.mxu0 0.0
      %3232 = vmatpush1.msra.mxu0 0.0
      %3233 = vmatprep.subr.mxu0 0.0
      %3234 = vmatpush1.msra.mxu0 0.0
      %3235 = vmatprep.subr.mxu0 0.0
      %3236 = vmatpush1.msra.mxu0 0.0
      %3237 = vmatprep.subr.mxu0 0.0
      %3238 = vmatpush1.msra.mxu0 0.0
      %3239 = vmatprep.subr.mxu0 0.0
      %3240 = vmatpush1.msra.mxu0 0.0
      %3241 = vmatprep.subr.mxu0 0.0
      %3242 = vmatpush1.msra.mxu0 0.0
      %3243 = vmatprep.subr.mxu0 0.0
      %3244 = vmatpush1.msra.mxu0 0.0
      %3245 = vmatprep.subr.mxu0 %v3206
      %3246 = vmatpush1.msra.mxu0 %v3205
      %3247 = vmatprep.subr.mxu0 %v3203
      %3248 = vmatpush1.msra.mxu0 %v3202
      %3249 = vmatprep.subr.mxu0 %v3200
      %3250 = vmatpush1.msra.mxu0 %v3199
      %3251 = vmatprep.subr.mxu0 %v3197
      %3252 = vmatpush1.msra.mxu0 %v3196
      %3253 = vmatprep.subr.mxu0 0.0
      %3254 = vmatpush2.msra.mxu0 0.0
      %3255 = vmatprep.subr.mxu0 0.0
      %3256 = vmatpush2.msra.mxu0 0.0
      %3257 = vmatprep.subr.mxu0 0.0
      %3258 = vmatpush2.msra.mxu0 0.0
      %3259 = vmatprep.subr.mxu0 0.0
      %3260 = vmatpush2.msra.mxu0 0.0
      %3261 = vmatprep.subr.mxu0 0.0
      %3262 = vmatpush2.msra.mxu0 0.0
      %3263 = vmatprep.subr.mxu0 0.0
      %3264 = vmatpush2.msra.mxu0 0.0
      %3265 = vmatprep.subr.mxu0 0.0
      %3266 = vmatpush2.msra.mxu0 0.0
      %3267 = vmatprep.subr.mxu0 0.0
      %3268 = vmatpush2.msra.mxu0 0.0
      %3269 = vmatprep.subr.mxu0 0.0
      %3270 = vmatpush2.msra.mxu0 0.0
      %3271 = vmatprep.subr.mxu0 0.0
      %3272 = vmatpush2.msra.mxu0 0.0
      %3273 = vmatprep.subr.mxu0 0.0
      %3274 = vmatpush2.msra.mxu0 0.0
      %3275 = vmatprep.subr.mxu0 0.0
      %3276 = vmatpush2.msra.mxu0 0.0
      %3277 = vmatprep.subr.mxu0 0.0
      %3278 = vmatpush2.msra.mxu0 0.0
      %3279 = vmatprep.subr.mxu0 0.0
      %3280 = vmatpush2.msra.mxu0 0.0
      %3281 = vmatprep.subr.mxu0 0.0
      %3282 = vmatpush2.msra.mxu0 0.0
      %3283 = vmatprep.subr.mxu0 0.0
      %3284 = vmatpush2.msra.mxu0 0.0
      %3285 = vmatprep.mubr.f32.mxu0 0.0
      %3286 = vmatmul.mubr.f32.gmra.mxu0 %v3217
      %v3287 = vpop.f32.mrf.mxu0
      %v3288 = vadd.f32 0.0, %v3287
      %v3289 = vpop.f32.mrf.mxu0
      %v3290 = vadd.f32 0.0, %v3289
      %3291 = vmatprep.mubr.f32.mxu0 0.0
      %3292 = vmatmul.mubr.f32.gmra.mxu0 %v3219
      %v3293 = vpop.f32.mrf.mxu0
      %v3294 = vadd.f32 0.0, %v3293
      %v3295 = vpop.f32.mrf.mxu0
      %v3296 = vadd.f32 0.0, %v3295
      %3297 = vdwg.mxu0
      %3298 = vmatprep.subr.mxu0 0.0
      %3299 = vmatpush1.msra.mxu0 0.0
      %3300 = vmatprep.subr.mxu0 0.0
      %3301 = vmatpush1.msra.mxu0 0.0
      %3302 = vmatprep.subr.mxu0 0.0
      %3303 = vmatpush1.msra.mxu0 0.0
      %3304 = vmatprep.subr.mxu0 0.0
      %3305 = vmatpush1.msra.mxu0 0.0
      %3306 = vmatprep.subr.mxu0 0.0
      %3307 = vmatpush1.msra.mxu0 0.0
      %3308 = vmatprep.subr.mxu0 0.0
      %3309 = vmatpush1.msra.mxu0 0.0
      %3310 = vmatprep.subr.mxu0 0.0
      %3311 = vmatpush1.msra.mxu0 0.0
      %3312 = vmatprep.subr.mxu0 0.0
      %3313 = vmatpush1.msra.mxu0 0.0
      %3314 = vmatprep.subr.mxu0 0.0
      %3315 = vmatpush1.msra.mxu0 0.0
      %3316 = vmatprep.subr.mxu0 0.0
      %3317 = vmatpush1.msra.mxu0 0.0
      %3318 = vmatprep.subr.mxu0 0.0
      %3319 = vmatpush1.msra.mxu0 0.0
      %3320 = vmatprep.subr.mxu0 0.0
      %3321 = vmatpush1.msra.mxu0 0.0
      %3322 = vmatprep.subr.mxu0 0.0
      %3323 = vmatpush1.msra.mxu0 %v3207
      %3324 = vmatprep.subr.mxu0 0.0
      %3325 = vmatpush1.msra.mxu0 %v3204
      %3326 = vmatprep.subr.mxu0 0.0
      %3327 = vmatpush1.msra.mxu0 %v3201
      %3328 = vmatprep.subr.mxu0 0.0
      %3329 = vmatpush1.msra.mxu0 %v3198
      %3330 = vmatprep.subr.mxu0 0.0
      %3331 = vmatpush2.msra.mxu0 0.0
      %3332 = vmatprep.subr.mxu0 0.0
      %3333 = vmatpush2.msra.mxu0 0.0
      %3334 = vmatprep.subr.mxu0 0.0
      %3335 = vmatpush2.msra.mxu0 0.0
      %3336 = vmatprep.subr.mxu0 0.0
      %3337 = vmatpush2.msra.mxu0 0.0
      %3338 = vmatprep.subr.mxu0 0.0
      %3339 = vmatpush2.msra.mxu0 0.0
      %3340 = vmatprep.subr.mxu0 0.0
      %3341 = vmatpush2.msra.mxu0 0.0
      %3342 = vmatprep.subr.mxu0 0.0
      %3343 = vmatpush2.msra.mxu0 0.0
      %3344 = vmatprep.subr.mxu0 0.0
      %3345 = vmatpush2.msra.mxu0 0.0
      %3346 = vmatprep.subr.mxu0 0.0
      %3347 = vmatpush2.msra.mxu0 0.0
      %3348 = vmatprep.subr.mxu0 0.0
      %3349 = vmatpush2.msra.mxu0 0.0
      %3350 = vmatprep.subr.mxu0 0.0
      %3351 = vmatpush2.msra.mxu0 0.0
      %3352 = vmatprep.subr.mxu0 0.0
      %3353 = vmatpush2.msra.mxu0 0.0
      %3354 = vmatprep.subr.mxu0 0.0
      %3355 = vmatpush2.msra.mxu0 0.0
      %3356 = vmatprep.subr.mxu0 0.0
      %3357 = vmatpush2.msra.mxu0 0.0
      %3358 = vmatprep.subr.mxu0 0.0
      %3359 = vmatpush2.msra.mxu0 0.0
      %3360 = vmatprep.subr.mxu0 0.0
      %3361 = vmatpush2.msra.mxu0 0.0
      %3362 = vmatprep.mubr.f32.mxu0 0.0
      %3363 = vmatmul.mubr.f32.gmra.mxu0 %v3217
      %v3364 = vpop.f32.mrf.mxu0
      %v3365 = vadd.f32 0.0, %v3364
      %v3366 = vpop.f32.mrf.mxu0
      %3367 = vmatprep.mubr.f32.mxu0 0.0
      %3368 = vmatmul.mubr.f32.gmra.mxu0 %v3219
      %v3369 = vpop.f32.mrf.mxu0
      %v3370 = vadd.f32 0.0, %v3369
      %v3371 = vpop.f32.mrf.mxu0
      %3372 = vdwg.mxu0
      %v3373 = vld [vmem:[%s18] sm:$0xff]
      %v3374 = vld [vmem:[%s18 + $0x8] sm:$0xff]
      %v3375 = vld [vmem:[%s18 + $0x10] sm:$0xff]
      %v3376 = vld [vmem:[%s18 + $0x18] sm:$0xff]
      %v3377 = vld [vmem:[%s18 + $0x20] sm:$0xff]
      %v3378 = vld [vmem:[%s18 + $0x28] sm:$0xff]
      %v3379 = vmul.f32 %v3288, %v3373
      %v3380 = vmul.f32 %v3290, %v3374
      %v3381 = vmul.f32 %v3365, %v3375
      %v3382 = vmul.f32 %v3294, %v3376
      %v3383 = vmul.f32 %v3296, %v3377
      %v3384 = vmul.f32 %v3370, %v3378
      %3385 = vst [vmem:[#allocation2 + $0x48] sm:$0xff] %v3379
      %3386 = vst [vmem:[#allocation2 + $0x50] sm:$0xff] %v3380
      %3387 = vst [vmem:[#allocation2 + $0x58] sm:$0xff] %v3381
      %3388 = vst [vmem:[#allocation2 + $0x60] sm:$0xff] %v3382
      %3389 = vst [vmem:[#allocation2 + $0x68] sm:$0xff] %v3383
      %3390 = vst [vmem:[#allocation2 + $0x70] sm:$0xff] %v3384
      %3391 = vst [vmem:[#allocation2 + $0x78] sm:$0xff] 0.0
      %3392 = vst [vmem:[#allocation2 + $0x80] sm:$0xff] 0.0
      %3393 = vst [vmem:[#allocation2 + $0x88] sm:$0xff] 0.0
      %3394 = vst [vmem:[#allocation2 + $0x90] sm:$0x1] 0.0
      %3395 = vst [vmem:[#allocation2 + $0x98] sm:$0x1] 0.0
      %3396 = vst [vmem:[#allocation2 + $0xa0] sm:$0x1] 0.0
      %v3397 = vld [vmem:[%s8] sm:$0x1]
      %v3399 = vlaneseq
      %v3400 = vshrl.u32 %v3399, 7
      %v3401 = vsub.s32 0, %v3400
      %v3402 = vrot.slane %v3397, %v3401
      %v3404 = vadd.f32 %v3402, 0.0
      %v3405 = vld [vmem:[#allocation2 + $0x30] sm:$0xf8]
      %v3406 = vld [vmem:[#allocation2 + $0x48] sm:$0xff]
      %v3407 = vld [vmem:[#allocation2 + $0x60] sm:$0x7]
      %v3408 = vadd.f32 %v3404, %v3405
      %v3409 = vadd.f32 %v3404, %v3406
      %v3410 = vadd.f32 %v3404, %v3407
      %v3411 = vld [vmem:[#allocation2 + $0x30] sm:$0xf0]
      %v3412 = vld [vmem:[#allocation2 + $0x60] sm:$0xf]
      %v3416 = vrot.slane %v3411, 1
      %v3417 = vrot.slane %v3406, 1
      %v3418 = vsel %vm1258, %v3416, %v3417
      %v3419 = vrot.slane %v3412, 1
      %v3420 = vsel %vm1258, %v3417, %v3419
      %3421 = vrot.lane.b32.xlu0 %v3418, 96
      %v3422 = vpop.permute.xlu0 %3421
      %3423 = vrot.lane.b32.xlu0 %v3420, 96
      %v3424 = vpop.permute.xlu0 %3423
      %3425 = vrot.lane.b32.xlu0 %v3419, 96
      %v3426 = vpop.permute.xlu0 %3425
      %v3430 = vadd.f32 %v3408, %v3422
      %v3431 = vadd.f32 %v3409, %v3424
      %v3432 = vadd.f32 %v3410, %v3426
      %v3433 = vld [vmem:[#allocation2 + $0x30] sm:$0xe0]
      %v3434 = vld [vmem:[#allocation2 + $0x60] sm:$0x1f]
      %v3437 = vrot.slane %v3433, 2
      %v3438 = vrot.slane %v3406, 2
      %v3439 = vsel %vm2018, %v3437, %v3438
      %v3440 = vrot.slane %v3434, 2
      %v3441 = vsel %vm2018, %v3438, %v3440
      %3442 = vrot.lane.b32.xlu0 %v3439, 64
      %v3443 = vpop.permute.xlu0 %3442
      %3444 = vrot.lane.b32.xlu0 %v3441, 64
      %v3445 = vpop.permute.xlu0 %3444
      %3446 = vrot.lane.b32.xlu0 %v3440, 64
      %v3447 = vpop.permute.xlu0 %3446
      %v3451 = vadd.f32 %v3430, %v3443
      %v3452 = vadd.f32 %v3431, %v3445
      %v3453 = vadd.f32 %v3432, %v3447
      %v3454 = vld [vmem:[#allocation2 + $0x30] sm:$0x80]
      %v3455 = vld [vmem:[#allocation2 + $0x60] sm:$0x7f]
      %v3458 = vrot.slane %v3454, 4
      %v3459 = vrot.slane %v3406, 4
      %v3460 = vsel %vm3026, %v3458, %v3459
      %v3461 = vrot.slane %v3455, 4
      %v3462 = vsel %vm3026, %v3459, %v3461
      %3463 = vrot.lane.b32.xlu0 %v3460, 32
      %v3464 = vpop.permute.xlu0 %3463
      %3465 = vrot.lane.b32.xlu0 %v3462, 32
      %v3466 = vpop.permute.xlu0 %3465
      %3467 = vrot.lane.b32.xlu0 %v3461, 32
      %v3468 = vpop.permute.xlu0 %3467
      %v3472 = vadd.f32 %v3451, %v3464
      %v3473 = vadd.f32 %v3452, %v3466
      %v3474 = vadd.f32 %v3453, %v3468
      %v3475 = vld [vmem:[#allocation2 + $0x50] sm:$0xff]
      %v3476 = vld [vmem:[#allocation2 + $0x68] sm:$0xff]
      %v3479 = vrot.slane %v3475, 5
      %v3480 = vrot.slane %v3476, 5
      %v3481 = vsel %vm3048, %v3479, %v3480
      %v3485 = vadd.f32 %v3472, %v3479
      %v3486 = vadd.f32 %v3473, %v3481
      %v3487 = vadd.f32 %v3474, %v3480
      %v3488 = vld [vmem:[#allocation2 + $0x50] sm:$0xfe]
      %v3489 = vld [vmem:[#allocation2 + $0x80] sm:$0x1]
      %v3492 = vrot.slane %v3488, 6
      %v3493 = vrot.slane %v3476, 6
      %v3494 = vsel %vm3062, %v3492, %v3493
      %v3495 = vrot.slane %v3489, 6
      %v3496 = vsel %vm3062, %v3493, %v3495
      %3497 = vrot.lane.b32.xlu0 %v3492, 96
      %v3498 = vpop.permute.xlu0 %3497
      %3499 = vrot.lane.b32.xlu0 %v3494, 96
      %v3500 = vpop.permute.xlu0 %3499
      %3501 = vrot.lane.b32.xlu0 %v3496, 96
      %v3502 = vpop.permute.xlu0 %3501
      %v3506 = vadd.f32 %v3485, %v3498
      %v3507 = vadd.f32 %v3486, %v3500
      %v3508 = vadd.f32 %v3487, %v3502
      %v3509 = vld [vmem:[#allocation2 + $0x50] sm:$0xf8]
      %v3510 = vld [vmem:[#allocation2 + $0x80] sm:$0x7]
      %3513 = vrot.lane.b32.xlu0 %v3509, 64
      %v3514 = vpop.permute.xlu0 %3513
      %3515 = vrot.lane.b32.xlu0 %v3476, 64
      %v3516 = vpop.permute.xlu0 %3515
      %3517 = vrot.lane.b32.xlu0 %v3510, 64
      %v3518 = vpop.permute.xlu0 %3517
      %v3522 = vadd.f32 %v3506, %v3514
      %v3523 = vadd.f32 %v3507, %v3516
      %v3524 = vadd.f32 %v3508, %v3518
      %v3525 = vld [vmem:[#allocation2 + $0x50] sm:$0xf0]
      %v3526 = vld [vmem:[#allocation2 + $0x80] sm:$0xf]
      %v3529 = vrot.slane %v3525, 1
      %v3530 = vrot.slane %v3476, 1
      %v3531 = vsel %vm1258, %v3529, %v3530
      %v3532 = vrot.slane %v3526, 1
      %v3533 = vsel %vm1258, %v3530, %v3532
      %3534 = vrot.lane.b32.xlu0 %v3531, 32
      %v3535 = vpop.permute.xlu0 %3534
      %3536 = vrot.lane.b32.xlu0 %v3533, 32
      %v3537 = vpop.permute.xlu0 %3536
      %3538 = vrot.lane.b32.xlu0 %v3532, 32
      %v3539 = vpop.permute.xlu0 %3538
      %v3543 = vadd.f32 %v3522, %v3535
      %v3544 = vadd.f32 %v3523, %v3537
      %v3545 = vadd.f32 %v3524, %v3539
      %v3546 = vld [vmem:[#allocation2 + $0x58] sm:$0xe0]
      %v3547 = vld [vmem:[#allocation2 + $0x70] sm:$0xff]
      %v3548 = vld [vmem:[#allocation2 + $0x88] sm:$0x1f]
      %v3552 = vrot.slane %v3546, 2
      %v3553 = vrot.slane %v3547, 2
      %v3554 = vsel %vm2018, %v3552, %v3553
      %v3555 = vrot.slane %v3548, 2
      %v3556 = vsel %vm2018, %v3553, %v3555
      %v3560 = vadd.f32 %v3543, %v3554
      %v3561 = vadd.f32 %v3544, %v3556
      %v3562 = vadd.f32 %v3545, %v3555
      %v3563 = vld [vmem:[#allocation2 + $0x58] sm:$0x80]
      %v3564 = vld [vmem:[#allocation2 + $0x88] sm:$0x7f]
      %v3567 = vrot.slane %v3563, 4
      %v3568 = vrot.slane %v3547, 4
      %v3569 = vsel %vm3026, %v3567, %v3568
      %v3570 = vrot.slane %v3564, 4
      %v3571 = vsel %vm3026, %v3568, %v3570
      %3572 = vrot.lane.b32.xlu0 %v3569, 96
      %v3573 = vpop.permute.xlu0 %3572
      %3574 = vrot.lane.b32.xlu0 %v3571, 96
      %v3575 = vpop.permute.xlu0 %3574
      %3576 = vrot.lane.b32.xlu0 %v3570, 96
      %v3577 = vpop.permute.xlu0 %3576
      %v3581 = vadd.f32 %v3560, %v3573
      %v3582 = vadd.f32 %v3561, %v3575
      %v3583 = vadd.f32 %v3562, %v3577
      %v3584 = vld [vmem:[#allocation2 + $0x88] sm:$0xff]
      %v3586 = vrot.slane %v3547, 5
      %v3587 = vrot.slane %v3584, 5
      %v3588 = vsel %vm3048, %v3586, %v3587
      %3589 = vrot.lane.b32.xlu0 %v3586, 64
      %v3590 = vpop.permute.xlu0 %3589
      %3591 = vrot.lane.b32.xlu0 %v3588, 64
      %v3592 = vpop.permute.xlu0 %3591
      %3593 = vrot.lane.b32.xlu0 %v3587, 64
      %v3594 = vpop.permute.xlu0 %3593
      %v3598 = vadd.f32 %v3581, %v3590
      %v3599 = vadd.f32 %v3582, %v3592
      %v3600 = vadd.f32 %v3583, %v3594
      %v3601 = vld [vmem:[#allocation2 + $0x70] sm:$0xfe]
      %v3602 = vld [vmem:[#allocation2 + $0xa0] sm:$0x1]
      %v3605 = vrot.slane %v3601, 6
      %v3606 = vrot.slane %v3584, 6
      %v3607 = vsel %vm3062, %v3605, %v3606
      %v3608 = vrot.slane %v3602, 6
      %v3609 = vsel %vm3062, %v3606, %v3608
      %3610 = vrot.lane.b32.xlu0 %v3605, 32
      %v3611 = vpop.permute.xlu0 %3610
      %3612 = vrot.lane.b32.xlu0 %v3607, 32
      %v3613 = vpop.permute.xlu0 %3612
      %3614 = vrot.lane.b32.xlu0 %v3609, 32
      %v3615 = vpop.permute.xlu0 %3614
      %v3619 = vadd.f32 %v3598, %v3611
      %v3620 = vadd.f32 %v3599, %v3613
      %v3621 = vadd.f32 %v3600, %v3615
      %v3622 = vmax.f32 %v3619, 0.0
      %v3623 = vmax.f32 %v3620, 0.0
      %v3624 = vmax.f32 %v3621, 0.0
      %v3625 = vld [vmem:[%s9] sm:$0xff]
      %v3626 = vld [vmem:[%s9 + $0x8] sm:$0xff]
      %v3627 = vld [vmem:[%s9 + $0x10] sm:$0xff]
      %v3628 = vld [vmem:[%s9 + $0x18] sm:$0xff]
      %v3629 = vld [vmem:[%s9 + $0x20] sm:$0xff]
      %v3630 = vld [vmem:[%s9 + $0x28] sm:$0xff]
      %v3631 = vld [vmem:[%s9 + $0x30] sm:$0xff]
      %v3632 = vld [vmem:[%s9 + $0x38] sm:$0xff]
      %v3633 = vld [vmem:[%s9 + $0x40] sm:$0xff]
      %v3634 = vld [vmem:[%s9 + $0x48] sm:$0xff]
      %v3635 = vld [vmem:[%s9 + $0x50] sm:$0xff]
      %v3636 = vld [vmem:[%s9 + $0x58] sm:$0xff]
      %v3640 = vrot.slane %v3622, 3
      %v3641 = vrot.slane %v3623, 3
      %v3642 = vsel %vm3211, %v3640, %v3641
      %v3643 = vrot.slane %v3624, 3
      %v3644 = vsel %vm3211, %v3641, %v3643
      %v3645 = vsel %vm1159, %v3642, 0
      %v3647 = vsel %vm1159, %v3644, 0
      %3649 = vmatprep.subr.mxu0 0.0
      %3650 = vmatpush1.msra.mxu0 0.0
      %3651 = vmatprep.subr.mxu0 0.0
      %3652 = vmatpush1.msra.mxu0 0.0
      %3653 = vmatprep.subr.mxu0 0.0
      %3654 = vmatpush1.msra.mxu0 0.0
      %3655 = vmatprep.subr.mxu0 0.0
      %3656 = vmatpush1.msra.mxu0 0.0
      %3657 = vmatprep.subr.mxu0 0.0
      %3658 = vmatpush1.msra.mxu0 0.0
      %3659 = vmatprep.subr.mxu0 0.0
      %3660 = vmatpush1.msra.mxu0 0.0
      %3661 = vmatprep.subr.mxu0 0.0
      %3662 = vmatpush1.msra.mxu0 0.0
      %3663 = vmatprep.subr.mxu0 0.0
      %3664 = vmatpush1.msra.mxu0 0.0
      %3665 = vmatprep.subr.mxu0 0.0
      %3666 = vmatpush1.msra.mxu0 0.0
      %3667 = vmatprep.subr.mxu0 0.0
      %3668 = vmatpush1.msra.mxu0 0.0
      %3669 = vmatprep.subr.mxu0 0.0
      %3670 = vmatpush1.msra.mxu0 0.0
      %3671 = vmatprep.subr.mxu0 0.0
      %3672 = vmatpush1.msra.mxu0 0.0
      %3673 = vmatprep.subr.mxu0 %v3635
      %3674 = vmatpush1.msra.mxu0 %v3634
      %3675 = vmatprep.subr.mxu0 %v3632
      %3676 = vmatpush1.msra.mxu0 %v3631
      %3677 = vmatprep.subr.mxu0 %v3629
      %3678 = vmatpush1.msra.mxu0 %v3628
      %3679 = vmatprep.subr.mxu0 %v3626
      %3680 = vmatpush1.msra.mxu0 %v3625
      %3681 = vmatprep.subr.mxu0 0.0
      %3682 = vmatpush2.msra.mxu0 0.0
      %3683 = vmatprep.subr.mxu0 0.0
      %3684 = vmatpush2.msra.mxu0 0.0
      %3685 = vmatprep.subr.mxu0 0.0
      %3686 = vmatpush2.msra.mxu0 0.0
      %3687 = vmatprep.subr.mxu0 0.0
      %3688 = vmatpush2.msra.mxu0 0.0
      %3689 = vmatprep.subr.mxu0 0.0
      %3690 = vmatpush2.msra.mxu0 0.0
      %3691 = vmatprep.subr.mxu0 0.0
      %3692 = vmatpush2.msra.mxu0 0.0
      %3693 = vmatprep.subr.mxu0 0.0
      %3694 = vmatpush2.msra.mxu0 0.0
      %3695 = vmatprep.subr.mxu0 0.0
      %3696 = vmatpush2.msra.mxu0 0.0
      %3697 = vmatprep.subr.mxu0 0.0
      %3698 = vmatpush2.msra.mxu0 0.0
      %3699 = vmatprep.subr.mxu0 0.0
      %3700 = vmatpush2.msra.mxu0 0.0
      %3701 = vmatprep.subr.mxu0 0.0
      %3702 = vmatpush2.msra.mxu0 0.0
      %3703 = vmatprep.subr.mxu0 0.0
      %3704 = vmatpush2.msra.mxu0 0.0
      %3705 = vmatprep.subr.mxu0 0.0
      %3706 = vmatpush2.msra.mxu0 0.0
      %3707 = vmatprep.subr.mxu0 0.0
      %3708 = vmatpush2.msra.mxu0 0.0
      %3709 = vmatprep.subr.mxu0 0.0
      %3710 = vmatpush2.msra.mxu0 0.0
      %3711 = vmatprep.subr.mxu0 0.0
      %3712 = vmatpush2.msra.mxu0 0.0
      %3713 = vmatprep.mubr.f32.mxu0 0.0
      %3714 = vmatmul.mubr.f32.gmra.mxu0 %v3645
      %v3715 = vpop.f32.mrf.mxu0
      %v3716 = vadd.f32 0.0, %v3715
      %v3717 = vpop.f32.mrf.mxu0
      %v3718 = vadd.f32 0.0, %v3717
      %3719 = vmatprep.mubr.f32.mxu0 0.0
      %3720 = vmatmul.mubr.f32.gmra.mxu0 %v3647
      %v3721 = vpop.f32.mrf.mxu0
      %v3722 = vadd.f32 0.0, %v3721
      %v3723 = vpop.f32.mrf.mxu0
      %v3724 = vadd.f32 0.0, %v3723
      %3725 = vdwg.mxu0
      %3726 = vmatprep.subr.mxu0 0.0
      %3727 = vmatpush1.msra.mxu0 0.0
      %3728 = vmatprep.subr.mxu0 0.0
      %3729 = vmatpush1.msra.mxu0 0.0
      %3730 = vmatprep.subr.mxu0 0.0
      %3731 = vmatpush1.msra.mxu0 0.0
      %3732 = vmatprep.subr.mxu0 0.0
      %3733 = vmatpush1.msra.mxu0 0.0
      %3734 = vmatprep.subr.mxu0 0.0
      %3735 = vmatpush1.msra.mxu0 0.0
      %3736 = vmatprep.subr.mxu0 0.0
      %3737 = vmatpush1.msra.mxu0 0.0
      %3738 = vmatprep.subr.mxu0 0.0
      %3739 = vmatpush1.msra.mxu0 0.0
      %3740 = vmatprep.subr.mxu0 0.0
      %3741 = vmatpush1.msra.mxu0 0.0
      %3742 = vmatprep.subr.mxu0 0.0
      %3743 = vmatpush1.msra.mxu0 0.0
      %3744 = vmatprep.subr.mxu0 0.0
      %3745 = vmatpush1.msra.mxu0 0.0
      %3746 = vmatprep.subr.mxu0 0.0
      %3747 = vmatpush1.msra.mxu0 0.0
      %3748 = vmatprep.subr.mxu0 0.0
      %3749 = vmatpush1.msra.mxu0 0.0
      %3750 = vmatprep.subr.mxu0 0.0
      %3751 = vmatpush1.msra.mxu0 %v3636
      %3752 = vmatprep.subr.mxu0 0.0
      %3753 = vmatpush1.msra.mxu0 %v3633
      %3754 = vmatprep.subr.mxu0 0.0
      %3755 = vmatpush1.msra.mxu0 %v3630
      %3756 = vmatprep.subr.mxu0 0.0
      %3757 = vmatpush1.msra.mxu0 %v3627
      %3758 = vmatprep.subr.mxu0 0.0
      %3759 = vmatpush2.msra.mxu0 0.0
      %3760 = vmatprep.subr.mxu0 0.0
      %3761 = vmatpush2.msra.mxu0 0.0
      %3762 = vmatprep.subr.mxu0 0.0
      %3763 = vmatpush2.msra.mxu0 0.0
      %3764 = vmatprep.subr.mxu0 0.0
      %3765 = vmatpush2.msra.mxu0 0.0
      %3766 = vmatprep.subr.mxu0 0.0
      %3767 = vmatpush2.msra.mxu0 0.0
      %3768 = vmatprep.subr.mxu0 0.0
      %3769 = vmatpush2.msra.mxu0 0.0
      %3770 = vmatprep.subr.mxu0 0.0
      %3771 = vmatpush2.msra.mxu0 0.0
      %3772 = vmatprep.subr.mxu0 0.0
      %3773 = vmatpush2.msra.mxu0 0.0
      %3774 = vmatprep.subr.mxu0 0.0
      %3775 = vmatpush2.msra.mxu0 0.0
      %3776 = vmatprep.subr.mxu0 0.0
      %3777 = vmatpush2.msra.mxu0 0.0
      %3778 = vmatprep.subr.mxu0 0.0
      %3779 = vmatpush2.msra.mxu0 0.0
      %3780 = vmatprep.subr.mxu0 0.0
      %3781 = vmatpush2.msra.mxu0 0.0
      %3782 = vmatprep.subr.mxu0 0.0
      %3783 = vmatpush2.msra.mxu0 0.0
      %3784 = vmatprep.subr.mxu0 0.0
      %3785 = vmatpush2.msra.mxu0 0.0
      %3786 = vmatprep.subr.mxu0 0.0
      %3787 = vmatpush2.msra.mxu0 0.0
      %3788 = vmatprep.subr.mxu0 0.0
      %3789 = vmatpush2.msra.mxu0 0.0
      %3790 = vmatprep.mubr.f32.mxu0 0.0
      %3791 = vmatmul.mubr.f32.gmra.mxu0 %v3645
      %v3792 = vpop.f32.mrf.mxu0
      %v3793 = vadd.f32 0.0, %v3792
      %v3794 = vpop.f32.mrf.mxu0
      %3795 = vmatprep.mubr.f32.mxu0 0.0
      %3796 = vmatmul.mubr.f32.gmra.mxu0 %v3647
      %v3797 = vpop.f32.mrf.mxu0
      %v3798 = vadd.f32 0.0, %v3797
      %v3799 = vpop.f32.mrf.mxu0
      %3800 = vdwg.mxu0
      %v3801 = vld [vmem:[%s18] sm:$0xff]
      %v3802 = vld [vmem:[%s18 + $0x8] sm:$0xff]
      %v3803 = vld [vmem:[%s18 + $0x10] sm:$0xff]
      %v3804 = vld [vmem:[%s18 + $0x18] sm:$0xff]
      %v3805 = vld [vmem:[%s18 + $0x20] sm:$0xff]
      %v3806 = vld [vmem:[%s18 + $0x28] sm:$0xff]
      %v3807 = vmul.f32 %v3716, %v3801
      %v3808 = vmul.f32 %v3718, %v3802
      %v3809 = vmul.f32 %v3793, %v3803
      %v3810 = vmul.f32 %v3722, %v3804
      %v3811 = vmul.f32 %v3724, %v3805
      %v3812 = vmul.f32 %v3798, %v3806
      %3813 = vst [vmem:[#allocation2 + $0x48] sm:$0xff] %v3807
      %3814 = vst [vmem:[#allocation2 + $0x50] sm:$0xff] %v3808
      %3815 = vst [vmem:[#allocation2 + $0x58] sm:$0xff] %v3809
      %3816 = vst [vmem:[#allocation2 + $0x60] sm:$0xff] %v3810
      %3817 = vst [vmem:[#allocation2 + $0x68] sm:$0xff] %v3811
      %3818 = vst [vmem:[#allocation2 + $0x70] sm:$0xff] %v3812
      %3819 = vst [vmem:[#allocation2 + $0x78] sm:$0xff] 0.0
      %3820 = vst [vmem:[#allocation2 + $0x80] sm:$0xff] 0.0
      %3821 = vst [vmem:[#allocation2 + $0x88] sm:$0xff] 0.0
      %3822 = vst [vmem:[#allocation2 + $0x90] sm:$0x1] 0.0
      %3823 = vst [vmem:[#allocation2 + $0x98] sm:$0x1] 0.0
      %3824 = vst [vmem:[#allocation2 + $0xa0] sm:$0x1] 0.0
      %v3825 = vld [vmem:[%s10] sm:$0x1]
      %v3827 = vlaneseq
      %v3828 = vshrl.u32 %v3827, 7
      %v3829 = vsub.s32 0, %v3828
      %v3830 = vrot.slane %v3825, %v3829
      %v3832 = vadd.f32 %v3830, 0.0
      %v3833 = vld [vmem:[#allocation2 + $0x30] sm:$0xf8]
      %v3834 = vld [vmem:[#allocation2 + $0x48] sm:$0xff]
      %v3835 = vld [vmem:[#allocation2 + $0x60] sm:$0x7]
      %v3836 = vadd.f32 %v3832, %v3833
      %v3837 = vadd.f32 %v3832, %v3834
      %v3838 = vadd.f32 %v3832, %v3835
      %v3839 = vld [vmem:[#allocation2 + $0x30] sm:$0xf0]
      %v3840 = vld [vmem:[#allocation2 + $0x60] sm:$0xf]
      %v3844 = vrot.slane %v3839, 1
      %v3845 = vrot.slane %v3834, 1
      %v3846 = vsel %vm1258, %v3844, %v3845
      %v3847 = vrot.slane %v3840, 1
      %v3848 = vsel %vm1258, %v3845, %v3847
      %3849 = vrot.lane.b32.xlu0 %v3846, 96
      %v3850 = vpop.permute.xlu0 %3849
      %3851 = vrot.lane.b32.xlu0 %v3848, 96
      %v3852 = vpop.permute.xlu0 %3851
      %3853 = vrot.lane.b32.xlu0 %v3847, 96
      %v3854 = vpop.permute.xlu0 %3853
      %v3858 = vadd.f32 %v3836, %v3850
      %v3859 = vadd.f32 %v3837, %v3852
      %v3860 = vadd.f32 %v3838, %v3854
      %v3861 = vld [vmem:[#allocation2 + $0x30] sm:$0xe0]
      %v3862 = vld [vmem:[#allocation2 + $0x60] sm:$0x1f]
      %v3865 = vrot.slane %v3861, 2
      %v3866 = vrot.slane %v3834, 2
      %v3867 = vsel %vm2018, %v3865, %v3866
      %v3868 = vrot.slane %v3862, 2
      %v3869 = vsel %vm2018, %v3866, %v3868
      %3870 = vrot.lane.b32.xlu0 %v3867, 64
      %v3871 = vpop.permute.xlu0 %3870
      %3872 = vrot.lane.b32.xlu0 %v3869, 64
      %v3873 = vpop.permute.xlu0 %3872
      %3874 = vrot.lane.b32.xlu0 %v3868, 64
      %v3875 = vpop.permute.xlu0 %3874
      %v3879 = vadd.f32 %v3858, %v3871
      %v3880 = vadd.f32 %v3859, %v3873
      %v3881 = vadd.f32 %v3860, %v3875
      %v3882 = vld [vmem:[#allocation2 + $0x30] sm:$0x80]
      %v3883 = vld [vmem:[#allocation2 + $0x60] sm:$0x7f]
      %v3886 = vrot.slane %v3882, 4
      %v3887 = vrot.slane %v3834, 4
      %v3888 = vsel %vm3026, %v3886, %v3887
      %v3889 = vrot.slane %v3883, 4
      %v3890 = vsel %vm3026, %v3887, %v3889
      %3891 = vrot.lane.b32.xlu0 %v3888, 32
      %v3892 = vpop.permute.xlu0 %3891
      %3893 = vrot.lane.b32.xlu0 %v3890, 32
      %v3894 = vpop.permute.xlu0 %3893
      %3895 = vrot.lane.b32.xlu0 %v3889, 32
      %v3896 = vpop.permute.xlu0 %3895
      %v3900 = vadd.f32 %v3879, %v3892
      %v3901 = vadd.f32 %v3880, %v3894
      %v3902 = vadd.f32 %v3881, %v3896
      %v3903 = vld [vmem:[#allocation2 + $0x50] sm:$0xff]
      %v3904 = vld [vmem:[#allocation2 + $0x68] sm:$0xff]
      %v3907 = vrot.slane %v3903, 5
      %v3908 = vrot.slane %v3904, 5
      %v3909 = vsel %vm3048, %v3907, %v3908
      %v3913 = vadd.f32 %v3900, %v3907
      %v3914 = vadd.f32 %v3901, %v3909
      %v3915 = vadd.f32 %v3902, %v3908
      %v3916 = vld [vmem:[#allocation2 + $0x50] sm:$0xfe]
      %v3917 = vld [vmem:[#allocation2 + $0x80] sm:$0x1]
      %v3920 = vrot.slane %v3916, 6
      %v3921 = vrot.slane %v3904, 6
      %v3922 = vsel %vm3062, %v3920, %v3921
      %v3923 = vrot.slane %v3917, 6
      %v3924 = vsel %vm3062, %v3921, %v3923
      %3925 = vrot.lane.b32.xlu0 %v3920, 96
      %v3926 = vpop.permute.xlu0 %3925
      %3927 = vrot.lane.b32.xlu0 %v3922, 96
      %v3928 = vpop.permute.xlu0 %3927
      %3929 = vrot.lane.b32.xlu0 %v3924, 96
      %v3930 = vpop.permute.xlu0 %3929
      %v3934 = vadd.f32 %v3913, %v3926
      %v3935 = vadd.f32 %v3914, %v3928
      %v3936 = vadd.f32 %v3915, %v3930
      %v3937 = vld [vmem:[#allocation2 + $0x50] sm:$0xf8]
      %v3938 = vld [vmem:[#allocation2 + $0x80] sm:$0x7]
      %3941 = vrot.lane.b32.xlu0 %v3937, 64
      %v3942 = vpop.permute.xlu0 %3941
      %3943 = vrot.lane.b32.xlu0 %v3904, 64
      %v3944 = vpop.permute.xlu0 %3943
      %3945 = vrot.lane.b32.xlu0 %v3938, 64
      %v3946 = vpop.permute.xlu0 %3945
      %v3950 = vadd.f32 %v3934, %v3942
      %v3951 = vadd.f32 %v3935, %v3944
      %v3952 = vadd.f32 %v3936, %v3946
      %v3953 = vld [vmem:[#allocation2 + $0x50] sm:$0xf0]
      %v3954 = vld [vmem:[#allocation2 + $0x80] sm:$0xf]
      %v3957 = vrot.slane %v3953, 1
      %v3958 = vrot.slane %v3904, 1
      %v3959 = vsel %vm1258, %v3957, %v3958
      %v3960 = vrot.slane %v3954, 1
      %v3961 = vsel %vm1258, %v3958, %v3960
      %3962 = vrot.lane.b32.xlu0 %v3959, 32
      %v3963 = vpop.permute.xlu0 %3962
      %3964 = vrot.lane.b32.xlu0 %v3961, 32
      %v3965 = vpop.permute.xlu0 %3964
      %3966 = vrot.lane.b32.xlu0 %v3960, 32
      %v3967 = vpop.permute.xlu0 %3966
      %v3971 = vadd.f32 %v3950, %v3963
      %v3972 = vadd.f32 %v3951, %v3965
      %v3973 = vadd.f32 %v3952, %v3967
      %v3974 = vld [vmem:[#allocation2 + $0x58] sm:$0xe0]
      %v3975 = vld [vmem:[#allocation2 + $0x70] sm:$0xff]
      %v3976 = vld [vmem:[#allocation2 + $0x88] sm:$0x1f]
      %v3980 = vrot.slane %v3974, 2
      %v3981 = vrot.slane %v3975, 2
      %v3982 = vsel %vm2018, %v3980, %v3981
      %v3983 = vrot.slane %v3976, 2
      %v3984 = vsel %vm2018, %v3981, %v3983
      %v3988 = vadd.f32 %v3971, %v3982
      %v3989 = vadd.f32 %v3972, %v3984
      %v3990 = vadd.f32 %v3973, %v3983
      %v3991 = vld [vmem:[#allocation2 + $0x58] sm:$0x80]
      %v3992 = vld [vmem:[#allocation2 + $0x88] sm:$0x7f]
      %v3995 = vrot.slane %v3991, 4
      %v3996 = vrot.slane %v3975, 4
      %v3997 = vsel %vm3026, %v3995, %v3996
      %v3998 = vrot.slane %v3992, 4
      %v3999 = vsel %vm3026, %v3996, %v3998
      %4000 = vrot.lane.b32.xlu0 %v3997, 96
      %v4001 = vpop.permute.xlu0 %4000
      %4002 = vrot.lane.b32.xlu0 %v3999, 96
      %v4003 = vpop.permute.xlu0 %4002
      %4004 = vrot.lane.b32.xlu0 %v3998, 96
      %v4005 = vpop.permute.xlu0 %4004
      %v4009 = vadd.f32 %v3988, %v4001
      %v4010 = vadd.f32 %v3989, %v4003
      %v4011 = vadd.f32 %v3990, %v4005
      %v4012 = vld [vmem:[#allocation2 + $0x88] sm:$0xff]
      %v4014 = vrot.slane %v3975, 5
      %v4015 = vrot.slane %v4012, 5
      %v4016 = vsel %vm3048, %v4014, %v4015
      %4017 = vrot.lane.b32.xlu0 %v4014, 64
      %v4018 = vpop.permute.xlu0 %4017
      %4019 = vrot.lane.b32.xlu0 %v4016, 64
      %v4020 = vpop.permute.xlu0 %4019
      %4021 = vrot.lane.b32.xlu0 %v4015, 64
      %v4022 = vpop.permute.xlu0 %4021
      %v4026 = vadd.f32 %v4009, %v4018
      %v4027 = vadd.f32 %v4010, %v4020
      %v4028 = vadd.f32 %v4011, %v4022
      %v4029 = vld [vmem:[#allocation2 + $0x70] sm:$0xfe]
      %v4030 = vld [vmem:[#allocation2 + $0xa0] sm:$0x1]
      %v4033 = vrot.slane %v4029, 6
      %v4034 = vrot.slane %v4012, 6
      %v4035 = vsel %vm3062, %v4033, %v4034
      %v4036 = vrot.slane %v4030, 6
      %v4037 = vsel %vm3062, %v4034, %v4036
      %4038 = vrot.lane.b32.xlu0 %v4033, 32
      %v4039 = vpop.permute.xlu0 %4038
      %4040 = vrot.lane.b32.xlu0 %v4035, 32
      %v4041 = vpop.permute.xlu0 %4040
      %4042 = vrot.lane.b32.xlu0 %v4037, 32
      %v4043 = vpop.permute.xlu0 %4042
      %v4047 = vadd.f32 %v4026, %v4039
      %v4048 = vadd.f32 %v4027, %v4041
      %v4049 = vadd.f32 %v4028, %v4043
      %v4050 = vmax.f32 %v4047, 0.0
      %v4051 = vmax.f32 %v4048, 0.0
      %v4052 = vmax.f32 %v4049, 0.0
      %v4053 = vld [vmem:[%s11] sm:$0xff]
      %v4054 = vld [vmem:[%s11 + $0x8] sm:$0xff]
      %v4055 = vld [vmem:[%s11 + $0x10] sm:$0xff]
      %v4056 = vld [vmem:[%s11 + $0x18] sm:$0xff]
      %v4057 = vld [vmem:[%s11 + $0x20] sm:$0xff]
      %v4058 = vld [vmem:[%s11 + $0x28] sm:$0xff]
      %v4059 = vld [vmem:[%s11 + $0x30] sm:$0xff]
      %v4060 = vld [vmem:[%s11 + $0x38] sm:$0xff]
      %v4061 = vld [vmem:[%s11 + $0x40] sm:$0xff]
      %v4062 = vld [vmem:[%s11 + $0x48] sm:$0xff]
      %v4063 = vld [vmem:[%s11 + $0x50] sm:$0xff]
      %v4064 = vld [vmem:[%s11 + $0x58] sm:$0xff]
      %v4068 = vrot.slane %v4050, 3
      %v4069 = vrot.slane %v4051, 3
      %v4070 = vsel %vm3211, %v4068, %v4069
      %v4071 = vrot.slane %v4052, 3
      %v4072 = vsel %vm3211, %v4069, %v4071
      %v4073 = vsel %vm1159, %v4070, 0
      %v4075 = vsel %vm1159, %v4072, 0
      %4077 = vmatprep.subr.mxu0 0.0
      %4078 = vmatpush1.msra.mxu0 0.0
      %4079 = vmatprep.subr.mxu0 0.0
      %4080 = vmatpush1.msra.mxu0 0.0
      %4081 = vmatprep.subr.mxu0 0.0
      %4082 = vmatpush1.msra.mxu0 0.0
      %4083 = vmatprep.subr.mxu0 0.0
      %4084 = vmatpush1.msra.mxu0 0.0
      %4085 = vmatprep.subr.mxu0 0.0
      %4086 = vmatpush1.msra.mxu0 0.0
      %4087 = vmatprep.subr.mxu0 0.0
      %4088 = vmatpush1.msra.mxu0 0.0
      %4089 = vmatprep.subr.mxu0 0.0
      %4090 = vmatpush1.msra.mxu0 0.0
      %4091 = vmatprep.subr.mxu0 0.0
      %4092 = vmatpush1.msra.mxu0 0.0
      %4093 = vmatprep.subr.mxu0 0.0
      %4094 = vmatpush1.msra.mxu0 0.0
      %4095 = vmatprep.subr.mxu0 0.0
      %4096 = vmatpush1.msra.mxu0 0.0
      %4097 = vmatprep.subr.mxu0 0.0
      %4098 = vmatpush1.msra.mxu0 0.0
      %4099 = vmatprep.subr.mxu0 0.0
      %4100 = vmatpush1.msra.mxu0 0.0
      %4101 = vmatprep.subr.mxu0 %v4063
      %4102 = vmatpush1.msra.mxu0 %v4062
      %4103 = vmatprep.subr.mxu0 %v4060
      %4104 = vmatpush1.msra.mxu0 %v4059
      %4105 = vmatprep.subr.mxu0 %v4057
      %4106 = vmatpush1.msra.mxu0 %v4056
      %4107 = vmatprep.subr.mxu0 %v4054
      %4108 = vmatpush1.msra.mxu0 %v4053
      %4109 = vmatprep.subr.mxu0 0.0
      %4110 = vmatpush2.msra.mxu0 0.0
      %4111 = vmatprep.subr.mxu0 0.0
      %4112 = vmatpush2.msra.mxu0 0.0
      %4113 = vmatprep.subr.mxu0 0.0
      %4114 = vmatpush2.msra.mxu0 0.0
      %4115 = vmatprep.subr.mxu0 0.0
      %4116 = vmatpush2.msra.mxu0 0.0
      %4117 = vmatprep.subr.mxu0 0.0
      %4118 = vmatpush2.msra.mxu0 0.0
      %4119 = vmatprep.subr.mxu0 0.0
      %4120 = vmatpush2.msra.mxu0 0.0
      %4121 = vmatprep.subr.mxu0 0.0
      %4122 = vmatpush2.msra.mxu0 0.0
      %4123 = vmatprep.subr.mxu0 0.0
      %4124 = vmatpush2.msra.mxu0 0.0
      %4125 = vmatprep.subr.mxu0 0.0
      %4126 = vmatpush2.msra.mxu0 0.0
      %4127 = vmatprep.subr.mxu0 0.0
      %4128 = vmatpush2.msra.mxu0 0.0
      %4129 = vmatprep.subr.mxu0 0.0
      %4130 = vmatpush2.msra.mxu0 0.0
      %4131 = vmatprep.subr.mxu0 0.0
      %4132 = vmatpush2.msra.mxu0 0.0
      %4133 = vmatprep.subr.mxu0 0.0
      %4134 = vmatpush2.msra.mxu0 0.0
      %4135 = vmatprep.subr.mxu0 0.0
      %4136 = vmatpush2.msra.mxu0 0.0
      %4137 = vmatprep.subr.mxu0 0.0
      %4138 = vmatpush2.msra.mxu0 0.0
      %4139 = vmatprep.subr.mxu0 0.0
      %4140 = vmatpush2.msra.mxu0 0.0
      %4141 = vmatprep.mubr.f32.mxu0 0.0
      %4142 = vmatmul.mubr.f32.gmra.mxu0 %v4073
      %v4143 = vpop.f32.mrf.mxu0
      %v4144 = vadd.f32 0.0, %v4143
      %v4145 = vpop.f32.mrf.mxu0
      %v4146 = vadd.f32 0.0, %v4145
      %4147 = vmatprep.mubr.f32.mxu0 0.0
      %4148 = vmatmul.mubr.f32.gmra.mxu0 %v4075
      %v4149 = vpop.f32.mrf.mxu0
      %v4150 = vadd.f32 0.0, %v4149
      %v4151 = vpop.f32.mrf.mxu0
      %v4152 = vadd.f32 0.0, %v4151
      %4153 = vdwg.mxu0
      %4154 = vmatprep.subr.mxu0 0.0
      %4155 = vmatpush1.msra.mxu0 0.0
      %4156 = vmatprep.subr.mxu0 0.0
      %4157 = vmatpush1.msra.mxu0 0.0
      %4158 = vmatprep.subr.mxu0 0.0
      %4159 = vmatpush1.msra.mxu0 0.0
      %4160 = vmatprep.subr.mxu0 0.0
      %4161 = vmatpush1.msra.mxu0 0.0
      %4162 = vmatprep.subr.mxu0 0.0
      %4163 = vmatpush1.msra.mxu0 0.0
      %4164 = vmatprep.subr.mxu0 0.0
      %4165 = vmatpush1.msra.mxu0 0.0
      %4166 = vmatprep.subr.mxu0 0.0
      %4167 = vmatpush1.msra.mxu0 0.0
      %4168 = vmatprep.subr.mxu0 0.0
      %4169 = vmatpush1.msra.mxu0 0.0
      %4170 = vmatprep.subr.mxu0 0.0
      %4171 = vmatpush1.msra.mxu0 0.0
      %4172 = vmatprep.subr.mxu0 0.0
      %4173 = vmatpush1.msra.mxu0 0.0
      %4174 = vmatprep.subr.mxu0 0.0
      %4175 = vmatpush1.msra.mxu0 0.0
      %4176 = vmatprep.subr.mxu0 0.0
      %4177 = vmatpush1.msra.mxu0 0.0
      %4178 = vmatprep.subr.mxu0 0.0
      %4179 = vmatpush1.msra.mxu0 %v4064
      %4180 = vmatprep.subr.mxu0 0.0
      %4181 = vmatpush1.msra.mxu0 %v4061
      %4182 = vmatprep.subr.mxu0 0.0
      %4183 = vmatpush1.msra.mxu0 %v4058
      %4184 = vmatprep.subr.mxu0 0.0
      %4185 = vmatpush1.msra.mxu0 %v4055
      %4186 = vmatprep.subr.mxu0 0.0
      %4187 = vmatpush2.msra.mxu0 0.0
      %4188 = vmatprep.subr.mxu0 0.0
      %4189 = vmatpush2.msra.mxu0 0.0
      %4190 = vmatprep.subr.mxu0 0.0
      %4191 = vmatpush2.msra.mxu0 0.0
      %4192 = vmatprep.subr.mxu0 0.0
      %4193 = vmatpush2.msra.mxu0 0.0
      %4194 = vmatprep.subr.mxu0 0.0
      %4195 = vmatpush2.msra.mxu0 0.0
      %4196 = vmatprep.subr.mxu0 0.0
      %4197 = vmatpush2.msra.mxu0 0.0
      %4198 = vmatprep.subr.mxu0 0.0
      %4199 = vmatpush2.msra.mxu0 0.0
      %4200 = vmatprep.subr.mxu0 0.0
      %4201 = vmatpush2.msra.mxu0 0.0
      %4202 = vmatprep.subr.mxu0 0.0
      %4203 = vmatpush2.msra.mxu0 0.0
      %4204 = vmatprep.subr.mxu0 0.0
      %4205 = vmatpush2.msra.mxu0 0.0
      %4206 = vmatprep.subr.mxu0 0.0
      %4207 = vmatpush2.msra.mxu0 0.0
      %4208 = vmatprep.subr.mxu0 0.0
      %4209 = vmatpush2.msra.mxu0 0.0
      %4210 = vmatprep.subr.mxu0 0.0
      %4211 = vmatpush2.msra.mxu0 0.0
      %4212 = vmatprep.subr.mxu0 0.0
      %4213 = vmatpush2.msra.mxu0 0.0
      %4214 = vmatprep.subr.mxu0 0.0
      %4215 = vmatpush2.msra.mxu0 0.0
      %4216 = vmatprep.subr.mxu0 0.0
      %4217 = vmatpush2.msra.mxu0 0.0
      %4218 = vmatprep.mubr.f32.mxu0 0.0
      %4219 = vmatmul.mubr.f32.gmra.mxu0 %v4073
      %v4220 = vpop.f32.mrf.mxu0
      %v4221 = vadd.f32 0.0, %v4220
      %v4222 = vpop.f32.mrf.mxu0
      %4223 = vmatprep.mubr.f32.mxu0 0.0
      %4224 = vmatmul.mubr.f32.gmra.mxu0 %v4075
      %v4225 = vpop.f32.mrf.mxu0
      %v4226 = vadd.f32 0.0, %v4225
      %v4227 = vpop.f32.mrf.mxu0
      %4228 = vdwg.mxu0
      %v4229 = vld [vmem:[%s18] sm:$0xff]
      %v4230 = vld [vmem:[%s18 + $0x8] sm:$0xff]
      %v4231 = vld [vmem:[%s18 + $0x10] sm:$0xff]
      %v4232 = vld [vmem:[%s18 + $0x18] sm:$0xff]
      %v4233 = vld [vmem:[%s18 + $0x20] sm:$0xff]
      %v4234 = vld [vmem:[%s18 + $0x28] sm:$0xff]
      %v4235 = vmul.f32 %v4144, %v4229
      %v4236 = vmul.f32 %v4146, %v4230
      %v4237 = vmul.f32 %v4221, %v4231
      %v4238 = vmul.f32 %v4150, %v4232
      %v4239 = vmul.f32 %v4152, %v4233
      %v4240 = vmul.f32 %v4226, %v4234
      %4241 = vst [vmem:[#allocation2 + $0x48] sm:$0xff] %v4235
      %4242 = vst [vmem:[#allocation2 + $0x50] sm:$0xff] %v4236
      %4243 = vst [vmem:[#allocation2 + $0x58] sm:$0xff] %v4237
      %4244 = vst [vmem:[#allocation2 + $0x60] sm:$0xff] %v4238
      %4245 = vst [vmem:[#allocation2 + $0x68] sm:$0xff] %v4239
      %4246 = vst [vmem:[#allocation2 + $0x70] sm:$0xff] %v4240
      %4247 = vst [vmem:[#allocation2 + $0x78] sm:$0xff] 0.0
      %4248 = vst [vmem:[#allocation2 + $0x80] sm:$0xff] 0.0
      %4249 = vst [vmem:[#allocation2 + $0x88] sm:$0xff] 0.0
      %4250 = vst [vmem:[#allocation2 + $0x90] sm:$0x1] 0.0
      %4251 = vst [vmem:[#allocation2 + $0x98] sm:$0x1] 0.0
      %4252 = vst [vmem:[#allocation2 + $0xa0] sm:$0x1] 0.0
      %v4253 = vld [vmem:[%s12] sm:$0x1]
      %v4255 = vlaneseq
      %v4256 = vshrl.u32 %v4255, 7
      %v4257 = vsub.s32 0, %v4256
      %v4258 = vrot.slane %v4253, %v4257
      %v4260 = vadd.f32 %v4258, 0.0
      %v4261 = vld [vmem:[#allocation2 + $0x30] sm:$0xf8]
      %v4262 = vld [vmem:[#allocation2 + $0x48] sm:$0xff]
      %v4263 = vld [vmem:[#allocation2 + $0x60] sm:$0x7]
      %v4264 = vadd.f32 %v4260, %v4261
      %v4265 = vadd.f32 %v4260, %v4262
      %v4266 = vadd.f32 %v4260, %v4263
      %v4267 = vld [vmem:[#allocation2 + $0x30] sm:$0xf0]
      %v4268 = vld [vmem:[#allocation2 + $0x60] sm:$0xf]
      %v4272 = vrot.slane %v4267, 1
      %v4273 = vrot.slane %v4262, 1
      %v4274 = vsel %vm1258, %v4272, %v4273
      %v4275 = vrot.slane %v4268, 1
      %v4276 = vsel %vm1258, %v4273, %v4275
      %4277 = vrot.lane.b32.xlu0 %v4274, 96
      %v4278 = vpop.permute.xlu0 %4277
      %4279 = vrot.lane.b32.xlu0 %v4276, 96
      %v4280 = vpop.permute.xlu0 %4279
      %4281 = vrot.lane.b32.xlu0 %v4275, 96
      %v4282 = vpop.permute.xlu0 %4281
      %v4286 = vadd.f32 %v4264, %v4278
      %v4287 = vadd.f32 %v4265, %v4280
      %v4288 = vadd.f32 %v4266, %v4282
      %v4289 = vld [vmem:[#allocation2 + $0x30] sm:$0xe0]
      %v4290 = vld [vmem:[#allocation2 + $0x60] sm:$0x1f]
      %v4293 = vrot.slane %v4289, 2
      %v4294 = vrot.slane %v4262, 2
      %v4295 = vsel %vm2018, %v4293, %v4294
      %v4296 = vrot.slane %v4290, 2
      %v4297 = vsel %vm2018, %v4294, %v4296
      %4298 = vrot.lane.b32.xlu0 %v4295, 64
      %v4299 = vpop.permute.xlu0 %4298
      %4300 = vrot.lane.b32.xlu0 %v4297, 64
      %v4301 = vpop.permute.xlu0 %4300
      %4302 = vrot.lane.b32.xlu0 %v4296, 64
      %v4303 = vpop.permute.xlu0 %4302
      %v4307 = vadd.f32 %v4286, %v4299
      %v4308 = vadd.f32 %v4287, %v4301
      %v4309 = vadd.f32 %v4288, %v4303
      %v4310 = vld [vmem:[#allocation2 + $0x30] sm:$0x80]
      %v4311 = vld [vmem:[#allocation2 + $0x60] sm:$0x7f]
      %v4314 = vrot.slane %v4310, 4
      %v4315 = vrot.slane %v4262, 4
      %v4316 = vsel %vm3026, %v4314, %v4315
      %v4317 = vrot.slane %v4311, 4
      %v4318 = vsel %vm3026, %v4315, %v4317
      %4319 = vrot.lane.b32.xlu0 %v4316, 32
      %v4320 = vpop.permute.xlu0 %4319
      %4321 = vrot.lane.b32.xlu0 %v4318, 32
      %v4322 = vpop.permute.xlu0 %4321
      %4323 = vrot.lane.b32.xlu0 %v4317, 32
      %v4324 = vpop.permute.xlu0 %4323
      %v4328 = vadd.f32 %v4307, %v4320
      %v4329 = vadd.f32 %v4308, %v4322
      %v4330 = vadd.f32 %v4309, %v4324
      %v4331 = vld [vmem:[#allocation2 + $0x50] sm:$0xff]
      %v4332 = vld [vmem:[#allocation2 + $0x68] sm:$0xff]
      %v4335 = vrot.slane %v4331, 5
      %v4336 = vrot.slane %v4332, 5
      %v4337 = vsel %vm3048, %v4335, %v4336
      %v4341 = vadd.f32 %v4328, %v4335
      %v4342 = vadd.f32 %v4329, %v4337
      %v4343 = vadd.f32 %v4330, %v4336
      %v4344 = vld [vmem:[#allocation2 + $0x50] sm:$0xfe]
      %v4345 = vld [vmem:[#allocation2 + $0x80] sm:$0x1]
      %v4348 = vrot.slane %v4344, 6
      %v4349 = vrot.slane %v4332, 6
      %v4350 = vsel %vm3062, %v4348, %v4349
      %v4351 = vrot.slane %v4345, 6
      %v4352 = vsel %vm3062, %v4349, %v4351
      %4353 = vrot.lane.b32.xlu0 %v4348, 96
      %v4354 = vpop.permute.xlu0 %4353
      %4355 = vrot.lane.b32.xlu0 %v4350, 96
      %v4356 = vpop.permute.xlu0 %4355
      %4357 = vrot.lane.b32.xlu0 %v4352, 96
      %v4358 = vpop.permute.xlu0 %4357
      %v4362 = vadd.f32 %v4341, %v4354
      %v4363 = vadd.f32 %v4342, %v4356
      %v4364 = vadd.f32 %v4343, %v4358
      %v4365 = vld [vmem:[#allocation2 + $0x50] sm:$0xf8]
      %v4366 = vld [vmem:[#allocation2 + $0x80] sm:$0x7]
      %4369 = vrot.lane.b32.xlu0 %v4365, 64
      %v4370 = vpop.permute.xlu0 %4369
      %4371 = vrot.lane.b32.xlu0 %v4332, 64
      %v4372 = vpop.permute.xlu0 %4371
      %4373 = vrot.lane.b32.xlu0 %v4366, 64
      %v4374 = vpop.permute.xlu0 %4373
      %v4378 = vadd.f32 %v4362, %v4370
      %v4379 = vadd.f32 %v4363, %v4372
      %v4380 = vadd.f32 %v4364, %v4374
      %v4381 = vld [vmem:[#allocation2 + $0x50] sm:$0xf0]
      %v4382 = vld [vmem:[#allocation2 + $0x80] sm:$0xf]
      %v4385 = vrot.slane %v4381, 1
      %v4386 = vrot.slane %v4332, 1
      %v4387 = vsel %vm1258, %v4385, %v4386
      %v4388 = vrot.slane %v4382, 1
      %v4389 = vsel %vm1258, %v4386, %v4388
      %4390 = vrot.lane.b32.xlu0 %v4387, 32
      %v4391 = vpop.permute.xlu0 %4390
      %4392 = vrot.lane.b32.xlu0 %v4389, 32
      %v4393 = vpop.permute.xlu0 %4392
      %4394 = vrot.lane.b32.xlu0 %v4388, 32
      %v4395 = vpop.permute.xlu0 %4394
      %v4399 = vadd.f32 %v4378, %v4391
      %v4400 = vadd.f32 %v4379, %v4393
      %v4401 = vadd.f32 %v4380, %v4395
      %v4402 = vld [vmem:[#allocation2 + $0x58] sm:$0xe0]
      %v4403 = vld [vmem:[#allocation2 + $0x70] sm:$0xff]
      %v4404 = vld [vmem:[#allocation2 + $0x88] sm:$0x1f]
      %v4408 = vrot.slane %v4402, 2
      %v4409 = vrot.slane %v4403, 2
      %v4410 = vsel %vm2018, %v4408, %v4409
      %v4411 = vrot.slane %v4404, 2
      %v4412 = vsel %vm2018, %v4409, %v4411
      %v4416 = vadd.f32 %v4399, %v4410
      %v4417 = vadd.f32 %v4400, %v4412
      %v4418 = vadd.f32 %v4401, %v4411
      %v4419 = vld [vmem:[#allocation2 + $0x58] sm:$0x80]
      %v4420 = vld [vmem:[#allocation2 + $0x88] sm:$0x7f]
      %v4423 = vrot.slane %v4419, 4
      %v4424 = vrot.slane %v4403, 4
      %v4425 = vsel %vm3026, %v4423, %v4424
      %v4426 = vrot.slane %v4420, 4
      %v4427 = vsel %vm3026, %v4424, %v4426
      %4428 = vrot.lane.b32.xlu0 %v4425, 96
      %v4429 = vpop.permute.xlu0 %4428
      %4430 = vrot.lane.b32.xlu0 %v4427, 96
      %v4431 = vpop.permute.xlu0 %4430
      %4432 = vrot.lane.b32.xlu0 %v4426, 96
      %v4433 = vpop.permute.xlu0 %4432
      %v4437 = vadd.f32 %v4416, %v4429
      %v4438 = vadd.f32 %v4417, %v4431
      %v4439 = vadd.f32 %v4418, %v4433
      %v4440 = vld [vmem:[#allocation2 + $0x88] sm:$0xff]
      %v4442 = vrot.slane %v4403, 5
      %v4443 = vrot.slane %v4440, 5
      %v4444 = vsel %vm3048, %v4442, %v4443
      %4445 = vrot.lane.b32.xlu0 %v4442, 64
      %v4446 = vpop.permute.xlu0 %4445
      %4447 = vrot.lane.b32.xlu0 %v4444, 64
      %v4448 = vpop.permute.xlu0 %4447
      %4449 = vrot.lane.b32.xlu0 %v4443, 64
      %v4450 = vpop.permute.xlu0 %4449
      %v4454 = vadd.f32 %v4437, %v4446
      %v4455 = vadd.f32 %v4438, %v4448
      %v4456 = vadd.f32 %v4439, %v4450
      %v4457 = vld [vmem:[#allocation2 + $0x70] sm:$0xfe]
      %v4458 = vld [vmem:[#allocation2 + $0xa0] sm:$0x1]
      %v4461 = vrot.slane %v4457, 6
      %v4462 = vrot.slane %v4440, 6
      %v4463 = vsel %vm3062, %v4461, %v4462
      %v4464 = vrot.slane %v4458, 6
      %v4465 = vsel %vm3062, %v4462, %v4464
      %4466 = vrot.lane.b32.xlu0 %v4461, 32
      %v4467 = vpop.permute.xlu0 %4466
      %4468 = vrot.lane.b32.xlu0 %v4463, 32
      %v4469 = vpop.permute.xlu0 %4468
      %4470 = vrot.lane.b32.xlu0 %v4465, 32
      %v4471 = vpop.permute.xlu0 %4470
      %v4475 = vadd.f32 %v4454, %v4467
      %v4476 = vadd.f32 %v4455, %v4469
      %v4477 = vadd.f32 %v4456, %v4471
      %v4478 = vmax.f32 %v4475, 0.0
      %v4479 = vmax.f32 %v4476, 0.0
      %v4480 = vmax.f32 %v4477, 0.0
      %v4481 = vld [vmem:[%s22] sm:$0xff]
      %v4482 = vld [vmem:[%s22 + $0x8] sm:$0xff]
      %v4483 = vld [vmem:[%s22 + $0x10] sm:$0xff]
      %v4484 = vld [vmem:[%s22 + $0x18] sm:$0xff]
      %v4485 = vld [vmem:[%s22 + $0x20] sm:$0xff]
      %v4486 = vld [vmem:[%s22 + $0x28] sm:$0xff]
      %v4487 = vld [vmem:[%s22 + $0x30] sm:$0xff]
      %v4488 = vld [vmem:[%s22 + $0x38] sm:$0xff]
      %v4492 = vrot.slane %v4478, 3
      %v4493 = vrot.slane %v4479, 3
      %v4494 = vsel %vm3211, %v4492, %v4493
      %v4495 = vrot.slane %v4480, 3
      %v4496 = vsel %vm3211, %v4493, %v4495
      %v4500 = vsel %vm805, %v4481, 0
      %v4503 = vsel %vm805, %v4482, 0
      %v4506 = vsel %vm805, %v4483, 0
      %v4509 = vsel %vm805, %v4484, 0
      %v4512 = vsel %vm805, %v4485, 0
      %v4515 = vsel %vm805, %v4486, 0
      %v4518 = vsel %vm805, %v4487, 0
      %v4521 = vsel %vm805, %v4488, 0
      %4523 = vmatprep.subr.mxu0 0.0
      %4524 = vmatpush1.msra.mxu0 0.0
      %4525 = vmatprep.subr.mxu0 0.0
      %4526 = vmatpush1.msra.mxu0 0.0
      %4527 = vmatprep.subr.mxu0 0.0
      %4528 = vmatpush1.msra.mxu0 0.0
      %4529 = vmatprep.subr.mxu0 0.0
      %4530 = vmatpush1.msra.mxu0 0.0
      %4531 = vmatprep.subr.mxu0 0.0
      %4532 = vmatpush1.msra.mxu0 0.0
      %4533 = vmatprep.subr.mxu0 0.0
      %4534 = vmatpush1.msra.mxu0 0.0
      %4535 = vmatprep.subr.mxu0 0.0
      %4536 = vmatpush1.msra.mxu0 0.0
      %4537 = vmatprep.subr.mxu0 0.0
      %4538 = vmatpush1.msra.mxu0 0.0
      %4539 = vmatprep.subr.mxu0 0.0
      %4540 = vmatpush1.msra.mxu0 0.0
      %4541 = vmatprep.subr.mxu0 0.0
      %4542 = vmatpush1.msra.mxu0 0.0
      %4543 = vmatprep.subr.mxu0 0.0
      %4544 = vmatpush1.msra.mxu0 0.0
      %4545 = vmatprep.subr.mxu0 0.0
      %4546 = vmatpush1.msra.mxu0 0.0
      %4547 = vmatprep.subr.mxu0 0.0
      %4548 = vmatpush1.msra.mxu0 0.0
      %4549 = vmatprep.subr.mxu0 0.0
      %4550 = vmatpush1.msra.mxu0 0.0
      %4551 = vmatprep.subr.mxu0 0.0
      %4552 = vmatpush1.msra.mxu0 %v4496
      %4553 = vmatprep.subr.mxu0 0.0
      %4554 = vmatpush1.msra.mxu0 %v4494
      %4555 = vmatprep.subr.mxu0 0.0
      %4556 = vmatpush2.msra.mxu0 0.0
      %4557 = vmatprep.subr.mxu0 0.0
      %4558 = vmatpush2.msra.mxu0 0.0
      %4559 = vmatprep.subr.mxu0 0.0
      %4560 = vmatpush2.msra.mxu0 0.0
      %4561 = vmatprep.subr.mxu0 0.0
      %4562 = vmatpush2.msra.mxu0 0.0
      %4563 = vmatprep.subr.mxu0 0.0
      %4564 = vmatpush2.msra.mxu0 0.0
      %4565 = vmatprep.subr.mxu0 0.0
      %4566 = vmatpush2.msra.mxu0 0.0
      %4567 = vmatprep.subr.mxu0 0.0
      %4568 = vmatpush2.msra.mxu0 0.0
      %4569 = vmatprep.subr.mxu0 0.0
      %4570 = vmatpush2.msra.mxu0 0.0
      %4571 = vmatprep.subr.mxu0 0.0
      %4572 = vmatpush2.msra.mxu0 0.0
      %4573 = vmatprep.subr.mxu0 0.0
      %4574 = vmatpush2.msra.mxu0 0.0
      %4575 = vmatprep.subr.mxu0 0.0
      %4576 = vmatpush2.msra.mxu0 0.0
      %4577 = vmatprep.subr.mxu0 0.0
      %4578 = vmatpush2.msra.mxu0 0.0
      %4579 = vmatprep.subr.mxu0 0.0
      %4580 = vmatpush2.msra.mxu0 0.0
      %4581 = vmatprep.subr.mxu0 0.0
      %4582 = vmatpush2.msra.mxu0 0.0
      %4583 = vmatprep.subr.mxu0 0.0
      %4584 = vmatpush2.msra.mxu0 0.0
      %4585 = vmatprep.subr.mxu0 0.0
      %4586 = vmatpush2.msra.mxu0 0.0
      %4587 = vmatprep.mubr.f32.mxu0 0.0
      %4588 = vmatmul.mubr.f32.gmra.mxu0 %v4500
      %v4589 = vpop.f32.mrf.mxu0
      %v4590 = vadd.f32 0.0, %v4589
      %v4591 = vpop.f32.mrf.mxu0
      %4592 = vmatprep.mubr.f32.mxu0 0.0
      %4593 = vmatmul.mubr.f32.gmra.mxu0 %v4503
      %v4594 = vpop.f32.mrf.mxu0
      %v4595 = vadd.f32 0.0, %v4594
      %v4596 = vpop.f32.mrf.mxu0
      %4597 = vmatprep.mubr.f32.mxu0 0.0
      %4598 = vmatmul.mubr.f32.gmra.mxu0 %v4506
      %v4599 = vpop.f32.mrf.mxu0
      %v4600 = vadd.f32 0.0, %v4599
      %v4601 = vpop.f32.mrf.mxu0
      %4602 = vmatprep.mubr.f32.mxu0 0.0
      %4603 = vmatmul.mubr.f32.gmra.mxu0 %v4509
      %v4604 = vpop.f32.mrf.mxu0
      %v4605 = vadd.f32 0.0, %v4604
      %v4606 = vpop.f32.mrf.mxu0
      %4607 = vmatprep.mubr.f32.mxu0 0.0
      %4608 = vmatmul.mubr.f32.gmra.mxu0 %v4512
      %v4609 = vpop.f32.mrf.mxu0
      %v4610 = vadd.f32 0.0, %v4609
      %v4611 = vpop.f32.mrf.mxu0
      %4612 = vmatprep.mubr.f32.mxu0 0.0
      %4613 = vmatmul.mubr.f32.gmra.mxu0 %v4515
      %v4614 = vpop.f32.mrf.mxu0
      %v4615 = vadd.f32 0.0, %v4614
      %v4616 = vpop.f32.mrf.mxu0
      %4617 = vmatprep.mubr.f32.mxu0 0.0
      %4618 = vmatmul.mubr.f32.gmra.mxu0 %v4518
      %v4619 = vpop.f32.mrf.mxu0
      %v4620 = vadd.f32 0.0, %v4619
      %v4621 = vpop.f32.mrf.mxu0
      %4622 = vmatprep.mubr.f32.mxu0 0.0
      %4623 = vmatmul.mubr.f32.gmra.mxu0 %v4521
      %v4624 = vpop.f32.mrf.mxu0
      %v4625 = vadd.f32 0.0, %v4624
      %v4626 = vpop.f32.mrf.mxu0
      %4627 = vdwg.mxu0
      %v4628 = vld [vmem:[%s13] sm:$0xff]
      %v4629 = vld [vmem:[%s13 + $0x8] sm:$0xff]
      %v4630 = vld [vmem:[%s13 + $0x10] sm:$0xff]
      %v4631 = vld [vmem:[%s13 + $0x18] sm:$0xff]
      %v4632 = vld [vmem:[%s13 + $0x20] sm:$0xff]
      %v4633 = vld [vmem:[%s13 + $0x28] sm:$0xff]
      %v4634 = vld [vmem:[%s13 + $0x30] sm:$0xff]
      %v4635 = vld [vmem:[%s13 + $0x38] sm:$0xff]
      %v4636 = vld [vmem:[%s13 + $0x40] sm:$0xff]
      %v4637 = vld [vmem:[%s13 + $0x48] sm:$0xff]
      %v4638 = vld [vmem:[%s13 + $0x50] sm:$0xff]
      %v4639 = vld [vmem:[%s13 + $0x58] sm:$0xff]
      %v4641 = vsel %vm1159, %v4590, 0
      %v4644 = vsel %vm1159, %v4595, 0
      %v4647 = vsel %vm1159, %v4600, 0
      %v4650 = vsel %vm1159, %v4605, 0
      %v4653 = vsel %vm1159, %v4610, 0
      %v4656 = vsel %vm1159, %v4615, 0
      %v4659 = vsel %vm1159, %v4620, 0
      %v4662 = vsel %vm1159, %v4625, 0
      %4664 = vmatprep.subr.mxu0 0.0
      %4665 = vmatpush1.msra.mxu0 0.0
      %4666 = vmatprep.subr.mxu0 0.0
      %4667 = vmatpush1.msra.mxu0 0.0
      %4668 = vmatprep.subr.mxu0 0.0
      %4669 = vmatpush1.msra.mxu0 0.0
      %4670 = vmatprep.subr.mxu0 0.0
      %4671 = vmatpush1.msra.mxu0 0.0
      %4672 = vmatprep.subr.mxu0 0.0
      %4673 = vmatpush1.msra.mxu0 0.0
      %4674 = vmatprep.subr.mxu0 0.0
      %4675 = vmatpush1.msra.mxu0 0.0
      %4676 = vmatprep.subr.mxu0 0.0
      %4677 = vmatpush1.msra.mxu0 0.0
      %4678 = vmatprep.subr.mxu0 0.0
      %4679 = vmatpush1.msra.mxu0 0.0
      %4680 = vmatprep.subr.mxu0 0.0
      %4681 = vmatpush1.msra.mxu0 0.0
      %4682 = vmatprep.subr.mxu0 0.0
      %4683 = vmatpush1.msra.mxu0 0.0
      %4684 = vmatprep.subr.mxu0 0.0
      %4685 = vmatpush1.msra.mxu0 0.0
      %4686 = vmatprep.subr.mxu0 0.0
      %4687 = vmatpush1.msra.mxu0 0.0
      %4688 = vmatprep.subr.mxu0 %v4638
      %4689 = vmatpush1.msra.mxu0 %v4637
      %4690 = vmatprep.subr.mxu0 %v4635
      %4691 = vmatpush1.msra.mxu0 %v4634
      %4692 = vmatprep.subr.mxu0 %v4632
      %4693 = vmatpush1.msra.mxu0 %v4631
      %4694 = vmatprep.subr.mxu0 %v4629
      %4695 = vmatpush1.msra.mxu0 %v4628
      %4696 = vmatprep.subr.mxu0 0.0
      %4697 = vmatpush2.msra.mxu0 0.0
      %4698 = vmatprep.subr.mxu0 0.0
      %4699 = vmatpush2.msra.mxu0 0.0
      %4700 = vmatprep.subr.mxu0 0.0
      %4701 = vmatpush2.msra.mxu0 0.0
      %4702 = vmatprep.subr.mxu0 0.0
      %4703 = vmatpush2.msra.mxu0 0.0
      %4704 = vmatprep.subr.mxu0 0.0
      %4705 = vmatpush2.msra.mxu0 0.0
      %4706 = vmatprep.subr.mxu0 0.0
      %4707 = vmatpush2.msra.mxu0 0.0
      %4708 = vmatprep.subr.mxu0 0.0
      %4709 = vmatpush2.msra.mxu0 0.0
      %4710 = vmatprep.subr.mxu0 0.0
      %4711 = vmatpush2.msra.mxu0 0.0
      %4712 = vmatprep.subr.mxu0 0.0
      %4713 = vmatpush2.msra.mxu0 0.0
      %4714 = vmatprep.subr.mxu0 0.0
      %4715 = vmatpush2.msra.mxu0 0.0
      %4716 = vmatprep.subr.mxu0 0.0
      %4717 = vmatpush2.msra.mxu0 0.0
      %4718 = vmatprep.subr.mxu0 0.0
      %4719 = vmatpush2.msra.mxu0 0.0
      %4720 = vmatprep.subr.mxu0 0.0
      %4721 = vmatpush2.msra.mxu0 0.0
      %4722 = vmatprep.subr.mxu0 0.0
      %4723 = vmatpush2.msra.mxu0 0.0
      %4724 = vmatprep.subr.mxu0 0.0
      %4725 = vmatpush2.msra.mxu0 0.0
      %4726 = vmatprep.subr.mxu0 0.0
      %4727 = vmatpush2.msra.mxu0 0.0
      %4728 = vmatprep.mubr.f32.mxu0 0.0
      %4729 = vmatmul.mubr.f32.gmra.mxu0 %v4641
      %v4730 = vpop.f32.mrf.mxu0
      %v4731 = vadd.f32 0.0, %v4730
      %v4732 = vpop.f32.mrf.mxu0
      %v4733 = vadd.f32 0.0, %v4732
      %4734 = vmatprep.mubr.f32.mxu0 0.0
      %4735 = vmatmul.mubr.f32.gmra.mxu0 %v4644
      %v4736 = vpop.f32.mrf.mxu0
      %v4737 = vadd.f32 0.0, %v4736
      %v4738 = vpop.f32.mrf.mxu0
      %v4739 = vadd.f32 0.0, %v4738
      %4740 = vmatprep.mubr.f32.mxu0 0.0
      %4741 = vmatmul.mubr.f32.gmra.mxu0 %v4647
      %v4742 = vpop.f32.mrf.mxu0
      %v4743 = vadd.f32 0.0, %v4742
      %v4744 = vpop.f32.mrf.mxu0
      %v4745 = vadd.f32 0.0, %v4744
      %4746 = vmatprep.mubr.f32.mxu0 0.0
      %4747 = vmatmul.mubr.f32.gmra.mxu0 %v4650
      %v4748 = vpop.f32.mrf.mxu0
      %v4749 = vadd.f32 0.0, %v4748
      %v4750 = vpop.f32.mrf.mxu0
      %v4751 = vadd.f32 0.0, %v4750
      %4752 = vmatprep.mubr.f32.mxu0 0.0
      %4753 = vmatmul.mubr.f32.gmra.mxu0 %v4653
      %v4754 = vpop.f32.mrf.mxu0
      %v4755 = vadd.f32 0.0, %v4754
      %v4756 = vpop.f32.mrf.mxu0
      %v4757 = vadd.f32 0.0, %v4756
      %4758 = vmatprep.mubr.f32.mxu0 0.0
      %4759 = vmatmul.mubr.f32.gmra.mxu0 %v4656
      %v4760 = vpop.f32.mrf.mxu0
      %v4761 = vadd.f32 0.0, %v4760
      %v4762 = vpop.f32.mrf.mxu0
      %v4763 = vadd.f32 0.0, %v4762
      %4764 = vmatprep.mubr.f32.mxu0 0.0
      %4765 = vmatmul.mubr.f32.gmra.mxu0 %v4659
      %v4766 = vpop.f32.mrf.mxu0
      %v4767 = vadd.f32 0.0, %v4766
      %v4768 = vpop.f32.mrf.mxu0
      %v4769 = vadd.f32 0.0, %v4768
      %4770 = vmatprep.mubr.f32.mxu0 0.0
      %4771 = vmatmul.mubr.f32.gmra.mxu0 %v4662
      %v4772 = vpop.f32.mrf.mxu0
      %v4773 = vadd.f32 0.0, %v4772
      %v4774 = vpop.f32.mrf.mxu0
      %v4775 = vadd.f32 0.0, %v4774
      %4776 = vdwg.mxu0
      %4777 = vmatprep.subr.mxu0 0.0
      %4778 = vmatpush1.msra.mxu0 0.0
      %4779 = vmatprep.subr.mxu0 0.0
      %4780 = vmatpush1.msra.mxu0 0.0
      %4781 = vmatprep.subr.mxu0 0.0
      %4782 = vmatpush1.msra.mxu0 0.0
      %4783 = vmatprep.subr.mxu0 0.0
      %4784 = vmatpush1.msra.mxu0 0.0
      %4785 = vmatprep.subr.mxu0 0.0
      %4786 = vmatpush1.msra.mxu0 0.0
      %4787 = vmatprep.subr.mxu0 0.0
      %4788 = vmatpush1.msra.mxu0 0.0
      %4789 = vmatprep.subr.mxu0 0.0
      %4790 = vmatpush1.msra.mxu0 0.0
      %4791 = vmatprep.subr.mxu0 0.0
      %4792 = vmatpush1.msra.mxu0 0.0
      %4793 = vmatprep.subr.mxu0 0.0
      %4794 = vmatpush1.msra.mxu0 0.0
      %4795 = vmatprep.subr.mxu0 0.0
      %4796 = vmatpush1.msra.mxu0 0.0
      %4797 = vmatprep.subr.mxu0 0.0
      %4798 = vmatpush1.msra.mxu0 0.0
      %4799 = vmatprep.subr.mxu0 0.0
      %4800 = vmatpush1.msra.mxu0 0.0
      %4801 = vmatprep.subr.mxu0 0.0
      %4802 = vmatpush1.msra.mxu0 %v4639
      %4803 = vmatprep.subr.mxu0 0.0
      %4804 = vmatpush1.msra.mxu0 %v4636
      %4805 = vmatprep.subr.mxu0 0.0
      %4806 = vmatpush1.msra.mxu0 %v4633
      %4807 = vmatprep.subr.mxu0 0.0
      %4808 = vmatpush1.msra.mxu0 %v4630
      %4809 = vmatprep.subr.mxu0 0.0
      %4810 = vmatpush2.msra.mxu0 0.0
      %4811 = vmatprep.subr.mxu0 0.0
      %4812 = vmatpush2.msra.mxu0 0.0
      %4813 = vmatprep.subr.mxu0 0.0
      %4814 = vmatpush2.msra.mxu0 0.0
      %4815 = vmatprep.subr.mxu0 0.0
      %4816 = vmatpush2.msra.mxu0 0.0
      %4817 = vmatprep.subr.mxu0 0.0
      %4818 = vmatpush2.msra.mxu0 0.0
      %4819 = vmatprep.subr.mxu0 0.0
      %4820 = vmatpush2.msra.mxu0 0.0
      %4821 = vmatprep.subr.mxu0 0.0
      %4822 = vmatpush2.msra.mxu0 0.0
      %4823 = vmatprep.subr.mxu0 0.0
      %4824 = vmatpush2.msra.mxu0 0.0
      %4825 = vmatprep.subr.mxu0 0.0
      %4826 = vmatpush2.msra.mxu0 0.0
      %4827 = vmatprep.subr.mxu0 0.0
      %4828 = vmatpush2.msra.mxu0 0.0
      %4829 = vmatprep.subr.mxu0 0.0
      %4830 = vmatpush2.msra.mxu0 0.0
      %4831 = vmatprep.subr.mxu0 0.0
      %4832 = vmatpush2.msra.mxu0 0.0
      %4833 = vmatprep.subr.mxu0 0.0
      %4834 = vmatpush2.msra.mxu0 0.0
      %4835 = vmatprep.subr.mxu0 0.0
      %4836 = vmatpush2.msra.mxu0 0.0
      %4837 = vmatprep.subr.mxu0 0.0
      %4838 = vmatpush2.msra.mxu0 0.0
      %4839 = vmatprep.subr.mxu0 0.0
      %4840 = vmatpush2.msra.mxu0 0.0
      %4841 = vmatprep.mubr.f32.mxu0 0.0
      %4842 = vmatmul.mubr.f32.gmra.mxu0 %v4641
      %v4843 = vpop.f32.mrf.mxu0
      %v4844 = vadd.f32 0.0, %v4843
      %v4845 = vpop.f32.mrf.mxu0
      %4846 = vmatprep.mubr.f32.mxu0 0.0
      %4847 = vmatmul.mubr.f32.gmra.mxu0 %v4644
      %v4848 = vpop.f32.mrf.mxu0
      %v4849 = vadd.f32 0.0, %v4848
      %v4850 = vpop.f32.mrf.mxu0
      %4851 = vmatprep.mubr.f32.mxu0 0.0
      %4852 = vmatmul.mubr.f32.gmra.mxu0 %v4647
      %v4853 = vpop.f32.mrf.mxu0
      %v4854 = vadd.f32 0.0, %v4853
      %v4855 = vpop.f32.mrf.mxu0
      %4856 = vmatprep.mubr.f32.mxu0 0.0
      %4857 = vmatmul.mubr.f32.gmra.mxu0 %v4650
      %v4858 = vpop.f32.mrf.mxu0
      %v4859 = vadd.f32 0.0, %v4858
      %v4860 = vpop.f32.mrf.mxu0
      %4861 = vmatprep.mubr.f32.mxu0 0.0
      %4862 = vmatmul.mubr.f32.gmra.mxu0 %v4653
      %v4863 = vpop.f32.mrf.mxu0
      %v4864 = vadd.f32 0.0, %v4863
      %v4865 = vpop.f32.mrf.mxu0
      %4866 = vmatprep.mubr.f32.mxu0 0.0
      %4867 = vmatmul.mubr.f32.gmra.mxu0 %v4656
      %v4868 = vpop.f32.mrf.mxu0
      %v4869 = vadd.f32 0.0, %v4868
      %v4870 = vpop.f32.mrf.mxu0
      %4871 = vmatprep.mubr.f32.mxu0 0.0
      %4872 = vmatmul.mubr.f32.gmra.mxu0 %v4659
      %v4873 = vpop.f32.mrf.mxu0
      %v4874 = vadd.f32 0.0, %v4873
      %v4875 = vpop.f32.mrf.mxu0
      %4876 = vmatprep.mubr.f32.mxu0 0.0
      %4877 = vmatmul.mubr.f32.gmra.mxu0 %v4662
      %v4878 = vpop.f32.mrf.mxu0
      %v4879 = vadd.f32 0.0, %v4878
      %v4880 = vpop.f32.mrf.mxu0
      %4881 = vdwg.mxu0
      %v4882 = vld [vmem:[%s17] sm:$0xff]
      %v4883 = vld [vmem:[%s17 + $0x8] sm:$0xff]
      %v4884 = vld [vmem:[%s17 + $0x10] sm:$0xff]
      %v4885 = vld [vmem:[%s17 + $0x18] sm:$0xff]
      %v4886 = vld [vmem:[%s17 + $0x20] sm:$0xff]
      %v4887 = vld [vmem:[%s17 + $0x28] sm:$0xff]
      %v4888 = vld [vmem:[%s17 + $0x30] sm:$0xff]
      %v4889 = vld [vmem:[%s17 + $0x38] sm:$0xff]
      %v4890 = vld [vmem:[%s17 + $0x40] sm:$0xff]
      %v4891 = vld [vmem:[%s17 + $0x48] sm:$0xff]
      %v4892 = vld [vmem:[%s17 + $0x50] sm:$0xff]
      %v4893 = vld [vmem:[%s17 + $0x58] sm:$0xff]
      %v4894 = vld [vmem:[%s17 + $0x60] sm:$0xff]
      %v4895 = vld [vmem:[%s17 + $0x68] sm:$0xff]
      %v4896 = vld [vmem:[%s17 + $0x70] sm:$0xff]
      %v4897 = vld [vmem:[%s17 + $0x78] sm:$0xff]
      %v4898 = vld [vmem:[%s17 + $0x80] sm:$0xff]
      %v4899 = vld [vmem:[%s17 + $0x88] sm:$0xff]
      %v4900 = vld [vmem:[%s17 + $0x90] sm:$0xff]
      %v4901 = vld [vmem:[%s17 + $0x98] sm:$0xff]
      %v4902 = vld [vmem:[%s17 + $0xa0] sm:$0xff]
      %v4903 = vld [vmem:[%s17 + $0xa8] sm:$0xff]
      %v4904 = vld [vmem:[%s17 + $0xb0] sm:$0xff]
      %v4905 = vld [vmem:[%s17 + $0xb8] sm:$0xff]
      %v4906 = vmul.f32 %v4731, %v4882
      %v4907 = vmul.f32 %v4733, %v4883
      %v4908 = vmul.f32 %v4844, %v4884
      %v4909 = vmul.f32 %v4737, %v4885
      %v4910 = vmul.f32 %v4739, %v4886
      %v4911 = vmul.f32 %v4849, %v4887
      %v4912 = vmul.f32 %v4743, %v4888
      %v4913 = vmul.f32 %v4745, %v4889
      %v4914 = vmul.f32 %v4854, %v4890
      %v4915 = vmul.f32 %v4749, %v4891
      %v4916 = vmul.f32 %v4751, %v4892
      %v4917 = vmul.f32 %v4859, %v4893
      %v4918 = vmul.f32 %v4755, %v4894
      %v4919 = vmul.f32 %v4757, %v4895
      %v4920 = vmul.f32 %v4864, %v4896
      %v4921 = vmul.f32 %v4761, %v4897
      %v4922 = vmul.f32 %v4763, %v4898
      %v4923 = vmul.f32 %v4869, %v4899
      %v4924 = vmul.f32 %v4767, %v4900
      %v4925 = vmul.f32 %v4769, %v4901
      %v4926 = vmul.f32 %v4874, %v4902
      %v4927 = vmul.f32 %v4773, %v4903
      %v4928 = vmul.f32 %v4775, %v4904
      %v4929 = vmul.f32 %v4879, %v4905
      %4930 = vst [vmem:[#allocation2 + $0x48] sm:$0xff] %v4906
      %4931 = vst [vmem:[#allocation2 + $0x50] sm:$0xff] %v4907
      %4932 = vst [vmem:[#allocation2 + $0x58] sm:$0xff] %v4908
      %4933 = vst [vmem:[#allocation2 + $0x60] sm:$0xff] %v4909
      %4934 = vst [vmem:[#allocation2 + $0x68] sm:$0xff] %v4910
      %4935 = vst [vmem:[#allocation2 + $0x70] sm:$0xff] %v4911
      %4936 = vst [vmem:[#allocation2 + $0x78] sm:$0xff] %v4912
      %4937 = vst [vmem:[#allocation2 + $0x80] sm:$0xff] %v4913
      %4938 = vst [vmem:[#allocation2 + $0x88] sm:$0xff] %v4914
      %4939 = vst [vmem:[#allocation2 + $0x90] sm:$0xff] %v4915
      %4940 = vst [vmem:[#allocation2 + $0x98] sm:$0xff] %v4916
      %4941 = vst [vmem:[#allocation2 + $0xa0] sm:$0xff] %v4917
      %4942 = vst [vmem:[#allocation2 + $0xa8] sm:$0xff] %v4918
      %4943 = vst [vmem:[#allocation2 + $0xb0] sm:$0xff] %v4919
      %4944 = vst [vmem:[#allocation2 + $0xb8] sm:$0xff] %v4920
      %4945 = vst [vmem:[#allocation2 + $0xc0] sm:$0xff] %v4921
      %4946 = vst [vmem:[#allocation2 + $0xc8] sm:$0xff] %v4922
      %4947 = vst [vmem:[#allocation2 + $0xd0] sm:$0xff] %v4923
      %4948 = vst [vmem:[#allocation2 + $0xd8] sm:$0xff] %v4924
      %4949 = vst [vmem:[#allocation2 + $0xe0] sm:$0xff] %v4925
      %4950 = vst [vmem:[#allocation2 + $0xe8] sm:$0xff] %v4926
      %4951 = vst [vmem:[#allocation2 + $0xf0] sm:$0xff] %v4927
      %4952 = vst [vmem:[#allocation2 + $0xf8] sm:$0xff] %v4928
      %4953 = vst [vmem:[#allocation2 + $0x100] sm:$0xff] %v4929
      %4954 = vst [vmem:[#allocation2 + $0x108] sm:$0xff] 0.0
      %4955 = vst [vmem:[#allocation2 + $0x110] sm:$0xff] 0.0
      %4956 = vst [vmem:[#allocation2 + $0x118] sm:$0xff] 0.0
      %4957 = vst [vmem:[#allocation2 + $0x120] sm:$0xff] 0.0
      %4958 = vst [vmem:[#allocation2 + $0x128] sm:$0xff] 0.0
      %4959 = vst [vmem:[#allocation2 + $0x130] sm:$0xff] 0.0
      %4960 = vst [vmem:[#allocation2 + $0x138] sm:$0x1] 0.0
      %4961 = vst [vmem:[#allocation2 + $0x140] sm:$0x1] 0.0
      %4962 = vst [vmem:[#allocation2 + $0x148] sm:$0x1] 0.0
      %v4963 = vld [vmem:[%s14] sm:$0x1]
      %v4965 = vlaneseq
      %v4966 = vshrl.u32 %v4965, 7
      %v4967 = vsub.s32 0, %v4966
      %v4968 = vrot.slane %v4963, %v4967
      %v4970 = vadd.f32 %v4968, 0.0
      %v4971 = vld [vmem:[#allocation2 + $0x18] sm:$0x80]
      %v4972 = vld [vmem:[#allocation2 + $0x30] sm:$0xff]
      %v4973 = vld [vmem:[#allocation2 + $0x48] sm:$0xff]
      %v4974 = vld [vmem:[#allocation2 + $0x60] sm:$0xff]
      %v4975 = vld [vmem:[#allocation2 + $0x78] sm:$0xff]
      %v4976 = vld [vmem:[#allocation2 + $0x90] sm:$0xff]
      %v4977 = vld [vmem:[#allocation2 + $0xa8] sm:$0xff]
      %v4978 = vld [vmem:[#allocation2 + $0xc0] sm:$0xff]
      %v4979 = vld [vmem:[#allocation2 + $0xd8] sm:$0x7f]
      %v4980 = vadd.f32 %v4970, %v4971
      %v4981 = vadd.f32 %v4970, %v4972
      %v4982 = vadd.f32 %v4970, %v4973
      %v4983 = vadd.f32 %v4970, %v4974
      %v4984 = vadd.f32 %v4970, %v4975
      %v4985 = vadd.f32 %v4970, %v4976
      %v4986 = vadd.f32 %v4970, %v4977
      %v4987 = vadd.f32 %v4970, %v4978
      %v4988 = vadd.f32 %v4970, %v4979
      %v4989 = vld [vmem:[#allocation2 + $0xd8] sm:$0xff]
      %v4998 = vrot.slane %v4972, 1
      %v4999 = vrot.slane %v4973, 1
      %v5000 = vsel %vm1258, %v4998, %v4999
      %v5001 = vrot.slane %v4974, 1
      %v5002 = vsel %vm1258, %v4999, %v5001
      %v5003 = vrot.slane %v4975, 1
      %v5004 = vsel %vm1258, %v5001, %v5003
      %v5005 = vrot.slane %v4976, 1
      %v5006 = vsel %vm1258, %v5003, %v5005
      %v5007 = vrot.slane %v4977, 1
      %v5008 = vsel %vm1258, %v5005, %v5007
      %v5009 = vrot.slane %v4978, 1
      %v5010 = vsel %vm1258, %v5007, %v5009
      %v5011 = vrot.slane %v4989, 1
      %v5012 = vsel %vm1258, %v5009, %v5011
      %5013 = vrot.lane.b32.xlu0 %v4998, 96
      %v5014 = vpop.permute.xlu0 %5013
      %5015 = vrot.lane.b32.xlu0 %v5000, 96
      %v5016 = vpop.permute.xlu0 %5015
      %5017 = vrot.lane.b32.xlu0 %v5002, 96
      %v5018 = vpop.permute.xlu0 %5017
      %5019 = vrot.lane.b32.xlu0 %v5004, 96
      %v5020 = vpop.permute.xlu0 %5019
      %5021 = vrot.lane.b32.xlu0 %v5006, 96
      %v5022 = vpop.permute.xlu0 %5021
      %5023 = vrot.lane.b32.xlu0 %v5008, 96
      %v5024 = vpop.permute.xlu0 %5023
      %5025 = vrot.lane.b32.xlu0 %v5010, 96
      %v5026 = vpop.permute.xlu0 %5025
      %5027 = vrot.lane.b32.xlu0 %v5012, 96
      %v5028 = vpop.permute.xlu0 %5027
      %5029 = vrot.lane.b32.xlu0 %v5011, 96
      %v5030 = vpop.permute.xlu0 %5029
      %v5040 = vadd.f32 %v4980, %v5014
      %v5041 = vadd.f32 %v4981, %v5016
      %v5042 = vadd.f32 %v4982, %v5018
      %v5043 = vadd.f32 %v4983, %v5020
      %v5044 = vadd.f32 %v4984, %v5022
      %v5045 = vadd.f32 %v4985, %v5024
      %v5046 = vadd.f32 %v4986, %v5026
      %v5047 = vadd.f32 %v4987, %v5028
      %v5048 = vadd.f32 %v4988, %v5030
      %v5049 = vld [vmem:[#allocation2 + $0x30] sm:$0xfe]
      %v5050 = vld [vmem:[#allocation2 + $0xf0] sm:$0x1]
      %v5053 = vrot.slane %v5049, 2
      %v5054 = vrot.slane %v4973, 2
      %v5055 = vsel %vm2018, %v5053, %v5054
      %v5056 = vrot.slane %v4974, 2
      %v5057 = vsel %vm2018, %v5054, %v5056
      %v5058 = vrot.slane %v4975, 2
      %v5059 = vsel %vm2018, %v5056, %v5058
      %v5060 = vrot.slane %v4976, 2
      %v5061 = vsel %vm2018, %v5058, %v5060
      %v5062 = vrot.slane %v4977, 2
      %v5063 = vsel %vm2018, %v5060, %v5062
      %v5064 = vrot.slane %v4978, 2
      %v5065 = vsel %vm2018, %v5062, %v5064
      %v5066 = vrot.slane %v4989, 2
      %v5067 = vsel %vm2018, %v5064, %v5066
      %v5068 = vrot.slane %v5050, 2
      %v5069 = vsel %vm2018, %v5066, %v5068
      %5070 = vrot.lane.b32.xlu0 %v5053, 64
      %v5071 = vpop.permute.xlu0 %5070
      %5072 = vrot.lane.b32.xlu0 %v5055, 64
      %v5073 = vpop.permute.xlu0 %5072
      %5074 = vrot.lane.b32.xlu0 %v5057, 64
      %v5075 = vpop.permute.xlu0 %5074
      %5076 = vrot.lane.b32.xlu0 %v5059, 64
      %v5077 = vpop.permute.xlu0 %5076
      %5078 = vrot.lane.b32.xlu0 %v5061, 64
      %v5079 = vpop.permute.xlu0 %5078
      %5080 = vrot.lane.b32.xlu0 %v5063, 64
      %v5081 = vpop.permute.xlu0 %5080
      %5082 = vrot.lane.b32.xlu0 %v5065, 64
      %v5083 = vpop.permute.xlu0 %5082
      %5084 = vrot.lane.b32.xlu0 %v5067, 64
      %v5085 = vpop.permute.xlu0 %5084
      %5086 = vrot.lane.b32.xlu0 %v5069, 64
      %v5087 = vpop.permute.xlu0 %5086
      %v5097 = vadd.f32 %v5040, %v5071
      %v5098 = vadd.f32 %v5041, %v5073
      %v5099 = vadd.f32 %v5042, %v5075
      %v5100 = vadd.f32 %v5043, %v5077
      %v5101 = vadd.f32 %v5044, %v5079
      %v5102 = vadd.f32 %v5045, %v5081
      %v5103 = vadd.f32 %v5046, %v5083
      %v5104 = vadd.f32 %v5047, %v5085
      %v5105 = vadd.f32 %v5048, %v5087
      %v5106 = vld [vmem:[#allocation2 + $0x30] sm:$0x80]
      %v5107 = vld [vmem:[#allocation2 + $0xf0] sm:$0x7f]
      %5110 = vrot.lane.b32.xlu0 %v5106, 32
      %v5111 = vpop.permute.xlu0 %5110
      %5112 = vrot.lane.b32.xlu0 %v4973, 32
      %v5113 = vpop.permute.xlu0 %5112
      %5114 = vrot.lane.b32.xlu0 %v4974, 32
      %v5115 = vpop.permute.xlu0 %5114
      %5116 = vrot.lane.b32.xlu0 %v4975, 32
      %v5117 = vpop.permute.xlu0 %5116
      %5118 = vrot.lane.b32.xlu0 %v4976, 32
      %v5119 = vpop.permute.xlu0 %5118
      %5120 = vrot.lane.b32.xlu0 %v4977, 32
      %v5121 = vpop.permute.xlu0 %5120
      %5122 = vrot.lane.b32.xlu0 %v4978, 32
      %v5123 = vpop.permute.xlu0 %5122
      %5124 = vrot.lane.b32.xlu0 %v4989, 32
      %v5125 = vpop.permute.xlu0 %5124
      %5126 = vrot.lane.b32.xlu0 %v5107, 32
      %v5127 = vpop.permute.xlu0 %5126
      %v5137 = vadd.f32 %v5097, %v5111
      %v5138 = vadd.f32 %v5098, %v5113
      %v5139 = vadd.f32 %v5099, %v5115
      %v5140 = vadd.f32 %v5100, %v5117
      %v5141 = vadd.f32 %v5101, %v5119
      %v5142 = vadd.f32 %v5102, %v5121
      %v5143 = vadd.f32 %v5103, %v5123
      %v5144 = vadd.f32 %v5104, %v5125
      %v5145 = vadd.f32 %v5105, %v5127
      %v5146 = vld [vmem:[#allocation2 + $0x50] sm:$0xff]
      %v5147 = vld [vmem:[#allocation2 + $0x68] sm:$0xff]
      %v5148 = vld [vmem:[#allocation2 + $0x80] sm:$0xff]
      %v5149 = vld [vmem:[#allocation2 + $0x98] sm:$0xff]
      %v5150 = vld [vmem:[#allocation2 + $0xb0] sm:$0xff]
      %v5151 = vld [vmem:[#allocation2 + $0xc8] sm:$0xff]
      %v5152 = vld [vmem:[#allocation2 + $0xe0] sm:$0xff]
      %v5153 = vld [vmem:[#allocation2 + $0xf8] sm:$0xff]
      %v5162 = vrot.slane %v5146, 1
      %v5163 = vrot.slane %v5147, 1
      %v5164 = vsel %vm1258, %v5162, %v5163
      %v5165 = vrot.slane %v5148, 1
      %v5166 = vsel %vm1258, %v5163, %v5165
      %v5167 = vrot.slane %v5149, 1
      %v5168 = vsel %vm1258, %v5165, %v5167
      %v5169 = vrot.slane %v5150, 1
      %v5170 = vsel %vm1258, %v5167, %v5169
      %v5171 = vrot.slane %v5151, 1
      %v5172 = vsel %vm1258, %v5169, %v5171
      %v5173 = vrot.slane %v5152, 1
      %v5174 = vsel %vm1258, %v5171, %v5173
      %v5175 = vrot.slane %v5153, 1
      %v5176 = vsel %vm1258, %v5173, %v5175
      %v5186 = vadd.f32 %v5137, %v5162
      %v5187 = vadd.f32 %v5138, %v5164
      %v5188 = vadd.f32 %v5139, %v5166
      %v5189 = vadd.f32 %v5140, %v5168
      %v5190 = vadd.f32 %v5141, %v5170
      %v5191 = vadd.f32 %v5142, %v5172
      %v5192 = vadd.f32 %v5143, %v5174
      %v5193 = vadd.f32 %v5144, %v5176
      %v5194 = vadd.f32 %v5145, %v5175
      %v5195 = vld [vmem:[#allocation2 + $0x50] sm:$0xfe]
      %v5196 = vld [vmem:[#allocation2 + $0x110] sm:$0x1]
      %v5199 = vrot.slane %v5195, 2
      %v5200 = vrot.slane %v5147, 2
      %v5201 = vsel %vm2018, %v5199, %v5200
      %v5202 = vrot.slane %v5148, 2
      %v5203 = vsel %vm2018, %v5200, %v5202
      %v5204 = vrot.slane %v5149, 2
      %v5205 = vsel %vm2018, %v5202, %v5204
      %v5206 = vrot.slane %v5150, 2
      %v5207 = vsel %vm2018, %v5204, %v5206
      %v5208 = vrot.slane %v5151, 2
      %v5209 = vsel %vm2018, %v5206, %v5208
      %v5210 = vrot.slane %v5152, 2
      %v5211 = vsel %vm2018, %v5208, %v5210
      %v5212 = vrot.slane %v5153, 2
      %v5213 = vsel %vm2018, %v5210, %v5212
      %v5214 = vrot.slane %v5196, 2
      %v5215 = vsel %vm2018, %v5212, %v5214
      %5216 = vrot.lane.b32.xlu0 %v5199, 96
      %v5217 = vpop.permute.xlu0 %5216
      %5218 = vrot.lane.b32.xlu0 %v5201, 96
      %v5219 = vpop.permute.xlu0 %5218
      %5220 = vrot.lane.b32.xlu0 %v5203, 96
      %v5221 = vpop.permute.xlu0 %5220
      %5222 = vrot.lane.b32.xlu0 %v5205, 96
      %v5223 = vpop.permute.xlu0 %5222
      %5224 = vrot.lane.b32.xlu0 %v5207, 96
      %v5225 = vpop.permute.xlu0 %5224
      %5226 = vrot.lane.b32.xlu0 %v5209, 96
      %v5227 = vpop.permute.xlu0 %5226
      %5228 = vrot.lane.b32.xlu0 %v5211, 96
      %v5229 = vpop.permute.xlu0 %5228
      %5230 = vrot.lane.b32.xlu0 %v5213, 96
      %v5231 = vpop.permute.xlu0 %5230
      %5232 = vrot.lane.b32.xlu0 %v5215, 96
      %v5233 = vpop.permute.xlu0 %5232
      %v5243 = vadd.f32 %v5186, %v5217
      %v5244 = vadd.f32 %v5187, %v5219
      %v5245 = vadd.f32 %v5188, %v5221
      %v5246 = vadd.f32 %v5189, %v5223
      %v5247 = vadd.f32 %v5190, %v5225
      %v5248 = vadd.f32 %v5191, %v5227
      %v5249 = vadd.f32 %v5192, %v5229
      %v5250 = vadd.f32 %v5193, %v5231
      %v5251 = vadd.f32 %v5194, %v5233
      %v5252 = vld [vmem:[#allocation2 + $0x50] sm:$0x80]
      %v5253 = vld [vmem:[#allocation2 + $0x110] sm:$0x7f]
      %5256 = vrot.lane.b32.xlu0 %v5252, 64
      %v5257 = vpop.permute.xlu0 %5256
      %5258 = vrot.lane.b32.xlu0 %v5147, 64
      %v5259 = vpop.permute.xlu0 %5258
      %5260 = vrot.lane.b32.xlu0 %v5148, 64
      %v5261 = vpop.permute.xlu0 %5260
      %5262 = vrot.lane.b32.xlu0 %v5149, 64
      %v5263 = vpop.permute.xlu0 %5262
      %5264 = vrot.lane.b32.xlu0 %v5150, 64
      %v5265 = vpop.permute.xlu0 %5264
      %5266 = vrot.lane.b32.xlu0 %v5151, 64
      %v5267 = vpop.permute.xlu0 %5266
      %5268 = vrot.lane.b32.xlu0 %v5152, 64
      %v5269 = vpop.permute.xlu0 %5268
      %5270 = vrot.lane.b32.xlu0 %v5153, 64
      %v5271 = vpop.permute.xlu0 %5270
      %5272 = vrot.lane.b32.xlu0 %v5253, 64
      %v5273 = vpop.permute.xlu0 %5272
      %v5283 = vadd.f32 %v5243, %v5257
      %v5284 = vadd.f32 %v5244, %v5259
      %v5285 = vadd.f32 %v5245, %v5261
      %v5286 = vadd.f32 %v5246, %v5263
      %v5287 = vadd.f32 %v5247, %v5265
      %v5288 = vadd.f32 %v5248, %v5267
      %v5289 = vadd.f32 %v5249, %v5269
      %v5290 = vadd.f32 %v5250, %v5271
      %v5291 = vadd.f32 %v5251, %v5273
      %v5292 = vld [vmem:[#allocation2 + $0x110] sm:$0xff]
      %v5294 = vrot.slane %v5292, 1
      %v5295 = vsel %vm1258, %v5175, %v5294
      %5296 = vrot.lane.b32.xlu0 %v5163, 32
      %v5297 = vpop.permute.xlu0 %5296
      %5298 = vrot.lane.b32.xlu0 %v5166, 32
      %v5299 = vpop.permute.xlu0 %5298
      %5300 = vrot.lane.b32.xlu0 %v5168, 32
      %v5301 = vpop.permute.xlu0 %5300
      %5302 = vrot.lane.b32.xlu0 %v5170, 32
      %v5303 = vpop.permute.xlu0 %5302
      %5304 = vrot.lane.b32.xlu0 %v5172, 32
      %v5305 = vpop.permute.xlu0 %5304
      %5306 = vrot.lane.b32.xlu0 %v5174, 32
      %v5307 = vpop.permute.xlu0 %5306
      %5308 = vrot.lane.b32.xlu0 %v5176, 32
      %v5309 = vpop.permute.xlu0 %5308
      %5310 = vrot.lane.b32.xlu0 %v5295, 32
      %v5311 = vpop.permute.xlu0 %5310
      %5312 = vrot.lane.b32.xlu0 %v5294, 32
      %v5313 = vpop.permute.xlu0 %5312
      %v5323 = vadd.f32 %v5283, %v5297
      %v5324 = vadd.f32 %v5284, %v5299
      %v5325 = vadd.f32 %v5285, %v5301
      %v5326 = vadd.f32 %v5286, %v5303
      %v5327 = vadd.f32 %v5287, %v5305
      %v5328 = vadd.f32 %v5288, %v5307
      %v5329 = vadd.f32 %v5289, %v5309
      %v5330 = vadd.f32 %v5290, %v5311
      %v5331 = vadd.f32 %v5291, %v5313
      %v5332 = vld [vmem:[#allocation2 + $0x70] sm:$0xfe]
      %v5333 = vld [vmem:[#allocation2 + $0x88] sm:$0xff]
      %v5334 = vld [vmem:[#allocation2 + $0xa0] sm:$0xff]
      %v5335 = vld [vmem:[#allocation2 + $0xb8] sm:$0xff]
      %v5336 = vld [vmem:[#allocation2 + $0xd0] sm:$0xff]
      %v5337 = vld [vmem:[#allocation2 + $0xe8] sm:$0xff]
      %v5338 = vld [vmem:[#allocation2 + $0x100] sm:$0xff]
      %v5339 = vld [vmem:[#allocation2 + $0x118] sm:$0xff]
      %v5340 = vld [vmem:[#allocation2 + $0x130] sm:$0x1]
      %v5350 = vrot.slane %v5332, 2
      %v5351 = vrot.slane %v5333, 2
      %v5352 = vsel %vm2018, %v5350, %v5351
      %v5353 = vrot.slane %v5334, 2
      %v5354 = vsel %vm2018, %v5351, %v5353
      %v5355 = vrot.slane %v5335, 2
      %v5356 = vsel %vm2018, %v5353, %v5355
      %v5357 = vrot.slane %v5336, 2
      %v5358 = vsel %vm2018, %v5355, %v5357
      %v5359 = vrot.slane %v5337, 2
      %v5360 = vsel %vm2018, %v5357, %v5359
      %v5361 = vrot.slane %v5338, 2
      %v5362 = vsel %vm2018, %v5359, %v5361
      %v5363 = vrot.slane %v5339, 2
      %v5364 = vsel %vm2018, %v5361, %v5363
      %v5365 = vrot.slane %v5340, 2
      %v5366 = vsel %vm2018, %v5363, %v5365
      %v5376 = vadd.f32 %v5323, %v5350
      %v5377 = vadd.f32 %v5324, %v5352
      %v5378 = vadd.f32 %v5325, %v5354
      %v5379 = vadd.f32 %v5326, %v5356
      %v5380 = vadd.f32 %v5327, %v5358
      %v5381 = vadd.f32 %v5328, %v5360
      %v5382 = vadd.f32 %v5329, %v5362
      %v5383 = vadd.f32 %v5330, %v5364
      %v5384 = vadd.f32 %v5331, %v5366
      %v5385 = vld [vmem:[#allocation2 + $0x70] sm:$0x80]
      %v5386 = vld [vmem:[#allocation2 + $0x130] sm:$0x7f]
      %5389 = vrot.lane.b32.xlu0 %v5385, 96
      %v5390 = vpop.permute.xlu0 %5389
      %5391 = vrot.lane.b32.xlu0 %v5333, 96
      %v5392 = vpop.permute.xlu0 %5391
      %5393 = vrot.lane.b32.xlu0 %v5334, 96
      %v5394 = vpop.permute.xlu0 %5393
      %5395 = vrot.lane.b32.xlu0 %v5335, 96
      %v5396 = vpop.permute.xlu0 %5395
      %5397 = vrot.lane.b32.xlu0 %v5336, 96
      %v5398 = vpop.permute.xlu0 %5397
      %5399 = vrot.lane.b32.xlu0 %v5337, 96
      %v5400 = vpop.permute.xlu0 %5399
      %5401 = vrot.lane.b32.xlu0 %v5338, 96
      %v5402 = vpop.permute.xlu0 %5401
      %5403 = vrot.lane.b32.xlu0 %v5339, 96
      %v5404 = vpop.permute.xlu0 %5403
      %5405 = vrot.lane.b32.xlu0 %v5386, 96
      %v5406 = vpop.permute.xlu0 %5405
      %v5416 = vadd.f32 %v5376, %v5390
      %v5417 = vadd.f32 %v5377, %v5392
      %v5418 = vadd.f32 %v5378, %v5394
      %v5419 = vadd.f32 %v5379, %v5396
      %v5420 = vadd.f32 %v5380, %v5398
      %v5421 = vadd.f32 %v5381, %v5400
      %v5422 = vadd.f32 %v5382, %v5402
      %v5423 = vadd.f32 %v5383, %v5404
      %v5424 = vadd.f32 %v5384, %v5406
      %v5425 = vld [vmem:[#allocation2 + $0x130] sm:$0xff]
      %v5427 = vrot.slane %v5333, 1
      %v5428 = vrot.slane %v5334, 1
      %v5429 = vsel %vm1258, %v5427, %v5428
      %v5430 = vrot.slane %v5335, 1
      %v5431 = vsel %vm1258, %v5428, %v5430
      %v5432 = vrot.slane %v5336, 1
      %v5433 = vsel %vm1258, %v5430, %v5432
      %v5434 = vrot.slane %v5337, 1
      %v5435 = vsel %vm1258, %v5432, %v5434
      %v5436 = vrot.slane %v5338, 1
      %v5437 = vsel %vm1258, %v5434, %v5436
      %v5438 = vrot.slane %v5339, 1
      %v5439 = vsel %vm1258, %v5436, %v5438
      %v5440 = vrot.slane %v5425, 1
      %v5441 = vsel %vm1258, %v5438, %v5440
      %5442 = vrot.lane.b32.xlu0 %v5427, 64
      %v5443 = vpop.permute.xlu0 %5442
      %5444 = vrot.lane.b32.xlu0 %v5429, 64
      %v5445 = vpop.permute.xlu0 %5444
      %5446 = vrot.lane.b32.xlu0 %v5431, 64
      %v5447 = vpop.permute.xlu0 %5446
      %5448 = vrot.lane.b32.xlu0 %v5433, 64
      %v5449 = vpop.permute.xlu0 %5448
      %5450 = vrot.lane.b32.xlu0 %v5435, 64
      %v5451 = vpop.permute.xlu0 %5450
      %5452 = vrot.lane.b32.xlu0 %v5437, 64
      %v5453 = vpop.permute.xlu0 %5452
      %5454 = vrot.lane.b32.xlu0 %v5439, 64
      %v5455 = vpop.permute.xlu0 %5454
      %5456 = vrot.lane.b32.xlu0 %v5441, 64
      %v5457 = vpop.permute.xlu0 %5456
      %5458 = vrot.lane.b32.xlu0 %v5440, 64
      %v5459 = vpop.permute.xlu0 %5458
      %v5469 = vadd.f32 %v5416, %v5443
      %v5470 = vadd.f32 %v5417, %v5445
      %v5471 = vadd.f32 %v5418, %v5447
      %v5472 = vadd.f32 %v5419, %v5449
      %v5473 = vadd.f32 %v5420, %v5451
      %v5474 = vadd.f32 %v5421, %v5453
      %v5475 = vadd.f32 %v5422, %v5455
      %v5476 = vadd.f32 %v5423, %v5457
      %v5477 = vadd.f32 %v5424, %v5459
      %v5478 = vld [vmem:[#allocation2 + $0x88] sm:$0xfe]
      %v5479 = vld [vmem:[#allocation2 + $0x148] sm:$0x1]
      %v5482 = vrot.slane %v5478, 2
      %v5483 = vsel %vm2018, %v5482, %v5353
      %v5484 = vrot.slane %v5425, 2
      %v5485 = vsel %vm2018, %v5363, %v5484
      %v5486 = vrot.slane %v5479, 2
      %v5487 = vsel %vm2018, %v5484, %v5486
      %5488 = vrot.lane.b32.xlu0 %v5482, 32
      %v5489 = vpop.permute.xlu0 %5488
      %5490 = vrot.lane.b32.xlu0 %v5483, 32
      %v5491 = vpop.permute.xlu0 %5490
      %5492 = vrot.lane.b32.xlu0 %v5356, 32
      %v5493 = vpop.permute.xlu0 %5492
      %5494 = vrot.lane.b32.xlu0 %v5358, 32
      %v5495 = vpop.permute.xlu0 %5494
      %5496 = vrot.lane.b32.xlu0 %v5360, 32
      %v5497 = vpop.permute.xlu0 %5496
      %5498 = vrot.lane.b32.xlu0 %v5362, 32
      %v5499 = vpop.permute.xlu0 %5498
      %5500 = vrot.lane.b32.xlu0 %v5364, 32
      %v5501 = vpop.permute.xlu0 %5500
      %5502 = vrot.lane.b32.xlu0 %v5485, 32
      %v5503 = vpop.permute.xlu0 %5502
      %5504 = vrot.lane.b32.xlu0 %v5487, 32
      %v5505 = vpop.permute.xlu0 %5504
      %v5515 = vadd.f32 %v5469, %v5489
      %v5516 = vadd.f32 %v5470, %v5491
      %v5517 = vadd.f32 %v5471, %v5493
      %v5518 = vadd.f32 %v5472, %v5495
      %v5519 = vadd.f32 %v5473, %v5497
      %v5520 = vadd.f32 %v5474, %v5499
      %v5521 = vadd.f32 %v5475, %v5501
      %v5522 = vadd.f32 %v5476, %v5503
      %v5523 = vadd.f32 %v5477, %v5505
      %v5524 = vmax.f32 %v5515, 0.0
      %v5525 = vmax.f32 %v5516, 0.0
      %v5526 = vmax.f32 %v5517, 0.0
      %v5527 = vmax.f32 %v5518, 0.0
      %v5528 = vmax.f32 %v5519, 0.0
      %v5529 = vmax.f32 %v5520, 0.0
      %v5530 = vmax.f32 %v5521, 0.0
      %v5531 = vmax.f32 %v5522, 0.0
      %v5532 = vmax.f32 %v5523, 0.0
      %v5533 = vld [vmem:[%s23] sm:$0xff]
      %v5534 = vld [vmem:[%s23 + $0x8] sm:$0xff]
      %v5535 = vld [vmem:[%s23 + $0x10] sm:$0xff]
      %v5536 = vld [vmem:[%s23 + $0x18] sm:$0xff]
      %v5537 = vld [vmem:[%s23 + $0x20] sm:$0xff]
      %v5538 = vld [vmem:[%s23 + $0x28] sm:$0xff]
      %v5539 = vld [vmem:[%s23 + $0x30] sm:$0xff]
      %v5540 = vld [vmem:[%s23 + $0x38] sm:$0xff]
      %v5541 = vld [vmem:[%s23 + $0x40] sm:$0xff]
      %v5542 = vld [vmem:[%s23 + $0x48] sm:$0xff]
      %v5543 = vld [vmem:[%s23 + $0x50] sm:$0xff]
      %v5544 = vld [vmem:[%s23 + $0x58] sm:$0xff]
      %v5545 = vld [vmem:[%s23 + $0x60] sm:$0xff]
      %v5546 = vld [vmem:[%s23 + $0x68] sm:$0xff]
      %v5547 = vld [vmem:[%s23 + $0x70] sm:$0xff]
      %v5548 = vld [vmem:[%s23 + $0x78] sm:$0xff]
      %v5549 = vld [vmem:[%s23 + $0x80] sm:$0xff]
      %v5550 = vld [vmem:[%s23 + $0x88] sm:$0xff]
      %v5551 = vld [vmem:[%s23 + $0x90] sm:$0xff]
      %v5552 = vld [vmem:[%s23 + $0x98] sm:$0xff]
      %v5553 = vld [vmem:[%s23 + $0xa0] sm:$0xff]
      %v5554 = vld [vmem:[%s23 + $0xa8] sm:$0xff]
      %v5555 = vld [vmem:[%s23 + $0xb0] sm:$0xff]
      %v5556 = vld [vmem:[%s23 + $0xb8] sm:$0xff]
      %v5557 = vld [vmem:[%s23 + $0xc0] sm:$0xff]
      %v5558 = vld [vmem:[%s23 + $0xc8] sm:$0xff]
      %v5559 = vld [vmem:[%s23 + $0xd0] sm:$0xff]
      %v5560 = vld [vmem:[%s23 + $0xd8] sm:$0xff]
      %v5561 = vld [vmem:[%s23 + $0xe0] sm:$0xff]
      %v5562 = vld [vmem:[%s23 + $0xe8] sm:$0xff]
      %v5563 = vld [vmem:[%s23 + $0xf0] sm:$0xff]
      %v5564 = vld [vmem:[%s23 + $0xf8] sm:$0xff]
      %v5574 = vrot.slane %v5524, 7
      %v5575 = vrot.slane %v5525, 7
      %v5576 = vsel %vm2508, %v5574, %v5575
      %v5577 = vrot.slane %v5526, 7
      %v5578 = vsel %vm2508, %v5575, %v5577
      %v5579 = vrot.slane %v5527, 7
      %v5580 = vsel %vm2508, %v5577, %v5579
      %v5581 = vrot.slane %v5528, 7
      %v5582 = vsel %vm2508, %v5579, %v5581
      %v5583 = vrot.slane %v5529, 7
      %v5584 = vsel %vm2508, %v5581, %v5583
      %v5585 = vrot.slane %v5530, 7
      %v5586 = vsel %vm2508, %v5583, %v5585
      %v5587 = vrot.slane %v5531, 7
      %v5588 = vsel %vm2508, %v5585, %v5587
      %v5589 = vrot.slane %v5532, 7
      %v5590 = vsel %vm2508, %v5587, %v5589
      %v5600 = vsel %vm2689, %v5533, 0
      %v5603 = vsel %vm2689, %v5534, 0
      %v5606 = vsel %vm2689, %v5535, 0
      %v5609 = vsel %vm2689, %v5536, 0
      %v5612 = vsel %vm2689, %v5537, 0
      %v5615 = vsel %vm2689, %v5538, 0
      %v5618 = vsel %vm2689, %v5539, 0
      %v5621 = vsel %vm2689, %v5540, 0
      %v5624 = vsel %vm2689, %v5541, 0
      %v5627 = vsel %vm2689, %v5542, 0
      %v5630 = vsel %vm2689, %v5543, 0
      %v5633 = vsel %vm2689, %v5544, 0
      %v5636 = vsel %vm2689, %v5545, 0
      %v5639 = vsel %vm2689, %v5546, 0
      %v5642 = vsel %vm2689, %v5547, 0
      %v5645 = vsel %vm2689, %v5548, 0
      %v5648 = vsel %vm2689, %v5549, 0
      %v5651 = vsel %vm2689, %v5550, 0
      %v5654 = vsel %vm2689, %v5551, 0
      %v5657 = vsel %vm2689, %v5552, 0
      %v5660 = vsel %vm2689, %v5553, 0
      %v5663 = vsel %vm2689, %v5554, 0
      %v5666 = vsel %vm2689, %v5555, 0
      %v5669 = vsel %vm2689, %v5556, 0
      %v5672 = vsel %vm2689, %v5557, 0
      %v5675 = vsel %vm2689, %v5558, 0
      %v5678 = vsel %vm2689, %v5559, 0
      %v5681 = vsel %vm2689, %v5560, 0
      %v5684 = vsel %vm2689, %v5561, 0
      %v5687 = vsel %vm2689, %v5562, 0
      %v5690 = vsel %vm2689, %v5563, 0
      %v5693 = vsel %vm2689, %v5564, 0
      %5695 = vmatprep.subr.mxu0 0.0
      %5696 = vmatpush1.msra.mxu0 0.0
      %5697 = vmatprep.subr.mxu0 0.0
      %5698 = vmatpush1.msra.mxu0 0.0
      %5699 = vmatprep.subr.mxu0 0.0
      %5700 = vmatpush1.msra.mxu0 0.0
      %5701 = vmatprep.subr.mxu0 0.0
      %5702 = vmatpush1.msra.mxu0 0.0
      %5703 = vmatprep.subr.mxu0 0.0
      %5704 = vmatpush1.msra.mxu0 0.0
      %5705 = vmatprep.subr.mxu0 0.0
      %5706 = vmatpush1.msra.mxu0 0.0
      %5707 = vmatprep.subr.mxu0 0.0
      %5708 = vmatpush1.msra.mxu0 0.0
      %5709 = vmatprep.subr.mxu0 0.0
      %5710 = vmatpush1.msra.mxu0 0.0
      %5711 = vmatprep.subr.mxu0 0.0
      %5712 = vmatpush1.msra.mxu0 %v5590
      %5713 = vmatprep.subr.mxu0 0.0
      %5714 = vmatpush1.msra.mxu0 %v5588
      %5715 = vmatprep.subr.mxu0 0.0
      %5716 = vmatpush1.msra.mxu0 %v5586
      %5717 = vmatprep.subr.mxu0 0.0
      %5718 = vmatpush1.msra.mxu0 %v5584
      %5719 = vmatprep.subr.mxu0 0.0
      %5720 = vmatpush1.msra.mxu0 %v5582
      %5721 = vmatprep.subr.mxu0 0.0
      %5722 = vmatpush1.msra.mxu0 %v5580
      %5723 = vmatprep.subr.mxu0 0.0
      %5724 = vmatpush1.msra.mxu0 %v5578
      %5725 = vmatprep.subr.mxu0 0.0
      %5726 = vmatpush1.msra.mxu0 %v5576
      %5727 = vmatprep.subr.mxu0 0.0
      %5728 = vmatpush2.msra.mxu0 0.0
      %5729 = vmatprep.subr.mxu0 0.0
      %5730 = vmatpush2.msra.mxu0 0.0
      %5731 = vmatprep.subr.mxu0 0.0
      %5732 = vmatpush2.msra.mxu0 0.0
      %5733 = vmatprep.subr.mxu0 0.0
      %5734 = vmatpush2.msra.mxu0 0.0
      %5735 = vmatprep.subr.mxu0 0.0
      %5736 = vmatpush2.msra.mxu0 0.0
      %5737 = vmatprep.subr.mxu0 0.0
      %5738 = vmatpush2.msra.mxu0 0.0
      %5739 = vmatprep.subr.mxu0 0.0
      %5740 = vmatpush2.msra.mxu0 0.0
      %5741 = vmatprep.subr.mxu0 0.0
      %5742 = vmatpush2.msra.mxu0 0.0
      %5743 = vmatprep.subr.mxu0 0.0
      %5744 = vmatpush2.msra.mxu0 0.0
      %5745 = vmatprep.subr.mxu0 0.0
      %5746 = vmatpush2.msra.mxu0 0.0
      %5747 = vmatprep.subr.mxu0 0.0
      %5748 = vmatpush2.msra.mxu0 0.0
      %5749 = vmatprep.subr.mxu0 0.0
      %5750 = vmatpush2.msra.mxu0 0.0
      %5751 = vmatprep.subr.mxu0 0.0
      %5752 = vmatpush2.msra.mxu0 0.0
      %5753 = vmatprep.subr.mxu0 0.0
      %5754 = vmatpush2.msra.mxu0 0.0
      %5755 = vmatprep.subr.mxu0 0.0
      %5756 = vmatpush2.msra.mxu0 0.0
      %5757 = vmatprep.subr.mxu0 0.0
      %5758 = vmatpush2.msra.mxu0 0.0
      %5759 = vmatprep.mubr.f32.mxu0 0.0
      %5760 = vmatmul.mubr.f32.gmra.mxu0 %v5600
      %v5761 = vpop.f32.mrf.mxu0
      %v5762 = vadd.f32 0.0, %v5761
      %v5763 = vpop.f32.mrf.mxu0
      %5764 = vmatprep.mubr.f32.mxu0 0.0
      %5765 = vmatmul.mubr.f32.gmra.mxu0 %v5603
      %v5766 = vpop.f32.mrf.mxu0
      %v5767 = vadd.f32 0.0, %v5766
      %v5768 = vpop.f32.mrf.mxu0
      %5769 = vmatprep.mubr.f32.mxu0 0.0
      %5770 = vmatmul.mubr.f32.gmra.mxu0 %v5606
      %v5771 = vpop.f32.mrf.mxu0
      %v5772 = vadd.f32 0.0, %v5771
      %v5773 = vpop.f32.mrf.mxu0
      %5774 = vmatprep.mubr.f32.mxu0 0.0
      %5775 = vmatmul.mubr.f32.gmra.mxu0 %v5609
      %v5776 = vpop.f32.mrf.mxu0
      %v5777 = vadd.f32 0.0, %v5776
      %v5778 = vpop.f32.mrf.mxu0
      %5779 = vmatprep.mubr.f32.mxu0 0.0
      %5780 = vmatmul.mubr.f32.gmra.mxu0 %v5612
      %v5781 = vpop.f32.mrf.mxu0
      %v5782 = vadd.f32 0.0, %v5781
      %v5783 = vpop.f32.mrf.mxu0
      %5784 = vmatprep.mubr.f32.mxu0 0.0
      %5785 = vmatmul.mubr.f32.gmra.mxu0 %v5615
      %v5786 = vpop.f32.mrf.mxu0
      %v5787 = vadd.f32 0.0, %v5786
      %v5788 = vpop.f32.mrf.mxu0
      %5789 = vmatprep.mubr.f32.mxu0 0.0
      %5790 = vmatmul.mubr.f32.gmra.mxu0 %v5618
      %v5791 = vpop.f32.mrf.mxu0
      %v5792 = vadd.f32 0.0, %v5791
      %v5793 = vpop.f32.mrf.mxu0
      %5794 = vmatprep.mubr.f32.mxu0 0.0
      %5795 = vmatmul.mubr.f32.gmra.mxu0 %v5621
      %v5796 = vpop.f32.mrf.mxu0
      %v5797 = vadd.f32 0.0, %v5796
      %v5798 = vpop.f32.mrf.mxu0
      %5799 = vmatprep.mubr.f32.mxu0 0.0
      %5800 = vmatmul.mubr.f32.gmra.mxu0 %v5624
      %v5801 = vpop.f32.mrf.mxu0
      %v5802 = vadd.f32 0.0, %v5801
      %v5803 = vpop.f32.mrf.mxu0
      %5804 = vmatprep.mubr.f32.mxu0 0.0
      %5805 = vmatmul.mubr.f32.gmra.mxu0 %v5627
      %v5806 = vpop.f32.mrf.mxu0
      %v5807 = vadd.f32 0.0, %v5806
      %v5808 = vpop.f32.mrf.mxu0
      %5809 = vmatprep.mubr.f32.mxu0 0.0
      %5810 = vmatmul.mubr.f32.gmra.mxu0 %v5630
      %v5811 = vpop.f32.mrf.mxu0
      %v5812 = vadd.f32 0.0, %v5811
      %v5813 = vpop.f32.mrf.mxu0
      %5814 = vmatprep.mubr.f32.mxu0 0.0
      %5815 = vmatmul.mubr.f32.gmra.mxu0 %v5633
      %v5816 = vpop.f32.mrf.mxu0
      %v5817 = vadd.f32 0.0, %v5816
      %v5818 = vpop.f32.mrf.mxu0
      %5819 = vmatprep.mubr.f32.mxu0 0.0
      %5820 = vmatmul.mubr.f32.gmra.mxu0 %v5636
      %v5821 = vpop.f32.mrf.mxu0
      %v5822 = vadd.f32 0.0, %v5821
      %v5823 = vpop.f32.mrf.mxu0
      %5824 = vmatprep.mubr.f32.mxu0 0.0
      %5825 = vmatmul.mubr.f32.gmra.mxu0 %v5639
      %v5826 = vpop.f32.mrf.mxu0
      %v5827 = vadd.f32 0.0, %v5826
      %v5828 = vpop.f32.mrf.mxu0
      %5829 = vmatprep.mubr.f32.mxu0 0.0
      %5830 = vmatmul.mubr.f32.gmra.mxu0 %v5642
      %v5831 = vpop.f32.mrf.mxu0
      %v5832 = vadd.f32 0.0, %v5831
      %v5833 = vpop.f32.mrf.mxu0
      %5834 = vmatprep.mubr.f32.mxu0 0.0
      %5835 = vmatmul.mubr.f32.gmra.mxu0 %v5645
      %v5836 = vpop.f32.mrf.mxu0
      %v5837 = vadd.f32 0.0, %v5836
      %v5838 = vpop.f32.mrf.mxu0
      %5839 = vmatprep.mubr.f32.mxu0 0.0
      %5840 = vmatmul.mubr.f32.gmra.mxu0 %v5648
      %v5841 = vpop.f32.mrf.mxu0
      %v5842 = vadd.f32 0.0, %v5841
      %v5843 = vpop.f32.mrf.mxu0
      %5844 = vmatprep.mubr.f32.mxu0 0.0
      %5845 = vmatmul.mubr.f32.gmra.mxu0 %v5651
      %v5846 = vpop.f32.mrf.mxu0
      %v5847 = vadd.f32 0.0, %v5846
      %v5848 = vpop.f32.mrf.mxu0
      %5849 = vmatprep.mubr.f32.mxu0 0.0
      %5850 = vmatmul.mubr.f32.gmra.mxu0 %v5654
      %v5851 = vpop.f32.mrf.mxu0
      %v5852 = vadd.f32 0.0, %v5851
      %v5853 = vpop.f32.mrf.mxu0
      %5854 = vmatprep.mubr.f32.mxu0 0.0
      %5855 = vmatmul.mubr.f32.gmra.mxu0 %v5657
      %v5856 = vpop.f32.mrf.mxu0
      %v5857 = vadd.f32 0.0, %v5856
      %v5858 = vpop.f32.mrf.mxu0
      %5859 = vmatprep.mubr.f32.mxu0 0.0
      %5860 = vmatmul.mubr.f32.gmra.mxu0 %v5660
      %v5861 = vpop.f32.mrf.mxu0
      %v5862 = vadd.f32 0.0, %v5861
      %v5863 = vpop.f32.mrf.mxu0
      %5864 = vmatprep.mubr.f32.mxu0 0.0
      %5865 = vmatmul.mubr.f32.gmra.mxu0 %v5663
      %v5866 = vpop.f32.mrf.mxu0
      %v5867 = vadd.f32 0.0, %v5866
      %v5868 = vpop.f32.mrf.mxu0
      %5869 = vmatprep.mubr.f32.mxu0 0.0
      %5870 = vmatmul.mubr.f32.gmra.mxu0 %v5666
      %v5871 = vpop.f32.mrf.mxu0
      %v5872 = vadd.f32 0.0, %v5871
      %v5873 = vpop.f32.mrf.mxu0
      %5874 = vmatprep.mubr.f32.mxu0 0.0
      %5875 = vmatmul.mubr.f32.gmra.mxu0 %v5669
      %v5876 = vpop.f32.mrf.mxu0
      %v5877 = vadd.f32 0.0, %v5876
      %v5878 = vpop.f32.mrf.mxu0
      %5879 = vmatprep.mubr.f32.mxu0 0.0
      %5880 = vmatmul.mubr.f32.gmra.mxu0 %v5672
      %v5881 = vpop.f32.mrf.mxu0
      %v5882 = vadd.f32 0.0, %v5881
      %v5883 = vpop.f32.mrf.mxu0
      %5884 = vmatprep.mubr.f32.mxu0 0.0
      %5885 = vmatmul.mubr.f32.gmra.mxu0 %v5675
      %v5886 = vpop.f32.mrf.mxu0
      %v5887 = vadd.f32 0.0, %v5886
      %v5888 = vpop.f32.mrf.mxu0
      %5889 = vmatprep.mubr.f32.mxu0 0.0
      %5890 = vmatmul.mubr.f32.gmra.mxu0 %v5678
      %v5891 = vpop.f32.mrf.mxu0
      %v5892 = vadd.f32 0.0, %v5891
      %v5893 = vpop.f32.mrf.mxu0
      %5894 = vmatprep.mubr.f32.mxu0 0.0
      %5895 = vmatmul.mubr.f32.gmra.mxu0 %v5681
      %v5896 = vpop.f32.mrf.mxu0
      %v5897 = vadd.f32 0.0, %v5896
      %v5898 = vpop.f32.mrf.mxu0
      %5899 = vmatprep.mubr.f32.mxu0 0.0
      %5900 = vmatmul.mubr.f32.gmra.mxu0 %v5684
      %v5901 = vpop.f32.mrf.mxu0
      %v5902 = vadd.f32 0.0, %v5901
      %v5903 = vpop.f32.mrf.mxu0
      %5904 = vmatprep.mubr.f32.mxu0 0.0
      %5905 = vmatmul.mubr.f32.gmra.mxu0 %v5687
      %v5906 = vpop.f32.mrf.mxu0
      %v5907 = vadd.f32 0.0, %v5906
      %v5908 = vpop.f32.mrf.mxu0
      %5909 = vmatprep.mubr.f32.mxu0 0.0
      %5910 = vmatmul.mubr.f32.gmra.mxu0 %v5690
      %v5911 = vpop.f32.mrf.mxu0
      %v5912 = vadd.f32 0.0, %v5911
      %v5913 = vpop.f32.mrf.mxu0
      %5914 = vmatprep.mubr.f32.mxu0 0.0
      %5915 = vmatmul.mubr.f32.gmra.mxu0 %v5693
      %v5916 = vpop.f32.mrf.mxu0
      %v5917 = vadd.f32 0.0, %v5916
      %v5918 = vpop.f32.mrf.mxu0
      %5919 = vdwg.mxu0
      %v5920 = vld [vmem:[%s15] sm:$0xff]
      %v5921 = vld [vmem:[%s15 + $0x8] sm:$0xff]
      %v5922 = vld [vmem:[%s15 + $0x10] sm:$0xff]
      %v5923 = vld [vmem:[%s15 + $0x18] sm:$0xff]
      %v5925 = vsel %vm1159, %v5762, 0
      %v5928 = vsel %vm1159, %v5767, 0
      %v5931 = vsel %vm1159, %v5772, 0
      %v5934 = vsel %vm1159, %v5777, 0
      %v5937 = vsel %vm1159, %v5782, 0
      %v5940 = vsel %vm1159, %v5787, 0
      %v5943 = vsel %vm1159, %v5792, 0
      %v5946 = vsel %vm1159, %v5797, 0
      %v5949 = vsel %vm1159, %v5802, 0
      %v5952 = vsel %vm1159, %v5807, 0
      %v5955 = vsel %vm1159, %v5812, 0
      %v5958 = vsel %vm1159, %v5817, 0
      %v5961 = vsel %vm1159, %v5822, 0
      %v5964 = vsel %vm1159, %v5827, 0
      %v5967 = vsel %vm1159, %v5832, 0
      %v5970 = vsel %vm1159, %v5837, 0
      %v5973 = vsel %vm1159, %v5842, 0
      %v5976 = vsel %vm1159, %v5847, 0
      %v5979 = vsel %vm1159, %v5852, 0
      %v5982 = vsel %vm1159, %v5857, 0
      %v5985 = vsel %vm1159, %v5862, 0
      %v5988 = vsel %vm1159, %v5867, 0
      %v5991 = vsel %vm1159, %v5872, 0
      %v5994 = vsel %vm1159, %v5877, 0
      %v5997 = vsel %vm1159, %v5882, 0
      %v6000 = vsel %vm1159, %v5887, 0
      %v6003 = vsel %vm1159, %v5892, 0
      %v6006 = vsel %vm1159, %v5897, 0
      %v6009 = vsel %vm1159, %v5902, 0
      %v6012 = vsel %vm1159, %v5907, 0
      %v6015 = vsel %vm1159, %v5912, 0
      %v6018 = vsel %vm1159, %v5917, 0
      %6020 = vmatprep.subr.mxu0 0.0
      %6021 = vmatpush1.msra.mxu0 0.0
      %6022 = vmatprep.subr.mxu0 0.0
      %6023 = vmatpush1.msra.mxu0 0.0
      %6024 = vmatprep.subr.mxu0 0.0
      %6025 = vmatpush1.msra.mxu0 0.0
      %6026 = vmatprep.subr.mxu0 0.0
      %6027 = vmatpush1.msra.mxu0 0.0
      %6028 = vmatprep.subr.mxu0 0.0
      %6029 = vmatpush1.msra.mxu0 0.0
      %6030 = vmatprep.subr.mxu0 0.0
      %6031 = vmatpush1.msra.mxu0 0.0
      %6032 = vmatprep.subr.mxu0 0.0
      %6033 = vmatpush1.msra.mxu0 0.0
      %6034 = vmatprep.subr.mxu0 0.0
      %6035 = vmatpush1.msra.mxu0 0.0
      %6036 = vmatprep.subr.mxu0 0.0
      %6037 = vmatpush1.msra.mxu0 0.0
      %6038 = vmatprep.subr.mxu0 0.0
      %6039 = vmatpush1.msra.mxu0 0.0
      %6040 = vmatprep.subr.mxu0 0.0
      %6041 = vmatpush1.msra.mxu0 0.0
      %6042 = vmatprep.subr.mxu0 0.0
      %6043 = vmatpush1.msra.mxu0 0.0
      %6044 = vmatprep.subr.mxu0 0.0
      %6045 = vmatpush1.msra.mxu0 %v5923
      %6046 = vmatprep.subr.mxu0 0.0
      %6047 = vmatpush1.msra.mxu0 %v5922
      %6048 = vmatprep.subr.mxu0 0.0
      %6049 = vmatpush1.msra.mxu0 %v5921
      %6050 = vmatprep.subr.mxu0 0.0
      %6051 = vmatpush1.msra.mxu0 %v5920
      %6052 = vmatprep.subr.mxu0 0.0
      %6053 = vmatpush2.msra.mxu0 0.0
      %6054 = vmatprep.subr.mxu0 0.0
      %6055 = vmatpush2.msra.mxu0 0.0
      %6056 = vmatprep.subr.mxu0 0.0
      %6057 = vmatpush2.msra.mxu0 0.0
      %6058 = vmatprep.subr.mxu0 0.0
      %6059 = vmatpush2.msra.mxu0 0.0
      %6060 = vmatprep.subr.mxu0 0.0
      %6061 = vmatpush2.msra.mxu0 0.0
      %6062 = vmatprep.subr.mxu0 0.0
      %6063 = vmatpush2.msra.mxu0 0.0
      %6064 = vmatprep.subr.mxu0 0.0
      %6065 = vmatpush2.msra.mxu0 0.0
      %6066 = vmatprep.subr.mxu0 0.0
      %6067 = vmatpush2.msra.mxu0 0.0
      %6068 = vmatprep.subr.mxu0 0.0
      %6069 = vmatpush2.msra.mxu0 0.0
      %6070 = vmatprep.subr.mxu0 0.0
      %6071 = vmatpush2.msra.mxu0 0.0
      %6072 = vmatprep.subr.mxu0 0.0
      %6073 = vmatpush2.msra.mxu0 0.0
      %6074 = vmatprep.subr.mxu0 0.0
      %6075 = vmatpush2.msra.mxu0 0.0
      %6076 = vmatprep.subr.mxu0 0.0
      %6077 = vmatpush2.msra.mxu0 0.0
      %6078 = vmatprep.subr.mxu0 0.0
      %6079 = vmatpush2.msra.mxu0 0.0
      %6080 = vmatprep.subr.mxu0 0.0
      %6081 = vmatpush2.msra.mxu0 0.0
      %6082 = vmatprep.subr.mxu0 0.0
      %6083 = vmatpush2.msra.mxu0 0.0
      %6084 = vmatprep.mubr.f32.mxu0 0.0
      %6085 = vmatmul.mubr.f32.gmra.mxu0 %v5925
      %v6086 = vpop.f32.mrf.mxu0
      %v6087 = vadd.f32 0.0, %v6086
      %v6088 = vpop.f32.mrf.mxu0
      %6089 = vmatprep.mubr.f32.mxu0 0.0
      %6090 = vmatmul.mubr.f32.gmra.mxu0 %v5928
      %v6091 = vpop.f32.mrf.mxu0
      %v6092 = vadd.f32 0.0, %v6091
      %v6093 = vpop.f32.mrf.mxu0
      %6094 = vmatprep.mubr.f32.mxu0 0.0
      %6095 = vmatmul.mubr.f32.gmra.mxu0 %v5931
      %v6096 = vpop.f32.mrf.mxu0
      %v6097 = vadd.f32 0.0, %v6096
      %v6098 = vpop.f32.mrf.mxu0
      %6099 = vmatprep.mubr.f32.mxu0 0.0
      %6100 = vmatmul.mubr.f32.gmra.mxu0 %v5934
      %v6101 = vpop.f32.mrf.mxu0
      %v6102 = vadd.f32 0.0, %v6101
      %v6103 = vpop.f32.mrf.mxu0
      %6104 = vmatprep.mubr.f32.mxu0 0.0
      %6105 = vmatmul.mubr.f32.gmra.mxu0 %v5937
      %v6106 = vpop.f32.mrf.mxu0
      %v6107 = vadd.f32 0.0, %v6106
      %v6108 = vpop.f32.mrf.mxu0
      %6109 = vmatprep.mubr.f32.mxu0 0.0
      %6110 = vmatmul.mubr.f32.gmra.mxu0 %v5940
      %v6111 = vpop.f32.mrf.mxu0
      %v6112 = vadd.f32 0.0, %v6111
      %v6113 = vpop.f32.mrf.mxu0
      %6114 = vmatprep.mubr.f32.mxu0 0.0
      %6115 = vmatmul.mubr.f32.gmra.mxu0 %v5943
      %v6116 = vpop.f32.mrf.mxu0
      %v6117 = vadd.f32 0.0, %v6116
      %v6118 = vpop.f32.mrf.mxu0
      %6119 = vmatprep.mubr.f32.mxu0 0.0
      %6120 = vmatmul.mubr.f32.gmra.mxu0 %v5946
      %v6121 = vpop.f32.mrf.mxu0
      %v6122 = vadd.f32 0.0, %v6121
      %v6123 = vpop.f32.mrf.mxu0
      %6124 = vmatprep.mubr.f32.mxu0 0.0
      %6125 = vmatmul.mubr.f32.gmra.mxu0 %v5949
      %v6126 = vpop.f32.mrf.mxu0
      %v6127 = vadd.f32 0.0, %v6126
      %v6128 = vpop.f32.mrf.mxu0
      %6129 = vmatprep.mubr.f32.mxu0 0.0
      %6130 = vmatmul.mubr.f32.gmra.mxu0 %v5952
      %v6131 = vpop.f32.mrf.mxu0
      %v6132 = vadd.f32 0.0, %v6131
      %v6133 = vpop.f32.mrf.mxu0
      %6134 = vmatprep.mubr.f32.mxu0 0.0
      %6135 = vmatmul.mubr.f32.gmra.mxu0 %v5955
      %v6136 = vpop.f32.mrf.mxu0
      %v6137 = vadd.f32 0.0, %v6136
      %v6138 = vpop.f32.mrf.mxu0
      %6139 = vmatprep.mubr.f32.mxu0 0.0
      %6140 = vmatmul.mubr.f32.gmra.mxu0 %v5958
      %v6141 = vpop.f32.mrf.mxu0
      %v6142 = vadd.f32 0.0, %v6141
      %v6143 = vpop.f32.mrf.mxu0
      %6144 = vmatprep.mubr.f32.mxu0 0.0
      %6145 = vmatmul.mubr.f32.gmra.mxu0 %v5961
      %v6146 = vpop.f32.mrf.mxu0
      %v6147 = vadd.f32 0.0, %v6146
      %v6148 = vpop.f32.mrf.mxu0
      %6149 = vmatprep.mubr.f32.mxu0 0.0
      %6150 = vmatmul.mubr.f32.gmra.mxu0 %v5964
      %v6151 = vpop.f32.mrf.mxu0
      %v6152 = vadd.f32 0.0, %v6151
      %v6153 = vpop.f32.mrf.mxu0
      %6154 = vmatprep.mubr.f32.mxu0 0.0
      %6155 = vmatmul.mubr.f32.gmra.mxu0 %v5967
      %v6156 = vpop.f32.mrf.mxu0
      %v6157 = vadd.f32 0.0, %v6156
      %v6158 = vpop.f32.mrf.mxu0
      %6159 = vmatprep.mubr.f32.mxu0 0.0
      %6160 = vmatmul.mubr.f32.gmra.mxu0 %v5970
      %v6161 = vpop.f32.mrf.mxu0
      %v6162 = vadd.f32 0.0, %v6161
      %v6163 = vpop.f32.mrf.mxu0
      %6164 = vmatprep.mubr.f32.mxu0 0.0
      %6165 = vmatmul.mubr.f32.gmra.mxu0 %v5973
      %v6166 = vpop.f32.mrf.mxu0
      %v6167 = vadd.f32 0.0, %v6166
      %v6168 = vpop.f32.mrf.mxu0
      %6169 = vmatprep.mubr.f32.mxu0 0.0
      %6170 = vmatmul.mubr.f32.gmra.mxu0 %v5976
      %v6171 = vpop.f32.mrf.mxu0
      %v6172 = vadd.f32 0.0, %v6171
      %v6173 = vpop.f32.mrf.mxu0
      %6174 = vmatprep.mubr.f32.mxu0 0.0
      %6175 = vmatmul.mubr.f32.gmra.mxu0 %v5979
      %v6176 = vpop.f32.mrf.mxu0
      %v6177 = vadd.f32 0.0, %v6176
      %v6178 = vpop.f32.mrf.mxu0
      %6179 = vmatprep.mubr.f32.mxu0 0.0
      %6180 = vmatmul.mubr.f32.gmra.mxu0 %v5982
      %v6181 = vpop.f32.mrf.mxu0
      %v6182 = vadd.f32 0.0, %v6181
      %v6183 = vpop.f32.mrf.mxu0
      %6184 = vmatprep.mubr.f32.mxu0 0.0
      %6185 = vmatmul.mubr.f32.gmra.mxu0 %v5985
      %v6186 = vpop.f32.mrf.mxu0
      %v6187 = vadd.f32 0.0, %v6186
      %v6188 = vpop.f32.mrf.mxu0
      %6189 = vmatprep.mubr.f32.mxu0 0.0
      %6190 = vmatmul.mubr.f32.gmra.mxu0 %v5988
      %v6191 = vpop.f32.mrf.mxu0
      %v6192 = vadd.f32 0.0, %v6191
      %v6193 = vpop.f32.mrf.mxu0
      %6194 = vmatprep.mubr.f32.mxu0 0.0
      %6195 = vmatmul.mubr.f32.gmra.mxu0 %v5991
      %v6196 = vpop.f32.mrf.mxu0
      %v6197 = vadd.f32 0.0, %v6196
      %v6198 = vpop.f32.mrf.mxu0
      %6199 = vmatprep.mubr.f32.mxu0 0.0
      %6200 = vmatmul.mubr.f32.gmra.mxu0 %v5994
      %v6201 = vpop.f32.mrf.mxu0
      %v6202 = vadd.f32 0.0, %v6201
      %v6203 = vpop.f32.mrf.mxu0
      %6204 = vmatprep.mubr.f32.mxu0 0.0
      %6205 = vmatmul.mubr.f32.gmra.mxu0 %v5997
      %v6206 = vpop.f32.mrf.mxu0
      %v6207 = vadd.f32 0.0, %v6206
      %v6208 = vpop.f32.mrf.mxu0
      %6209 = vmatprep.mubr.f32.mxu0 0.0
      %6210 = vmatmul.mubr.f32.gmra.mxu0 %v6000
      %v6211 = vpop.f32.mrf.mxu0
      %v6212 = vadd.f32 0.0, %v6211
      %v6213 = vpop.f32.mrf.mxu0
      %6214 = vmatprep.mubr.f32.mxu0 0.0
      %6215 = vmatmul.mubr.f32.gmra.mxu0 %v6003
      %v6216 = vpop.f32.mrf.mxu0
      %v6217 = vadd.f32 0.0, %v6216
      %v6218 = vpop.f32.mrf.mxu0
      %6219 = vmatprep.mubr.f32.mxu0 0.0
      %6220 = vmatmul.mubr.f32.gmra.mxu0 %v6006
      %v6221 = vpop.f32.mrf.mxu0
      %v6222 = vadd.f32 0.0, %v6221
      %v6223 = vpop.f32.mrf.mxu0
      %6224 = vmatprep.mubr.f32.mxu0 0.0
      %6225 = vmatmul.mubr.f32.gmra.mxu0 %v6009
      %v6226 = vpop.f32.mrf.mxu0
      %v6227 = vadd.f32 0.0, %v6226
      %v6228 = vpop.f32.mrf.mxu0
      %6229 = vmatprep.mubr.f32.mxu0 0.0
      %6230 = vmatmul.mubr.f32.gmra.mxu0 %v6012
      %v6231 = vpop.f32.mrf.mxu0
      %v6232 = vadd.f32 0.0, %v6231
      %v6233 = vpop.f32.mrf.mxu0
      %6234 = vmatprep.mubr.f32.mxu0 0.0
      %6235 = vmatmul.mubr.f32.gmra.mxu0 %v6015
      %v6236 = vpop.f32.mrf.mxu0
      %v6237 = vadd.f32 0.0, %v6236
      %v6238 = vpop.f32.mrf.mxu0
      %6239 = vmatprep.mubr.f32.mxu0 0.0
      %6240 = vmatmul.mubr.f32.gmra.mxu0 %v6018
      %v6241 = vpop.f32.mrf.mxu0
      %v6242 = vadd.f32 0.0, %v6241
      %v6243 = vpop.f32.mrf.mxu0
      %6244 = vdwg.mxu0
      %v6245 = vld [vmem:[%s19] sm:$0xff]
      %v6246 = vld [vmem:[%s19 + $0x8] sm:$0xff]
      %v6247 = vld [vmem:[%s19 + $0x10] sm:$0xff]
      %v6248 = vld [vmem:[%s19 + $0x18] sm:$0xff]
      %v6249 = vld [vmem:[%s19 + $0x20] sm:$0xff]
      %v6250 = vld [vmem:[%s19 + $0x28] sm:$0xff]
      %v6251 = vld [vmem:[%s19 + $0x30] sm:$0xff]
      %v6252 = vld [vmem:[%s19 + $0x38] sm:$0xff]
      %v6253 = vld [vmem:[%s19 + $0x40] sm:$0xff]
      %v6254 = vld [vmem:[%s19 + $0x48] sm:$0xff]
      %v6255 = vld [vmem:[%s19 + $0x50] sm:$0xff]
      %v6256 = vld [vmem:[%s19 + $0x58] sm:$0xff]
      %v6257 = vld [vmem:[%s19 + $0x60] sm:$0xff]
      %v6258 = vld [vmem:[%s19 + $0x68] sm:$0xff]
      %v6259 = vld [vmem:[%s19 + $0x70] sm:$0xff]
      %v6260 = vld [vmem:[%s19 + $0x78] sm:$0xff]
      %v6261 = vld [vmem:[%s19 + $0x80] sm:$0xff]
      %v6262 = vld [vmem:[%s19 + $0x88] sm:$0xff]
      %v6263 = vld [vmem:[%s19 + $0x90] sm:$0xff]
      %v6264 = vld [vmem:[%s19 + $0x98] sm:$0xff]
      %v6265 = vld [vmem:[%s19 + $0xa0] sm:$0xff]
      %v6266 = vld [vmem:[%s19 + $0xa8] sm:$0xff]
      %v6267 = vld [vmem:[%s19 + $0xb0] sm:$0xff]
      %v6268 = vld [vmem:[%s19 + $0xb8] sm:$0xff]
      %v6269 = vld [vmem:[%s19 + $0xc0] sm:$0xff]
      %v6270 = vld [vmem:[%s19 + $0xc8] sm:$0xff]
      %v6271 = vld [vmem:[%s19 + $0xd0] sm:$0xff]
      %v6272 = vld [vmem:[%s19 + $0xd8] sm:$0xff]
      %v6273 = vld [vmem:[%s19 + $0xe0] sm:$0xff]
      %v6274 = vld [vmem:[%s19 + $0xe8] sm:$0xff]
      %v6275 = vld [vmem:[%s19 + $0xf0] sm:$0xff]
      %v6276 = vld [vmem:[%s19 + $0xf8] sm:$0xff]
      %v6277 = vmul.f32 %v6087, %v6245
      %v6278 = vmul.f32 %v6092, %v6246
      %v6279 = vmul.f32 %v6097, %v6247
      %v6280 = vmul.f32 %v6102, %v6248
      %v6281 = vmul.f32 %v6107, %v6249
      %v6282 = vmul.f32 %v6112, %v6250
      %v6283 = vmul.f32 %v6117, %v6251
      %v6284 = vmul.f32 %v6122, %v6252
      %v6285 = vmul.f32 %v6127, %v6253
      %v6286 = vmul.f32 %v6132, %v6254
      %v6287 = vmul.f32 %v6137, %v6255
      %v6288 = vmul.f32 %v6142, %v6256
      %v6289 = vmul.f32 %v6147, %v6257
      %v6290 = vmul.f32 %v6152, %v6258
      %v6291 = vmul.f32 %v6157, %v6259
      %v6292 = vmul.f32 %v6162, %v6260
      %v6293 = vmul.f32 %v6167, %v6261
      %v6294 = vmul.f32 %v6172, %v6262
      %v6295 = vmul.f32 %v6177, %v6263
      %v6296 = vmul.f32 %v6182, %v6264
      %v6297 = vmul.f32 %v6187, %v6265
      %v6298 = vmul.f32 %v6192, %v6266
      %v6299 = vmul.f32 %v6197, %v6267
      %v6300 = vmul.f32 %v6202, %v6268
      %v6301 = vmul.f32 %v6207, %v6269
      %v6302 = vmul.f32 %v6212, %v6270
      %v6303 = vmul.f32 %v6217, %v6271
      %v6304 = vmul.f32 %v6222, %v6272
      %v6305 = vmul.f32 %v6227, %v6273
      %v6306 = vmul.f32 %v6232, %v6274
      %v6307 = vmul.f32 %v6237, %v6275
      %v6308 = vmul.f32 %v6242, %v6276
      %vm6309 = vcmask 97280
      %6310 = vst.msk [vmem:[#allocation2 + $0x48] sm:$0xff] %vm6309, %v6277
      %6311 = vst.msk [vmem:[#allocation2 + $0x60] sm:$0xff] %vm6309, %v6278
      %6312 = vst.msk [vmem:[#allocation2 + $0x78] sm:$0xff] %vm6309, %v6279
      %6313 = vst.msk [vmem:[#allocation2 + $0x90] sm:$0xff] %vm6309, %v6280
      %6314 = vst.msk [vmem:[#allocation2 + $0xa8] sm:$0xff] %vm6309, %v6281
      %6315 = vst.msk [vmem:[#allocation2 + $0xc0] sm:$0xff] %vm6309, %v6282
      %6316 = vst.msk [vmem:[#allocation2 + $0xd8] sm:$0xff] %vm6309, %v6283
      %6317 = vst.msk [vmem:[#allocation2 + $0xf0] sm:$0xff] %vm6309, %v6284
      %6318 = vst.msk [vmem:[#allocation2 + $0x108] sm:$0xff] %vm6309, %v6285
      %6319 = vst.msk [vmem:[#allocation2 + $0x120] sm:$0xff] %vm6309, %v6286
      %6320 = vst.msk [vmem:[#allocation2 + $0x138] sm:$0xff] %vm6309, %v6287
      %6321 = vst.msk [vmem:[#allocation2 + $0x150] sm:$0xff] %vm6309, %v6288
      %6322 = vst.msk [vmem:[#allocation2 + $0x168] sm:$0xff] %vm6309, %v6289
      %6323 = vst.msk [vmem:[#allocation2 + $0x180] sm:$0xff] %vm6309, %v6290
      %6324 = vst.msk [vmem:[#allocation2 + $0x198] sm:$0xff] %vm6309, %v6291
      %6325 = vst.msk [vmem:[#allocation2 + $0x1b0] sm:$0xff] %vm6309, %v6292
      %6326 = vst.msk [vmem:[#allocation2 + $0x1c8] sm:$0xff] %vm6309, %v6293
      %6327 = vst.msk [vmem:[#allocation2 + $0x1e0] sm:$0xff] %vm6309, %v6294
      %6328 = vst.msk [vmem:[#allocation2 + $0x1f8] sm:$0xff] %vm6309, %v6295
      %6329 = vst.msk [vmem:[#allocation2 + $0x210] sm:$0xff] %vm6309, %v6296
      %6330 = vst.msk [vmem:[#allocation2 + $0x228] sm:$0xff] %vm6309, %v6297
      %6331 = vst.msk [vmem:[#allocation2 + $0x240] sm:$0xff] %vm6309, %v6298
      %6332 = vst.msk [vmem:[#allocation2 + $0x258] sm:$0xff] %vm6309, %v6299
      %6333 = vst.msk [vmem:[#allocation2 + $0x270] sm:$0xff] %vm6309, %v6300
      %6334 = vst.msk [vmem:[#allocation2 + $0x288] sm:$0xff] %vm6309, %v6301
      %6335 = vst.msk [vmem:[#allocation2 + $0x2a0] sm:$0xff] %vm6309, %v6302
      %6336 = vst.msk [vmem:[#allocation2 + $0x2b8] sm:$0xff] %vm6309, %v6303
      %6337 = vst.msk [vmem:[#allocation2 + $0x2d0] sm:$0xff] %vm6309, %v6304
      %6338 = vst.msk [vmem:[#allocation2 + $0x2e8] sm:$0xff] %vm6309, %v6305
      %6339 = vst.msk [vmem:[#allocation2 + $0x300] sm:$0xff] %vm6309, %v6306
      %6340 = vst.msk [vmem:[#allocation2 + $0x318] sm:$0xff] %vm6309, %v6307
      %6341 = vst.msk [vmem:[#allocation2 + $0x330] sm:$0xff] %vm6309, %v6308
      %6342 = vst.msk [vmem:[#allocation2 + $0x348] sm:$0xff] %vm6309, 0.0
      %6343 = vst.msk [vmem:[#allocation2 + $0x360] sm:$0xff] %vm6309, 0.0
      %6344 = vst.msk [vmem:[#allocation2 + $0x378] sm:$0xff] %vm6309, 0.0
      %6345 = vst.msk [vmem:[#allocation2 + $0x390] sm:$0xff] %vm6309, 0.0
      %vm6346 = vcmask 90112
      %6347 = vst.msk [vmem:[#allocation2 + $0x3a8] sm:$0x1] %vm6346, 0.0
      %v6348 = vld [vmem:[#allocation3] sm:$0x1]
      %v6350 = vlaneseq
      %v6351 = vshrl.u32 %v6350, 7
      %v6352 = vsub.s32 0, %v6351
      %v6353 = vrot.slane %v6348, %v6352
      %v6355 = vadd.f32 %v6353, 0.0
      %v6356 = vld [vmem:[#allocation2] sm:$0x80]
      %v6357 = vld [vmem:[#allocation2 + $0x18] sm:$0xff]
      %v6358 = vld [vmem:[#allocation2 + $0x30] sm:$0xff]
      %v6359 = vld [vmem:[#allocation2 + $0x48] sm:$0xff]
      %v6360 = vld [vmem:[#allocation2 + $0x60] sm:$0xff]
      %v6361 = vld [vmem:[#allocation2 + $0x78] sm:$0xff]
      %v6362 = vld [vmem:[#allocation2 + $0x90] sm:$0xff]
      %v6363 = vld [vmem:[#allocation2 + $0xa8] sm:$0xff]
      %v6364 = vld [vmem:[#allocation2 + $0xc0] sm:$0xff]
      %v6365 = vld [vmem:[#allocation2 + $0xd8] sm:$0xff]
      %v6366 = vld [vmem:[#allocation2 + $0xf0] sm:$0xff]
      %v6367 = vld [vmem:[#allocation2 + $0x108] sm:$0xff]
      %v6368 = vld [vmem:[#allocation2 + $0x120] sm:$0xff]
      %v6369 = vld [vmem:[#allocation2 + $0x138] sm:$0xff]
      %v6370 = vld [vmem:[#allocation2 + $0x150] sm:$0xff]
      %v6371 = vld [vmem:[#allocation2 + $0x168] sm:$0xff]
      %v6372 = vld [vmem:[#allocation2 + $0x180] sm:$0xff]
      %v6373 = vld [vmem:[#allocation2 + $0x198] sm:$0xff]
      %v6374 = vld [vmem:[#allocation2 + $0x1b0] sm:$0xff]
      %v6375 = vld [vmem:[#allocation2 + $0x1c8] sm:$0xff]
      %v6376 = vld [vmem:[#allocation2 + $0x1e0] sm:$0xff]
      %v6377 = vld [vmem:[#allocation2 + $0x1f8] sm:$0xff]
      %v6378 = vld [vmem:[#allocation2 + $0x210] sm:$0xff]
      %v6379 = vld [vmem:[#allocation2 + $0x228] sm:$0xff]
      %v6380 = vld [vmem:[#allocation2 + $0x240] sm:$0xff]
      %v6381 = vld [vmem:[#allocation2 + $0x258] sm:$0xff]
      %v6382 = vld [vmem:[#allocation2 + $0x270] sm:$0xff]
      %v6383 = vld [vmem:[#allocation2 + $0x288] sm:$0xff]
      %v6384 = vld [vmem:[#allocation2 + $0x2a0] sm:$0xff]
      %v6385 = vld [vmem:[#allocation2 + $0x2b8] sm:$0xff]
      %v6386 = vld [vmem:[#allocation2 + $0x2d0] sm:$0xff]
      %v6387 = vld [vmem:[#allocation2 + $0x2e8] sm:$0xff]
      %v6388 = vld [vmem:[#allocation2 + $0x300] sm:$0x7f]
      %v6389 = vadd.f32 %v6355, %v6356
      %v6390 = vadd.f32 %v6355, %v6357
      %v6391 = vadd.f32 %v6355, %v6358
      %v6392 = vadd.f32 %v6355, %v6359
      %v6393 = vadd.f32 %v6355, %v6360
      %v6394 = vadd.f32 %v6355, %v6361
      %v6395 = vadd.f32 %v6355, %v6362
      %v6396 = vadd.f32 %v6355, %v6363
      %v6397 = vadd.f32 %v6355, %v6364
      %v6398 = vadd.f32 %v6355, %v6365
      %v6399 = vadd.f32 %v6355, %v6366
      %v6400 = vadd.f32 %v6355, %v6367
      %v6401 = vadd.f32 %v6355, %v6368
      %v6402 = vadd.f32 %v6355, %v6369
      %v6403 = vadd.f32 %v6355, %v6370
      %v6404 = vadd.f32 %v6355, %v6371
      %v6405 = vadd.f32 %v6355, %v6372
      %v6406 = vadd.f32 %v6355, %v6373
      %v6407 = vadd.f32 %v6355, %v6374
      %v6408 = vadd.f32 %v6355, %v6375
      %v6409 = vadd.f32 %v6355, %v6376
      %v6410 = vadd.f32 %v6355, %v6377
      %v6411 = vadd.f32 %v6355, %v6378
      %v6412 = vadd.f32 %v6355, %v6379
      %v6413 = vadd.f32 %v6355, %v6380
      %v6414 = vadd.f32 %v6355, %v6381
      %v6415 = vadd.f32 %v6355, %v6382
      %v6416 = vadd.f32 %v6355, %v6383
      %v6417 = vadd.f32 %v6355, %v6384
      %v6418 = vadd.f32 %v6355, %v6385
      %v6419 = vadd.f32 %v6355, %v6386
      %v6420 = vadd.f32 %v6355, %v6387
      %v6421 = vadd.f32 %v6355, %v6388
      %v6422 = vld [vmem:[#allocation2 + $0x300] sm:$0xff]
      %v6455 = vrot.slane %v6357, 1
      %v6456 = vrot.slane %v6358, 1
      %v6457 = vsel %vm1258, %v6455, %v6456
      %v6458 = vrot.slane %v6359, 1
      %v6459 = vsel %vm1258, %v6456, %v6458
      %v6460 = vrot.slane %v6360, 1
      %v6461 = vsel %vm1258, %v6458, %v6460
      %v6462 = vrot.slane %v6361, 1
      %v6463 = vsel %vm1258, %v6460, %v6462
      %v6464 = vrot.slane %v6362, 1
      %v6465 = vsel %vm1258, %v6462, %v6464
      %v6466 = vrot.slane %v6363, 1
      %v6467 = vsel %vm1258, %v6464, %v6466
      %v6468 = vrot.slane %v6364, 1
      %v6469 = vsel %vm1258, %v6466, %v6468
      %v6470 = vrot.slane %v6365, 1
      %v6471 = vsel %vm1258, %v6468, %v6470
      %v6472 = vrot.slane %v6366, 1
      %v6473 = vsel %vm1258, %v6470, %v6472
      %v6474 = vrot.slane %v6367, 1
      %v6475 = vsel %vm1258, %v6472, %v6474
      %v6476 = vrot.slane %v6368, 1
      %v6477 = vsel %vm1258, %v6474, %v6476
      %v6478 = vrot.slane %v6369, 1
      %v6479 = vsel %vm1258, %v6476, %v6478
      %v6480 = vrot.slane %v6370, 1
      %v6481 = vsel %vm1258, %v6478, %v6480
      %v6482 = vrot.slane %v6371, 1
      %v6483 = vsel %vm1258, %v6480, %v6482
      %v6484 = vrot.slane %v6372, 1
      %v6485 = vsel %vm1258, %v6482, %v6484
      %v6486 = vrot.slane %v6373, 1
      %v6487 = vsel %vm1258, %v6484, %v6486
      %v6488 = vrot.slane %v6374, 1
      %v6489 = vsel %vm1258, %v6486, %v6488
      %v6490 = vrot.slane %v6375, 1
      %v6491 = vsel %vm1258, %v6488, %v6490
      %v6492 = vrot.slane %v6376, 1
      %v6493 = vsel %vm1258, %v6490, %v6492
      %v6494 = vrot.slane %v6377, 1
      %v6495 = vsel %vm1258, %v6492, %v6494
      %v6496 = vrot.slane %v6378, 1
      %v6497 = vsel %vm1258, %v6494, %v6496
      %v6498 = vrot.slane %v6379, 1
      %v6499 = vsel %vm1258, %v6496, %v6498
      %v6500 = vrot.slane %v6380, 1
      %v6501 = vsel %vm1258, %v6498, %v6500
      %v6502 = vrot.slane %v6381, 1
      %v6503 = vsel %vm1258, %v6500, %v6502
      %v6504 = vrot.slane %v6382, 1
      %v6505 = vsel %vm1258, %v6502, %v6504
      %v6506 = vrot.slane %v6383, 1
      %v6507 = vsel %vm1258, %v6504, %v6506
      %v6508 = vrot.slane %v6384, 1
      %v6509 = vsel %vm1258, %v6506, %v6508
      %v6510 = vrot.slane %v6385, 1
      %v6511 = vsel %vm1258, %v6508, %v6510
      %v6512 = vrot.slane %v6386, 1
      %v6513 = vsel %vm1258, %v6510, %v6512
      %v6514 = vrot.slane %v6387, 1
      %v6515 = vsel %vm1258, %v6512, %v6514
      %v6516 = vrot.slane %v6422, 1
      %v6517 = vsel %vm1258, %v6514, %v6516
      %6518 = vrot.lane.b32.xlu0 %v6455, 127
      %v6519 = vpop.permute.xlu0 %6518
      %6520 = vrot.lane.b32.xlu0 %v6457, 127
      %v6521 = vpop.permute.xlu0 %6520
      %6522 = vrot.lane.b32.xlu0 %v6459, 127
      %v6523 = vpop.permute.xlu0 %6522
      %6524 = vrot.lane.b32.xlu0 %v6461, 127
      %v6525 = vpop.permute.xlu0 %6524
      %6526 = vrot.lane.b32.xlu0 %v6463, 127
      %v6527 = vpop.permute.xlu0 %6526
      %6528 = vrot.lane.b32.xlu0 %v6465, 127
      %v6529 = vpop.permute.xlu0 %6528
      %6530 = vrot.lane.b32.xlu0 %v6467, 127
      %v6531 = vpop.permute.xlu0 %6530
      %6532 = vrot.lane.b32.xlu0 %v6469, 127
      %v6533 = vpop.permute.xlu0 %6532
      %6534 = vrot.lane.b32.xlu0 %v6471, 127
      %v6535 = vpop.permute.xlu0 %6534
      %6536 = vrot.lane.b32.xlu0 %v6473, 127
      %v6537 = vpop.permute.xlu0 %6536
      %6538 = vrot.lane.b32.xlu0 %v6475, 127
      %v6539 = vpop.permute.xlu0 %6538
      %6540 = vrot.lane.b32.xlu0 %v6477, 127
      %v6541 = vpop.permute.xlu0 %6540
      %6542 = vrot.lane.b32.xlu0 %v6479, 127
      %v6543 = vpop.permute.xlu0 %6542
      %6544 = vrot.lane.b32.xlu0 %v6481, 127
      %v6545 = vpop.permute.xlu0 %6544
      %6546 = vrot.lane.b32.xlu0 %v6483, 127
      %v6547 = vpop.permute.xlu0 %6546
      %6548 = vrot.lane.b32.xlu0 %v6485, 127
      %v6549 = vpop.permute.xlu0 %6548
      %6550 = vrot.lane.b32.xlu0 %v6487, 127
      %v6551 = vpop.permute.xlu0 %6550
      %6552 = vrot.lane.b32.xlu0 %v6489, 127
      %v6553 = vpop.permute.xlu0 %6552
      %6554 = vrot.lane.b32.xlu0 %v6491, 127
      %v6555 = vpop.permute.xlu0 %6554
      %6556 = vrot.lane.b32.xlu0 %v6493, 127
      %v6557 = vpop.permute.xlu0 %6556
      %6558 = vrot.lane.b32.xlu0 %v6495, 127
      %v6559 = vpop.permute.xlu0 %6558
      %6560 = vrot.lane.b32.xlu0 %v6497, 127
      %v6561 = vpop.permute.xlu0 %6560
      %6562 = vrot.lane.b32.xlu0 %v6499, 127
      %v6563 = vpop.permute.xlu0 %6562
      %6564 = vrot.lane.b32.xlu0 %v6501, 127
      %v6565 = vpop.permute.xlu0 %6564
      %6566 = vrot.lane.b32.xlu0 %v6503, 127
      %v6567 = vpop.permute.xlu0 %6566
      %6568 = vrot.lane.b32.xlu0 %v6505, 127
      %v6569 = vpop.permute.xlu0 %6568
      %6570 = vrot.lane.b32.xlu0 %v6507, 127
      %v6571 = vpop.permute.xlu0 %6570
      %6572 = vrot.lane.b32.xlu0 %v6509, 127
      %v6573 = vpop.permute.xlu0 %6572
      %6574 = vrot.lane.b32.xlu0 %v6511, 127
      %v6575 = vpop.permute.xlu0 %6574
      %6576 = vrot.lane.b32.xlu0 %v6513, 127
      %v6577 = vpop.permute.xlu0 %6576
      %6578 = vrot.lane.b32.xlu0 %v6515, 127
      %v6579 = vpop.permute.xlu0 %6578
      %6580 = vrot.lane.b32.xlu0 %v6517, 127
      %v6581 = vpop.permute.xlu0 %6580
      %6582 = vrot.lane.b32.xlu0 %v6516, 127
      %v6583 = vpop.permute.xlu0 %6582
      %v6617 = vadd.f32 %v6389, %v6519
      %v6618 = vadd.f32 %v6390, %v6521
      %v6619 = vadd.f32 %v6391, %v6523
      %v6620 = vadd.f32 %v6392, %v6525
      %v6621 = vadd.f32 %v6393, %v6527
      %v6622 = vadd.f32 %v6394, %v6529
      %v6623 = vadd.f32 %v6395, %v6531
      %v6624 = vadd.f32 %v6396, %v6533
      %v6625 = vadd.f32 %v6397, %v6535
      %v6626 = vadd.f32 %v6398, %v6537
      %v6627 = vadd.f32 %v6399, %v6539
      %v6628 = vadd.f32 %v6400, %v6541
      %v6629 = vadd.f32 %v6401, %v6543
      %v6630 = vadd.f32 %v6402, %v6545
      %v6631 = vadd.f32 %v6403, %v6547
      %v6632 = vadd.f32 %v6404, %v6549
      %v6633 = vadd.f32 %v6405, %v6551
      %v6634 = vadd.f32 %v6406, %v6553
      %v6635 = vadd.f32 %v6407, %v6555
      %v6636 = vadd.f32 %v6408, %v6557
      %v6637 = vadd.f32 %v6409, %v6559
      %v6638 = vadd.f32 %v6410, %v6561
      %v6639 = vadd.f32 %v6411, %v6563
      %v6640 = vadd.f32 %v6412, %v6565
      %v6641 = vadd.f32 %v6413, %v6567
      %v6642 = vadd.f32 %v6414, %v6569
      %v6643 = vadd.f32 %v6415, %v6571
      %v6644 = vadd.f32 %v6416, %v6573
      %v6645 = vadd.f32 %v6417, %v6575
      %v6646 = vadd.f32 %v6418, %v6577
      %v6647 = vadd.f32 %v6419, %v6579
      %v6648 = vadd.f32 %v6420, %v6581
      %v6649 = vadd.f32 %v6421, %v6583
      %v6650 = vld [vmem:[#allocation2 + $0x18] sm:$0xfe]
      %v6651 = vld [vmem:[#allocation2 + $0x318] sm:$0x1]
      %v6654 = vrot.slane %v6650, 2
      %v6655 = vrot.slane %v6358, 2
      %v6656 = vsel %vm2018, %v6654, %v6655
      %v6657 = vrot.slane %v6359, 2
      %v6658 = vsel %vm2018, %v6655, %v6657
      %v6659 = vrot.slane %v6360, 2
      %v6660 = vsel %vm2018, %v6657, %v6659
      %v6661 = vrot.slane %v6361, 2
      %v6662 = vsel %vm2018, %v6659, %v6661
      %v6663 = vrot.slane %v6362, 2
      %v6664 = vsel %vm2018, %v6661, %v6663
      %v6665 = vrot.slane %v6363, 2
      %v6666 = vsel %vm2018, %v6663, %v6665
      %v6667 = vrot.slane %v6364, 2
      %v6668 = vsel %vm2018, %v6665, %v6667
      %v6669 = vrot.slane %v6365, 2
      %v6670 = vsel %vm2018, %v6667, %v6669
      %v6671 = vrot.slane %v6366, 2
      %v6672 = vsel %vm2018, %v6669, %v6671
      %v6673 = vrot.slane %v6367, 2
      %v6674 = vsel %vm2018, %v6671, %v6673
      %v6675 = vrot.slane %v6368, 2
      %v6676 = vsel %vm2018, %v6673, %v6675
      %v6677 = vrot.slane %v6369, 2
      %v6678 = vsel %vm2018, %v6675, %v6677
      %v6679 = vrot.slane %v6370, 2
      %v6680 = vsel %vm2018, %v6677, %v6679
      %v6681 = vrot.slane %v6371, 2
      %v6682 = vsel %vm2018, %v6679, %v6681
      %v6683 = vrot.slane %v6372, 2
      %v6684 = vsel %vm2018, %v6681, %v6683
      %v6685 = vrot.slane %v6373, 2
      %v6686 = vsel %vm2018, %v6683, %v6685
      %v6687 = vrot.slane %v6374, 2
      %v6688 = vsel %vm2018, %v6685, %v6687
      %v6689 = vrot.slane %v6375, 2
      %v6690 = vsel %vm2018, %v6687, %v6689
      %v6691 = vrot.slane %v6376, 2
      %v6692 = vsel %vm2018, %v6689, %v6691
      %v6693 = vrot.slane %v6377, 2
      %v6694 = vsel %vm2018, %v6691, %v6693
      %v6695 = vrot.slane %v6378, 2
      %v6696 = vsel %vm2018, %v6693, %v6695
      %v6697 = vrot.slane %v6379, 2
      %v6698 = vsel %vm2018, %v6695, %v6697
      %v6699 = vrot.slane %v6380, 2
      %v6700 = vsel %vm2018, %v6697, %v6699
      %v6701 = vrot.slane %v6381, 2
      %v6702 = vsel %vm2018, %v6699, %v6701
      %v6703 = vrot.slane %v6382, 2
      %v6704 = vsel %vm2018, %v6701, %v6703
      %v6705 = vrot.slane %v6383, 2
      %v6706 = vsel %vm2018, %v6703, %v6705
      %v6707 = vrot.slane %v6384, 2
      %v6708 = vsel %vm2018, %v6705, %v6707
      %v6709 = vrot.slane %v6385, 2
      %v6710 = vsel %vm2018, %v6707, %v6709
      %v6711 = vrot.slane %v6386, 2
      %v6712 = vsel %vm2018, %v6709, %v6711
      %v6713 = vrot.slane %v6387, 2
      %v6714 = vsel %vm2018, %v6711, %v6713
      %v6715 = vrot.slane %v6422, 2
      %v6716 = vsel %vm2018, %v6713, %v6715
      %v6717 = vrot.slane %v6651, 2
      %v6718 = vsel %vm2018, %v6715, %v6717
      %6719 = vrot.lane.b32.xlu0 %v6654, 126
      %v6720 = vpop.permute.xlu0 %6719
      %6721 = vrot.lane.b32.xlu0 %v6656, 126
      %v6722 = vpop.permute.xlu0 %6721
      %6723 = vrot.lane.b32.xlu0 %v6658, 126
      %v6724 = vpop.permute.xlu0 %6723
      %6725 = vrot.lane.b32.xlu0 %v6660, 126
      %v6726 = vpop.permute.xlu0 %6725
      %6727 = vrot.lane.b32.xlu0 %v6662, 126
      %v6728 = vpop.permute.xlu0 %6727
      %6729 = vrot.lane.b32.xlu0 %v6664, 126
      %v6730 = vpop.permute.xlu0 %6729
      %6731 = vrot.lane.b32.xlu0 %v6666, 126
      %v6732 = vpop.permute.xlu0 %6731
      %6733 = vrot.lane.b32.xlu0 %v6668, 126
      %v6734 = vpop.permute.xlu0 %6733
      %6735 = vrot.lane.b32.xlu0 %v6670, 126
      %v6736 = vpop.permute.xlu0 %6735
      %6737 = vrot.lane.b32.xlu0 %v6672, 126
      %v6738 = vpop.permute.xlu0 %6737
      %6739 = vrot.lane.b32.xlu0 %v6674, 126
      %v6740 = vpop.permute.xlu0 %6739
      %6741 = vrot.lane.b32.xlu0 %v6676, 126
      %v6742 = vpop.permute.xlu0 %6741
      %6743 = vrot.lane.b32.xlu0 %v6678, 126
      %v6744 = vpop.permute.xlu0 %6743
      %6745 = vrot.lane.b32.xlu0 %v6680, 126
      %v6746 = vpop.permute.xlu0 %6745
      %6747 = vrot.lane.b32.xlu0 %v6682, 126
      %v6748 = vpop.permute.xlu0 %6747
      %6749 = vrot.lane.b32.xlu0 %v6684, 126
      %v6750 = vpop.permute.xlu0 %6749
      %6751 = vrot.lane.b32.xlu0 %v6686, 126
      %v6752 = vpop.permute.xlu0 %6751
      %6753 = vrot.lane.b32.xlu0 %v6688, 126
      %v6754 = vpop.permute.xlu0 %6753
      %6755 = vrot.lane.b32.xlu0 %v6690, 126
      %v6756 = vpop.permute.xlu0 %6755
      %6757 = vrot.lane.b32.xlu0 %v6692, 126
      %v6758 = vpop.permute.xlu0 %6757
      %6759 = vrot.lane.b32.xlu0 %v6694, 126
      %v6760 = vpop.permute.xlu0 %6759
      %6761 = vrot.lane.b32.xlu0 %v6696, 126
      %v6762 = vpop.permute.xlu0 %6761
      %6763 = vrot.lane.b32.xlu0 %v6698, 126
      %v6764 = vpop.permute.xlu0 %6763
      %6765 = vrot.lane.b32.xlu0 %v6700, 126
      %v6766 = vpop.permute.xlu0 %6765
      %6767 = vrot.lane.b32.xlu0 %v6702, 126
      %v6768 = vpop.permute.xlu0 %6767
      %6769 = vrot.lane.b32.xlu0 %v6704, 126
      %v6770 = vpop.permute.xlu0 %6769
      %6771 = vrot.lane.b32.xlu0 %v6706, 126
      %v6772 = vpop.permute.xlu0 %6771
      %6773 = vrot.lane.b32.xlu0 %v6708, 126
      %v6774 = vpop.permute.xlu0 %6773
      %6775 = vrot.lane.b32.xlu0 %v6710, 126
      %v6776 = vpop.permute.xlu0 %6775
      %6777 = vrot.lane.b32.xlu0 %v6712, 126
      %v6778 = vpop.permute.xlu0 %6777
      %6779 = vrot.lane.b32.xlu0 %v6714, 126
      %v6780 = vpop.permute.xlu0 %6779
      %6781 = vrot.lane.b32.xlu0 %v6716, 126
      %v6782 = vpop.permute.xlu0 %6781
      %6783 = vrot.lane.b32.xlu0 %v6718, 126
      %v6784 = vpop.permute.xlu0 %6783
      %v6818 = vadd.f32 %v6617, %v6720
      %v6819 = vadd.f32 %v6618, %v6722
      %v6820 = vadd.f32 %v6619, %v6724
      %v6821 = vadd.f32 %v6620, %v6726
      %v6822 = vadd.f32 %v6621, %v6728
      %v6823 = vadd.f32 %v6622, %v6730
      %v6824 = vadd.f32 %v6623, %v6732
      %v6825 = vadd.f32 %v6624, %v6734
      %v6826 = vadd.f32 %v6625, %v6736
      %v6827 = vadd.f32 %v6626, %v6738
      %v6828 = vadd.f32 %v6627, %v6740
      %v6829 = vadd.f32 %v6628, %v6742
      %v6830 = vadd.f32 %v6629, %v6744
      %v6831 = vadd.f32 %v6630, %v6746
      %v6832 = vadd.f32 %v6631, %v6748
      %v6833 = vadd.f32 %v6632, %v6750
      %v6834 = vadd.f32 %v6633, %v6752
      %v6835 = vadd.f32 %v6634, %v6754
      %v6836 = vadd.f32 %v6635, %v6756
      %v6837 = vadd.f32 %v6636, %v6758
      %v6838 = vadd.f32 %v6637, %v6760
      %v6839 = vadd.f32 %v6638, %v6762
      %v6840 = vadd.f32 %v6639, %v6764
      %v6841 = vadd.f32 %v6640, %v6766
      %v6842 = vadd.f32 %v6641, %v6768
      %v6843 = vadd.f32 %v6642, %v6770
      %v6844 = vadd.f32 %v6643, %v6772
      %v6845 = vadd.f32 %v6644, %v6774
      %v6846 = vadd.f32 %v6645, %v6776
      %v6847 = vadd.f32 %v6646, %v6778
      %v6848 = vadd.f32 %v6647, %v6780
      %v6849 = vadd.f32 %v6648, %v6782
      %v6850 = vadd.f32 %v6649, %v6784
      %v6851 = vld [vmem:[#allocation2 + $0x30] sm:$0x80]
      %v6852 = vld [vmem:[#allocation2 + $0x318] sm:$0xff]
      %v6853 = vld [vmem:[#allocation2 + $0x330] sm:$0x7f]
      %6857 = vrot.lane.b32.xlu0 %v6851, 125
      %v6858 = vpop.permute.xlu0 %6857
      %6859 = vrot.lane.b32.xlu0 %v6359, 125
      %v6860 = vpop.permute.xlu0 %6859
      %6861 = vrot.lane.b32.xlu0 %v6360, 125
      %v6862 = vpop.permute.xlu0 %6861
      %6863 = vrot.lane.b32.xlu0 %v6361, 125
      %v6864 = vpop.permute.xlu0 %6863
      %6865 = vrot.lane.b32.xlu0 %v6362, 125
      %v6866 = vpop.permute.xlu0 %6865
      %6867 = vrot.lane.b32.xlu0 %v6363, 125
      %v6868 = vpop.permute.xlu0 %6867
      %6869 = vrot.lane.b32.xlu0 %v6364, 125
      %v6870 = vpop.permute.xlu0 %6869
      %6871 = vrot.lane.b32.xlu0 %v6365, 125
      %v6872 = vpop.permute.xlu0 %6871
      %6873 = vrot.lane.b32.xlu0 %v6366, 125
      %v6874 = vpop.permute.xlu0 %6873
      %6875 = vrot.lane.b32.xlu0 %v6367, 125
      %v6876 = vpop.permute.xlu0 %6875
      %6877 = vrot.lane.b32.xlu0 %v6368, 125
      %v6878 = vpop.permute.xlu0 %6877
      %6879 = vrot.lane.b32.xlu0 %v6369, 125
      %v6880 = vpop.permute.xlu0 %6879
      %6881 = vrot.lane.b32.xlu0 %v6370, 125
      %v6882 = vpop.permute.xlu0 %6881
      %6883 = vrot.lane.b32.xlu0 %v6371, 125
      %v6884 = vpop.permute.xlu0 %6883
      %6885 = vrot.lane.b32.xlu0 %v6372, 125
      %v6886 = vpop.permute.xlu0 %6885
      %6887 = vrot.lane.b32.xlu0 %v6373, 125
      %v6888 = vpop.permute.xlu0 %6887
      %6889 = vrot.lane.b32.xlu0 %v6374, 125
      %v6890 = vpop.permute.xlu0 %6889
      %6891 = vrot.lane.b32.xlu0 %v6375, 125
      %v6892 = vpop.permute.xlu0 %6891
      %6893 = vrot.lane.b32.xlu0 %v6376, 125
      %v6894 = vpop.permute.xlu0 %6893
      %6895 = vrot.lane.b32.xlu0 %v6377, 125
      %v6896 = vpop.permute.xlu0 %6895
      %6897 = vrot.lane.b32.xlu0 %v6378, 125
      %v6898 = vpop.permute.xlu0 %6897
      %6899 = vrot.lane.b32.xlu0 %v6379, 125
      %v6900 = vpop.permute.xlu0 %6899
      %6901 = vrot.lane.b32.xlu0 %v6380, 125
      %v6902 = vpop.permute.xlu0 %6901
      %6903 = vrot.lane.b32.xlu0 %v6381, 125
      %v6904 = vpop.permute.xlu0 %6903
      %6905 = vrot.lane.b32.xlu0 %v6382, 125
      %v6906 = vpop.permute.xlu0 %6905
      %6907 = vrot.lane.b32.xlu0 %v6383, 125
      %v6908 = vpop.permute.xlu0 %6907
      %6909 = vrot.lane.b32.xlu0 %v6384, 125
      %v6910 = vpop.permute.xlu0 %6909
      %6911 = vrot.lane.b32.xlu0 %v6385, 125
      %v6912 = vpop.permute.xlu0 %6911
      %6913 = vrot.lane.b32.xlu0 %v6386, 125
      %v6914 = vpop.permute.xlu0 %6913
      %6915 = vrot.lane.b32.xlu0 %v6387, 125
      %v6916 = vpop.permute.xlu0 %6915
      %6917 = vrot.lane.b32.xlu0 %v6422, 125
      %v6918 = vpop.permute.xlu0 %6917
      %6919 = vrot.lane.b32.xlu0 %v6852, 125
      %v6920 = vpop.permute.xlu0 %6919
      %6921 = vrot.lane.b32.xlu0 %v6853, 125
      %v6922 = vpop.permute.xlu0 %6921
      %v6956 = vadd.f32 %v6818, %v6858
      %v6957 = vadd.f32 %v6819, %v6860
      %v6958 = vadd.f32 %v6820, %v6862
      %v6959 = vadd.f32 %v6821, %v6864
      %v6960 = vadd.f32 %v6822, %v6866
      %v6961 = vadd.f32 %v6823, %v6868
      %v6962 = vadd.f32 %v6824, %v6870
      %v6963 = vadd.f32 %v6825, %v6872
      %v6964 = vadd.f32 %v6826, %v6874
      %v6965 = vadd.f32 %v6827, %v6876
      %v6966 = vadd.f32 %v6828, %v6878
      %v6967 = vadd.f32 %v6829, %v6880
      %v6968 = vadd.f32 %v6830, %v6882
      %v6969 = vadd.f32 %v6831, %v6884
      %v6970 = vadd.f32 %v6832, %v6886
      %v6971 = vadd.f32 %v6833, %v6888
      %v6972 = vadd.f32 %v6834, %v6890
      %v6973 = vadd.f32 %v6835, %v6892
      %v6974 = vadd.f32 %v6836, %v6894
      %v6975 = vadd.f32 %v6837, %v6896
      %v6976 = vadd.f32 %v6838, %v6898
      %v6977 = vadd.f32 %v6839, %v6900
      %v6978 = vadd.f32 %v6840, %v6902
      %v6979 = vadd.f32 %v6841, %v6904
      %v6980 = vadd.f32 %v6842, %v6906
      %v6981 = vadd.f32 %v6843, %v6908
      %v6982 = vadd.f32 %v6844, %v6910
      %v6983 = vadd.f32 %v6845, %v6912
      %v6984 = vadd.f32 %v6846, %v6914
      %v6985 = vadd.f32 %v6847, %v6916
      %v6986 = vadd.f32 %v6848, %v6918
      %v6987 = vadd.f32 %v6849, %v6920
      %v6988 = vadd.f32 %v6850, %v6922
      %v6989 = vld [vmem:[#allocation2 + $0x330] sm:$0xff]
      %v6991 = vrot.slane %v6852, 1
      %v6992 = vsel %vm1258, %v6516, %v6991
      %v6993 = vrot.slane %v6989, 1
      %v6994 = vsel %vm1258, %v6991, %v6993
      %6995 = vrot.lane.b32.xlu0 %v6458, 124
      %v6996 = vpop.permute.xlu0 %6995
      %6997 = vrot.lane.b32.xlu0 %v6461, 124
      %v6998 = vpop.permute.xlu0 %6997
      %6999 = vrot.lane.b32.xlu0 %v6463, 124
      %v7000 = vpop.permute.xlu0 %6999
      %7001 = vrot.lane.b32.xlu0 %v6465, 124
      %v7002 = vpop.permute.xlu0 %7001
      %7003 = vrot.lane.b32.xlu0 %v6467, 124
      %v7004 = vpop.permute.xlu0 %7003
      %7005 = vrot.lane.b32.xlu0 %v6469, 124
      %v7006 = vpop.permute.xlu0 %7005
      %7007 = vrot.lane.b32.xlu0 %v6471, 124
      %v7008 = vpop.permute.xlu0 %7007
      %7009 = vrot.lane.b32.xlu0 %v6473, 124
      %v7010 = vpop.permute.xlu0 %7009
      %7011 = vrot.lane.b32.xlu0 %v6475, 124
      %v7012 = vpop.permute.xlu0 %7011
      %7013 = vrot.lane.b32.xlu0 %v6477, 124
      %v7014 = vpop.permute.xlu0 %7013
      %7015 = vrot.lane.b32.xlu0 %v6479, 124
      %v7016 = vpop.permute.xlu0 %7015
      %7017 = vrot.lane.b32.xlu0 %v6481, 124
      %v7018 = vpop.permute.xlu0 %7017
      %7019 = vrot.lane.b32.xlu0 %v6483, 124
      %v7020 = vpop.permute.xlu0 %7019
      %7021 = vrot.lane.b32.xlu0 %v6485, 124
      %v7022 = vpop.permute.xlu0 %7021
      %7023 = vrot.lane.b32.xlu0 %v6487, 124
      %v7024 = vpop.permute.xlu0 %7023
      %7025 = vrot.lane.b32.xlu0 %v6489, 124
      %v7026 = vpop.permute.xlu0 %7025
      %7027 = vrot.lane.b32.xlu0 %v6491, 124
      %v7028 = vpop.permute.xlu0 %7027
      %7029 = vrot.lane.b32.xlu0 %v6493, 124
      %v7030 = vpop.permute.xlu0 %7029
      %7031 = vrot.lane.b32.xlu0 %v6495, 124
      %v7032 = vpop.permute.xlu0 %7031
      %7033 = vrot.lane.b32.xlu0 %v6497, 124
      %v7034 = vpop.permute.xlu0 %7033
      %7035 = vrot.lane.b32.xlu0 %v6499, 124
      %v7036 = vpop.permute.xlu0 %7035
      %7037 = vrot.lane.b32.xlu0 %v6501, 124
      %v7038 = vpop.permute.xlu0 %7037
      %7039 = vrot.lane.b32.xlu0 %v6503, 124
      %v7040 = vpop.permute.xlu0 %7039
      %7041 = vrot.lane.b32.xlu0 %v6505, 124
      %v7042 = vpop.permute.xlu0 %7041
      %7043 = vrot.lane.b32.xlu0 %v6507, 124
      %v7044 = vpop.permute.xlu0 %7043
      %7045 = vrot.lane.b32.xlu0 %v6509, 124
      %v7046 = vpop.permute.xlu0 %7045
      %7047 = vrot.lane.b32.xlu0 %v6511, 124
      %v7048 = vpop.permute.xlu0 %7047
      %7049 = vrot.lane.b32.xlu0 %v6513, 124
      %v7050 = vpop.permute.xlu0 %7049
      %7051 = vrot.lane.b32.xlu0 %v6515, 124
      %v7052 = vpop.permute.xlu0 %7051
      %7053 = vrot.lane.b32.xlu0 %v6517, 124
      %v7054 = vpop.permute.xlu0 %7053
      %7055 = vrot.lane.b32.xlu0 %v6992, 124
      %v7056 = vpop.permute.xlu0 %7055
      %7057 = vrot.lane.b32.xlu0 %v6994, 124
      %v7058 = vpop.permute.xlu0 %7057
      %7059 = vrot.lane.b32.xlu0 %v6993, 124
      %v7060 = vpop.permute.xlu0 %7059
      %v7094 = vadd.f32 %v6956, %v6996
      %v7095 = vadd.f32 %v6957, %v6998
      %v7096 = vadd.f32 %v6958, %v7000
      %v7097 = vadd.f32 %v6959, %v7002
      %v7098 = vadd.f32 %v6960, %v7004
      %v7099 = vadd.f32 %v6961, %v7006
      %v7100 = vadd.f32 %v6962, %v7008
      %v7101 = vadd.f32 %v6963, %v7010
      %v7102 = vadd.f32 %v6964, %v7012
      %v7103 = vadd.f32 %v6965, %v7014
      %v7104 = vadd.f32 %v6966, %v7016
      %v7105 = vadd.f32 %v6967, %v7018
      %v7106 = vadd.f32 %v6968, %v7020
      %v7107 = vadd.f32 %v6969, %v7022
      %v7108 = vadd.f32 %v6970, %v7024
      %v7109 = vadd.f32 %v6971, %v7026
      %v7110 = vadd.f32 %v6972, %v7028
      %v7111 = vadd.f32 %v6973, %v7030
      %v7112 = vadd.f32 %v6974, %v7032
      %v7113 = vadd.f32 %v6975, %v7034
      %v7114 = vadd.f32 %v6976, %v7036
      %v7115 = vadd.f32 %v6977, %v7038
      %v7116 = vadd.f32 %v6978, %v7040
      %v7117 = vadd.f32 %v6979, %v7042
      %v7118 = vadd.f32 %v6980, %v7044
      %v7119 = vadd.f32 %v6981, %v7046
      %v7120 = vadd.f32 %v6982, %v7048
      %v7121 = vadd.f32 %v6983, %v7050
      %v7122 = vadd.f32 %v6984, %v7052
      %v7123 = vadd.f32 %v6985, %v7054
      %v7124 = vadd.f32 %v6986, %v7056
      %v7125 = vadd.f32 %v6987, %v7058
      %v7126 = vadd.f32 %v6988, %v7060
      %v7127 = vld [vmem:[#allocation2 + $0x48] sm:$0xfe]
      %v7128 = vld [vmem:[#allocation2 + $0x348] sm:$0x1]
      %v7131 = vrot.slane %v7127, 2
      %v7132 = vsel %vm2018, %v7131, %v6659
      %v7133 = vrot.slane %v6852, 2
      %v7134 = vsel %vm2018, %v6715, %v7133
      %v7135 = vrot.slane %v6989, 2
      %v7136 = vsel %vm2018, %v7133, %v7135
      %v7137 = vrot.slane %v7128, 2
      %v7138 = vsel %vm2018, %v7135, %v7137
      %7139 = vrot.lane.b32.xlu0 %v7131, 123
      %v7140 = vpop.permute.xlu0 %7139
      %7141 = vrot.lane.b32.xlu0 %v7132, 123
      %v7142 = vpop.permute.xlu0 %7141
      %7143 = vrot.lane.b32.xlu0 %v6662, 123
      %v7144 = vpop.permute.xlu0 %7143
      %7145 = vrot.lane.b32.xlu0 %v6664, 123
      %v7146 = vpop.permute.xlu0 %7145
      %7147 = vrot.lane.b32.xlu0 %v6666, 123
      %v7148 = vpop.permute.xlu0 %7147
      %7149 = vrot.lane.b32.xlu0 %v6668, 123
      %v7150 = vpop.permute.xlu0 %7149
      %7151 = vrot.lane.b32.xlu0 %v6670, 123
      %v7152 = vpop.permute.xlu0 %7151
      %7153 = vrot.lane.b32.xlu0 %v6672, 123
      %v7154 = vpop.permute.xlu0 %7153
      %7155 = vrot.lane.b32.xlu0 %v6674, 123
      %v7156 = vpop.permute.xlu0 %7155
      %7157 = vrot.lane.b32.xlu0 %v6676, 123
      %v7158 = vpop.permute.xlu0 %7157
      %7159 = vrot.lane.b32.xlu0 %v6678, 123
      %v7160 = vpop.permute.xlu0 %7159
      %7161 = vrot.lane.b32.xlu0 %v6680, 123
      %v7162 = vpop.permute.xlu0 %7161
      %7163 = vrot.lane.b32.xlu0 %v6682, 123
      %v7164 = vpop.permute.xlu0 %7163
      %7165 = vrot.lane.b32.xlu0 %v6684, 123
      %v7166 = vpop.permute.xlu0 %7165
      %7167 = vrot.lane.b32.xlu0 %v6686, 123
      %v7168 = vpop.permute.xlu0 %7167
      %7169 = vrot.lane.b32.xlu0 %v6688, 123
      %v7170 = vpop.permute.xlu0 %7169
      %7171 = vrot.lane.b32.xlu0 %v6690, 123
      %v7172 = vpop.permute.xlu0 %7171
      %7173 = vrot.lane.b32.xlu0 %v6692, 123
      %v7174 = vpop.permute.xlu0 %7173
      %7175 = vrot.lane.b32.xlu0 %v6694, 123
      %v7176 = vpop.permute.xlu0 %7175
      %7177 = vrot.lane.b32.xlu0 %v6696, 123
      %v7178 = vpop.permute.xlu0 %7177
      %7179 = vrot.lane.b32.xlu0 %v6698, 123
      %v7180 = vpop.permute.xlu0 %7179
      %7181 = vrot.lane.b32.xlu0 %v6700, 123
      %v7182 = vpop.permute.xlu0 %7181
      %7183 = vrot.lane.b32.xlu0 %v6702, 123
      %v7184 = vpop.permute.xlu0 %7183
      %7185 = vrot.lane.b32.xlu0 %v6704, 123
      %v7186 = vpop.permute.xlu0 %7185
      %7187 = vrot.lane.b32.xlu0 %v6706, 123
      %v7188 = vpop.permute.xlu0 %7187
      %7189 = vrot.lane.b32.xlu0 %v6708, 123
      %v7190 = vpop.permute.xlu0 %7189
      %7191 = vrot.lane.b32.xlu0 %v6710, 123
      %v7192 = vpop.permute.xlu0 %7191
      %7193 = vrot.lane.b32.xlu0 %v6712, 123
      %v7194 = vpop.permute.xlu0 %7193
      %7195 = vrot.lane.b32.xlu0 %v6714, 123
      %v7196 = vpop.permute.xlu0 %7195
      %7197 = vrot.lane.b32.xlu0 %v6716, 123
      %v7198 = vpop.permute.xlu0 %7197
      %7199 = vrot.lane.b32.xlu0 %v7134, 123
      %v7200 = vpop.permute.xlu0 %7199
      %7201 = vrot.lane.b32.xlu0 %v7136, 123
      %v7202 = vpop.permute.xlu0 %7201
      %7203 = vrot.lane.b32.xlu0 %v7138, 123
      %v7204 = vpop.permute.xlu0 %7203
      %v7238 = vadd.f32 %v7094, %v7140
      %v7239 = vadd.f32 %v7095, %v7142
      %v7240 = vadd.f32 %v7096, %v7144
      %v7241 = vadd.f32 %v7097, %v7146
      %v7242 = vadd.f32 %v7098, %v7148
      %v7243 = vadd.f32 %v7099, %v7150
      %v7244 = vadd.f32 %v7100, %v7152
      %v7245 = vadd.f32 %v7101, %v7154
      %v7246 = vadd.f32 %v7102, %v7156
      %v7247 = vadd.f32 %v7103, %v7158
      %v7248 = vadd.f32 %v7104, %v7160
      %v7249 = vadd.f32 %v7105, %v7162
      %v7250 = vadd.f32 %v7106, %v7164
      %v7251 = vadd.f32 %v7107, %v7166
      %v7252 = vadd.f32 %v7108, %v7168
      %v7253 = vadd.f32 %v7109, %v7170
      %v7254 = vadd.f32 %v7110, %v7172
      %v7255 = vadd.f32 %v7111, %v7174
      %v7256 = vadd.f32 %v7112, %v7176
      %v7257 = vadd.f32 %v7113, %v7178
      %v7258 = vadd.f32 %v7114, %v7180
      %v7259 = vadd.f32 %v7115, %v7182
      %v7260 = vadd.f32 %v7116, %v7184
      %v7261 = vadd.f32 %v7117, %v7186
      %v7262 = vadd.f32 %v7118, %v7188
      %v7263 = vadd.f32 %v7119, %v7190
      %v7264 = vadd.f32 %v7120, %v7192
      %v7265 = vadd.f32 %v7121, %v7194
      %v7266 = vadd.f32 %v7122, %v7196
      %v7267 = vadd.f32 %v7123, %v7198
      %v7268 = vadd.f32 %v7124, %v7200
      %v7269 = vadd.f32 %v7125, %v7202
      %v7270 = vadd.f32 %v7126, %v7204
      %v7271 = vld [vmem:[#allocation2 + $0x60] sm:$0x80]
      %v7272 = vld [vmem:[#allocation2 + $0x348] sm:$0xff]
      %v7273 = vld [vmem:[#allocation2 + $0x360] sm:$0x7f]
      %7277 = vrot.lane.b32.xlu0 %v7271, 122
      %v7278 = vpop.permute.xlu0 %7277
      %7279 = vrot.lane.b32.xlu0 %v6361, 122
      %v7280 = vpop.permute.xlu0 %7279
      %7281 = vrot.lane.b32.xlu0 %v6362, 122
      %v7282 = vpop.permute.xlu0 %7281
      %7283 = vrot.lane.b32.xlu0 %v6363, 122
      %v7284 = vpop.permute.xlu0 %7283
      %7285 = vrot.lane.b32.xlu0 %v6364, 122
      %v7286 = vpop.permute.xlu0 %7285
      %7287 = vrot.lane.b32.xlu0 %v6365, 122
      %v7288 = vpop.permute.xlu0 %7287
      %7289 = vrot.lane.b32.xlu0 %v6366, 122
      %v7290 = vpop.permute.xlu0 %7289
      %7291 = vrot.lane.b32.xlu0 %v6367, 122
      %v7292 = vpop.permute.xlu0 %7291
      %7293 = vrot.lane.b32.xlu0 %v6368, 122
      %v7294 = vpop.permute.xlu0 %7293
      %7295 = vrot.lane.b32.xlu0 %v6369, 122
      %v7296 = vpop.permute.xlu0 %7295
      %7297 = vrot.lane.b32.xlu0 %v6370, 122
      %v7298 = vpop.permute.xlu0 %7297
      %7299 = vrot.lane.b32.xlu0 %v6371, 122
      %v7300 = vpop.permute.xlu0 %7299
      %7301 = vrot.lane.b32.xlu0 %v6372, 122
      %v7302 = vpop.permute.xlu0 %7301
      %7303 = vrot.lane.b32.xlu0 %v6373, 122
      %v7304 = vpop.permute.xlu0 %7303
      %7305 = vrot.lane.b32.xlu0 %v6374, 122
      %v7306 = vpop.permute.xlu0 %7305
      %7307 = vrot.lane.b32.xlu0 %v6375, 122
      %v7308 = vpop.permute.xlu0 %7307
      %7309 = vrot.lane.b32.xlu0 %v6376, 122
      %v7310 = vpop.permute.xlu0 %7309
      %7311 = vrot.lane.b32.xlu0 %v6377, 122
      %v7312 = vpop.permute.xlu0 %7311
      %7313 = vrot.lane.b32.xlu0 %v6378, 122
      %v7314 = vpop.permute.xlu0 %7313
      %7315 = vrot.lane.b32.xlu0 %v6379, 122
      %v7316 = vpop.permute.xlu0 %7315
      %7317 = vrot.lane.b32.xlu0 %v6380, 122
      %v7318 = vpop.permute.xlu0 %7317
      %7319 = vrot.lane.b32.xlu0 %v6381, 122
      %v7320 = vpop.permute.xlu0 %7319
      %7321 = vrot.lane.b32.xlu0 %v6382, 122
      %v7322 = vpop.permute.xlu0 %7321
      %7323 = vrot.lane.b32.xlu0 %v6383, 122
      %v7324 = vpop.permute.xlu0 %7323
      %7325 = vrot.lane.b32.xlu0 %v6384, 122
      %v7326 = vpop.permute.xlu0 %7325
      %7327 = vrot.lane.b32.xlu0 %v6385, 122
      %v7328 = vpop.permute.xlu0 %7327
      %7329 = vrot.lane.b32.xlu0 %v6386, 122
      %v7330 = vpop.permute.xlu0 %7329
      %7331 = vrot.lane.b32.xlu0 %v6387, 122
      %v7332 = vpop.permute.xlu0 %7331
      %7333 = vrot.lane.b32.xlu0 %v6422, 122
      %v7334 = vpop.permute.xlu0 %7333
      %7335 = vrot.lane.b32.xlu0 %v6852, 122
      %v7336 = vpop.permute.xlu0 %7335
      %7337 = vrot.lane.b32.xlu0 %v6989, 122
      %v7338 = vpop.permute.xlu0 %7337
      %7339 = vrot.lane.b32.xlu0 %v7272, 122
      %v7340 = vpop.permute.xlu0 %7339
      %7341 = vrot.lane.b32.xlu0 %v7273, 122
      %v7342 = vpop.permute.xlu0 %7341
      %v7376 = vadd.f32 %v7238, %v7278
      %v7377 = vadd.f32 %v7239, %v7280
      %v7378 = vadd.f32 %v7240, %v7282
      %v7379 = vadd.f32 %v7241, %v7284
      %v7380 = vadd.f32 %v7242, %v7286
      %v7381 = vadd.f32 %v7243, %v7288
      %v7382 = vadd.f32 %v7244, %v7290
      %v7383 = vadd.f32 %v7245, %v7292
      %v7384 = vadd.f32 %v7246, %v7294
      %v7385 = vadd.f32 %v7247, %v7296
      %v7386 = vadd.f32 %v7248, %v7298
      %v7387 = vadd.f32 %v7249, %v7300
      %v7388 = vadd.f32 %v7250, %v7302
      %v7389 = vadd.f32 %v7251, %v7304
      %v7390 = vadd.f32 %v7252, %v7306
      %v7391 = vadd.f32 %v7253, %v7308
      %v7392 = vadd.f32 %v7254, %v7310
      %v7393 = vadd.f32 %v7255, %v7312
      %v7394 = vadd.f32 %v7256, %v7314
      %v7395 = vadd.f32 %v7257, %v7316
      %v7396 = vadd.f32 %v7258, %v7318
      %v7397 = vadd.f32 %v7259, %v7320
      %v7398 = vadd.f32 %v7260, %v7322
      %v7399 = vadd.f32 %v7261, %v7324
      %v7400 = vadd.f32 %v7262, %v7326
      %v7401 = vadd.f32 %v7263, %v7328
      %v7402 = vadd.f32 %v7264, %v7330
      %v7403 = vadd.f32 %v7265, %v7332
      %v7404 = vadd.f32 %v7266, %v7334
      %v7405 = vadd.f32 %v7267, %v7336
      %v7406 = vadd.f32 %v7268, %v7338
      %v7407 = vadd.f32 %v7269, %v7340
      %v7408 = vadd.f32 %v7270, %v7342
      %v7409 = vld [vmem:[#allocation2 + $0x360] sm:$0xff]
      %v7411 = vrot.slane %v7272, 1
      %v7412 = vsel %vm1258, %v6993, %v7411
      %v7413 = vrot.slane %v7409, 1
      %v7414 = vsel %vm1258, %v7411, %v7413
      %7415 = vrot.lane.b32.xlu0 %v6462, 121
      %v7416 = vpop.permute.xlu0 %7415
      %7417 = vrot.lane.b32.xlu0 %v6465, 121
      %v7418 = vpop.permute.xlu0 %7417
      %7419 = vrot.lane.b32.xlu0 %v6467, 121
      %v7420 = vpop.permute.xlu0 %7419
      %7421 = vrot.lane.b32.xlu0 %v6469, 121
      %v7422 = vpop.permute.xlu0 %7421
      %7423 = vrot.lane.b32.xlu0 %v6471, 121
      %v7424 = vpop.permute.xlu0 %7423
      %7425 = vrot.lane.b32.xlu0 %v6473, 121
      %v7426 = vpop.permute.xlu0 %7425
      %7427 = vrot.lane.b32.xlu0 %v6475, 121
      %v7428 = vpop.permute.xlu0 %7427
      %7429 = vrot.lane.b32.xlu0 %v6477, 121
      %v7430 = vpop.permute.xlu0 %7429
      %7431 = vrot.lane.b32.xlu0 %v6479, 121
      %v7432 = vpop.permute.xlu0 %7431
      %7433 = vrot.lane.b32.xlu0 %v6481, 121
      %v7434 = vpop.permute.xlu0 %7433
      %7435 = vrot.lane.b32.xlu0 %v6483, 121
      %v7436 = vpop.permute.xlu0 %7435
      %7437 = vrot.lane.b32.xlu0 %v6485, 121
      %v7438 = vpop.permute.xlu0 %7437
      %7439 = vrot.lane.b32.xlu0 %v6487, 121
      %v7440 = vpop.permute.xlu0 %7439
      %7441 = vrot.lane.b32.xlu0 %v6489, 121
      %v7442 = vpop.permute.xlu0 %7441
      %7443 = vrot.lane.b32.xlu0 %v6491, 121
      %v7444 = vpop.permute.xlu0 %7443
      %7445 = vrot.lane.b32.xlu0 %v6493, 121
      %v7446 = vpop.permute.xlu0 %7445
      %7447 = vrot.lane.b32.xlu0 %v6495, 121
      %v7448 = vpop.permute.xlu0 %7447
      %7449 = vrot.lane.b32.xlu0 %v6497, 121
      %v7450 = vpop.permute.xlu0 %7449
      %7451 = vrot.lane.b32.xlu0 %v6499, 121
      %v7452 = vpop.permute.xlu0 %7451
      %7453 = vrot.lane.b32.xlu0 %v6501, 121
      %v7454 = vpop.permute.xlu0 %7453
      %7455 = vrot.lane.b32.xlu0 %v6503, 121
      %v7456 = vpop.permute.xlu0 %7455
      %7457 = vrot.lane.b32.xlu0 %v6505, 121
      %v7458 = vpop.permute.xlu0 %7457
      %7459 = vrot.lane.b32.xlu0 %v6507, 121
      %v7460 = vpop.permute.xlu0 %7459
      %7461 = vrot.lane.b32.xlu0 %v6509, 121
      %v7462 = vpop.permute.xlu0 %7461
      %7463 = vrot.lane.b32.xlu0 %v6511, 121
      %v7464 = vpop.permute.xlu0 %7463
      %7465 = vrot.lane.b32.xlu0 %v6513, 121
      %v7466 = vpop.permute.xlu0 %7465
      %7467 = vrot.lane.b32.xlu0 %v6515, 121
      %v7468 = vpop.permute.xlu0 %7467
      %7469 = vrot.lane.b32.xlu0 %v6517, 121
      %v7470 = vpop.permute.xlu0 %7469
      %7471 = vrot.lane.b32.xlu0 %v6992, 121
      %v7472 = vpop.permute.xlu0 %7471
      %7473 = vrot.lane.b32.xlu0 %v6994, 121
      %v7474 = vpop.permute.xlu0 %7473
      %7475 = vrot.lane.b32.xlu0 %v7412, 121
      %v7476 = vpop.permute.xlu0 %7475
      %7477 = vrot.lane.b32.xlu0 %v7414, 121
      %v7478 = vpop.permute.xlu0 %7477
      %7479 = vrot.lane.b32.xlu0 %v7413, 121
      %v7480 = vpop.permute.xlu0 %7479
      %v7514 = vadd.f32 %v7376, %v7416
      %v7515 = vadd.f32 %v7377, %v7418
      %v7516 = vadd.f32 %v7378, %v7420
      %v7517 = vadd.f32 %v7379, %v7422
      %v7518 = vadd.f32 %v7380, %v7424
      %v7519 = vadd.f32 %v7381, %v7426
      %v7520 = vadd.f32 %v7382, %v7428
      %v7521 = vadd.f32 %v7383, %v7430
      %v7522 = vadd.f32 %v7384, %v7432
      %v7523 = vadd.f32 %v7385, %v7434
      %v7524 = vadd.f32 %v7386, %v7436
      %v7525 = vadd.f32 %v7387, %v7438
      %v7526 = vadd.f32 %v7388, %v7440
      %v7527 = vadd.f32 %v7389, %v7442
      %v7528 = vadd.f32 %v7390, %v7444
      %v7529 = vadd.f32 %v7391, %v7446
      %v7530 = vadd.f32 %v7392, %v7448
      %v7531 = vadd.f32 %v7393, %v7450
      %v7532 = vadd.f32 %v7394, %v7452
      %v7533 = vadd.f32 %v7395, %v7454
      %v7534 = vadd.f32 %v7396, %v7456
      %v7535 = vadd.f32 %v7397, %v7458
      %v7536 = vadd.f32 %v7398, %v7460
      %v7537 = vadd.f32 %v7399, %v7462
      %v7538 = vadd.f32 %v7400, %v7464
      %v7539 = vadd.f32 %v7401, %v7466
      %v7540 = vadd.f32 %v7402, %v7468
      %v7541 = vadd.f32 %v7403, %v7470
      %v7542 = vadd.f32 %v7404, %v7472
      %v7543 = vadd.f32 %v7405, %v7474
      %v7544 = vadd.f32 %v7406, %v7476
      %v7545 = vadd.f32 %v7407, %v7478
      %v7546 = vadd.f32 %v7408, %v7480
      %v7547 = vld [vmem:[#allocation2 + $0x78] sm:$0xfe]
      %v7548 = vld [vmem:[#allocation2 + $0x378] sm:$0x1]
      %v7551 = vrot.slane %v7547, 2
      %v7552 = vsel %vm2018, %v7551, %v6663
      %v7553 = vrot.slane %v7272, 2
      %v7554 = vsel %vm2018, %v7135, %v7553
      %v7555 = vrot.slane %v7409, 2
      %v7556 = vsel %vm2018, %v7553, %v7555
      %v7557 = vrot.slane %v7548, 2
      %v7558 = vsel %vm2018, %v7555, %v7557
      %7559 = vrot.lane.b32.xlu0 %v7551, 120
      %v7560 = vpop.permute.xlu0 %7559
      %7561 = vrot.lane.b32.xlu0 %v7552, 120
      %v7562 = vpop.permute.xlu0 %7561
      %7563 = vrot.lane.b32.xlu0 %v6666, 120
      %v7564 = vpop.permute.xlu0 %7563
      %7565 = vrot.lane.b32.xlu0 %v6668, 120
      %v7566 = vpop.permute.xlu0 %7565
      %7567 = vrot.lane.b32.xlu0 %v6670, 120
      %v7568 = vpop.permute.xlu0 %7567
      %7569 = vrot.lane.b32.xlu0 %v6672, 120
      %v7570 = vpop.permute.xlu0 %7569
      %7571 = vrot.lane.b32.xlu0 %v6674, 120
      %v7572 = vpop.permute.xlu0 %7571
      %7573 = vrot.lane.b32.xlu0 %v6676, 120
      %v7574 = vpop.permute.xlu0 %7573
      %7575 = vrot.lane.b32.xlu0 %v6678, 120
      %v7576 = vpop.permute.xlu0 %7575
      %7577 = vrot.lane.b32.xlu0 %v6680, 120
      %v7578 = vpop.permute.xlu0 %7577
      %7579 = vrot.lane.b32.xlu0 %v6682, 120
      %v7580 = vpop.permute.xlu0 %7579
      %7581 = vrot.lane.b32.xlu0 %v6684, 120
      %v7582 = vpop.permute.xlu0 %7581
      %7583 = vrot.lane.b32.xlu0 %v6686, 120
      %v7584 = vpop.permute.xlu0 %7583
      %7585 = vrot.lane.b32.xlu0 %v6688, 120
      %v7586 = vpop.permute.xlu0 %7585
      %7587 = vrot.lane.b32.xlu0 %v6690, 120
      %v7588 = vpop.permute.xlu0 %7587
      %7589 = vrot.lane.b32.xlu0 %v6692, 120
      %v7590 = vpop.permute.xlu0 %7589
      %7591 = vrot.lane.b32.xlu0 %v6694, 120
      %v7592 = vpop.permute.xlu0 %7591
      %7593 = vrot.lane.b32.xlu0 %v6696, 120
      %v7594 = vpop.permute.xlu0 %7593
      %7595 = vrot.lane.b32.xlu0 %v6698, 120
      %v7596 = vpop.permute.xlu0 %7595
      %7597 = vrot.lane.b32.xlu0 %v6700, 120
      %v7598 = vpop.permute.xlu0 %7597
      %7599 = vrot.lane.b32.xlu0 %v6702, 120
      %v7600 = vpop.permute.xlu0 %7599
      %7601 = vrot.lane.b32.xlu0 %v6704, 120
      %v7602 = vpop.permute.xlu0 %7601
      %7603 = vrot.lane.b32.xlu0 %v6706, 120
      %v7604 = vpop.permute.xlu0 %7603
      %7605 = vrot.lane.b32.xlu0 %v6708, 120
      %v7606 = vpop.permute.xlu0 %7605
      %7607 = vrot.lane.b32.xlu0 %v6710, 120
      %v7608 = vpop.permute.xlu0 %7607
      %7609 = vrot.lane.b32.xlu0 %v6712, 120
      %v7610 = vpop.permute.xlu0 %7609
      %7611 = vrot.lane.b32.xlu0 %v6714, 120
      %v7612 = vpop.permute.xlu0 %7611
      %7613 = vrot.lane.b32.xlu0 %v6716, 120
      %v7614 = vpop.permute.xlu0 %7613
      %7615 = vrot.lane.b32.xlu0 %v7134, 120
      %v7616 = vpop.permute.xlu0 %7615
      %7617 = vrot.lane.b32.xlu0 %v7136, 120
      %v7618 = vpop.permute.xlu0 %7617
      %7619 = vrot.lane.b32.xlu0 %v7554, 120
      %v7620 = vpop.permute.xlu0 %7619
      %7621 = vrot.lane.b32.xlu0 %v7556, 120
      %v7622 = vpop.permute.xlu0 %7621
      %7623 = vrot.lane.b32.xlu0 %v7558, 120
      %v7624 = vpop.permute.xlu0 %7623
      %v7658 = vadd.f32 %v7514, %v7560
      %v7659 = vadd.f32 %v7515, %v7562
      %v7660 = vadd.f32 %v7516, %v7564
      %v7661 = vadd.f32 %v7517, %v7566
      %v7662 = vadd.f32 %v7518, %v7568
      %v7663 = vadd.f32 %v7519, %v7570
      %v7664 = vadd.f32 %v7520, %v7572
      %v7665 = vadd.f32 %v7521, %v7574
      %v7666 = vadd.f32 %v7522, %v7576
      %v7667 = vadd.f32 %v7523, %v7578
      %v7668 = vadd.f32 %v7524, %v7580
      %v7669 = vadd.f32 %v7525, %v7582
      %v7670 = vadd.f32 %v7526, %v7584
      %v7671 = vadd.f32 %v7527, %v7586
      %v7672 = vadd.f32 %v7528, %v7588
      %v7673 = vadd.f32 %v7529, %v7590
      %v7674 = vadd.f32 %v7530, %v7592
      %v7675 = vadd.f32 %v7531, %v7594
      %v7676 = vadd.f32 %v7532, %v7596
      %v7677 = vadd.f32 %v7533, %v7598
      %v7678 = vadd.f32 %v7534, %v7600
      %v7679 = vadd.f32 %v7535, %v7602
      %v7680 = vadd.f32 %v7536, %v7604
      %v7681 = vadd.f32 %v7537, %v7606
      %v7682 = vadd.f32 %v7538, %v7608
      %v7683 = vadd.f32 %v7539, %v7610
      %v7684 = vadd.f32 %v7540, %v7612
      %v7685 = vadd.f32 %v7541, %v7614
      %v7686 = vadd.f32 %v7542, %v7616
      %v7687 = vadd.f32 %v7543, %v7618
      %v7688 = vadd.f32 %v7544, %v7620
      %v7689 = vadd.f32 %v7545, %v7622
      %v7690 = vadd.f32 %v7546, %v7624
      %v7691 = vld [vmem:[#allocation2 + $0x90] sm:$0x80]
      %v7692 = vld [vmem:[#allocation2 + $0x378] sm:$0xff]
      %v7693 = vld [vmem:[#allocation2 + $0x390] sm:$0x7f]
      %7697 = vrot.lane.b32.xlu0 %v7691, 119
      %v7698 = vpop.permute.xlu0 %7697
      %7699 = vrot.lane.b32.xlu0 %v6363, 119
      %v7700 = vpop.permute.xlu0 %7699
      %7701 = vrot.lane.b32.xlu0 %v6364, 119
      %v7702 = vpop.permute.xlu0 %7701
      %7703 = vrot.lane.b32.xlu0 %v6365, 119
      %v7704 = vpop.permute.xlu0 %7703
      %7705 = vrot.lane.b32.xlu0 %v6366, 119
      %v7706 = vpop.permute.xlu0 %7705
      %7707 = vrot.lane.b32.xlu0 %v6367, 119
      %v7708 = vpop.permute.xlu0 %7707
      %7709 = vrot.lane.b32.xlu0 %v6368, 119
      %v7710 = vpop.permute.xlu0 %7709
      %7711 = vrot.lane.b32.xlu0 %v6369, 119
      %v7712 = vpop.permute.xlu0 %7711
      %7713 = vrot.lane.b32.xlu0 %v6370, 119
      %v7714 = vpop.permute.xlu0 %7713
      %7715 = vrot.lane.b32.xlu0 %v6371, 119
      %v7716 = vpop.permute.xlu0 %7715
      %7717 = vrot.lane.b32.xlu0 %v6372, 119
      %v7718 = vpop.permute.xlu0 %7717
      %7719 = vrot.lane.b32.xlu0 %v6373, 119
      %v7720 = vpop.permute.xlu0 %7719
      %7721 = vrot.lane.b32.xlu0 %v6374, 119
      %v7722 = vpop.permute.xlu0 %7721
      %7723 = vrot.lane.b32.xlu0 %v6375, 119
      %v7724 = vpop.permute.xlu0 %7723
      %7725 = vrot.lane.b32.xlu0 %v6376, 119
      %v7726 = vpop.permute.xlu0 %7725
      %7727 = vrot.lane.b32.xlu0 %v6377, 119
      %v7728 = vpop.permute.xlu0 %7727
      %7729 = vrot.lane.b32.xlu0 %v6378, 119
      %v7730 = vpop.permute.xlu0 %7729
      %7731 = vrot.lane.b32.xlu0 %v6379, 119
      %v7732 = vpop.permute.xlu0 %7731
      %7733 = vrot.lane.b32.xlu0 %v6380, 119
      %v7734 = vpop.permute.xlu0 %7733
      %7735 = vrot.lane.b32.xlu0 %v6381, 119
      %v7736 = vpop.permute.xlu0 %7735
      %7737 = vrot.lane.b32.xlu0 %v6382, 119
      %v7738 = vpop.permute.xlu0 %7737
      %7739 = vrot.lane.b32.xlu0 %v6383, 119
      %v7740 = vpop.permute.xlu0 %7739
      %7741 = vrot.lane.b32.xlu0 %v6384, 119
      %v7742 = vpop.permute.xlu0 %7741
      %7743 = vrot.lane.b32.xlu0 %v6385, 119
      %v7744 = vpop.permute.xlu0 %7743
      %7745 = vrot.lane.b32.xlu0 %v6386, 119
      %v7746 = vpop.permute.xlu0 %7745
      %7747 = vrot.lane.b32.xlu0 %v6387, 119
      %v7748 = vpop.permute.xlu0 %7747
      %7749 = vrot.lane.b32.xlu0 %v6422, 119
      %v7750 = vpop.permute.xlu0 %7749
      %7751 = vrot.lane.b32.xlu0 %v6852, 119
      %v7752 = vpop.permute.xlu0 %7751
      %7753 = vrot.lane.b32.xlu0 %v6989, 119
      %v7754 = vpop.permute.xlu0 %7753
      %7755 = vrot.lane.b32.xlu0 %v7272, 119
      %v7756 = vpop.permute.xlu0 %7755
      %7757 = vrot.lane.b32.xlu0 %v7409, 119
      %v7758 = vpop.permute.xlu0 %7757
      %7759 = vrot.lane.b32.xlu0 %v7692, 119
      %v7760 = vpop.permute.xlu0 %7759
      %7761 = vrot.lane.b32.xlu0 %v7693, 119
      %v7762 = vpop.permute.xlu0 %7761
      %v7796 = vadd.f32 %v7658, %v7698
      %v7797 = vadd.f32 %v7659, %v7700
      %v7798 = vadd.f32 %v7660, %v7702
      %v7799 = vadd.f32 %v7661, %v7704
      %v7800 = vadd.f32 %v7662, %v7706
      %v7801 = vadd.f32 %v7663, %v7708
      %v7802 = vadd.f32 %v7664, %v7710
      %v7803 = vadd.f32 %v7665, %v7712
      %v7804 = vadd.f32 %v7666, %v7714
      %v7805 = vadd.f32 %v7667, %v7716
      %v7806 = vadd.f32 %v7668, %v7718
      %v7807 = vadd.f32 %v7669, %v7720
      %v7808 = vadd.f32 %v7670, %v7722
      %v7809 = vadd.f32 %v7671, %v7724
      %v7810 = vadd.f32 %v7672, %v7726
      %v7811 = vadd.f32 %v7673, %v7728
      %v7812 = vadd.f32 %v7674, %v7730
      %v7813 = vadd.f32 %v7675, %v7732
      %v7814 = vadd.f32 %v7676, %v7734
      %v7815 = vadd.f32 %v7677, %v7736
      %v7816 = vadd.f32 %v7678, %v7738
      %v7817 = vadd.f32 %v7679, %v7740
      %v7818 = vadd.f32 %v7680, %v7742
      %v7819 = vadd.f32 %v7681, %v7744
      %v7820 = vadd.f32 %v7682, %v7746
      %v7821 = vadd.f32 %v7683, %v7748
      %v7822 = vadd.f32 %v7684, %v7750
      %v7823 = vadd.f32 %v7685, %v7752
      %v7824 = vadd.f32 %v7686, %v7754
      %v7825 = vadd.f32 %v7687, %v7756
      %v7826 = vadd.f32 %v7688, %v7758
      %v7827 = vadd.f32 %v7689, %v7760
      %v7828 = vadd.f32 %v7690, %v7762
      %v7829 = vld [vmem:[#allocation2 + $0x390] sm:$0xff]
      %v7831 = vrot.slane %v7692, 1
      %v7832 = vsel %vm1258, %v7413, %v7831
      %v7833 = vrot.slane %v7829, 1
      %v7834 = vsel %vm1258, %v7831, %v7833
      %7835 = vrot.lane.b32.xlu0 %v6466, 118
      %v7836 = vpop.permute.xlu0 %7835
      %7837 = vrot.lane.b32.xlu0 %v6469, 118
      %v7838 = vpop.permute.xlu0 %7837
      %7839 = vrot.lane.b32.xlu0 %v6471, 118
      %v7840 = vpop.permute.xlu0 %7839
      %7841 = vrot.lane.b32.xlu0 %v6473, 118
      %v7842 = vpop.permute.xlu0 %7841
      %7843 = vrot.lane.b32.xlu0 %v6475, 118
      %v7844 = vpop.permute.xlu0 %7843
      %7845 = vrot.lane.b32.xlu0 %v6477, 118
      %v7846 = vpop.permute.xlu0 %7845
      %7847 = vrot.lane.b32.xlu0 %v6479, 118
      %v7848 = vpop.permute.xlu0 %7847
      %7849 = vrot.lane.b32.xlu0 %v6481, 118
      %v7850 = vpop.permute.xlu0 %7849
      %7851 = vrot.lane.b32.xlu0 %v6483, 118
      %v7852 = vpop.permute.xlu0 %7851
      %7853 = vrot.lane.b32.xlu0 %v6485, 118
      %v7854 = vpop.permute.xlu0 %7853
      %7855 = vrot.lane.b32.xlu0 %v6487, 118
      %v7856 = vpop.permute.xlu0 %7855
      %7857 = vrot.lane.b32.xlu0 %v6489, 118
      %v7858 = vpop.permute.xlu0 %7857
      %7859 = vrot.lane.b32.xlu0 %v6491, 118
      %v7860 = vpop.permute.xlu0 %7859
      %7861 = vrot.lane.b32.xlu0 %v6493, 118
      %v7862 = vpop.permute.xlu0 %7861
      %7863 = vrot.lane.b32.xlu0 %v6495, 118
      %v7864 = vpop.permute.xlu0 %7863
      %7865 = vrot.lane.b32.xlu0 %v6497, 118
      %v7866 = vpop.permute.xlu0 %7865
      %7867 = vrot.lane.b32.xlu0 %v6499, 118
      %v7868 = vpop.permute.xlu0 %7867
      %7869 = vrot.lane.b32.xlu0 %v6501, 118
      %v7870 = vpop.permute.xlu0 %7869
      %7871 = vrot.lane.b32.xlu0 %v6503, 118
      %v7872 = vpop.permute.xlu0 %7871
      %7873 = vrot.lane.b32.xlu0 %v6505, 118
      %v7874 = vpop.permute.xlu0 %7873
      %7875 = vrot.lane.b32.xlu0 %v6507, 118
      %v7876 = vpop.permute.xlu0 %7875
      %7877 = vrot.lane.b32.xlu0 %v6509, 118
      %v7878 = vpop.permute.xlu0 %7877
      %7879 = vrot.lane.b32.xlu0 %v6511, 118
      %v7880 = vpop.permute.xlu0 %7879
      %7881 = vrot.lane.b32.xlu0 %v6513, 118
      %v7882 = vpop.permute.xlu0 %7881
      %7883 = vrot.lane.b32.xlu0 %v6515, 118
      %v7884 = vpop.permute.xlu0 %7883
      %7885 = vrot.lane.b32.xlu0 %v6517, 118
      %v7886 = vpop.permute.xlu0 %7885
      %7887 = vrot.lane.b32.xlu0 %v6992, 118
      %v7888 = vpop.permute.xlu0 %7887
      %7889 = vrot.lane.b32.xlu0 %v6994, 118
      %v7890 = vpop.permute.xlu0 %7889
      %7891 = vrot.lane.b32.xlu0 %v7412, 118
      %v7892 = vpop.permute.xlu0 %7891
      %7893 = vrot.lane.b32.xlu0 %v7414, 118
      %v7894 = vpop.permute.xlu0 %7893
      %7895 = vrot.lane.b32.xlu0 %v7832, 118
      %v7896 = vpop.permute.xlu0 %7895
      %7897 = vrot.lane.b32.xlu0 %v7834, 118
      %v7898 = vpop.permute.xlu0 %7897
      %7899 = vrot.lane.b32.xlu0 %v7833, 118
      %v7900 = vpop.permute.xlu0 %7899
      %v7934 = vadd.f32 %v7796, %v7836
      %v7935 = vadd.f32 %v7797, %v7838
      %v7936 = vadd.f32 %v7798, %v7840
      %v7937 = vadd.f32 %v7799, %v7842
      %v7938 = vadd.f32 %v7800, %v7844
      %v7939 = vadd.f32 %v7801, %v7846
      %v7940 = vadd.f32 %v7802, %v7848
      %v7941 = vadd.f32 %v7803, %v7850
      %v7942 = vadd.f32 %v7804, %v7852
      %v7943 = vadd.f32 %v7805, %v7854
      %v7944 = vadd.f32 %v7806, %v7856
      %v7945 = vadd.f32 %v7807, %v7858
      %v7946 = vadd.f32 %v7808, %v7860
      %v7947 = vadd.f32 %v7809, %v7862
      %v7948 = vadd.f32 %v7810, %v7864
      %v7949 = vadd.f32 %v7811, %v7866
      %v7950 = vadd.f32 %v7812, %v7868
      %v7951 = vadd.f32 %v7813, %v7870
      %v7952 = vadd.f32 %v7814, %v7872
      %v7953 = vadd.f32 %v7815, %v7874
      %v7954 = vadd.f32 %v7816, %v7876
      %v7955 = vadd.f32 %v7817, %v7878
      %v7956 = vadd.f32 %v7818, %v7880
      %v7957 = vadd.f32 %v7819, %v7882
      %v7958 = vadd.f32 %v7820, %v7884
      %v7959 = vadd.f32 %v7821, %v7886
      %v7960 = vadd.f32 %v7822, %v7888
      %v7961 = vadd.f32 %v7823, %v7890
      %v7962 = vadd.f32 %v7824, %v7892
      %v7963 = vadd.f32 %v7825, %v7894
      %v7964 = vadd.f32 %v7826, %v7896
      %v7965 = vadd.f32 %v7827, %v7898
      %v7966 = vadd.f32 %v7828, %v7900
      %v7967 = vld [vmem:[#allocation2 + $0xa8] sm:$0xfe]
      %v7968 = vld [vmem:[#allocation2 + $0x3a8] sm:$0x1]
      %v7971 = vrot.slane %v7967, 2
      %v7972 = vsel %vm2018, %v7971, %v6667
      %v7973 = vrot.slane %v7692, 2
      %v7974 = vsel %vm2018, %v7555, %v7973
      %v7975 = vrot.slane %v7829, 2
      %v7976 = vsel %vm2018, %v7973, %v7975
      %v7977 = vrot.slane %v7968, 2
      %v7978 = vsel %vm2018, %v7975, %v7977
      %7979 = vrot.lane.b32.xlu0 %v7971, 117
      %v7980 = vpop.permute.xlu0 %7979
      %7981 = vrot.lane.b32.xlu0 %v7972, 117
      %v7982 = vpop.permute.xlu0 %7981
      %7983 = vrot.lane.b32.xlu0 %v6670, 117
      %v7984 = vpop.permute.xlu0 %7983
      %7985 = vrot.lane.b32.xlu0 %v6672, 117
      %v7986 = vpop.permute.xlu0 %7985
      %7987 = vrot.lane.b32.xlu0 %v6674, 117
      %v7988 = vpop.permute.xlu0 %7987
      %7989 = vrot.lane.b32.xlu0 %v6676, 117
      %v7990 = vpop.permute.xlu0 %7989
      %7991 = vrot.lane.b32.xlu0 %v6678, 117
      %v7992 = vpop.permute.xlu0 %7991
      %7993 = vrot.lane.b32.xlu0 %v6680, 117
      %v7994 = vpop.permute.xlu0 %7993
      %7995 = vrot.lane.b32.xlu0 %v6682, 117
      %v7996 = vpop.permute.xlu0 %7995
      %7997 = vrot.lane.b32.xlu0 %v6684, 117
      %v7998 = vpop.permute.xlu0 %7997
      %7999 = vrot.lane.b32.xlu0 %v6686, 117
      %v8000 = vpop.permute.xlu0 %7999
      %8001 = vrot.lane.b32.xlu0 %v6688, 117
      %v8002 = vpop.permute.xlu0 %8001
      %8003 = vrot.lane.b32.xlu0 %v6690, 117
      %v8004 = vpop.permute.xlu0 %8003
      %8005 = vrot.lane.b32.xlu0 %v6692, 117
      %v8006 = vpop.permute.xlu0 %8005
      %8007 = vrot.lane.b32.xlu0 %v6694, 117
      %v8008 = vpop.permute.xlu0 %8007
      %8009 = vrot.lane.b32.xlu0 %v6696, 117
      %v8010 = vpop.permute.xlu0 %8009
      %8011 = vrot.lane.b32.xlu0 %v6698, 117
      %v8012 = vpop.permute.xlu0 %8011
      %8013 = vrot.lane.b32.xlu0 %v6700, 117
      %v8014 = vpop.permute.xlu0 %8013
      %8015 = vrot.lane.b32.xlu0 %v6702, 117
      %v8016 = vpop.permute.xlu0 %8015
      %8017 = vrot.lane.b32.xlu0 %v6704, 117
      %v8018 = vpop.permute.xlu0 %8017
      %8019 = vrot.lane.b32.xlu0 %v6706, 117
      %v8020 = vpop.permute.xlu0 %8019
      %8021 = vrot.lane.b32.xlu0 %v6708, 117
      %v8022 = vpop.permute.xlu0 %8021
      %8023 = vrot.lane.b32.xlu0 %v6710, 117
      %v8024 = vpop.permute.xlu0 %8023
      %8025 = vrot.lane.b32.xlu0 %v6712, 117
      %v8026 = vpop.permute.xlu0 %8025
      %8027 = vrot.lane.b32.xlu0 %v6714, 117
      %v8028 = vpop.permute.xlu0 %8027
      %8029 = vrot.lane.b32.xlu0 %v6716, 117
      %v8030 = vpop.permute.xlu0 %8029
      %8031 = vrot.lane.b32.xlu0 %v7134, 117
      %v8032 = vpop.permute.xlu0 %8031
      %8033 = vrot.lane.b32.xlu0 %v7136, 117
      %v8034 = vpop.permute.xlu0 %8033
      %8035 = vrot.lane.b32.xlu0 %v7554, 117
      %v8036 = vpop.permute.xlu0 %8035
      %8037 = vrot.lane.b32.xlu0 %v7556, 117
      %v8038 = vpop.permute.xlu0 %8037
      %8039 = vrot.lane.b32.xlu0 %v7974, 117
      %v8040 = vpop.permute.xlu0 %8039
      %8041 = vrot.lane.b32.xlu0 %v7976, 117
      %v8042 = vpop.permute.xlu0 %8041
      %8043 = vrot.lane.b32.xlu0 %v7978, 117
      %v8044 = vpop.permute.xlu0 %8043
      %v8078 = vadd.f32 %v7934, %v7980
      %v8079 = vadd.f32 %v7935, %v7982
      %v8080 = vadd.f32 %v7936, %v7984
      %v8081 = vadd.f32 %v7937, %v7986
      %v8082 = vadd.f32 %v7938, %v7988
      %v8083 = vadd.f32 %v7939, %v7990
      %v8084 = vadd.f32 %v7940, %v7992
      %v8085 = vadd.f32 %v7941, %v7994
      %v8086 = vadd.f32 %v7942, %v7996
      %v8087 = vadd.f32 %v7943, %v7998
      %v8088 = vadd.f32 %v7944, %v8000
      %v8089 = vadd.f32 %v7945, %v8002
      %v8090 = vadd.f32 %v7946, %v8004
      %v8091 = vadd.f32 %v7947, %v8006
      %v8092 = vadd.f32 %v7948, %v8008
      %v8093 = vadd.f32 %v7949, %v8010
      %v8094 = vadd.f32 %v7950, %v8012
      %v8095 = vadd.f32 %v7951, %v8014
      %v8096 = vadd.f32 %v7952, %v8016
      %v8097 = vadd.f32 %v7953, %v8018
      %v8098 = vadd.f32 %v7954, %v8020
      %v8099 = vadd.f32 %v7955, %v8022
      %v8100 = vadd.f32 %v7956, %v8024
      %v8101 = vadd.f32 %v7957, %v8026
      %v8102 = vadd.f32 %v7958, %v8028
      %v8103 = vadd.f32 %v7959, %v8030
      %v8104 = vadd.f32 %v7960, %v8032
      %v8105 = vadd.f32 %v7961, %v8034
      %v8106 = vadd.f32 %v7962, %v8036
      %v8107 = vadd.f32 %v7963, %v8038
      %v8108 = vadd.f32 %v7964, %v8040
      %v8109 = vadd.f32 %v7965, %v8042
      %v8110 = vadd.f32 %v7966, %v8044
      %v8111 = vsub.f32 0.0, %v8078
      %v8112 = vsub.f32 0.0, %v8079
      %v8113 = vsub.f32 0.0, %v8080
      %v8114 = vsub.f32 0.0, %v8081
      %v8115 = vsub.f32 0.0, %v8082
      %v8116 = vsub.f32 0.0, %v8083
      %v8117 = vsub.f32 0.0, %v8084
      %v8118 = vsub.f32 0.0, %v8085
      %v8119 = vsub.f32 0.0, %v8086
      %v8120 = vsub.f32 0.0, %v8087
      %v8121 = vsub.f32 0.0, %v8088
      %v8122 = vsub.f32 0.0, %v8089
      %v8123 = vsub.f32 0.0, %v8090
      %v8124 = vsub.f32 0.0, %v8091
      %v8125 = vsub.f32 0.0, %v8092
      %v8126 = vsub.f32 0.0, %v8093
      %v8127 = vsub.f32 0.0, %v8094
      %v8128 = vsub.f32 0.0, %v8095
      %v8129 = vsub.f32 0.0, %v8096
      %v8130 = vsub.f32 0.0, %v8097
      %v8131 = vsub.f32 0.0, %v8098
      %v8132 = vsub.f32 0.0, %v8099
      %v8133 = vsub.f32 0.0, %v8100
      %v8134 = vsub.f32 0.0, %v8101
      %v8135 = vsub.f32 0.0, %v8102
      %v8136 = vsub.f32 0.0, %v8103
      %v8137 = vsub.f32 0.0, %v8104
      %v8138 = vsub.f32 0.0, %v8105
      %v8139 = vsub.f32 0.0, %v8106
      %v8140 = vsub.f32 0.0, %v8107
      %v8141 = vsub.f32 0.0, %v8108
      %v8142 = vsub.f32 0.0, %v8109
      %v8143 = vsub.f32 0.0, %v8110
      %v8144 = vmul.f32 %v8111, 1.442695
      %v8145 = vpow.pop %v8144
      %v8146 = vmul.f32 %v8112, 1.442695
      %v8147 = vpow.pop %v8146
      %v8148 = vmul.f32 %v8113, 1.442695
      %v8149 = vpow.pop %v8148
      %v8150 = vmul.f32 %v8114, 1.442695
      %v8151 = vpow.pop %v8150
      %v8152 = vmul.f32 %v8115, 1.442695
      %v8153 = vpow.pop %v8152
      %v8154 = vmul.f32 %v8116, 1.442695
      %v8155 = vpow.pop %v8154
      %v8156 = vmul.f32 %v8117, 1.442695
      %v8157 = vpow.pop %v8156
      %v8158 = vmul.f32 %v8118, 1.442695
      %v8159 = vpow.pop %v8158
      %v8160 = vmul.f32 %v8119, 1.442695
      %v8161 = vpow.pop %v8160
      %v8162 = vmul.f32 %v8120, 1.442695
      %v8163 = vpow.pop %v8162
      %v8164 = vmul.f32 %v8121, 1.442695
      %v8165 = vpow.pop %v8164
      %v8166 = vmul.f32 %v8122, 1.442695
      %v8167 = vpow.pop %v8166
      %v8168 = vmul.f32 %v8123, 1.442695
      %v8169 = vpow.pop %v8168
      %v8170 = vmul.f32 %v8124, 1.442695
      %v8171 = vpow.pop %v8170
      %v8172 = vmul.f32 %v8125, 1.442695
      %v8173 = vpow.pop %v8172
      %v8174 = vmul.f32 %v8126, 1.442695
      %v8175 = vpow.pop %v8174
      %v8176 = vmul.f32 %v8127, 1.442695
      %v8177 = vpow.pop %v8176
      %v8178 = vmul.f32 %v8128, 1.442695
      %v8179 = vpow.pop %v8178
      %v8180 = vmul.f32 %v8129, 1.442695
      %v8181 = vpow.pop %v8180
      %v8182 = vmul.f32 %v8130, 1.442695
      %v8183 = vpow.pop %v8182
      %v8184 = vmul.f32 %v8131, 1.442695
      %v8185 = vpow.pop %v8184
      %v8186 = vmul.f32 %v8132, 1.442695
      %v8187 = vpow.pop %v8186
      %v8188 = vmul.f32 %v8133, 1.442695
      %v8189 = vpow.pop %v8188
      %v8190 = vmul.f32 %v8134, 1.442695
      %v8191 = vpow.pop %v8190
      %v8192 = vmul.f32 %v8135, 1.442695
      %v8193 = vpow.pop %v8192
      %v8194 = vmul.f32 %v8136, 1.442695
      %v8195 = vpow.pop %v8194
      %v8196 = vmul.f32 %v8137, 1.442695
      %v8197 = vpow.pop %v8196
      %v8198 = vmul.f32 %v8138, 1.442695
      %v8199 = vpow.pop %v8198
      %v8200 = vmul.f32 %v8139, 1.442695
      %v8201 = vpow.pop %v8200
      %v8202 = vmul.f32 %v8140, 1.442695
      %v8203 = vpow.pop %v8202
      %v8204 = vmul.f32 %v8141, 1.442695
      %v8205 = vpow.pop %v8204
      %v8206 = vmul.f32 %v8142, 1.442695
      %v8207 = vpow.pop %v8206
      %v8208 = vmul.f32 %v8143, 1.442695
      %v8209 = vpow.pop %v8208
      %v8210 = vadd.f32 %v8145, 1.0
      %v8211 = vadd.f32 %v8147, 1.0
      %v8212 = vadd.f32 %v8149, 1.0
      %v8213 = vadd.f32 %v8151, 1.0
      %v8214 = vadd.f32 %v8153, 1.0
      %v8215 = vadd.f32 %v8155, 1.0
      %v8216 = vadd.f32 %v8157, 1.0
      %v8217 = vadd.f32 %v8159, 1.0
      %v8218 = vadd.f32 %v8161, 1.0
      %v8219 = vadd.f32 %v8163, 1.0
      %v8220 = vadd.f32 %v8165, 1.0
      %v8221 = vadd.f32 %v8167, 1.0
      %v8222 = vadd.f32 %v8169, 1.0
      %v8223 = vadd.f32 %v8171, 1.0
      %v8224 = vadd.f32 %v8173, 1.0
      %v8225 = vadd.f32 %v8175, 1.0
      %v8226 = vadd.f32 %v8177, 1.0
      %v8227 = vadd.f32 %v8179, 1.0
      %v8228 = vadd.f32 %v8181, 1.0
      %v8229 = vadd.f32 %v8183, 1.0
      %v8230 = vadd.f32 %v8185, 1.0
      %v8231 = vadd.f32 %v8187, 1.0
      %v8232 = vadd.f32 %v8189, 1.0
      %v8233 = vadd.f32 %v8191, 1.0
      %v8234 = vadd.f32 %v8193, 1.0
      %v8235 = vadd.f32 %v8195, 1.0
      %v8236 = vadd.f32 %v8197, 1.0
      %v8237 = vadd.f32 %v8199, 1.0
      %v8238 = vadd.f32 %v8201, 1.0
      %v8239 = vadd.f32 %v8203, 1.0
      %v8240 = vadd.f32 %v8205, 1.0
      %v8241 = vadd.f32 %v8207, 1.0
      %v8242 = vadd.f32 %v8209, 1.0
      %v8243 = vrcp.pop %v8210
      %v8244 = vmul.f32 1.0, %v8243
      %v8245 = vrcp.pop %v8211
      %v8246 = vmul.f32 1.0, %v8245
      %v8247 = vrcp.pop %v8212
      %v8248 = vmul.f32 1.0, %v8247
      %v8249 = vrcp.pop %v8213
      %v8250 = vmul.f32 1.0, %v8249
      %v8251 = vrcp.pop %v8214
      %v8252 = vmul.f32 1.0, %v8251
      %v8253 = vrcp.pop %v8215
      %v8254 = vmul.f32 1.0, %v8253
      %v8255 = vrcp.pop %v8216
      %v8256 = vmul.f32 1.0, %v8255
      %v8257 = vrcp.pop %v8217
      %v8258 = vmul.f32 1.0, %v8257
      %v8259 = vrcp.pop %v8218
      %v8260 = vmul.f32 1.0, %v8259
      %v8261 = vrcp.pop %v8219
      %v8262 = vmul.f32 1.0, %v8261
      %v8263 = vrcp.pop %v8220
      %v8264 = vmul.f32 1.0, %v8263
      %v8265 = vrcp.pop %v8221
      %v8266 = vmul.f32 1.0, %v8265
      %v8267 = vrcp.pop %v8222
      %v8268 = vmul.f32 1.0, %v8267
      %v8269 = vrcp.pop %v8223
      %v8270 = vmul.f32 1.0, %v8269
      %v8271 = vrcp.pop %v8224
      %v8272 = vmul.f32 1.0, %v8271
      %v8273 = vrcp.pop %v8225
      %v8274 = vmul.f32 1.0, %v8273
      %v8275 = vrcp.pop %v8226
      %v8276 = vmul.f32 1.0, %v8275
      %v8277 = vrcp.pop %v8227
      %v8278 = vmul.f32 1.0, %v8277
      %v8279 = vrcp.pop %v8228
      %v8280 = vmul.f32 1.0, %v8279
      %v8281 = vrcp.pop %v8229
      %v8282 = vmul.f32 1.0, %v8281
      %v8283 = vrcp.pop %v8230
      %v8284 = vmul.f32 1.0, %v8283
      %v8285 = vrcp.pop %v8231
      %v8286 = vmul.f32 1.0, %v8285
      %v8287 = vrcp.pop %v8232
      %v8288 = vmul.f32 1.0, %v8287
      %v8289 = vrcp.pop %v8233
      %v8290 = vmul.f32 1.0, %v8289
      %v8291 = vrcp.pop %v8234
      %v8292 = vmul.f32 1.0, %v8291
      %v8293 = vrcp.pop %v8235
      %v8294 = vmul.f32 1.0, %v8293
      %v8295 = vrcp.pop %v8236
      %v8296 = vmul.f32 1.0, %v8295
      %v8297 = vrcp.pop %v8237
      %v8298 = vmul.f32 1.0, %v8297
      %v8299 = vrcp.pop %v8238
      %v8300 = vmul.f32 1.0, %v8299
      %v8301 = vrcp.pop %v8239
      %v8302 = vmul.f32 1.0, %v8301
      %v8303 = vrcp.pop %v8240
      %v8304 = vmul.f32 1.0, %v8303
      %v8305 = vrcp.pop %v8241
      %v8306 = vmul.f32 1.0, %v8305
      %v8307 = vrcp.pop %v8242
      %v8308 = vmul.f32 1.0, %v8307
      %vm8309 = vcmask 7175
      %8310 = vst.msk [vmem:[%s739 - $0x7] sm:$0x80] %vm8309, %v8244
      %vm8311 = vcmask 7168
      %8312 = vst.msk [vmem:[%s739 + $0x1] sm:$0xff] %vm8311, %v8246
      %8313 = vst.msk [vmem:[%s739 + $0x9] sm:$0xff] %vm8311, %v8248
      %8314 = vst.msk [vmem:[%s739 + $0x11] sm:$0xff] %vm8311, %v8250
      %8315 = vst.msk [vmem:[%s739 + $0x19] sm:$0xff] %vm8311, %v8252
      %8316 = vst.msk [vmem:[%s739 + $0x21] sm:$0xff] %vm8311, %v8254
      %8317 = vst.msk [vmem:[%s739 + $0x29] sm:$0xff] %vm8311, %v8256
      %8318 = vst.msk [vmem:[%s739 + $0x31] sm:$0xff] %vm8311, %v8258
      %8319 = vst.msk [vmem:[%s739 + $0x39] sm:$0xff] %vm8311, %v8260
      %8320 = vst.msk [vmem:[%s739 + $0x41] sm:$0xff] %vm8311, %v8262
      %8321 = vst.msk [vmem:[%s739 + $0x49] sm:$0xff] %vm8311, %v8264
      %8322 = vst.msk [vmem:[%s739 + $0x51] sm:$0xff] %vm8311, %v8266
      %8323 = vst.msk [vmem:[%s739 + $0x59] sm:$0xff] %vm8311, %v8268
      %8324 = vst.msk [vmem:[%s739 + $0x61] sm:$0xff] %vm8311, %v8270
      %8325 = vst.msk [vmem:[%s739 + $0x69] sm:$0xff] %vm8311, %v8272
      %8326 = vst.msk [vmem:[%s739 + $0x71] sm:$0xff] %vm8311, %v8274
      %8327 = vst.msk [vmem:[%s739 + $0x79] sm:$0xff] %vm8311, %v8276
      %8328 = vst.msk [vmem:[%s739 + $0x81] sm:$0xff] %vm8311, %v8278
      %8329 = vst.msk [vmem:[%s739 + $0x89] sm:$0xff] %vm8311, %v8280
      %8330 = vst.msk [vmem:[%s739 + $0x91] sm:$0xff] %vm8311, %v8282
      %8331 = vst.msk [vmem:[%s739 + $0x99] sm:$0xff] %vm8311, %v8284
      %8332 = vst.msk [vmem:[%s739 + $0xa1] sm:$0xff] %vm8311, %v8286
      %8333 = vst.msk [vmem:[%s739 + $0xa9] sm:$0xff] %vm8311, %v8288
      %8334 = vst.msk [vmem:[%s739 + $0xb1] sm:$0xff] %vm8311, %v8290
      %8335 = vst.msk [vmem:[%s739 + $0xb9] sm:$0xff] %vm8311, %v8292
      %8336 = vst.msk [vmem:[%s739 + $0xc1] sm:$0xff] %vm8311, %v8294
      %8337 = vst.msk [vmem:[%s739 + $0xc9] sm:$0xff] %vm8311, %v8296
      %8338 = vst.msk [vmem:[%s739 + $0xd1] sm:$0xff] %vm8311, %v8298
      %8339 = vst.msk [vmem:[%s739 + $0xd9] sm:$0xff] %vm8311, %v8300
      %8340 = vst.msk [vmem:[%s739 + $0xe1] sm:$0xff] %vm8311, %v8302
      %8341 = vst.msk [vmem:[%s739 + $0xe9] sm:$0xff] %vm8311, %v8304
      %8342 = vst.msk [vmem:[%s739 + $0xf1] sm:$0xff] %vm8311, %v8306
      %vm8343 = vcmask 6144
      %8344 = vst.msk [vmem:[%s739 + $0xf9] sm:$0x7f] %vm8343, %v8308
      %p8345 = scmp.lt.s32.totalorder %s37, 1
      %s8346 = scalar_select %p8345, %s37, 1
      %s8347 = smul.addr %s8346, 32
      %s8348 = smul.addr %s8347, 8
      %s8349 = scalar_lea.vmem %s24, %s8348
      // Predicated region
      $region117: #{convae_forward.1} parent=115 // pred_check
        %p8350 = pneg %p564
      $region118: #{convae_forward.1} parent=115 // pred_check_branch
        %8352 = sbr.rel (%p8350) target = $region120
      $region119: #{convae_forward.1} parent=115 // pred_region
        _
      $region120: #{convae_forward.1} parent=115 // pred_fallthru
        _
    $region116: #{convae_forward.1} parent=5 // pred_fallthru
      _
    %p8353 = scmp.le.s32.totalorder 2, %s32
    // Predicated region
    $region121: #{convae_forward.1} parent=5 // pred_check
      %p8354 = pneg %p8353
    $region122: #{convae_forward.1} parent=5 // pred_check_branch
      %8356 = sbr.rel (%p8354) target = $region124
    $region123: #{convae_forward.1} parent=5 // pred_region
      %s8357 = ssub.s32 %s32, 2
      // Predicated region
      $region125: #{convae_forward.1} parent=123 // pred_check
        %p8358 = pneg %p570
      $region126: #{convae_forward.1} parent=123 // pred_check_branch
        %8360 = sbr.rel (%p8358) target = $region128
      $region127: #{convae_forward.1} parent=123 // pred_region
        %p8361 = scmp.lt.s32.totalorder %s38, 1
        %s8362 = scalar_select %p8361, %s38, 1
        %s8363 = smul.addr %s8362, 32
        %s8364 = smul.addr %s8363, 8
        %s8365 = scalar_lea.vmem %s24, %s8364
      $region128: #{convae_forward.1} parent=123 // pred_fallthru
        _
    $region124: #{convae_forward.1} parent=5 // pred_fallthru
      _
  $region6: #{convae_forward.1} parent=0 // loop_footer
    %s36 = sadd.s32 1, %s32
  $region7: #{convae_forward.1} parent=0 // loop_footer_branch
    %31 = sbr.rel target = $region3
  $region8: #{convae_forward.1} parent=0 // loop_exit
    _

</llo_original>
